<compile_context>
chip_gen: v5e
topology: v5e:2x2
jax: 0.10.0
libtpu: 0.0.40
codegen_flags: <defaults>
</compile_context>

<pallas_src>
import functools

import jax
import jax.numpy as jnp
from jax.experimental import pallas as pl
from jax.experimental.pallas import tpu as pltpu

MAXVAL = 1e4   # kornia.morphology default max_val (geodesic border sentinel)
PAD = 2        # single padding geometry (5x5 morpho halo) for the MRM block


# ------------------------------------------------------------ in-kernel ops --
def _conv_cols(src, col_ref, base, Wp, M, K, cin):
    """im2col: fill col_ref[:K*K*cin] with the K*K shifted taps of the padded
    slab.  src(off) -> (cin, M) slice at flat offset off."""
    for dy in range(K):
        for dx in range(K):
            t = dy * K + dx
            off = base + dy * Wp + dx
            col_ref[t * cin:(t + 1) * cin, :] = src(off)


def _col_matmul(w_ref, b_ref, col_ref, rows):
    """Single deep-contraction MXU matmul: (Cout, rows) x (rows, M), bf16
    operands, f32 accumulate, f32 bias add."""
    return jnp.dot(w_ref[...],
                   col_ref[0:rows, :].astype(jnp.bfloat16),
                   preferred_element_type=jnp.float32) + b_ref[...]


def _rm_block_tail(x1, xres, w2_ref, b2_ref, w3_ref, b3_ref,
                   col_ref, pad1_ref, pad2_ref, cmask, Wp, M, K):
    """Given x1 = conv1(x) and xres = conv_res(x) (shared-LHS matmul already
    done), run conv2/conv3 via im2col on re-padded VMEM slabs and return the
    assembled RMBlock output (f, M).  pad1/pad2 borders are pre-zeroed by the
    caller; only the interior is stored per item."""
    E = PAD * Wp + PAD            # flat offset of the valid interior
    base = Wp + 1                 # conv taps: slab pad = 2, conv pad = 1
    f1 = pad1_ref.shape[0]
    f2 = pad2_ref.shape[0]
    pad1_ref[:, E:E + M] = x1 * cmask
    _conv_cols(lambda off: pad1_ref[:, off:off + M], col_ref, base, Wp, M, K, f1)
    x2 = _col_matmul(w2_ref, b2_ref, col_ref, K * K * f1)
    pad2_ref[:, E:E + M] = x2 * cmask
    _conv_cols(lambda off: pad2_ref[:, off:off + M], col_ref, base, Wp, M, K, f2)
    x3 = _col_matmul(w3_ref, b3_ref, col_ref, K * K * f2)
    return jnp.concatenate([x1, x2, x3], axis=0) + xres


# ---------------------------------------------------------------- kernels ----
def _rm1_kernel(x_ref, w1r_ref, b1r_ref, w2_ref, b2_ref, w3_ref, b3_ref,
                cmask_ref, o_ref, col_ref, pad1_ref, pad2_ref, *, Wp, H, K):
    """Fused RMBlock1 (4 convs + concat + residual); outputs the interior-only
    (f, M) slab (garbage columns zeroed), single dense store per item."""
    M = H * Wp
    base = Wp + 1
    cmask = cmask_ref[...]                        # (1, M) valid-column mask
    f1 = pad1_ref.shape[0]
    cin = w1r_ref.shape[1] // (K * K)
    # zero pad-scratch borders once per grid step (interior rewritten per item)
    pad1_ref[...] = jnp.zeros_like(pad1_ref)
    pad2_ref[...] = jnp.zeros_like(pad2_ref)
    for b in range(x_ref.shape[0]):               # folded batch items
        _conv_cols(lambda off, b=b: x_ref[b, :, off:off + M],
                   col_ref, base, Wp, M, K, cin)
        y = _col_matmul(w1r_ref, b1r_ref, col_ref, K * K * cin)   # c1 + cres
        x1, xres = y[:f1], y[f1:]
        out = _rm_block_tail(x1, xres, w2_ref, b2_ref, w3_ref, b3_ref,
                             col_ref, pad1_ref, pad2_ref, cmask, Wp, M, K)
        o_ref[b] = out * cmask


def _tail_kernel(x_ref, w1r_ref, b1r_ref, w2_ref, b2_ref, w3_ref, b3_ref,
                 nd_ref, ne_ref, cmask_ref, o_ref,
                 xpad_ref, col_ref, pad1_ref, pad2_ref, *, Wp, H, K, KM):
    """Fused: quadratic dilation - erosion (24 taps, pre-combined offset+
    sentinel constants, center tap skipped) + RMBlock2 + residual add.
    The stage-1 interior is re-padded in VMEM; the inner-3x3 morphology taps
    double as the rm2 conv1/res im2col rows (each tap loaded once)."""
    M = H * Wp
    E = PAD * Wp + PAD
    cmask = cmask_ref[...]
    f1 = pad1_ref.shape[0]
    f = x_ref.shape[1]
    ctr = KM // 2
    xpad_ref[...] = jnp.zeros_like(xpad_ref)      # zero border once per step
    pad1_ref[...] = jnp.zeros_like(pad1_ref)
    pad2_ref[...] = jnp.zeros_like(pad2_ref)
    for b in range(x_ref.shape[0]):
        xpad_ref[:, E:E + M] = x_ref[b]           # rebuild padded slab in VMEM
        d = None
        e = None
        for i in range(KM):
            for j in range(KM):
                off = i * Wp + j
                t = i * KM + j
                xv = xpad_ref[:, off:off + M]     # one load, shared below
                if not (i == ctr and j == ctr):   # kernel[center]=0: skip tap
                    td = xv + nd_ref[t:t + 1, off:off + M]
                    te = xv + ne_ref[t:t + 1, off:off + M]
                    d = td if d is None else jnp.maximum(d, td)
                    e = te if e is None else jnp.minimum(e, te)
                if (PAD - 1 <= i < PAD - 1 + K) and (PAD - 1 <= j < PAD - 1 + K):
                    tc = (i - (PAD - 1)) * K + (j - (PAD - 1))
                    col_ref[tc * f:(tc + 1) * f, :] = xv     # rm2 im2col row
        y = _col_matmul(w1r_ref, b1r_ref, col_ref, K * K * f)   # c1 + cres
        x1, xres = y[:f1], y[f1:]
        rm = _rm_block_tail(x1, xres, w2_ref, b2_ref, w3_ref, b3_ref,
                            col_ref, pad1_ref, pad2_ref, cmask, Wp, M, K)
        o_ref[b] = (d - e) + rm


def _sepconv_kernel(x_ref, w_ref, b_ref, o_ref, col_ref, *, Wp, H, K):
    """SeparableConvolution with the 1x1 pointwise conv folded into the 3x3
    ("depthwise" in the reference is a plain nn.Conv2d): one im2col matmul."""
    M = H * Wp
    cin = w_ref.shape[1] // (K * K)
    for b in range(x_ref.shape[0]):
        _conv_cols(lambda off, b=b: x_ref[b, :, off:off + M],
                   col_ref, 0, Wp, M, K, cin)
        o_ref[b] = _col_matmul(w_ref, b_ref, col_ref, K * K * cin)


# --------------------------------------------------------------- wrappers ----
def quad_neighborhood(k1, k2, ksize=5):
    """QuadraticMorpho structuring element (scale=None).  The kornia kernel
    mask (5x5 ones, center 0) is realised by skipping the center tap."""
    c = jnp.arange(-(ksize // 2), ksize // 2 + 1, dtype=jnp.float32)
    X, Y = jnp.meshgrid(c, c, indexing="xy")
    se = k1 * X ** 2 + k2 * Y ** 2
    se = se / jnp.max(se)
    return -se


def _flatten_padded(x, p):
    """(N, C, H, W) -> zero-padded (N, C, (H+2p)*(W+2p) + 2p) flat slab."""
    N, C, H, W = x.shape
    Hp, Wp = H + 2 * p, W + 2 * p
    xs = jnp.pad(x, ((0, 0), (0, 0), (p, p), (p, p)))
    xs = xs.reshape(N, C, Hp * Wp)
    xs = jnp.pad(xs, ((0, 0), (0, 0), (0, 2 * p)))   # halo for the last tap row
    return xs, Wp


def _wflat(w):
    """HWIO (K,K,Cin,Cout) -> (Cout, K*K*Cin), tap-major then Cin."""
    K, _, Cin, Cout = w.shape
    return jnp.transpose(w, (3, 0, 1, 2)).reshape(Cout, K * K * Cin)


def _rm_weights(prm):
    """Stack conv1 and conv_res (identical RHS) into one MXU LHS; bf16 weights
    (f32 bias) so the MXU runs native bf16 passes."""
    w1r = jnp.concatenate([_wflat(prm["w1"]), _wflat(prm["wres"])], axis=0)
    b1r = jnp.concatenate([prm["b1"], prm["bres"]]).reshape(-1, 1)
    return (w1r.astype(jnp.bfloat16), b1r,
            _wflat(prm["w2"]).astype(jnp.bfloat16), prm["b2"].reshape(-1, 1),
            _wflat(prm["w3"]).astype(jnp.bfloat16), prm["b3"].reshape(-1, 1))


def _vmem_limit_bytes():
    """Generation-aware VMEM limit (v5e/v6e: 128 MiB phys, v7x: 64 MiB)."""
    cap = 128 * 1024 * 1024
    try:
        info_fn = getattr(pltpu, "get_tpu_info", None)
        if info_fn is not None:
            cap = int(getattr(info_fn(), "vmem_capacity_bytes", cap))
    except Exception:
        pass
    return int(min(max(cap - 16 * 1024 * 1024, 24 * 1024 * 1024),
                   112 * 1024 * 1024))


def _pick_nb(n, item_bytes, fixed_bytes, budget, max_nb=8, min_steps=4):
    """Fold several batch items per grid step (amortize ~0.35us/step) while
    keeping >=4 grid steps (>=2 per TensorCore on 2-TC v7x) and fitting the
    double-buffered per-step working set in the VMEM budget."""
    avail = max(budget - fixed_bytes, item_bytes)
    nb = int(max(1, min(n, max_nb, avail // max(item_bytes, 1))))
    steps = min(min_steps, n)
    while nb > 1 and (n % nb != 0 or n // nb < steps):
        nb -= 1
    return nb


def mpmrm_forward(x_nchw, params):
    x = x_nchw.astype(jnp.float32)
    B, C, H, W = x.shape
    assert H % 2 == 0 and W % 2 == 0
    h, w = H // 2, W // 2
    N = B * 4
    KC = 3     # RMBlock / sepconv conv kernel size
    KM = 5     # morphology kernel size
    # 'b c (nh h) (nw w) -> (b nh nw) c h w'
    xq = (x.reshape(B, C, 2, h, 2, w)
           .transpose(0, 2, 4, 1, 3, 5)
           .reshape(N, C, h, w))

    xs, Wp = _flatten_padded(xq, PAD)         # pad once for the whole MRM block
    L = xs.shape[-1]
    M = h * Wp
    f1 = params["rm1"]["w1"].shape[-1]
    f2 = params["rm1"]["w2"].shape[-1]
    f3 = params["rm1"]["w3"].shape[-1]
    f = f1 + f2 + f3

    # static masks: valid-column mask over the compact (h, Wp) grid and the
    # +-MAXVAL border sentinel over the padded slab
    cmask = jnp.pad(jnp.ones((h, w), jnp.float32),
                    ((0, 0), (0, Wp - w))).reshape(1, M)
    bmask = jnp.pad(jnp.zeros((h, w), jnp.float32),
                    ((PAD, PAD), (PAD, PAD)), constant_values=1.0).reshape(1, -1)
    bmask = jnp.pad(bmask, ((0, 0), (0, 2 * PAD)), constant_values=1.0) * MAXVAL

    # quadratic structuring elements (kornia flips the SE for dilation),
    # pre-combined with the border sentinel: one VPU add per morphology tap.
    nd = jnp.flip(quad_neighborhood(params["dil_k1"], params["dil_k2"], KM),
                  axis=(0, 1)).reshape(-1, 1)
    ne = quad_neighborhood(params["ero_k1"], params["ero_k2"], KM).reshape(-1, 1)
    ndc = nd - bmask                          # (KM*KM, L): dilation = max(x+ndc)
    nec = bmask - ne                          # (KM*KM, L): erosion  = min(x+nec)

    rm1w = _rm_weights(params["rm1"])
    rm2w = _rm_weights(params["rm2"])

    vmem_limit = _vmem_limit_bytes()
    budget = vmem_limit - 8 * 1024 * 1024     # headroom for compiler temps
    cparams = pltpu.CompilerParams(dimension_semantics=("parallel",),
                                   vmem_limit_bytes=vmem_limit)

    # ---- stage 1: fused RMBlock1 (im2col convs), interior-only output ----
    item1 = 4 * (2 * C * L + 2 * f * M + 8 * f * M)
    fixed1 = 4 * (KC * KC * max(C, f1, f2) * M + (f1 + f2) * L) + (2 << 20)
    nb1 = _pick_nb(N, item1, fixed1, budget)
    xr = pl.pallas_call(
        functools.partial(_rm1_kernel, Wp=Wp, H=h, K=KC),
        out_shape=jax.ShapeDtypeStruct((N, f, M), jnp.float32),
        grid=(N // nb1,),
        in_specs=[pl.BlockSpec((nb1, C, L), lambda i: (i, 0, 0))]
                 + [pl.BlockSpec(a.shape, lambda i: (0, 0)) for a in rm1w]
                 + [pl.BlockSpec((1, M), lambda i: (0, 0))],
        out_specs=pl.BlockSpec((nb1, f, M), lambda i: (i, 0, 0)),
        scratch_shapes=[pltpu.VMEM((KC * KC * max(C, f1, f2), M), jnp.float32),
                        pltpu.VMEM((f1, L), jnp.float32),
                        pltpu.VMEM((f2, L), jnp.float32)],
        compiler_params=cparams,
    )(xs, *rm1w, cmask)

    # ---- stage 2: morphological gradient + RMBlock2 + add, fused ----
    item2 = 4 * (2 * f * M + 2 * f * M + 10 * f * M)
    fixed2 = 4 * (f * L + KC * KC * max(f, f1, f2) * M + (f1 + f2) * L
                  + 2 * KM * KM * L) + (2 << 20)
    nb2 = _pick_nb(N, item2, fixed2, budget)
    y = pl.pallas_call(
        functools.partial(_tail_kernel, Wp=Wp, H=h, K=KC, KM=KM),
        out_shape=jax.ShapeDtypeStruct((N, f, M), jnp.float32),
        grid=(N // nb2,),
        in_specs=[pl.BlockSpec((nb2, f, M), lambda i: (i, 0, 0))]
                 + [pl.BlockSpec(a.shape, lambda i: (0, 0)) for a in rm2w]
                 + [pl.BlockSpec((KM * KM, L), lambda i: (0, 0)),
                    pl.BlockSpec((KM * KM, L), lambda i: (0, 0)),
                    pl.BlockSpec((1, M), lambda i: (0, 0))],
        out_specs=pl.BlockSpec((nb2, f, M), lambda i: (i, 0, 0)),
        scratch_shapes=[pltpu.VMEM((f, L), jnp.float32),
                        pltpu.VMEM((KC * KC * max(f, f1, f2), M), jnp.float32),
                        pltpu.VMEM((f1, L), jnp.float32),
                        pltpu.VMEM((f2, L), jnp.float32)],
        compiler_params=cparams,
    )(xr, *rm2w, ndc, nec, cmask)

    # crop garbage columns, reassemble '(b nh nw) c h w -> b c (nh h) (nw w)'
    yq = y.reshape(N, f, h, Wp)[:, :, :, :w]
    yf = (yq.reshape(B, 2, 2, f, h, w)
            .transpose(0, 3, 1, 4, 2, 5)
            .reshape(B, f, H, W))

    # ---- stage 3: SeparableConvolution (1x1 folded into the 3x3) ----
    ys, Wp2 = _flatten_padded(yf, 1)
    L2 = ys.shape[-1]
    M2 = H * Wp2
    dwf = _wflat(params["dw_w"])                       # (f, 9f)
    pwf = _wflat(params["pw_w"])                       # (Cout, f)
    wc = jnp.dot(pwf, dwf).astype(jnp.bfloat16)        # composed (Cout, 9f)
    bc = (jnp.dot(pwf, params["dw_b"].reshape(-1, 1))
          + params["pw_b"].reshape(-1, 1))             # composed bias, f32
    Cout = wc.shape[0]
    item3 = 4 * (2 * f * L2 + 2 * Cout * M2 + 2 * Cout * M2)
    fixed3 = 4 * (KC * KC * f * M2) + (2 << 20)
    nb3 = _pick_nb(B, item3, fixed3, budget)
    out = pl.pallas_call(
        functools.partial(_sepconv_kernel, Wp=Wp2, H=H, K=KC),
        out_shape=jax.ShapeDtypeStruct((B, Cout, M2), jnp.float32),
        grid=(B // nb3,),
        in_specs=[pl.BlockSpec((nb3, f, L2), lambda i: (i, 0, 0)),
                  pl.BlockSpec(wc.shape, lambda i: (0, 0)),
                  pl.BlockSpec(bc.shape, lambda i: (0, 0))],
        out_specs=pl.BlockSpec((nb3, Cout, M2), lambda i: (i, 0, 0)),
        scratch_shapes=[pltpu.VMEM((KC * KC * f, M2), jnp.float32)],
        compiler_params=cparams,
    )(ys, wc, bc)
    return out.reshape(B, Cout, H, Wp2)[:, :, :, :W]


# ------------------------------------------------------------------ params ----
def init_params(key, in_channels, f1, f2, f3, out_channels):
    f = f1 + f2 + f3
    keys = iter(jax.random.split(key, 32))

    def conv_p(cin, cout, k):
        bound = 1.0 / (cin * k * k) ** 0.5
        w = jax.random.uniform(next(keys), (k, k, cin, cout), jnp.float32,
                               -bound, bound)
        b = jax.random.uniform(next(keys), (cout,), jnp.float32, -bound, bound)
        return w, b

    rm1 = {}
    rm1["w1"], rm1["b1"] = conv_p(in_channels, f1, 3)
    rm1["w2"], rm1["b2"] = conv_p(f1, f2, 3)
    rm1["w3"], rm1["b3"] = conv_p(f2, f3, 3)
    rm1["wres"], rm1["bres"] = conv_p(in_channels, f, 3)
    rm2 = {}
    rm2["w1"], rm2["b1"] = conv_p(f, f1, 3)
    rm2["w2"], rm2["b2"] = conv_p(f1, f2, 3)
    rm2["w3"], rm2["b3"] = conv_p(f2, f3, 3)
    rm2["wres"], rm2["bres"] = conv_p(f, f, 3)
    dw_w, dw_b = conv_p(f, f, 3)
    pw_w, pw_b = conv_p(f, out_channels, 1)
    ero_k1 = jax.random.uniform(next(keys), (1,), minval=0.1, maxval=1.0)
    ero_k2 = jax.random.uniform(next(keys), (1,), minval=0.1, maxval=1.0)
    dil_k1 = jax.random.uniform(next(keys), (1,), minval=0.1, maxval=1.0)
    dil_k2 = jax.random.uniform(next(keys), (1,), minval=0.1, maxval=1.0)
    return dict(rm1=rm1, rm2=rm2, dw_w=dw_w, dw_b=dw_b, pw_w=pw_w, pw_b=pw_b,
                ero_k1=ero_k1, ero_k2=ero_k2, dil_k1=dil_k1, dil_k2=dil_k2)


if __name__ == "__main__":
    key = jax.random.PRNGKey(0)
    kx, kp = jax.random.split(key)
    B, C, H, W = 2, 4, 16, 16
    f1, f2, f3, out_channels = 4, 4, 8, 8
    x = jax.random.normal(kx, (B, C, H, W), jnp.float32)
    params = init_params(kp, C, f1, f2, f3, out_channels)

    fwd = jax.jit(mpmrm_forward)
    out = fwd(x, params)
    jax.block_until_ready(out)
    assert out.shape == (B, out_channels, H, W), out.shape
    assert out.dtype == jnp.float32
    print("KERNEL_OK")
</pallas_src>

<mosaic_0001>
module attributes {stable_mosaic.version = 11 : i64} {
  func.func @_rm1_kernel(%arg0: i32, %arg1: memref<2x4x148xf32, #tpu.memory_space<vmem>>, %arg2: memref<20x36xbf16, #tpu.memory_space<vmem>>, %arg3: memref<20x1xf32, #tpu.memory_space<vmem>>, %arg4: memref<4x36xbf16, #tpu.memory_space<vmem>>, %arg5: memref<4x1xf32, #tpu.memory_space<vmem>>, %arg6: memref<8x36xbf16, #tpu.memory_space<vmem>>, %arg7: memref<8x1xf32, #tpu.memory_space<vmem>>, %arg8: memref<1x96xf32, #tpu.memory_space<vmem>>, %arg9: memref<2x16x96xf32, #tpu.memory_space<vmem>>, %arg10: memref<36x96xf32, #tpu.memory_space<vmem>>, %arg11: memref<4x148xf32, #tpu.memory_space<vmem>>, %arg12: memref<4x148xf32, #tpu.memory_space<vmem>>) attributes {dimension_semantics = [#tpu.dimension_semantics<parallel>], iteration_bounds = array<i64: 4>, scalar_prefetch = 0 : i64, scratch_operands = 3 : i64, tpu.core_type = #tpu.core_type<tc>, window_params = [{transform_indices = @transform_0, window_bounds = array<i64: 2, 4, 148>}, {pipeline_mode = #tpu.pipeline_mode<synchronous>, transform_indices = @transform_1, window_bounds = array<i64: 20, 36>}, {pipeline_mode = #tpu.pipeline_mode<synchronous>, transform_indices = @transform_2, window_bounds = array<i64: 20, 1>}, {pipeline_mode = #tpu.pipeline_mode<synchronous>, transform_indices = @transform_3, window_bounds = array<i64: 4, 36>}, {pipeline_mode = #tpu.pipeline_mode<synchronous>, transform_indices = @transform_4, window_bounds = array<i64: 4, 1>}, {pipeline_mode = #tpu.pipeline_mode<synchronous>, transform_indices = @transform_5, window_bounds = array<i64: 8, 36>}, {pipeline_mode = #tpu.pipeline_mode<synchronous>, transform_indices = @transform_6, window_bounds = array<i64: 8, 1>}, {pipeline_mode = #tpu.pipeline_mode<synchronous>, transform_indices = @transform_7, window_bounds = array<i64: 1, 96>}, {transform_indices = @transform_8, window_bounds = array<i64: 2, 16, 96>}]} {
    %c0 = arith.constant 0 : index
    %c0_0 = arith.constant 0 : index
    %0 = vector.load %arg8[%c0, %c0_0] : memref<1x96xf32, #tpu.memory_space<vmem>>, vector<1x96xf32>
    %cst = arith.constant 0.000000e+00 : f32
    %1 = vector.broadcast %cst : f32 to vector<4x148xf32>
    %c0_1 = arith.constant 0 : index
    %c0_2 = arith.constant 0 : index
    %2 = vector.load %arg11[%c0_1, %c0_2] : memref<4x148xf32, #tpu.memory_space<vmem>>, vector<4x148xf32>
    tpu.vector_store %arg11[%c0_1, %c0_2], %1 {strides = array<i32>} : memref<4x148xf32, #tpu.memory_space<vmem>>, vector<4x148xf32>,
    %cst_3 = arith.constant 0.000000e+00 : f32
    %3 = vector.broadcast %cst_3 : f32 to vector<4x148xf32>
    %c0_4 = arith.constant 0 : index
    %c0_5 = arith.constant 0 : index
    %4 = vector.load %arg12[%c0_4, %c0_5] : memref<4x148xf32, #tpu.memory_space<vmem>>, vector<4x148xf32>
    tpu.vector_store %arg12[%c0_4, %c0_5], %3 {strides = array<i32>} : memref<4x148xf32, #tpu.memory_space<vmem>>, vector<4x148xf32>,
    %c0_6 = arith.constant 0 : index
    %c0_7 = arith.constant 0 : index
    %c13 = arith.constant 13 : index
    %5 = vector.load %arg1[%c0_6, %c0_7, %c13] : memref<2x4x148xf32, #tpu.memory_space<vmem>>, vector<1x4x96xf32>
    %6 = vector.shape_cast %5 : vector<1x4x96xf32> to vector<4x96xf32>
    %c0_8 = arith.constant 0 : index
    %c0_9 = arith.constant 0 : index
    %7 = vector.load %arg10[%c0_8, %c0_9] : memref<36x96xf32, #tpu.memory_space<vmem>>, vector<4x96xf32>
    tpu.vector_store %arg10[%c0_8, %c0_9], %6 {strides = array<i32>} : memref<36x96xf32, #tpu.memory_space<vmem>>, vector<4x96xf32>,
    %c0_10 = arith.constant 0 : index
    %c0_11 = arith.constant 0 : index
    %c14 = arith.constant 14 : index
    %8 = vector.load %arg1[%c0_10, %c0_11, %c14] : memref<2x4x148xf32, #tpu.memory_space<vmem>>, vector<1x4x96xf32>
    %9 = vector.shape_cast %8 : vector<1x4x96xf32> to vector<4x96xf32>
    %c4 = arith.constant 4 : index
    %c0_12 = arith.constant 0 : index
    %10 = vector.load %arg10[%c4, %c0_12] : memref<36x96xf32, #tpu.memory_space<vmem>>, vector<4x96xf32>
    tpu.vector_store %arg10[%c4, %c0_12], %9 {strides = array<i32>} : memref<36x96xf32, #tpu.memory_space<vmem>>, vector<4x96xf32>,
    %c0_13 = arith.constant 0 : index
    %c0_14 = arith.constant 0 : index
    %c15 = arith.constant 15 : index
    %11 = vector.load %arg1[%c0_13, %c0_14, %c15] : memref<2x4x148xf32, #tpu.memory_space<vmem>>, vector<1x4x96xf32>
    %12 = vector.shape_cast %11 : vector<1x4x96xf32> to vector<4x96xf32>
    %c8 = arith.constant 8 : index
    %c0_15 = arith.constant 0 : index
    %13 = vector.load %arg10[%c8, %c0_15] : memref<36x96xf32, #tpu.memory_space<vmem>>, vector<4x96xf32>
    tpu.vector_store %arg10[%c8, %c0_15], %12 {strides = array<i32>} : memref<36x96xf32, #tpu.memory_space<vmem>>, vector<4x96xf32>,
    %c0_16 = arith.constant 0 : index
    %c0_17 = arith.constant 0 : index
    %c25 = arith.constant 25 : index
    %14 = vector.load %arg1[%c0_16, %c0_17, %c25] : memref<2x4x148xf32, #tpu.memory_space<vmem>>, vector<1x4x96xf32>
    %15 = vector.shape_cast %14 : vector<1x4x96xf32> to vector<4x96xf32>
    %c12 = arith.constant 12 : index
    %c0_18 = arith.constant 0 : index
    %16 = vector.load %arg10[%c12, %c0_18] : memref<36x96xf32, #tpu.memory_space<vmem>>, vector<4x96xf32>
    tpu.vector_store %arg10[%c12, %c0_18], %15 {strides = array<i32>} : memref<36x96xf32, #tpu.memory_space<vmem>>, vector<4x96xf32>,
    %c0_19 = arith.constant 0 : index
    %c0_20 = arith.constant 0 : index
    %c26 = arith.constant 26 : index
    %17 = vector.load %arg1[%c0_19, %c0_20, %c26] : memref<2x4x148xf32, #tpu.memory_space<vmem>>, vector<1x4x96xf32>
    %18 = vector.shape_cast %17 : vector<1x4x96xf32> to vector<4x96xf32>
    %c16 = arith.constant 16 : index
    %c0_21 = arith.constant 0 : index
    %19 = vector.load %arg10[%c16, %c0_21] : memref<36x96xf32, #tpu.memory_space<vmem>>, vector<4x96xf32>
    tpu.vector_store %arg10[%c16, %c0_21], %18 {strides = array<i32>} : memref<36x96xf32, #tpu.memory_space<vmem>>, vector<4x96xf32>,
    %c0_22 = arith.constant 0 : index
    %c0_23 = arith.constant 0 : index
    %c27 = arith.constant 27 : index
    %20 = vector.load %arg1[%c0_22, %c0_23, %c27] : memref<2x4x148xf32, #tpu.memory_space<vmem>>, vector<1x4x96xf32>
    %21 = vector.shape_cast %20 : vector<1x4x96xf32> to vector<4x96xf32>
    %c20 = arith.constant 20 : index
    %c0_24 = arith.constant 0 : index
    %22 = vector.load %arg10[%c20, %c0_24] : memref<36x96xf32, #tpu.memory_space<vmem>>, vector<4x96xf32>
    tpu.vector_store %arg10[%c20, %c0_24], %21 {strides = array<i32>} : memref<36x96xf32, #tpu.memory_space<vmem>>, vector<4x96xf32>,
    %c0_25 = arith.constant 0 : index
    %c0_26 = arith.constant 0 : index
    %c37 = arith.constant 37 : index
    %23 = vector.load %arg1[%c0_25, %c0_26, %c37] : memref<2x4x148xf32, #tpu.memory_space<vmem>>, vector<1x4x96xf32>
    %24 = vector.shape_cast %23 : vector<1x4x96xf32> to vector<4x96xf32>
    %c24 = arith.constant 24 : index
    %c0_27 = arith.constant 0 : index
    %25 = vector.load %arg10[%c24, %c0_27] : memref<36x96xf32, #tpu.memory_space<vmem>>, vector<4x96xf32>
    tpu.vector_store %arg10[%c24, %c0_27], %24 {strides = array<i32>} : memref<36x96xf32, #tpu.memory_space<vmem>>, vector<4x96xf32>,
    %c0_28 = arith.constant 0 : index
    %c0_29 = arith.constant 0 : index
    %c38 = arith.constant 38 : index
    %26 = vector.load %arg1[%c0_28, %c0_29, %c38] : memref<2x4x148xf32, #tpu.memory_space<vmem>>, vector<1x4x96xf32>
    %27 = vector.shape_cast %26 : vector<1x4x96xf32> to vector<4x96xf32>
    %c28 = arith.constant 28 : index
    %c0_30 = arith.constant 0 : index
    %28 = vector.load %arg10[%c28, %c0_30] : memref<36x96xf32, #tpu.memory_space<vmem>>, vector<4x96xf32>
    tpu.vector_store %arg10[%c28, %c0_30], %27 {strides = array<i32>} : memref<36x96xf32, #tpu.memory_space<vmem>>, vector<4x96xf32>,
    %c0_31 = arith.constant 0 : index
    %c0_32 = arith.constant 0 : index
    %c39 = arith.constant 39 : index
    %29 = vector.load %arg1[%c0_31, %c0_32, %c39] : memref<2x4x148xf32, #tpu.memory_space<vmem>>, vector<1x4x96xf32>
    %30 = vector.shape_cast %29 : vector<1x4x96xf32> to vector<4x96xf32>
    %c32 = arith.constant 32 : index
    %c0_33 = arith.constant 0 : index
    %31 = vector.load %arg10[%c32, %c0_33] : memref<36x96xf32, #tpu.memory_space<vmem>>, vector<4x96xf32>
    tpu.vector_store %arg10[%c32, %c0_33], %30 {strides = array<i32>} : memref<36x96xf32, #tpu.memory_space<vmem>>, vector<4x96xf32>,
    %c0_34 = arith.constant 0 : index
    %c0_35 = arith.constant 0 : index
    %32 = vector.load %arg2[%c0_34, %c0_35] : memref<20x36xbf16, #tpu.memory_space<vmem>>, vector<20x36xbf16>
    %c0_36 = arith.constant 0 : index
    %c0_37 = arith.constant 0 : index
    %33 = vector.load %arg10[%c0_36, %c0_37] : memref<36x96xf32, #tpu.memory_space<vmem>>, vector<36x96xf32>
    %34 = arith.truncf %33 : vector<36x96xf32> to vector<36x96xbf16>
    %cst_38 = arith.constant dense<0.000000e+00> : vector<20x96xf32>
    %35 = tpu.matmul %32, %34, %cst_38 {dimension_numbers = #tpu.dot_dimension_numbers<[1], [0], [0], [1], [0, 0, 1, 1], [], []>} : vector<20x36xbf16>, vector<36x96xbf16>, vector<20x96xf32> -> vector<20x96xf32>
    %c0_39 = arith.constant 0 : index
    %c0_40 = arith.constant 0 : index
    %36 = vector.load %arg3[%c0_39, %c0_40] : memref<20x1xf32, #tpu.memory_space<vmem>>, vector<20x1xf32>
    %37 = vector.broadcast %36 : vector<20x1xf32> to vector<20x96xf32>
    %38 = arith.addf %35, %37 : vector<20x96xf32>
    %39 = vector.extract_strided_slice %38 {offsets = [0, 0], sizes = [4, 96], strides = [1, 1]} : vector<20x96xf32> to vector<4x96xf32>
    %40 = vector.extract_strided_slice %38 {offsets = [4, 0], sizes = [16, 96], strides = [1, 1]} : vector<20x96xf32> to vector<16x96xf32>
    %41 = vector.broadcast %0 : vector<1x96xf32> to vector<4x96xf32>
    %42 = arith.mulf %39, %41 : vector<4x96xf32>
    %c0_41 = arith.constant 0 : index
    %c26_42 = arith.constant 26 : index
    %43 = vector.load %arg11[%c0_41, %c26_42] : memref<4x148xf32, #tpu.memory_space<vmem>>, vector<4x96xf32>
    tpu.vector_store %arg11[%c0_41, %c26_42], %42 {strides = array<i32>} : memref<4x148xf32, #tpu.memory_space<vmem>>, vector<4x96xf32>,
    %c0_43 = arith.constant 0 : index
    %c13_44 = arith.constant 13 : index
    %44 = vector.load %arg11[%c0_43, %c13_44] : memref<4x148xf32, #tpu.memory_space<vmem>>, vector<4x96xf32>
    %c0_45 = arith.constant 0 : index
    %c0_46 = arith.constant 0 : index
    %45 = vector.load %arg10[%c0_45, %c0_46] : memref<36x96xf32, #tpu.memory_space<vmem>>, vector<4x96xf32>
    tpu.vector_store %arg10[%c0_45, %c0_46], %44 {strides = array<i32>} : memref<36x96xf32, #tpu.memory_space<vmem>>, vector<4x96xf32>,
    %c0_47 = arith.constant 0 : index
    %c14_48 = arith.constant 14 : index
    %46 = vector.load %arg11[%c0_47, %c14_48] : memref<4x148xf32, #tpu.memory_space<vmem>>, vector<4x96xf32>
    %c4_49 = arith.constant 4 : index
    %c0_50 = arith.constant 0 : index
    %47 = vector.load %arg10[%c4_49, %c0_50] : memref<36x96xf32, #tpu.memory_space<vmem>>, vector<4x96xf32>
    tpu.vector_store %arg10[%c4_49, %c0_50], %46 {strides = array<i32>} : memref<36x96xf32, #tpu.memory_space<vmem>>, vector<4x96xf32>,
    %c0_51 = arith.constant 0 : index
    %c15_52 = arith.constant 15 : index
    %48 = vector.load %arg11[%c0_51, %c15_52] : memref<4x148xf32, #tpu.memory_space<vmem>>, vector<4x96xf32>
    %c8_53 = arith.constant 8 : index
    %c0_54 = arith.constant 0 : index
    %49 = vector.load %arg10[%c8_53, %c0_54] : memref<36x96xf32, #tpu.memory_space<vmem>>, vector<4x96xf32>
    tpu.vector_store %arg10[%c8_53, %c0_54], %48 {strides = array<i32>} : memref<36x96xf32, #tpu.memory_space<vmem>>, vector<4x96xf32>,
    %c0_55 = arith.constant 0 : index
    %c25_56 = arith.constant 25 : index
    %50 = vector.load %arg11[%c0_55, %c25_56] : memref<4x148xf32, #tpu.memory_space<vmem>>, vector<4x96xf32>
    %c12_57 = arith.constant 12 : index
    %c0_58 = arith.constant 0 : index
    %51 = vector.load %arg10[%c12_57, %c0_58] : memref<36x96xf32, #tpu.memory_space<vmem>>, vector<4x96xf32>
    tpu.vector_store %arg10[%c12_57, %c0_58], %50 {strides = array<i32>} : memref<36x96xf32, #tpu.memory_space<vmem>>, vector<4x96xf32>,
    %c0_59 = arith.constant 0 : index
    %c26_60 = arith.constant 26 : index
    %52 = vector.load %arg11[%c0_59, %c26_60] : memref<4x148xf32, #tpu.memory_space<vmem>>, vector<4x96xf32>
    %c16_61 = arith.constant 16 : index
    %c0_62 = arith.constant 0 : index
    %53 = vector.load %arg10[%c16_61, %c0_62] : memref<36x96xf32, #tpu.memory_space<vmem>>, vector<4x96xf32>
    tpu.vector_store %arg10[%c16_61, %c0_62], %52 {strides = array<i32>} : memref<36x96xf32, #tpu.memory_space<vmem>>, vector<4x96xf32>,
    %c0_63 = arith.constant 0 : index
    %c27_64 = arith.constant 27 : index
    %54 = vector.load %arg11[%c0_63, %c27_64] : memref<4x148xf32, #tpu.memory_space<vmem>>, vector<4x96xf32>
    %c20_65 = arith.constant 20 : index
    %c0_66 = arith.constant 0 : index
    %55 = vector.load %arg10[%c20_65, %c0_66] : memref<36x96xf32, #tpu.memory_space<vmem>>, vector<4x96xf32>
    tpu.vector_store %arg10[%c20_65, %c0_66], %54 {strides = array<i32>} : memref<36x96xf32, #tpu.memory_space<vmem>>, vector<4x96xf32>,
    %c0_67 = arith.constant 0 : index
    %c37_68 = arith.constant 37 : index
    %56 = vector.load %arg11[%c0_67, %c37_68] : memref<4x148xf32, #tpu.memory_space<vmem>>, vector<4x96xf32>
    %c24_69 = arith.constant 24 : index
    %c0_70 = arith.constant 0 : index
    %57 = vector.load %arg10[%c24_69, %c0_70] : memref<36x96xf32, #tpu.memory_space<vmem>>, vector<4x96xf32>
    tpu.vector_store %arg10[%c24_69, %c0_70], %56 {strides = array<i32>} : memref<36x96xf32, #tpu.memory_space<vmem>>, vector<4x96xf32>,
    %c0_71 = arith.constant 0 : index
    %c38_72 = arith.constant 38 : index
    %58 = vector.load %arg11[%c0_71, %c38_72] : memref<4x148xf32, #tpu.memory_space<vmem>>, vector<4x96xf32>
    %c28_73 = arith.constant 28 : index
    %c0_74 = arith.constant 0 : index
    %59 = vector.load %arg10[%c28_73, %c0_74] : memref<36x96xf32, #tpu.memory_space<vmem>>, vector<4x96xf32>
    tpu.vector_store %arg10[%c28_73, %c0_74], %58 {strides = array<i32>} : memref<36x96xf32, #tpu.memory_space<vmem>>, vector<4x96xf32>,
    %c0_75 = arith.constant 0 : index
    %c39_76 = arith.constant 39 : index
    %60 = vector.load %arg11[%c0_75, %c39_76] : memref<4x148xf32, #tpu.memory_space<vmem>>, vector<4x96xf32>
    %c32_77 = arith.constant 32 : index
    %c0_78 = arith.constant 0 : index
    %61 = vector.load %arg10[%c32_77, %c0_78] : memref<36x96xf32, #tpu.memory_space<vmem>>, vector<4x96xf32>
    tpu.vector_store %arg10[%c32_77, %c0_78], %60 {strides = array<i32>} : memref<36x96xf32, #tpu.memory_space<vmem>>, vector<4x96xf32>,
    %c0_79 = arith.constant 0 : index
    %c0_80 = arith.constant 0 : index
    %62 = vector.load %arg4[%c0_79, %c0_80] : memref<4x36xbf16, #tpu.memory_space<vmem>>, vector<4x36xbf16>
    %c0_81 = arith.constant 0 : index
    %c0_82 = arith.constant 0 : index
    %63 = vector.load %arg10[%c0_81, %c0_82] : memref<36x96xf32, #tpu.memory_space<vmem>>, vector<36x96xf32>
    %64 = arith.truncf %63 : vector<36x96xf32> to vector<36x96xbf16>
    %cst_83 = arith.constant dense<0.000000e+00> : vector<4x96xf32>
    %65 = tpu.matmul %62, %64, %cst_83 {dimension_numbers = #tpu.dot_dimension_numbers<[1], [0], [0], [1], [0, 0, 1, 1], [], []>} : vector<4x36xbf16>, vector<36x96xbf16>, vector<4x96xf32> -> vector<4x96xf32>
    %c0_84 = arith.constant 0 : index
    %c0_85 = arith.constant 0 : index
    %66 = vector.load %arg5[%c0_84, %c0_85] : memref<4x1xf32, #tpu.memory_space<vmem>>, vector<4x1xf32>
    %67 = vector.broadcast %66 : vector<4x1xf32> to vector<4x96xf32>
    %68 = arith.addf %65, %67 : vector<4x96xf32>
    %69 = vector.broadcast %0 : vector<1x96xf32> to vector<4x96xf32>
    %70 = arith.mulf %68, %69 : vector<4x96xf32>
    %c0_86 = arith.constant 0 : index
    %c26_87 = arith.constant 26 : index
    %71 = vector.load %arg12[%c0_86, %c26_87] : memref<4x148xf32, #tpu.memory_space<vmem>>, vector<4x96xf32>
    tpu.vector_store %arg12[%c0_86, %c26_87], %70 {strides = array<i32>} : memref<4x148xf32, #tpu.memory_space<vmem>>, vector<4x96xf32>,
    %c0_88 = arith.constant 0 : index
    %c13_89 = arith.constant 13 : index
    %72 = vector.load %arg12[%c0_88, %c13_89] : memref<4x148xf32, #tpu.memory_space<vmem>>, vector<4x96xf32>
    %c0_90 = arith.constant 0 : index
    %c0_91 = arith.constant 0 : index
    %73 = vector.load %arg10[%c0_90, %c0_91] : memref<36x96xf32, #tpu.memory_space<vmem>>, vector<4x96xf32>
    tpu.vector_store %arg10[%c0_90, %c0_91], %72 {strides = array<i32>} : memref<36x96xf32, #tpu.memory_space<vmem>>, vector<4x96xf32>,
    %c0_92 = arith.constant 0 : index
    %c14_93 = arith.constant 14 : index
    %74 = vector.load %arg12[%c0_92, %c14_93] : memref<4x148xf32, #tpu.memory_space<vmem>>, vector<4x96xf32>
    %c4_94 = arith.constant 4 : index
    %c0_95 = arith.constant 0 : index
    %75 = vector.load %arg10[%c4_94, %c0_95] : memref<36x96xf32, #tpu.memory_space<vmem>>, vector<4x96xf32>
    tpu.vector_store %arg10[%c4_94, %c0_95], %74 {strides = array<i32>} : memref<36x96xf32, #tpu.memory_space<vmem>>, vector<4x96xf32>,
    %c0_96 = arith.constant 0 : index
    %c15_97 = arith.constant 15 : index
    %76 = vector.load %arg12[%c0_96, %c15_97] : memref<4x148xf32, #tpu.memory_space<vmem>>, vector<4x96xf32>
    %c8_98 = arith.constant 8 : index
    %c0_99 = arith.constant 0 : index
    %77 = vector.load %arg10[%c8_98, %c0_99] : memref<36x96xf32, #tpu.memory_space<vmem>>, vector<4x96xf32>
    tpu.vector_store %arg10[%c8_98, %c0_99], %76 {strides = array<i32>} : memref<36x96xf32, #tpu.memory_space<vmem>>, vector<4x96xf32>,
    %c0_100 = arith.constant 0 : index
    %c25_101 = arith.constant 25 : index
    %78 = vector.load %arg12[%c0_100, %c25_101] : memref<4x148xf32, #tpu.memory_space<vmem>>, vector<4x96xf32>
    %c12_102 = arith.constant 12 : index
    %c0_103 = arith.constant 0 : index
    %79 = vector.load %arg10[%c12_102, %c0_103] : memref<36x96xf32, #tpu.memory_space<vmem>>, vector<4x96xf32>
    tpu.vector_store %arg10[%c12_102, %c0_103], %78 {strides = array<i32>} : memref<36x96xf32, #tpu.memory_space<vmem>>, vector<4x96xf32>,
    %c0_104 = arith.constant 0 : index
    %c26_105 = arith.constant 26 : index
    %80 = vector.load %arg12[%c0_104, %c26_105] : memref<4x148xf32, #tpu.memory_space<vmem>>, vector<4x96xf32>
    %c16_106 = arith.constant 16 : index
    %c0_107 = arith.constant 0 : index
    %81 = vector.load %arg10[%c16_106, %c0_107] : memref<36x96xf32, #tpu.memory_space<vmem>>, vector<4x96xf32>
    tpu.vector_store %arg10[%c16_106, %c0_107], %80 {strides = array<i32>} : memref<36x96xf32, #tpu.memory_space<vmem>>, vector<4x96xf32>,
    %c0_108 = arith.constant 0 : index
    %c27_109 = arith.constant 27 : index
    %82 = vector.load %arg12[%c0_108, %c27_109] : memref<4x148xf32, #tpu.memory_space<vmem>>, vector<4x96xf32>
    %c20_110 = arith.constant 20 : index
    %c0_111 = arith.constant 0 : index
    %83 = vector.load %arg10[%c20_110, %c0_111] : memref<36x96xf32, #tpu.memory_space<vmem>>, vector<4x96xf32>
    tpu.vector_store %arg10[%c20_110, %c0_111], %82 {strides = array<i32>} : memref<36x96xf32, #tpu.memory_space<vmem>>, vector<4x96xf32>,
    %c0_112 = arith.constant 0 : index
    %c37_113 = arith.constant 37 : index
    %84 = vector.load %arg12[%c0_112, %c37_113] : memref<4x148xf32, #tpu.memory_space<vmem>>, vector<4x96xf32>
    %c24_114 = arith.constant 24 : index
    %c0_115 = arith.constant 0 : index
    %85 = vector.load %arg10[%c24_114, %c0_115] : memref<36x96xf32, #tpu.memory_space<vmem>>, vector<4x96xf32>
    tpu.vector_store %arg10[%c24_114, %c0_115], %84 {strides = array<i32>} : memref<36x96xf32, #tpu.memory_space<vmem>>, vector<4x96xf32>,
    %c0_116 = arith.constant 0 : index
    %c38_117 = arith.constant 38 : index
    %86 = vector.load %arg12[%c0_116, %c38_117] : memref<4x148xf32, #tpu.memory_space<vmem>>, vector<4x96xf32>
    %c28_118 = arith.constant 28 : index
    %c0_119 = arith.constant 0 : index
    %87 = vector.load %arg10[%c28_118, %c0_119] : memref<36x96xf32, #tpu.memory_space<vmem>>, vector<4x96xf32>
    tpu.vector_store %arg10[%c28_118, %c0_119], %86 {strides = array<i32>} : memref<36x96xf32, #tpu.memory_space<vmem>>, vector<4x96xf32>,
    %c0_120 = arith.constant 0 : index
    %c39_121 = arith.constant 39 : index
    %88 = vector.load %arg12[%c0_120, %c39_121] : memref<4x148xf32, #tpu.memory_space<vmem>>, vector<4x96xf32>
    %c32_122 = arith.constant 32 : index
    %c0_123 = arith.constant 0 : index
    %89 = vector.load %arg10[%c32_122, %c0_123] : memref<36x96xf32, #tpu.memory_space<vmem>>, vector<4x96xf32>
    tpu.vector_store %arg10[%c32_122, %c0_123], %88 {strides = array<i32>} : memref<36x96xf32, #tpu.memory_space<vmem>>, vector<4x96xf32>,
    %c0_124 = arith.constant 0 : index
    %c0_125 = arith.constant 0 : index
    %90 = vector.load %arg6[%c0_124, %c0_125] : memref<8x36xbf16, #tpu.memory_space<vmem>>, vector<8x36xbf16>
    %c0_126 = arith.constant 0 : index
    %c0_127 = arith.constant 0 : index
    %91 = vector.load %arg10[%c0_126, %c0_127] : memref<36x96xf32, #tpu.memory_space<vmem>>, vector<36x96xf32>
    %92 = arith.truncf %91 : vector<36x96xf32> to vector<36x96xbf16>
    %cst_128 = arith.constant dense<0.000000e+00> : vector<8x96xf32>
    %93 = tpu.matmul %90, %92, %cst_128 {dimension_numbers = #tpu.dot_dimension_numbers<[1], [0], [0], [1], [0, 0, 1, 1], [], []>} : vector<8x36xbf16>, vector<36x96xbf16>, vector<8x96xf32> -> vector<8x96xf32>
    %c0_129 = arith.constant 0 : index
    %c0_130 = arith.constant 0 : index
    %94 = vector.load %arg7[%c0_129, %c0_130] : memref<8x1xf32, #tpu.memory_space<vmem>>, vector<8x1xf32>
    %95 = vector.broadcast %94 : vector<8x1xf32> to vector<8x96xf32>
    %96 = arith.addf %93, %95 : vector<8x96xf32>
    %97 = tpu.concatenate %39, %68, %96 in 0 : vector<4x96xf32>, vector<4x96xf32>, vector<8x96xf32> -> vector<16x96xf32>
    %98 = arith.addf %97, %40 : vector<16x96xf32>
    %99 = vector.broadcast %0 : vector<1x96xf32> to vector<16x96xf32>
    %100 = arith.mulf %98, %99 : vector<16x96xf32>
    %c0_131 = arith.constant 0 : index
    %c0_132 = arith.constant 0 : index
    %c0_133 = arith.constant 0 : index
    %101 = vector.load %arg9[%c0_131, %c0_132, %c0_133] : memref<2x16x96xf32, #tpu.memory_space<vmem>>, vector<1x16x96xf32>
    %102 = vector.shape_cast %101 : vector<1x16x96xf32> to vector<16x96xf32>
    %103 = vector.shape_cast %100 : vector<16x96xf32> to vector<1x16x96xf32>
    tpu.vector_store %arg9[%c0_131, %c0_132, %c0_133], %103 {strides = array<i32>} : memref<2x16x96xf32, #tpu.memory_space<vmem>>, vector<1x16x96xf32>,
    %c1 = arith.constant 1 : index
    %c0_134 = arith.constant 0 : index
    %c13_135 = arith.constant 13 : index
    %104 = vector.load %arg1[%c1, %c0_134, %c13_135] : memref<2x4x148xf32, #tpu.memory_space<vmem>>, vector<1x4x96xf32>
    %105 = vector.shape_cast %104 : vector<1x4x96xf32> to vector<4x96xf32>
    %c0_136 = arith.constant 0 : index
    %c0_137 = arith.constant 0 : index
    %106 = vector.load %arg10[%c0_136, %c0_137] : memref<36x96xf32, #tpu.memory_space<vmem>>, vector<4x96xf32>
    tpu.vector_store %arg10[%c0_136, %c0_137], %105 {strides = array<i32>} : memref<36x96xf32, #tpu.memory_space<vmem>>, vector<4x96xf32>,
    %c1_138 = arith.constant 1 : index
    %c0_139 = arith.constant 0 : index
    %c14_140 = arith.constant 14 : index
    %107 = vector.load %arg1[%c1_138, %c0_139, %c14_140] : memref<2x4x148xf32, #tpu.memory_space<vmem>>, vector<1x4x96xf32>
    %108 = vector.shape_cast %107 : vector<1x4x96xf32> to vector<4x96xf32>
    %c4_141 = arith.constant 4 : index
    %c0_142 = arith.constant 0 : index
    %109 = vector.load %arg10[%c4_141, %c0_142] : memref<36x96xf32, #tpu.memory_space<vmem>>, vector<4x96xf32>
    tpu.vector_store %arg10[%c4_141, %c0_142], %108 {strides = array<i32>} : memref<36x96xf32, #tpu.memory_space<vmem>>, vector<4x96xf32>,
    %c1_143 = arith.constant 1 : index
    %c0_144 = arith.constant 0 : index
    %c15_145 = arith.constant 15 : index
    %110 = vector.load %arg1[%c1_143, %c0_144, %c15_145] : memref<2x4x148xf32, #tpu.memory_space<vmem>>, vector<1x4x96xf32>
    %111 = vector.shape_cast %110 : vector<1x4x96xf32> to vector<4x96xf32>
    %c8_146 = arith.constant 8 : index
    %c0_147 = arith.constant 0 : index
    %112 = vector.load %arg10[%c8_146, %c0_147] : memref<36x96xf32, #tpu.memory_space<vmem>>, vector<4x96xf32>
    tpu.vector_store %arg10[%c8_146, %c0_147], %111 {strides = array<i32>} : memref<36x96xf32, #tpu.memory_space<vmem>>, vector<4x96xf32>,
    %c1_148 = arith.constant 1 : index
    %c0_149 = arith.constant 0 : index
    %c25_150 = arith.constant 25 : index
    %113 = vector.load %arg1[%c1_148, %c0_149, %c25_150] : memref<2x4x148xf32, #tpu.memory_space<vmem>>, vector<1x4x96xf32>
    %114 = vector.shape_cast %113 : vector<1x4x96xf32> to vector<4x96xf32>
    %c12_151 = arith.constant 12 : index
    %c0_152 = arith.constant 0 : index
    %115 = vector.load %arg10[%c12_151, %c0_152] : memref<36x96xf32, #tpu.memory_space<vmem>>, vector<4x96xf32>
    tpu.vector_store %arg10[%c12_151, %c0_152], %114 {strides = array<i32>} : memref<36x96xf32, #tpu.memory_space<vmem>>, vector<4x96xf32>,
    %c1_153 = arith.constant 1 : index
    %c0_154 = arith.constant 0 : index
    %c26_155 = arith.constant 26 : index
    %116 = vector.load %arg1[%c1_153, %c0_154, %c26_155] : memref<2x4x148xf32, #tpu.memory_space<vmem>>, vector<1x4x96xf32>
    %117 = vector.shape_cast %116 : vector<1x4x96xf32> to vector<4x96xf32>
    %c16_156 = arith.constant 16 : index
    %c0_157 = arith.constant 0 : index
    %118 = vector.load %arg10[%c16_156, %c0_157] : memref<36x96xf32, #tpu.memory_space<vmem>>, vector<4x96xf32>
    tpu.vector_store %arg10[%c16_156, %c0_157], %117 {strides = array<i32>} : memref<36x96xf32, #tpu.memory_space<vmem>>, vector<4x96xf32>,
    %c1_158 = arith.constant 1 : index
    %c0_159 = arith.constant 0 : index
    %c27_160 = arith.constant 27 : index
    %119 = vector.load %arg1[%c1_158, %c0_159, %c27_160] : memref<2x4x148xf32, #tpu.memory_space<vmem>>, vector<1x4x96xf32>
    %120 = vector.shape_cast %119 : vector<1x4x96xf32> to vector<4x96xf32>
    %c20_161 = arith.constant 20 : index
    %c0_162 = arith.constant 0 : index
    %121 = vector.load %arg10[%c20_161, %c0_162] : memref<36x96xf32, #tpu.memory_space<vmem>>, vector<4x96xf32>
    tpu.vector_store %arg10[%c20_161, %c0_162], %120 {strides = array<i32>} : memref<36x96xf32, #tpu.memory_space<vmem>>, vector<4x96xf32>,
    %c1_163 = arith.constant 1 : index
    %c0_164 = arith.constant 0 : index
    %c37_165 = arith.constant 37 : index
    %122 = vector.load %arg1[%c1_163, %c0_164, %c37_165] : memref<2x4x148xf32, #tpu.memory_space<vmem>>, vector<1x4x96xf32>
    %123 = vector.shape_cast %122 : vector<1x4x96xf32> to vector<4x96xf32>
    %c24_166 = arith.constant 24 : index
    %c0_167 = arith.constant 0 : index
    %124 = vector.load %arg10[%c24_166, %c0_167] : memref<36x96xf32, #tpu.memory_space<vmem>>, vector<4x96xf32>
    tpu.vector_store %arg10[%c24_166, %c0_167], %123 {strides = array<i32>} : memref<36x96xf32, #tpu.memory_space<vmem>>, vector<4x96xf32>,
    %c1_168 = arith.constant 1 : index
    %c0_169 = arith.constant 0 : index
    %c38_170 = arith.constant 38 : index
    %125 = vector.load %arg1[%c1_168, %c0_169, %c38_170] : memref<2x4x148xf32, #tpu.memory_space<vmem>>, vector<1x4x96xf32>
    %126 = vector.shape_cast %125 : vector<1x4x96xf32> to vector<4x96xf32>
    %c28_171 = arith.constant 28 : index
    %c0_172 = arith.constant 0 : index
    %127 = vector.load %arg10[%c28_171, %c0_172] : memref<36x96xf32, #tpu.memory_space<vmem>>, vector<4x96xf32>
    tpu.vector_store %arg10[%c28_171, %c0_172], %126 {strides = array<i32>} : memref<36x96xf32, #tpu.memory_space<vmem>>, vector<4x96xf32>,
    %c1_173 = arith.constant 1 : index
    %c0_174 = arith.constant 0 : index
    %c39_175 = arith.constant 39 : index
    %128 = vector.load %arg1[%c1_173, %c0_174, %c39_175] : memref<2x4x148xf32, #tpu.memory_space<vmem>>, vector<1x4x96xf32>
    %129 = vector.shape_cast %128 : vector<1x4x96xf32> to vector<4x96xf32>
    %c32_176 = arith.constant 32 : index
    %c0_177 = arith.constant 0 : index
    %130 = vector.load %arg10[%c32_176, %c0_177] : memref<36x96xf32, #tpu.memory_space<vmem>>, vector<4x96xf32>
    tpu.vector_store %arg10[%c32_176, %c0_177], %129 {strides = array<i32>} : memref<36x96xf32, #tpu.memory_space<vmem>>, vector<4x96xf32>,
    %c0_178 = arith.constant 0 : index
    %c0_179 = arith.constant 0 : index
    %131 = vector.load %arg2[%c0_178, %c0_179] : memref<20x36xbf16, #tpu.memory_space<vmem>>, vector<20x36xbf16>
    %c0_180 = arith.constant 0 : index
    %c0_181 = arith.constant 0 : index
    %132 = vector.load %arg10[%c0_180, %c0_181] : memref<36x96xf32, #tpu.memory_space<vmem>>, vector<36x96xf32>
    %133 = arith.truncf %132 : vector<36x96xf32> to vector<36x96xbf16>
    %cst_182 = arith.constant dense<0.000000e+00> : vector<20x96xf32>
    %134 = tpu.matmul %131, %133, %cst_182 {dimension_numbers = #tpu.dot_dimension_numbers<[1], [0], [0], [1], [0, 0, 1, 1], [], []>} : vector<20x36xbf16>, vector<36x96xbf16>, vector<20x96xf32> -> vector<20x96xf32>
    %c0_183 = arith.constant 0 : index
    %c0_184 = arith.constant 0 : index
    %135 = vector.load %arg3[%c0_183, %c0_184] : memref<20x1xf32, #tpu.memory_space<vmem>>, vector<20x1xf32>
    %136 = vector.broadcast %135 : vector<20x1xf32> to vector<20x96xf32>
    %137 = arith.addf %134, %136 : vector<20x96xf32>
    %138 = vector.extract_strided_slice %137 {offsets = [0, 0], sizes = [4, 96], strides = [1, 1]} : vector<20x96xf32> to vector<4x96xf32>
    %139 = vector.extract_strided_slice %137 {offsets = [4, 0], sizes = [16, 96], strides = [1, 1]} : vector<20x96xf32> to vector<16x96xf32>
    %140 = vector.broadcast %0 : vector<1x96xf32> to vector<4x96xf32>
    %141 = arith.mulf %138, %140 : vector<4x96xf32>
    %c0_185 = arith.constant 0 : index
    %c26_186 = arith.constant 26 : index
    %142 = vector.load %arg11[%c0_185, %c26_186] : memref<4x148xf32, #tpu.memory_space<vmem>>, vector<4x96xf32>
    tpu.vector_store %arg11[%c0_185, %c26_186], %141 {strides = array<i32>} : memref<4x148xf32, #tpu.memory_space<vmem>>, vector<4x96xf32>,
    %c0_187 = arith.constant 0 : index
    %c13_188 = arith.constant 13 : index
    %143 = vector.load %arg11[%c0_187, %c13_188] : memref<4x148xf32, #tpu.memory_space<vmem>>, vector<4x96xf32>
    %c0_189 = arith.constant 0 : index
    %c0_190 = arith.constant 0 : index
    %144 = vector.load %arg10[%c0_189, %c0_190] : memref<36x96xf32, #tpu.memory_space<vmem>>, vector<4x96xf32>
    tpu.vector_store %arg10[%c0_189, %c0_190], %143 {strides = array<i32>} : memref<36x96xf32, #tpu.memory_space<vmem>>, vector<4x96xf32>,
    %c0_191 = arith.constant 0 : index
    %c14_192 = arith.constant 14 : index
    %145 = vector.load %arg11[%c0_191, %c14_192] : memref<4x148xf32, #tpu.memory_space<vmem>>, vector<4x96xf32>
    %c4_193 = arith.constant 4 : index
    %c0_194 = arith.constant 0 : index
    %146 = vector.load %arg10[%c4_193, %c0_194] : memref<36x96xf32, #tpu.memory_space<vmem>>, vector<4x96xf32>
    tpu.vector_store %arg10[%c4_193, %c0_194], %145 {strides = array<i32>} : memref<36x96xf32, #tpu.memory_space<vmem>>, vector<4x96xf32>,
    %c0_195 = arith.constant 0 : index
    %c15_196 = arith.constant 15 : index
    %147 = vector.load %arg11[%c0_195, %c15_196] : memref<4x148xf32, #tpu.memory_space<vmem>>, vector<4x96xf32>
    %c8_197 = arith.constant 8 : index
    %c0_198 = arith.constant 0 : index
    %148 = vector.load %arg10[%c8_197, %c0_198] : memref<36x96xf32, #tpu.memory_space<vmem>>, vector<4x96xf32>
    tpu.vector_store %arg10[%c8_197, %c0_198], %147 {strides = array<i32>} : memref<36x96xf32, #tpu.memory_space<vmem>>, vector<4x96xf32>,
    %c0_199 = arith.constant 0 : index
    %c25_200 = arith.constant 25 : index
    %149 = vector.load %arg11[%c0_199, %c25_200] : memref<4x148xf32, #tpu.memory_space<vmem>>, vector<4x96xf32>
    %c12_201 = arith.constant 12 : index
    %c0_202 = arith.constant 0 : index
    %150 = vector.load %arg10[%c12_201, %c0_202] : memref<36x96xf32, #tpu.memory_space<vmem>>, vector<4x96xf32>
    tpu.vector_store %arg10[%c12_201, %c0_202], %149 {strides = array<i32>} : memref<36x96xf32, #tpu.memory_space<vmem>>, vector<4x96xf32>,
    %c0_203 = arith.constant 0 : index
    %c26_204 = arith.constant 26 : index
    %151 = vector.load %arg11[%c0_203, %c26_204] : memref<4x148xf32, #tpu.memory_space<vmem>>, vector<4x96xf32>
    %c16_205 = arith.constant 16 : index
    %c0_206 = arith.constant 0 : index
    %152 = vector.load %arg10[%c16_205, %c0_206] : memref<36x96xf32, #tpu.memory_space<vmem>>, vector<4x96xf32>
    tpu.vector_store %arg10[%c16_205, %c0_206], %151 {strides = array<i32>} : memref<36x96xf32, #tpu.memory_space<vmem>>, vector<4x96xf32>,
    %c0_207 = arith.constant 0 : index
    %c27_208 = arith.constant 27 : index
    %153 = vector.load %arg11[%c0_207, %c27_208] : memref<4x148xf32, #tpu.memory_space<vmem>>, vector<4x96xf32>
    %c20_209 = arith.constant 20 : index
    %c0_210 = arith.constant 0 : index
    %154 = vector.load %arg10[%c20_209, %c0_210] : memref<36x96xf32, #tpu.memory_space<vmem>>, vector<4x96xf32>
    tpu.vector_store %arg10[%c20_209, %c0_210], %153 {strides = array<i32>} : memref<36x96xf32, #tpu.memory_space<vmem>>, vector<4x96xf32>,
    %c0_211 = arith.constant 0 : index
    %c37_212 = arith.constant 37 : index
    %155 = vector.load %arg11[%c0_211, %c37_212] : memref<4x148xf32, #tpu.memory_space<vmem>>, vector<4x96xf32>
    %c24_213 = arith.constant 24 : index
    %c0_214 = arith.constant 0 : index
    %156 = vector.load %arg10[%c24_213, %c0_214] : memref<36x96xf32, #tpu.memory_space<vmem>>, vector<4x96xf32>
    tpu.vector_store %arg10[%c24_213, %c0_214], %155 {strides = array<i32>} : memref<36x96xf32, #tpu.memory_space<vmem>>, vector<4x96xf32>,
    %c0_215 = arith.constant 0 : index
    %c38_216 = arith.constant 38 : index
    %157 = vector.load %arg11[%c0_215, %c38_216] : memref<4x148xf32, #tpu.memory_space<vmem>>, vector<4x96xf32>
    %c28_217 = arith.constant 28 : index
    %c0_218 = arith.constant 0 : index
    %158 = vector.load %arg10[%c28_217, %c0_218] : memref<36x96xf32, #tpu.memory_space<vmem>>, vector<4x96xf32>
    tpu.vector_store %arg10[%c28_217, %c0_218], %157 {strides = array<i32>} : memref<36x96xf32, #tpu.memory_space<vmem>>, vector<4x96xf32>,
    %c0_219 = arith.constant 0 : index
    %c39_220 = arith.constant 39 : index
    %159 = vector.load %arg11[%c0_219, %c39_220] : memref<4x148xf32, #tpu.memory_space<vmem>>, vector<4x96xf32>
    %c32_221 = arith.constant 32 : index
    %c0_222 = arith.constant 0 : index
    %160 = vector.load %arg10[%c32_221, %c0_222] : memref<36x96xf32, #tpu.memory_space<vmem>>, vector<4x96xf32>
    tpu.vector_store %arg10[%c32_221, %c0_222], %159 {strides = array<i32>} : memref<36x96xf32, #tpu.memory_space<vmem>>, vector<4x96xf32>,
    %c0_223 = arith.constant 0 : index
    %c0_224 = arith.constant 0 : index
    %161 = vector.load %arg4[%c0_223, %c0_224] : memref<4x36xbf16, #tpu.memory_space<vmem>>, vector<4x36xbf16>
    %c0_225 = arith.constant 0 : index
    %c0_226 = arith.constant 0 : index
    %162 = vector.load %arg10[%c0_225, %c0_226] : memref<36x96xf32, #tpu.memory_space<vmem>>, vector<36x96xf32>
    %163 = arith.truncf %162 : vector<36x96xf32> to vector<36x96xbf16>
    %cst_227 = arith.constant dense<0.000000e+00> : vector<4x96xf32>
    %164 = tpu.matmul %161, %163, %cst_227 {dimension_numbers = #tpu.dot_dimension_numbers<[1], [0], [0], [1], [0, 0, 1, 1], [], []>} : vector<4x36xbf16>, vector<36x96xbf16>, vector<4x96xf32> -> vector<4x96xf32>
    %c0_228 = arith.constant 0 : index
    %c0_229 = arith.constant 0 : index
    %165 = vector.load %arg5[%c0_228, %c0_229] : memref<4x1xf32, #tpu.memory_space<vmem>>, vector<4x1xf32>
    %166 = vector.broadcast %165 : vector<4x1xf32> to vector<4x96xf32>
    %167 = arith.addf %164, %166 : vector<4x96xf32>
    %168 = vector.broadcast %0 : vector<1x96xf32> to vector<4x96xf32>
    %169 = arith.mulf %167, %168 : vector<4x96xf32>
    %c0_230 = arith.constant 0 : index
    %c26_231 = arith.constant 26 : index
    %170 = vector.load %arg12[%c0_230, %c26_231] : memref<4x148xf32, #tpu.memory_space<vmem>>, vector<4x96xf32>
    tpu.vector_store %arg12[%c0_230, %c26_231], %169 {strides = array<i32>} : memref<4x148xf32, #tpu.memory_space<vmem>>, vector<4x96xf32>,
    %c0_232 = arith.constant 0 : index
    %c13_233 = arith.constant 13 : index
    %171 = vector.load %arg12[%c0_232, %c13_233] : memref<4x148xf32, #tpu.memory_space<vmem>>, vector<4x96xf32>
    %c0_234 = arith.constant 0 : index
    %c0_235 = arith.constant 0 : index
    %172 = vector.load %arg10[%c0_234, %c0_235] : memref<36x96xf32, #tpu.memory_space<vmem>>, vector<4x96xf32>
    tpu.vector_store %arg10[%c0_234, %c0_235], %171 {strides = array<i32>} : memref<36x96xf32, #tpu.memory_space<vmem>>, vector<4x96xf32>,
    %c0_236 = arith.constant 0 : index
    %c14_237 = arith.constant 14 : index
    %173 = vector.load %arg12[%c0_236, %c14_237] : memref<4x148xf32, #tpu.memory_space<vmem>>, vector<4x96xf32>
    %c4_238 = arith.constant 4 : index
    %c0_239 = arith.constant 0 : index
    %174 = vector.load %arg10[%c4_238, %c0_239] : memref<36x96xf32, #tpu.memory_space<vmem>>, vector<4x96xf32>
    tpu.vector_store %arg10[%c4_238, %c0_239], %173 {strides = array<i32>} : memref<36x96xf32, #tpu.memory_space<vmem>>, vector<4x96xf32>,
    %c0_240 = arith.constant 0 : index
    %c15_241 = arith.constant 15 : index
    %175 = vector.load %arg12[%c0_240, %c15_241] : memref<4x148xf32, #tpu.memory_space<vmem>>, vector<4x96xf32>
    %c8_242 = arith.constant 8 : index
    %c0_243 = arith.constant 0 : index
    %176 = vector.load %arg10[%c8_242, %c0_243] : memref<36x96xf32, #tpu.memory_space<vmem>>, vector<4x96xf32>
    tpu.vector_store %arg10[%c8_242, %c0_243], %175 {strides = array<i32>} : memref<36x96xf32, #tpu.memory_space<vmem>>, vector<4x96xf32>,
    %c0_244 = arith.constant 0 : index
    %c25_245 = arith.constant 25 : index
    %177 = vector.load %arg12[%c0_244, %c25_245] : memref<4x148xf32, #tpu.memory_space<vmem>>, vector<4x96xf32>
    %c12_246 = arith.constant 12 : index
    %c0_247 = arith.constant 0 : index
    %178 = vector.load %arg10[%c12_246, %c0_247] : memref<36x96xf32, #tpu.memory_space<vmem>>, vector<4x96xf32>
    tpu.vector_store %arg10[%c12_246, %c0_247], %177 {strides = array<i32>} : memref<36x96xf32, #tpu.memory_space<vmem>>, vector<4x96xf32>,
    %c0_248 = arith.constant 0 : index
    %c26_249 = arith.constant 26 : index
    %179 = vector.load %arg12[%c0_248, %c26_249] : memref<4x148xf32, #tpu.memory_space<vmem>>, vector<4x96xf32>
    %c16_250 = arith.constant 16 : index
    %c0_251 = arith.constant 0 : index
    %180 = vector.load %arg10[%c16_250, %c0_251] : memref<36x96xf32, #tpu.memory_space<vmem>>, vector<4x96xf32>
    tpu.vector_store %arg10[%c16_250, %c0_251], %179 {strides = array<i32>} : memref<36x96xf32, #tpu.memory_space<vmem>>, vector<4x96xf32>,
    %c0_252 = arith.constant 0 : index
    %c27_253 = arith.constant 27 : index
    %181 = vector.load %arg12[%c0_252, %c27_253] : memref<4x148xf32, #tpu.memory_space<vmem>>, vector<4x96xf32>
    %c20_254 = arith.constant 20 : index
    %c0_255 = arith.constant 0 : index
    %182 = vector.load %arg10[%c20_254, %c0_255] : memref<36x96xf32, #tpu.memory_space<vmem>>, vector<4x96xf32>
    tpu.vector_store %arg10[%c20_254, %c0_255], %181 {strides = array<i32>} : memref<36x96xf32, #tpu.memory_space<vmem>>, vector<4x96xf32>,
    %c0_256 = arith.constant 0 : index
    %c37_257 = arith.constant 37 : index
    %183 = vector.load %arg12[%c0_256, %c37_257] : memref<4x148xf32, #tpu.memory_space<vmem>>, vector<4x96xf32>
    %c24_258 = arith.constant 24 : index
    %c0_259 = arith.constant 0 : index
    %184 = vector.load %arg10[%c24_258, %c0_259] : memref<36x96xf32, #tpu.memory_space<vmem>>, vector<4x96xf32>
    tpu.vector_store %arg10[%c24_258, %c0_259], %183 {strides = array<i32>} : memref<36x96xf32, #tpu.memory_space<vmem>>, vector<4x96xf32>,
    %c0_260 = arith.constant 0 : index
    %c38_261 = arith.constant 38 : index
    %185 = vector.load %arg12[%c0_260, %c38_261] : memref<4x148xf32, #tpu.memory_space<vmem>>, vector<4x96xf32>
    %c28_262 = arith.constant 28 : index
    %c0_263 = arith.constant 0 : index
    %186 = vector.load %arg10[%c28_262, %c0_263] : memref<36x96xf32, #tpu.memory_space<vmem>>, vector<4x96xf32>
    tpu.vector_store %arg10[%c28_262, %c0_263], %185 {strides = array<i32>} : memref<36x96xf32, #tpu.memory_space<vmem>>, vector<4x96xf32>,
    %c0_264 = arith.constant 0 : index
    %c39_265 = arith.constant 39 : index
    %187 = vector.load %arg12[%c0_264, %c39_265] : memref<4x148xf32, #tpu.memory_space<vmem>>, vector<4x96xf32>
    %c32_266 = arith.constant 32 : index
    %c0_267 = arith.constant 0 : index
    %188 = vector.load %arg10[%c32_266, %c0_267] : memref<36x96xf32, #tpu.memory_space<vmem>>, vector<4x96xf32>
    tpu.vector_store %arg10[%c32_266, %c0_267], %187 {strides = array<i32>} : memref<36x96xf32, #tpu.memory_space<vmem>>, vector<4x96xf32>,
    %c0_268 = arith.constant 0 : index
    %c0_269 = arith.constant 0 : index
    %189 = vector.load %arg6[%c0_268, %c0_269] : memref<8x36xbf16, #tpu.memory_space<vmem>>, vector<8x36xbf16>
    %c0_270 = arith.constant 0 : index
    %c0_271 = arith.constant 0 : index
    %190 = vector.load %arg10[%c0_270, %c0_271] : memref<36x96xf32, #tpu.memory_space<vmem>>, vector<36x96xf32>
    %191 = arith.truncf %190 : vector<36x96xf32> to vector<36x96xbf16>
    %cst_272 = arith.constant dense<0.000000e+00> : vector<8x96xf32>
    %192 = tpu.matmul %189, %191, %cst_272 {dimension_numbers = #tpu.dot_dimension_numbers<[1], [0], [0], [1], [0, 0, 1, 1], [], []>} : vector<8x36xbf16>, vector<36x96xbf16>, vector<8x96xf32> -> vector<8x96xf32>
    %c0_273 = arith.constant 0 : index
    %c0_274 = arith.constant 0 : index
    %193 = vector.load %arg7[%c0_273, %c0_274] : memref<8x1xf32, #tpu.memory_space<vmem>>, vector<8x1xf32>
    %194 = vector.broadcast %193 : vector<8x1xf32> to vector<8x96xf32>
    %195 = arith.addf %192, %194 : vector<8x96xf32>
    %196 = tpu.concatenate %138, %167, %195 in 0 : vector<4x96xf32>, vector<4x96xf32>, vector<8x96xf32> -> vector<16x96xf32>
    %197 = arith.addf %196, %139 : vector<16x96xf32>
    %198 = vector.broadcast %0 : vector<1x96xf32> to vector<16x96xf32>
    %199 = arith.mulf %197, %198 : vector<16x96xf32>
    %c1_275 = arith.constant 1 : index
    %c0_276 = arith.constant 0 : index
    %c0_277 = arith.constant 0 : index
    %200 = vector.load %arg9[%c1_275, %c0_276, %c0_277] : memref<2x16x96xf32, #tpu.memory_space<vmem>>, vector<1x16x96xf32>
    %201 = vector.shape_cast %200 : vector<1x16x96xf32> to vector<16x96xf32>
    %202 = vector.shape_cast %199 : vector<16x96xf32> to vector<1x16x96xf32>
    tpu.vector_store %arg9[%c1_275, %c0_276, %c0_277], %202 {strides = array<i32>} : memref<2x16x96xf32, #tpu.memory_space<vmem>>, vector<1x16x96xf32>,
    return
  }
  func.func @transform_0(%arg0: i32) -> (i32, i32, i32) {
    %c0_i32 = arith.constant 0 : i32
    %c0_i32_0 = arith.constant 0 : i32
    %c0_i32_1 = arith.constant 0 : i32
    return %arg0, %c0_i32, %c0_i32_0 : i32, i32, i32
  }
  func.func @transform_1(%arg0: i32) -> (i32, i32) {
    %c0_i32 = arith.constant 0 : i32
    %c0_i32_0 = arith.constant 0 : i32
    %c0_i32_1 = arith.constant 0 : i32
    return %c0_i32, %c0_i32_0 : i32, i32
  }
  func.func @transform_2(%arg0: i32) -> (i32, i32) {
    %c0_i32 = arith.constant 0 : i32
    %c0_i32_0 = arith.constant 0 : i32
    %c0_i32_1 = arith.constant 0 : i32
    return %c0_i32, %c0_i32_0 : i32, i32
  }
  func.func @transform_3(%arg0: i32) -> (i32, i32) {
    %c0_i32 = arith.constant 0 : i32
    %c0_i32_0 = arith.constant 0 : i32
    %c0_i32_1 = arith.constant 0 : i32
    return %c0_i32, %c0_i32_0 : i32, i32
  }
  func.func @transform_4(%arg0: i32) -> (i32, i32) {
    %c0_i32 = arith.constant 0 : i32
    %c0_i32_0 = arith.constant 0 : i32
    %c0_i32_1 = arith.constant 0 : i32
    return %c0_i32, %c0_i32_0 : i32, i32
  }
  func.func @transform_5(%arg0: i32) -> (i32, i32) {
    %c0_i32 = arith.constant 0 : i32
    %c0_i32_0 = arith.constant 0 : i32
    %c0_i32_1 = arith.constant 0 : i32
    return %c0_i32, %c0_i32_0 : i32, i32
  }
  func.func @transform_6(%arg0: i32) -> (i32, i32) {
    %c0_i32 = arith.constant 0 : i32
    %c0_i32_0 = arith.constant 0 : i32
    %c0_i32_1 = arith.constant 0 : i32
    return %c0_i32, %c0_i32_0 : i32, i32
  }
  func.func @transform_7(%arg0: i32) -> (i32, i32) {
    %c0_i32 = arith.constant 0 : i32
    %c0_i32_0 = arith.constant 0 : i32
    %c0_i32_1 = arith.constant 0 : i32
    return %c0_i32, %c0_i32_0 : i32, i32
  }
  func.func @transform_8(%arg0: i32) -> (i32, i32, i32) {
    %c0_i32 = arith.constant 0 : i32
    %c0_i32_0 = arith.constant 0 : i32
    %c0_i32_1 = arith.constant 0 : i32
    return %arg0, %c0_i32, %c0_i32_0 : i32, i32, i32
  }
}

module attributes {stable_mosaic.version = 11 : i64} {
  func.func @_tail_kernel(%arg0: i32, %arg1: memref<2x16x96xf32, #tpu.memory_space<vmem>>, %arg2: memref<20x144xbf16, #tpu.memory_space<vmem>>, %arg3: memref<20x1xf32, #tpu.memory_space<vmem>>, %arg4: memref<4x36xbf16, #tpu.memory_space<vmem>>, %arg5: memref<4x1xf32, #tpu.memory_space<vmem>>, %arg6: memref<8x36xbf16, #tpu.memory_space<vmem>>, %arg7: memref<8x1xf32, #tpu.memory_space<vmem>>, %arg8: memref<25x148xf32, #tpu.memory_space<vmem>>, %arg9: memref<25x148xf32, #tpu.memory_space<vmem>>, %arg10: memref<1x96xf32, #tpu.memory_space<vmem>>, %arg11: memref<2x16x96xf32, #tpu.memory_space<vmem>>, %arg12: memref<16x148xf32, #tpu.memory_space<vmem>>, %arg13: memref<144x96xf32, #tpu.memory_space<vmem>>, %arg14: memref<4x148xf32, #tpu.memory_space<vmem>>, %arg15: memref<4x148xf32, #tpu.memory_space<vmem>>) attributes {dimension_semantics = [#tpu.dimension_semantics<parallel>], iteration_bounds = array<i64: 4>, scalar_prefetch = 0 : i64, scratch_operands = 4 : i64, tpu.core_type = #tpu.core_type<tc>, window_params = [{transform_indices = @transform_0, window_bounds = array<i64: 2, 16, 96>}, {pipeline_mode = #tpu.pipeline_mode<synchronous>, transform_indices = @transform_1, window_bounds = array<i64: 20, 144>}, {pipeline_mode = #tpu.pipeline_mode<synchronous>, transform_indices = @transform_2, window_bounds = array<i64: 20, 1>}, {pipeline_mode = #tpu.pipeline_mode<synchronous>, transform_indices = @transform_3, window_bounds = array<i64: 4, 36>}, {pipeline_mode = #tpu.pipeline_mode<synchronous>, transform_indices = @transform_4, window_bounds = array<i64: 4, 1>}, {pipeline_mode = #tpu.pipeline_mode<synchronous>, transform_indices = @transform_5, window_bounds = array<i64: 8, 36>}, {pipeline_mode = #tpu.pipeline_mode<synchronous>, transform_indices = @transform_6, window_bounds = array<i64: 8, 1>}, {pipeline_mode = #tpu.pipeline_mode<synchronous>, transform_indices = @transform_7, window_bounds = array<i64: 25, 148>}, {pipeline_mode = #tpu.pipeline_mode<synchronous>, transform_indices = @transform_8, window_bounds = array<i64: 25, 148>}, {pipeline_mode = #tpu.pipeline_mode<synchronous>, transform_indices = @transform_9, window_bounds = array<i64: 1, 96>}, {transform_indices = @transform_10, window_bounds = array<i64: 2, 16, 96>}]} {
    %c0 = arith.constant 0 : index
    %c0_0 = arith.constant 0 : index
    %0 = vector.load %arg10[%c0, %c0_0] : memref<1x96xf32, #tpu.memory_space<vmem>>, vector<1x96xf32>
    %cst = arith.constant 0.000000e+00 : f32
    %1 = vector.broadcast %cst : f32 to vector<16x148xf32>
    %c0_1 = arith.constant 0 : index
    %c0_2 = arith.constant 0 : index
    %2 = vector.load %arg12[%c0_1, %c0_2] : memref<16x148xf32, #tpu.memory_space<vmem>>, vector<16x148xf32>
    tpu.vector_store %arg12[%c0_1, %c0_2], %1 {strides = array<i32>} : memref<16x148xf32, #tpu.memory_space<vmem>>, vector<16x148xf32>,
    %cst_3 = arith.constant 0.000000e+00 : f32
    %3 = vector.broadcast %cst_3 : f32 to vector<4x148xf32>
    %c0_4 = arith.constant 0 : index
    %c0_5 = arith.constant 0 : index
    %4 = vector.load %arg14[%c0_4, %c0_5] : memref<4x148xf32, #tpu.memory_space<vmem>>, vector<4x148xf32>
    tpu.vector_store %arg14[%c0_4, %c0_5], %3 {strides = array<i32>} : memref<4x148xf32, #tpu.memory_space<vmem>>, vector<4x148xf32>,
    %cst_6 = arith.constant 0.000000e+00 : f32
    %5 = vector.broadcast %cst_6 : f32 to vector<4x148xf32>
    %c0_7 = arith.constant 0 : index
    %c0_8 = arith.constant 0 : index
    %6 = vector.load %arg15[%c0_7, %c0_8] : memref<4x148xf32, #tpu.memory_space<vmem>>, vector<4x148xf32>
    tpu.vector_store %arg15[%c0_7, %c0_8], %5 {strides = array<i32>} : memref<4x148xf32, #tpu.memory_space<vmem>>, vector<4x148xf32>,
    %c0_9 = arith.constant 0 : index
    %c0_10 = arith.constant 0 : index
    %c0_11 = arith.constant 0 : index
    %7 = vector.load %arg1[%c0_9, %c0_10, %c0_11] : memref<2x16x96xf32, #tpu.memory_space<vmem>>, vector<1x16x96xf32>
    %8 = vector.shape_cast %7 : vector<1x16x96xf32> to vector<16x96xf32>
    %c0_12 = arith.constant 0 : index
    %c26 = arith.constant 26 : index
    %9 = vector.load %arg12[%c0_12, %c26] : memref<16x148xf32, #tpu.memory_space<vmem>>, vector<16x96xf32>
    tpu.vector_store %arg12[%c0_12, %c26], %8 {strides = array<i32>} : memref<16x148xf32, #tpu.memory_space<vmem>>, vector<16x96xf32>,
    %c0_13 = arith.constant 0 : index
    %c0_14 = arith.constant 0 : index
    %10 = vector.load %arg12[%c0_13, %c0_14] : memref<16x148xf32, #tpu.memory_space<vmem>>, vector<16x96xf32>
    %c0_15 = arith.constant 0 : index
    %c0_16 = arith.constant 0 : index
    %11 = vector.load %arg8[%c0_15, %c0_16] : memref<25x148xf32, #tpu.memory_space<vmem>>, vector<1x96xf32>
    %12 = vector.broadcast %11 : vector<1x96xf32> to vector<16x96xf32>
    %13 = arith.addf %10, %12 : vector<16x96xf32>
    %c0_17 = arith.constant 0 : index
    %c0_18 = arith.constant 0 : index
    %14 = vector.load %arg9[%c0_17, %c0_18] : memref<25x148xf32, #tpu.memory_space<vmem>>, vector<1x96xf32>
    %15 = vector.broadcast %14 : vector<1x96xf32> to vector<16x96xf32>
    %16 = arith.addf %10, %15 : vector<16x96xf32>
    %c0_19 = arith.constant 0 : index
    %c1 = arith.constant 1 : index
    %17 = vector.load %arg12[%c0_19, %c1] : memref<16x148xf32, #tpu.memory_space<vmem>>, vector<16x96xf32>
    %c1_20 = arith.constant 1 : index
    %c1_21 = arith.constant 1 : index
    %18 = vector.load %arg8[%c1_20, %c1_21] : memref<25x148xf32, #tpu.memory_space<vmem>>, vector<1x96xf32>
    %19 = vector.broadcast %18 : vector<1x96xf32> to vector<16x96xf32>
    %20 = arith.addf %17, %19 : vector<16x96xf32>
    %c1_22 = arith.constant 1 : index
    %c1_23 = arith.constant 1 : index
    %21 = vector.load %arg9[%c1_22, %c1_23] : memref<25x148xf32, #tpu.memory_space<vmem>>, vector<1x96xf32>
    %22 = vector.broadcast %21 : vector<1x96xf32> to vector<16x96xf32>
    %23 = arith.addf %17, %22 : vector<16x96xf32>
    %24 = arith.maximumf %13, %20 : vector<16x96xf32>
    %25 = arith.minimumf %16, %23 : vector<16x96xf32>
    %c0_24 = arith.constant 0 : index
    %c2 = arith.constant 2 : index
    %26 = vector.load %arg12[%c0_24, %c2] : memref<16x148xf32, #tpu.memory_space<vmem>>, vector<16x96xf32>
    %c2_25 = arith.constant 2 : index
    %c2_26 = arith.constant 2 : index
    %27 = vector.load %arg8[%c2_25, %c2_26] : memref<25x148xf32, #tpu.memory_space<vmem>>, vector<1x96xf32>
    %28 = vector.broadcast %27 : vector<1x96xf32> to vector<16x96xf32>
    %29 = arith.addf %26, %28 : vector<16x96xf32>
    %c2_27 = arith.constant 2 : index
    %c2_28 = arith.constant 2 : index
    %30 = vector.load %arg9[%c2_27, %c2_28] : memref<25x148xf32, #tpu.memory_space<vmem>>, vector<1x96xf32>
    %31 = vector.broadcast %30 : vector<1x96xf32> to vector<16x96xf32>
    %32 = arith.addf %26, %31 : vector<16x96xf32>
    %33 = arith.maximumf %24, %29 : vector<16x96xf32>
    %34 = arith.minimumf %25, %32 : vector<16x96xf32>
    %c0_29 = arith.constant 0 : index
    %c3 = arith.constant 3 : index
    %35 = vector.load %arg12[%c0_29, %c3] : memref<16x148xf32, #tpu.memory_space<vmem>>, vector<16x96xf32>
    %c3_30 = arith.constant 3 : index
    %c3_31 = arith.constant 3 : index
    %36 = vector.load %arg8[%c3_30, %c3_31] : memref<25x148xf32, #tpu.memory_space<vmem>>, vector<1x96xf32>
    %37 = vector.broadcast %36 : vector<1x96xf32> to vector<16x96xf32>
    %38 = arith.addf %35, %37 : vector<16x96xf32>
    %c3_32 = arith.constant 3 : index
    %c3_33 = arith.constant 3 : index
    %39 = vector.load %arg9[%c3_32, %c3_33] : memref<25x148xf32, #tpu.memory_space<vmem>>, vector<1x96xf32>
    %40 = vector.broadcast %39 : vector<1x96xf32> to vector<16x96xf32>
    %41 = arith.addf %35, %40 : vector<16x96xf32>
    %42 = arith.maximumf %33, %38 : vector<16x96xf32>
    %43 = arith.minimumf %34, %41 : vector<16x96xf32>
    %c0_34 = arith.constant 0 : index
    %c4 = arith.constant 4 : index
    %44 = vector.load %arg12[%c0_34, %c4] : memref<16x148xf32, #tpu.memory_space<vmem>>, vector<16x96xf32>
    %c4_35 = arith.constant 4 : index
    %c4_36 = arith.constant 4 : index
    %45 = vector.load %arg8[%c4_35, %c4_36] : memref<25x148xf32, #tpu.memory_space<vmem>>, vector<1x96xf32>
    %46 = vector.broadcast %45 : vector<1x96xf32> to vector<16x96xf32>
    %47 = arith.addf %44, %46 : vector<16x96xf32>
    %c4_37 = arith.constant 4 : index
    %c4_38 = arith.constant 4 : index
    %48 = vector.load %arg9[%c4_37, %c4_38] : memref<25x148xf32, #tpu.memory_space<vmem>>, vector<1x96xf32>
    %49 = vector.broadcast %48 : vector<1x96xf32> to vector<16x96xf32>
    %50 = arith.addf %44, %49 : vector<16x96xf32>
    %51 = arith.maximumf %42, %47 : vector<16x96xf32>
    %52 = arith.minimumf %43, %50 : vector<16x96xf32>
    %c0_39 = arith.constant 0 : index
    %c12 = arith.constant 12 : index
    %53 = vector.load %arg12[%c0_39, %c12] : memref<16x148xf32, #tpu.memory_space<vmem>>, vector<16x96xf32>
    %c5 = arith.constant 5 : index
    %c12_40 = arith.constant 12 : index
    %54 = vector.load %arg8[%c5, %c12_40] : memref<25x148xf32, #tpu.memory_space<vmem>>, vector<1x96xf32>
    %55 = vector.broadcast %54 : vector<1x96xf32> to vector<16x96xf32>
    %56 = arith.addf %53, %55 : vector<16x96xf32>
    %c5_41 = arith.constant 5 : index
    %c12_42 = arith.constant 12 : index
    %57 = vector.load %arg9[%c5_41, %c12_42] : memref<25x148xf32, #tpu.memory_space<vmem>>, vector<1x96xf32>
    %58 = vector.broadcast %57 : vector<1x96xf32> to vector<16x96xf32>
    %59 = arith.addf %53, %58 : vector<16x96xf32>
    %60 = arith.maximumf %51, %56 : vector<16x96xf32>
    %61 = arith.minimumf %52, %59 : vector<16x96xf32>
    %c0_43 = arith.constant 0 : index
    %c13 = arith.constant 13 : index
    %62 = vector.load %arg12[%c0_43, %c13] : memref<16x148xf32, #tpu.memory_space<vmem>>, vector<16x96xf32>
    %c6 = arith.constant 6 : index
    %c13_44 = arith.constant 13 : index
    %63 = vector.load %arg8[%c6, %c13_44] : memref<25x148xf32, #tpu.memory_space<vmem>>, vector<1x96xf32>
    %64 = vector.broadcast %63 : vector<1x96xf32> to vector<16x96xf32>
    %65 = arith.addf %62, %64 : vector<16x96xf32>
    %c6_45 = arith.constant 6 : index
    %c13_46 = arith.constant 13 : index
    %66 = vector.load %arg9[%c6_45, %c13_46] : memref<25x148xf32, #tpu.memory_space<vmem>>, vector<1x96xf32>
    %67 = vector.broadcast %66 : vector<1x96xf32> to vector<16x96xf32>
    %68 = arith.addf %62, %67 : vector<16x96xf32>
    %69 = arith.maximumf %60, %65 : vector<16x96xf32>
    %70 = arith.minimumf %61, %68 : vector<16x96xf32>
    %c0_47 = arith.constant 0 : index
    %c0_48 = arith.constant 0 : index
    %71 = vector.load %arg13[%c0_47, %c0_48] : memref<144x96xf32, #tpu.memory_space<vmem>>, vector<16x96xf32>
    tpu.vector_store %arg13[%c0_47, %c0_48], %62 {strides = array<i32>} : memref<144x96xf32, #tpu.memory_space<vmem>>, vector<16x96xf32>,
    %c0_49 = arith.constant 0 : index
    %c14 = arith.constant 14 : index
    %72 = vector.load %arg12[%c0_49, %c14] : memref<16x148xf32, #tpu.memory_space<vmem>>, vector<16x96xf32>
    %c7 = arith.constant 7 : index
    %c14_50 = arith.constant 14 : index
    %73 = vector.load %arg8[%c7, %c14_50] : memref<25x148xf32, #tpu.memory_space<vmem>>, vector<1x96xf32>
    %74 = vector.broadcast %73 : vector<1x96xf32> to vector<16x96xf32>
    %75 = arith.addf %72, %74 : vector<16x96xf32>
    %c7_51 = arith.constant 7 : index
    %c14_52 = arith.constant 14 : index
    %76 = vector.load %arg9[%c7_51, %c14_52] : memref<25x148xf32, #tpu.memory_space<vmem>>, vector<1x96xf32>
    %77 = vector.broadcast %76 : vector<1x96xf32> to vector<16x96xf32>
    %78 = arith.addf %72, %77 : vector<16x96xf32>
    %79 = arith.maximumf %69, %75 : vector<16x96xf32>
    %80 = arith.minimumf %70, %78 : vector<16x96xf32>
    %c16 = arith.constant 16 : index
    %c0_53 = arith.constant 0 : index
    %81 = vector.load %arg13[%c16, %c0_53] : memref<144x96xf32, #tpu.memory_space<vmem>>, vector<16x96xf32>
    tpu.vector_store %arg13[%c16, %c0_53], %72 {strides = array<i32>} : memref<144x96xf32, #tpu.memory_space<vmem>>, vector<16x96xf32>,
    %c0_54 = arith.constant 0 : index
    %c15 = arith.constant 15 : index
    %82 = vector.load %arg12[%c0_54, %c15] : memref<16x148xf32, #tpu.memory_space<vmem>>, vector<16x96xf32>
    %c8 = arith.constant 8 : index
    %c15_55 = arith.constant 15 : index
    %83 = vector.load %arg8[%c8, %c15_55] : memref<25x148xf32, #tpu.memory_space<vmem>>, vector<1x96xf32>
    %84 = vector.broadcast %83 : vector<1x96xf32> to vector<16x96xf32>
    %85 = arith.addf %82, %84 : vector<16x96xf32>
    %c8_56 = arith.constant 8 : index
    %c15_57 = arith.constant 15 : index
    %86 = vector.load %arg9[%c8_56, %c15_57] : memref<25x148xf32, #tpu.memory_space<vmem>>, vector<1x96xf32>
    %87 = vector.broadcast %86 : vector<1x96xf32> to vector<16x96xf32>
    %88 = arith.addf %82, %87 : vector<16x96xf32>
    %89 = arith.maximumf %79, %85 : vector<16x96xf32>
    %90 = arith.minimumf %80, %88 : vector<16x96xf32>
    %c32 = arith.constant 32 : index
    %c0_58 = arith.constant 0 : index
    %91 = vector.load %arg13[%c32, %c0_58] : memref<144x96xf32, #tpu.memory_space<vmem>>, vector<16x96xf32>
    tpu.vector_store %arg13[%c32, %c0_58], %82 {strides = array<i32>} : memref<144x96xf32, #tpu.memory_space<vmem>>, vector<16x96xf32>,
    %c0_59 = arith.constant 0 : index
    %c16_60 = arith.constant 16 : index
    %92 = vector.load %arg12[%c0_59, %c16_60] : memref<16x148xf32, #tpu.memory_space<vmem>>, vector<16x96xf32>
    %c9 = arith.constant 9 : index
    %c16_61 = arith.constant 16 : index
    %93 = vector.load %arg8[%c9, %c16_61] : memref<25x148xf32, #tpu.memory_space<vmem>>, vector<1x96xf32>
    %94 = vector.broadcast %93 : vector<1x96xf32> to vector<16x96xf32>
    %95 = arith.addf %92, %94 : vector<16x96xf32>
    %c9_62 = arith.constant 9 : index
    %c16_63 = arith.constant 16 : index
    %96 = vector.load %arg9[%c9_62, %c16_63] : memref<25x148xf32, #tpu.memory_space<vmem>>, vector<1x96xf32>
    %97 = vector.broadcast %96 : vector<1x96xf32> to vector<16x96xf32>
    %98 = arith.addf %92, %97 : vector<16x96xf32>
    %99 = arith.maximumf %89, %95 : vector<16x96xf32>
    %100 = arith.minimumf %90, %98 : vector<16x96xf32>
    %c0_64 = arith.constant 0 : index
    %c24 = arith.constant 24 : index
    %101 = vector.load %arg12[%c0_64, %c24] : memref<16x148xf32, #tpu.memory_space<vmem>>, vector<16x96xf32>
    %c10 = arith.constant 10 : index
    %c24_65 = arith.constant 24 : index
    %102 = vector.load %arg8[%c10, %c24_65] : memref<25x148xf32, #tpu.memory_space<vmem>>, vector<1x96xf32>
    %103 = vector.broadcast %102 : vector<1x96xf32> to vector<16x96xf32>
    %104 = arith.addf %101, %103 : vector<16x96xf32>
    %c10_66 = arith.constant 10 : index
    %c24_67 = arith.constant 24 : index
    %105 = vector.load %arg9[%c10_66, %c24_67] : memref<25x148xf32, #tpu.memory_space<vmem>>, vector<1x96xf32>
    %106 = vector.broadcast %105 : vector<1x96xf32> to vector<16x96xf32>
    %107 = arith.addf %101, %106 : vector<16x96xf32>
    %108 = arith.maximumf %99, %104 : vector<16x96xf32>
    %109 = arith.minimumf %100, %107 : vector<16x96xf32>
    %c0_68 = arith.constant 0 : index
    %c25 = arith.constant 25 : index
    %110 = vector.load %arg12[%c0_68, %c25] : memref<16x148xf32, #tpu.memory_space<vmem>>, vector<16x96xf32>
    %c11 = arith.constant 11 : index
    %c25_69 = arith.constant 25 : index
    %111 = vector.load %arg8[%c11, %c25_69] : memref<25x148xf32, #tpu.memory_space<vmem>>, vector<1x96xf32>
    %112 = vector.broadcast %111 : vector<1x96xf32> to vector<16x96xf32>
    %113 = arith.addf %110, %112 : vector<16x96xf32>
    %c11_70 = arith.constant 11 : index
    %c25_71 = arith.constant 25 : index
    %114 = vector.load %arg9[%c11_70, %c25_71] : memref<25x148xf32, #tpu.memory_space<vmem>>, vector<1x96xf32>
    %115 = vector.broadcast %114 : vector<1x96xf32> to vector<16x96xf32>
    %116 = arith.addf %110, %115 : vector<16x96xf32>
    %117 = arith.maximumf %108, %113 : vector<16x96xf32>
    %118 = arith.minimumf %109, %116 : vector<16x96xf32>
    %c48 = arith.constant 48 : index
    %c0_72 = arith.constant 0 : index
    %119 = vector.load %arg13[%c48, %c0_72] : memref<144x96xf32, #tpu.memory_space<vmem>>, vector<16x96xf32>
    tpu.vector_store %arg13[%c48, %c0_72], %110 {strides = array<i32>} : memref<144x96xf32, #tpu.memory_space<vmem>>, vector<16x96xf32>,
    %c0_73 = arith.constant 0 : index
    %c26_74 = arith.constant 26 : index
    %120 = vector.load %arg12[%c0_73, %c26_74] : memref<16x148xf32, #tpu.memory_space<vmem>>, vector<16x96xf32>
    %c64 = arith.constant 64 : index
    %c0_75 = arith.constant 0 : index
    %121 = vector.load %arg13[%c64, %c0_75] : memref<144x96xf32, #tpu.memory_space<vmem>>, vector<16x96xf32>
    tpu.vector_store %arg13[%c64, %c0_75], %120 {strides = array<i32>} : memref<144x96xf32, #tpu.memory_space<vmem>>, vector<16x96xf32>,
    %c0_76 = arith.constant 0 : index
    %c27 = arith.constant 27 : index
    %122 = vector.load %arg12[%c0_76, %c27] : memref<16x148xf32, #tpu.memory_space<vmem>>, vector<16x96xf32>
    %c13_77 = arith.constant 13 : index
    %c27_78 = arith.constant 27 : index
    %123 = vector.load %arg8[%c13_77, %c27_78] : memref<25x148xf32, #tpu.memory_space<vmem>>, vector<1x96xf32>
    %124 = vector.broadcast %123 : vector<1x96xf32> to vector<16x96xf32>
    %125 = arith.addf %122, %124 : vector<16x96xf32>
    %c13_79 = arith.constant 13 : index
    %c27_80 = arith.constant 27 : index
    %126 = vector.load %arg9[%c13_79, %c27_80] : memref<25x148xf32, #tpu.memory_space<vmem>>, vector<1x96xf32>
    %127 = vector.broadcast %126 : vector<1x96xf32> to vector<16x96xf32>
    %128 = arith.addf %122, %127 : vector<16x96xf32>
    %129 = arith.maximumf %117, %125 : vector<16x96xf32>
    %130 = arith.minimumf %118, %128 : vector<16x96xf32>
    %c80 = arith.constant 80 : index
    %c0_81 = arith.constant 0 : index
    %131 = vector.load %arg13[%c80, %c0_81] : memref<144x96xf32, #tpu.memory_space<vmem>>, vector<16x96xf32>
    tpu.vector_store %arg13[%c80, %c0_81], %122 {strides = array<i32>} : memref<144x96xf32, #tpu.memory_space<vmem>>, vector<16x96xf32>,
    %c0_82 = arith.constant 0 : index
    %c28 = arith.constant 28 : index
    %132 = vector.load %arg12[%c0_82, %c28] : memref<16x148xf32, #tpu.memory_space<vmem>>, vector<16x96xf32>
    %c14_83 = arith.constant 14 : index
    %c28_84 = arith.constant 28 : index
    %133 = vector.load %arg8[%c14_83, %c28_84] : memref<25x148xf32, #tpu.memory_space<vmem>>, vector<1x96xf32>
    %134 = vector.broadcast %133 : vector<1x96xf32> to vector<16x96xf32>
    %135 = arith.addf %132, %134 : vector<16x96xf32>
    %c14_85 = arith.constant 14 : index
    %c28_86 = arith.constant 28 : index
    %136 = vector.load %arg9[%c14_85, %c28_86] : memref<25x148xf32, #tpu.memory_space<vmem>>, vector<1x96xf32>
    %137 = vector.broadcast %136 : vector<1x96xf32> to vector<16x96xf32>
    %138 = arith.addf %132, %137 : vector<16x96xf32>
    %139 = arith.maximumf %129, %135 : vector<16x96xf32>
    %140 = arith.minimumf %130, %138 : vector<16x96xf32>
    %c0_87 = arith.constant 0 : index
    %c36 = arith.constant 36 : index
    %141 = vector.load %arg12[%c0_87, %c36] : memref<16x148xf32, #tpu.memory_space<vmem>>, vector<16x96xf32>
    %c15_88 = arith.constant 15 : index
    %c36_89 = arith.constant 36 : index
    %142 = vector.load %arg8[%c15_88, %c36_89] : memref<25x148xf32, #tpu.memory_space<vmem>>, vector<1x96xf32>
    %143 = vector.broadcast %142 : vector<1x96xf32> to vector<16x96xf32>
    %144 = arith.addf %141, %143 : vector<16x96xf32>
    %c15_90 = arith.constant 15 : index
    %c36_91 = arith.constant 36 : index
    %145 = vector.load %arg9[%c15_90, %c36_91] : memref<25x148xf32, #tpu.memory_space<vmem>>, vector<1x96xf32>
    %146 = vector.broadcast %145 : vector<1x96xf32> to vector<16x96xf32>
    %147 = arith.addf %141, %146 : vector<16x96xf32>
    %148 = arith.maximumf %139, %144 : vector<16x96xf32>
    %149 = arith.minimumf %140, %147 : vector<16x96xf32>
    %c0_92 = arith.constant 0 : index
    %c37 = arith.constant 37 : index
    %150 = vector.load %arg12[%c0_92, %c37] : memref<16x148xf32, #tpu.memory_space<vmem>>, vector<16x96xf32>
    %c16_93 = arith.constant 16 : index
    %c37_94 = arith.constant 37 : index
    %151 = vector.load %arg8[%c16_93, %c37_94] : memref<25x148xf32, #tpu.memory_space<vmem>>, vector<1x96xf32>
    %152 = vector.broadcast %151 : vector<1x96xf32> to vector<16x96xf32>
    %153 = arith.addf %150, %152 : vector<16x96xf32>
    %c16_95 = arith.constant 16 : index
    %c37_96 = arith.constant 37 : index
    %154 = vector.load %arg9[%c16_95, %c37_96] : memref<25x148xf32, #tpu.memory_space<vmem>>, vector<1x96xf32>
    %155 = vector.broadcast %154 : vector<1x96xf32> to vector<16x96xf32>
    %156 = arith.addf %150, %155 : vector<16x96xf32>
    %157 = arith.maximumf %148, %153 : vector<16x96xf32>
    %158 = arith.minimumf %149, %156 : vector<16x96xf32>
    %c96 = arith.constant 96 : index
    %c0_97 = arith.constant 0 : index
    %159 = vector.load %arg13[%c96, %c0_97] : memref<144x96xf32, #tpu.memory_space<vmem>>, vector<16x96xf32>
    tpu.vector_store %arg13[%c96, %c0_97], %150 {strides = array<i32>} : memref<144x96xf32, #tpu.memory_space<vmem>>, vector<16x96xf32>,
    %c0_98 = arith.constant 0 : index
    %c38 = arith.constant 38 : index
    %160 = vector.load %arg12[%c0_98, %c38] : memref<16x148xf32, #tpu.memory_space<vmem>>, vector<16x96xf32>
    %c17 = arith.constant 17 : index
    %c38_99 = arith.constant 38 : index
    %161 = vector.load %arg8[%c17, %c38_99] : memref<25x148xf32, #tpu.memory_space<vmem>>, vector<1x96xf32>
    %162 = vector.broadcast %161 : vector<1x96xf32> to vector<16x96xf32>
    %163 = arith.addf %160, %162 : vector<16x96xf32>
    %c17_100 = arith.constant 17 : index
    %c38_101 = arith.constant 38 : index
    %164 = vector.load %arg9[%c17_100, %c38_101] : memref<25x148xf32, #tpu.memory_space<vmem>>, vector<1x96xf32>
    %165 = vector.broadcast %164 : vector<1x96xf32> to vector<16x96xf32>
    %166 = arith.addf %160, %165 : vector<16x96xf32>
    %167 = arith.maximumf %157, %163 : vector<16x96xf32>
    %168 = arith.minimumf %158, %166 : vector<16x96xf32>
    %c112 = arith.constant 112 : index
    %c0_102 = arith.constant 0 : index
    %169 = vector.load %arg13[%c112, %c0_102] : memref<144x96xf32, #tpu.memory_space<vmem>>, vector<16x96xf32>
    tpu.vector_store %arg13[%c112, %c0_102], %160 {strides = array<i32>} : memref<144x96xf32, #tpu.memory_space<vmem>>, vector<16x96xf32>,
    %c0_103 = arith.constant 0 : index
    %c39 = arith.constant 39 : index
    %170 = vector.load %arg12[%c0_103, %c39] : memref<16x148xf32, #tpu.memory_space<vmem>>, vector<16x96xf32>
    %c18 = arith.constant 18 : index
    %c39_104 = arith.constant 39 : index
    %171 = vector.load %arg8[%c18, %c39_104] : memref<25x148xf32, #tpu.memory_space<vmem>>, vector<1x96xf32>
    %172 = vector.broadcast %171 : vector<1x96xf32> to vector<16x96xf32>
    %173 = arith.addf %170, %172 : vector<16x96xf32>
    %c18_105 = arith.constant 18 : index
    %c39_106 = arith.constant 39 : index
    %174 = vector.load %arg9[%c18_105, %c39_106] : memref<25x148xf32, #tpu.memory_space<vmem>>, vector<1x96xf32>
    %175 = vector.broadcast %174 : vector<1x96xf32> to vector<16x96xf32>
    %176 = arith.addf %170, %175 : vector<16x96xf32>
    %177 = arith.maximumf %167, %173 : vector<16x96xf32>
    %178 = arith.minimumf %168, %176 : vector<16x96xf32>
    %c128 = arith.constant 128 : index
    %c0_107 = arith.constant 0 : index
    %179 = vector.load %arg13[%c128, %c0_107] : memref<144x96xf32, #tpu.memory_space<vmem>>, vector<16x96xf32>
    tpu.vector_store %arg13[%c128, %c0_107], %170 {strides = array<i32>} : memref<144x96xf32, #tpu.memory_space<vmem>>, vector<16x96xf32>,
    %c0_108 = arith.constant 0 : index
    %c40 = arith.constant 40 : index
    %180 = vector.load %arg12[%c0_108, %c40] : memref<16x148xf32, #tpu.memory_space<vmem>>, vector<16x96xf32>
    %c19 = arith.constant 19 : index
    %c40_109 = arith.constant 40 : index
    %181 = vector.load %arg8[%c19, %c40_109] : memref<25x148xf32, #tpu.memory_space<vmem>>, vector<1x96xf32>
    %182 = vector.broadcast %181 : vector<1x96xf32> to vector<16x96xf32>
    %183 = arith.addf %180, %182 : vector<16x96xf32>
    %c19_110 = arith.constant 19 : index
    %c40_111 = arith.constant 40 : index
    %184 = vector.load %arg9[%c19_110, %c40_111] : memref<25x148xf32, #tpu.memory_space<vmem>>, vector<1x96xf32>
    %185 = vector.broadcast %184 : vector<1x96xf32> to vector<16x96xf32>
    %186 = arith.addf %180, %185 : vector<16x96xf32>
    %187 = arith.maximumf %177, %183 : vector<16x96xf32>
    %188 = arith.minimumf %178, %186 : vector<16x96xf32>
    %c0_112 = arith.constant 0 : index
    %c48_113 = arith.constant 48 : index
    %189 = vector.load %arg12[%c0_112, %c48_113] : memref<16x148xf32, #tpu.memory_space<vmem>>, vector<16x96xf32>
    %c20 = arith.constant 20 : index
    %c48_114 = arith.constant 48 : index
    %190 = vector.load %arg8[%c20, %c48_114] : memref<25x148xf32, #tpu.memory_space<vmem>>, vector<1x96xf32>
    %191 = vector.broadcast %190 : vector<1x96xf32> to vector<16x96xf32>
    %192 = arith.addf %189, %191 : vector<16x96xf32>
    %c20_115 = arith.constant 20 : index
    %c48_116 = arith.constant 48 : index
    %193 = vector.load %arg9[%c20_115, %c48_116] : memref<25x148xf32, #tpu.memory_space<vmem>>, vector<1x96xf32>
    %194 = vector.broadcast %193 : vector<1x96xf32> to vector<16x96xf32>
    %195 = arith.addf %189, %194 : vector<16x96xf32>
    %196 = arith.maximumf %187, %192 : vector<16x96xf32>
    %197 = arith.minimumf %188, %195 : vector<16x96xf32>
    %c0_117 = arith.constant 0 : index
    %c49 = arith.constant 49 : index
    %198 = vector.load %arg12[%c0_117, %c49] : memref<16x148xf32, #tpu.memory_space<vmem>>, vector<16x96xf32>
    %c21 = arith.constant 21 : index
    %c49_118 = arith.constant 49 : index
    %199 = vector.load %arg8[%c21, %c49_118] : memref<25x148xf32, #tpu.memory_space<vmem>>, vector<1x96xf32>
    %200 = vector.broadcast %199 : vector<1x96xf32> to vector<16x96xf32>
    %201 = arith.addf %198, %200 : vector<16x96xf32>
    %c21_119 = arith.constant 21 : index
    %c49_120 = arith.constant 49 : index
    %202 = vector.load %arg9[%c21_119, %c49_120] : memref<25x148xf32, #tpu.memory_space<vmem>>, vector<1x96xf32>
    %203 = vector.broadcast %202 : vector<1x96xf32> to vector<16x96xf32>
    %204 = arith.addf %198, %203 : vector<16x96xf32>
    %205 = arith.maximumf %196, %201 : vector<16x96xf32>
    %206 = arith.minimumf %197, %204 : vector<16x96xf32>
    %c0_121 = arith.constant 0 : index
    %c50 = arith.constant 50 : index
    %207 = vector.load %arg12[%c0_121, %c50] : memref<16x148xf32, #tpu.memory_space<vmem>>, vector<16x96xf32>
    %c22 = arith.constant 22 : index
    %c50_122 = arith.constant 50 : index
    %208 = vector.load %arg8[%c22, %c50_122] : memref<25x148xf32, #tpu.memory_space<vmem>>, vector<1x96xf32>
    %209 = vector.broadcast %208 : vector<1x96xf32> to vector<16x96xf32>
    %210 = arith.addf %207, %209 : vector<16x96xf32>
    %c22_123 = arith.constant 22 : index
    %c50_124 = arith.constant 50 : index
    %211 = vector.load %arg9[%c22_123, %c50_124] : memref<25x148xf32, #tpu.memory_space<vmem>>, vector<1x96xf32>
    %212 = vector.broadcast %211 : vector<1x96xf32> to vector<16x96xf32>
    %213 = arith.addf %207, %212 : vector<16x96xf32>
    %214 = arith.maximumf %205, %210 : vector<16x96xf32>
    %215 = arith.minimumf %206, %213 : vector<16x96xf32>
    %c0_125 = arith.constant 0 : index
    %c51 = arith.constant 51 : index
    %216 = vector.load %arg12[%c0_125, %c51] : memref<16x148xf32, #tpu.memory_space<vmem>>, vector<16x96xf32>
    %c23 = arith.constant 23 : index
    %c51_126 = arith.constant 51 : index
    %217 = vector.load %arg8[%c23, %c51_126] : memref<25x148xf32, #tpu.memory_space<vmem>>, vector<1x96xf32>
    %218 = vector.broadcast %217 : vector<1x96xf32> to vector<16x96xf32>
    %219 = arith.addf %216, %218 : vector<16x96xf32>
    %c23_127 = arith.constant 23 : index
    %c51_128 = arith.constant 51 : index
    %220 = vector.load %arg9[%c23_127, %c51_128] : memref<25x148xf32, #tpu.memory_space<vmem>>, vector<1x96xf32>
    %221 = vector.broadcast %220 : vector<1x96xf32> to vector<16x96xf32>
    %222 = arith.addf %216, %221 : vector<16x96xf32>
    %223 = arith.maximumf %214, %219 : vector<16x96xf32>
    %224 = arith.minimumf %215, %222 : vector<16x96xf32>
    %c0_129 = arith.constant 0 : index
    %c52 = arith.constant 52 : index
    %225 = vector.load %arg12[%c0_129, %c52] : memref<16x148xf32, #tpu.memory_space<vmem>>, vector<16x96xf32>
    %c24_130 = arith.constant 24 : index
    %c52_131 = arith.constant 52 : index
    %226 = vector.load %arg8[%c24_130, %c52_131] : memref<25x148xf32, #tpu.memory_space<vmem>>, vector<1x96xf32>
    %227 = vector.broadcast %226 : vector<1x96xf32> to vector<16x96xf32>
    %228 = arith.addf %225, %227 : vector<16x96xf32>
    %c24_132 = arith.constant 24 : index
    %c52_133 = arith.constant 52 : index
    %229 = vector.load %arg9[%c24_132, %c52_133] : memref<25x148xf32, #tpu.memory_space<vmem>>, vector<1x96xf32>
    %230 = vector.broadcast %229 : vector<1x96xf32> to vector<16x96xf32>
    %231 = arith.addf %225, %230 : vector<16x96xf32>
    %232 = arith.maximumf %223, %228 : vector<16x96xf32>
    %233 = arith.minimumf %224, %231 : vector<16x96xf32>
    %c0_134 = arith.constant 0 : index
    %c0_135 = arith.constant 0 : index
    %234 = vector.load %arg2[%c0_134, %c0_135] : memref<20x144xbf16, #tpu.memory_space<vmem>>, vector<20x144xbf16>
    %c0_136 = arith.constant 0 : index
    %c0_137 = arith.constant 0 : index
    %235 = vector.load %arg13[%c0_136, %c0_137] : memref<144x96xf32, #tpu.memory_space<vmem>>, vector<144x96xf32>
    %236 = arith.truncf %235 : vector<144x96xf32> to vector<144x96xbf16>
    %cst_138 = arith.constant dense<0.000000e+00> : vector<20x96xf32>
    %237 = tpu.matmul %234, %236, %cst_138 {dimension_numbers = #tpu.dot_dimension_numbers<[1], [0], [0], [1], [0, 0, 1, 1], [], []>} : vector<20x144xbf16>, vector<144x96xbf16>, vector<20x96xf32> -> vector<20x96xf32>
    %c0_139 = arith.constant 0 : index
    %c0_140 = arith.constant 0 : index
    %238 = vector.load %arg3[%c0_139, %c0_140] : memref<20x1xf32, #tpu.memory_space<vmem>>, vector<20x1xf32>
    %239 = vector.broadcast %238 : vector<20x1xf32> to vector<20x96xf32>
    %240 = arith.addf %237, %239 : vector<20x96xf32>
    %241 = vector.extract_strided_slice %240 {offsets = [0, 0], sizes = [4, 96], strides = [1, 1]} : vector<20x96xf32> to vector<4x96xf32>
    %242 = vector.extract_strided_slice %240 {offsets = [4, 0], sizes = [16, 96], strides = [1, 1]} : vector<20x96xf32> to vector<16x96xf32>
    %243 = vector.broadcast %0 : vector<1x96xf32> to vector<4x96xf32>
    %244 = arith.mulf %241, %243 : vector<4x96xf32>
    %c0_141 = arith.constant 0 : index
    %c26_142 = arith.constant 26 : index
    %245 = vector.load %arg14[%c0_141, %c26_142] : memref<4x148xf32, #tpu.memory_space<vmem>>, vector<4x96xf32>
    tpu.vector_store %arg14[%c0_141, %c26_142], %244 {strides = array<i32>} : memref<4x148xf32, #tpu.memory_space<vmem>>, vector<4x96xf32>,
    %c0_143 = arith.constant 0 : index
    %c13_144 = arith.constant 13 : index
    %246 = vector.load %arg14[%c0_143, %c13_144] : memref<4x148xf32, #tpu.memory_space<vmem>>, vector<4x96xf32>
    %c0_145 = arith.constant 0 : index
    %c0_146 = arith.constant 0 : index
    %247 = vector.load %arg13[%c0_145, %c0_146] : memref<144x96xf32, #tpu.memory_space<vmem>>, vector<4x96xf32>
    tpu.vector_store %arg13[%c0_145, %c0_146], %246 {strides = array<i32>} : memref<144x96xf32, #tpu.memory_space<vmem>>, vector<4x96xf32>,
    %c0_147 = arith.constant 0 : index
    %c14_148 = arith.constant 14 : index
    %248 = vector.load %arg14[%c0_147, %c14_148] : memref<4x148xf32, #tpu.memory_space<vmem>>, vector<4x96xf32>
    %c4_149 = arith.constant 4 : index
    %c0_150 = arith.constant 0 : index
    %249 = vector.load %arg13[%c4_149, %c0_150] : memref<144x96xf32, #tpu.memory_space<vmem>>, vector<4x96xf32>
    tpu.vector_store %arg13[%c4_149, %c0_150], %248 {strides = array<i32>} : memref<144x96xf32, #tpu.memory_space<vmem>>, vector<4x96xf32>,
    %c0_151 = arith.constant 0 : index
    %c15_152 = arith.constant 15 : index
    %250 = vector.load %arg14[%c0_151, %c15_152] : memref<4x148xf32, #tpu.memory_space<vmem>>, vector<4x96xf32>
    %c8_153 = arith.constant 8 : index
    %c0_154 = arith.constant 0 : index
    %251 = vector.load %arg13[%c8_153, %c0_154] : memref<144x96xf32, #tpu.memory_space<vmem>>, vector<4x96xf32>
    tpu.vector_store %arg13[%c8_153, %c0_154], %250 {strides = array<i32>} : memref<144x96xf32, #tpu.memory_space<vmem>>, vector<4x96xf32>,
    %c0_155 = arith.constant 0 : index
    %c25_156 = arith.constant 25 : index
    %252 = vector.load %arg14[%c0_155, %c25_156] : memref<4x148xf32, #tpu.memory_space<vmem>>, vector<4x96xf32>
    %c12_157 = arith.constant 12 : index
    %c0_158 = arith.constant 0 : index
    %253 = vector.load %arg13[%c12_157, %c0_158] : memref<144x96xf32, #tpu.memory_space<vmem>>, vector<4x96xf32>
    tpu.vector_store %arg13[%c12_157, %c0_158], %252 {strides = array<i32>} : memref<144x96xf32, #tpu.memory_space<vmem>>, vector<4x96xf32>,
    %c0_159 = arith.constant 0 : index
    %c26_160 = arith.constant 26 : index
    %254 = vector.load %arg14[%c0_159, %c26_160] : memref<4x148xf32, #tpu.memory_space<vmem>>, vector<4x96xf32>
    %c16_161 = arith.constant 16 : index
    %c0_162 = arith.constant 0 : index
    %255 = vector.load %arg13[%c16_161, %c0_162] : memref<144x96xf32, #tpu.memory_space<vmem>>, vector<4x96xf32>
    tpu.vector_store %arg13[%c16_161, %c0_162], %254 {strides = array<i32>} : memref<144x96xf32, #tpu.memory_space<vmem>>, vector<4x96xf32>,
    %c0_163 = arith.constant 0 : index
    %c27_164 = arith.constant 27 : index
    %256 = vector.load %arg14[%c0_163, %c27_164] : memref<4x148xf32, #tpu.memory_space<vmem>>, vector<4x96xf32>
    %c20_165 = arith.constant 20 : index
    %c0_166 = arith.constant 0 : index
    %257 = vector.load %arg13[%c20_165, %c0_166] : memref<144x96xf32, #tpu.memory_space<vmem>>, vector<4x96xf32>
    tpu.vector_store %arg13[%c20_165, %c0_166], %256 {strides = array<i32>} : memref<144x96xf32, #tpu.memory_space<vmem>>, vector<4x96xf32>,
    %c0_167 = arith.constant 0 : index
    %c37_168 = arith.constant 37 : index
    %258 = vector.load %arg14[%c0_167, %c37_168] : memref<4x148xf32, #tpu.memory_space<vmem>>, vector<4x96xf32>
    %c24_169 = arith.constant 24 : index
    %c0_170 = arith.constant 0 : index
    %259 = vector.load %arg13[%c24_169, %c0_170] : memref<144x96xf32, #tpu.memory_space<vmem>>, vector<4x96xf32>
    tpu.vector_store %arg13[%c24_169, %c0_170], %258 {strides = array<i32>} : memref<144x96xf32, #tpu.memory_space<vmem>>, vector<4x96xf32>,
    %c0_171 = arith.constant 0 : index
    %c38_172 = arith.constant 38 : index
    %260 = vector.load %arg14[%c0_171, %c38_172] : memref<4x148xf32, #tpu.memory_space<vmem>>, vector<4x96xf32>
    %c28_173 = arith.constant 28 : index
    %c0_174 = arith.constant 0 : index
    %261 = vector.load %arg13[%c28_173, %c0_174] : memref<144x96xf32, #tpu.memory_space<vmem>>, vector<4x96xf32>
    tpu.vector_store %arg13[%c28_173, %c0_174], %260 {strides = array<i32>} : memref<144x96xf32, #tpu.memory_space<vmem>>, vector<4x96xf32>,
    %c0_175 = arith.constant 0 : index
    %c39_176 = arith.constant 39 : index
    %262 = vector.load %arg14[%c0_175, %c39_176] : memref<4x148xf32, #tpu.memory_space<vmem>>, vector<4x96xf32>
    %c32_177 = arith.constant 32 : index
    %c0_178 = arith.constant 0 : index
    %263 = vector.load %arg13[%c32_177, %c0_178] : memref<144x96xf32, #tpu.memory_space<vmem>>, vector<4x96xf32>
    tpu.vector_store %arg13[%c32_177, %c0_178], %262 {strides = array<i32>} : memref<144x96xf32, #tpu.memory_space<vmem>>, vector<4x96xf32>,
    %c0_179 = arith.constant 0 : index
    %c0_180 = arith.constant 0 : index
    %264 = vector.load %arg4[%c0_179, %c0_180] : memref<4x36xbf16, #tpu.memory_space<vmem>>, vector<4x36xbf16>
    %c0_181 = arith.constant 0 : index
    %c0_182 = arith.constant 0 : index
    %265 = vector.load %arg13[%c0_181, %c0_182] : memref<144x96xf32, #tpu.memory_space<vmem>>, vector<36x96xf32>
    %266 = arith.truncf %265 : vector<36x96xf32> to vector<36x96xbf16>
    %cst_183 = arith.constant dense<0.000000e+00> : vector<4x96xf32>
    %267 = tpu.matmul %264, %266, %cst_183 {dimension_numbers = #tpu.dot_dimension_numbers<[1], [0], [0], [1], [0, 0, 1, 1], [], []>} : vector<4x36xbf16>, vector<36x96xbf16>, vector<4x96xf32> -> vector<4x96xf32>
    %c0_184 = arith.constant 0 : index
    %c0_185 = arith.constant 0 : index
    %268 = vector.load %arg5[%c0_184, %c0_185] : memref<4x1xf32, #tpu.memory_space<vmem>>, vector<4x1xf32>
    %269 = vector.broadcast %268 : vector<4x1xf32> to vector<4x96xf32>
    %270 = arith.addf %267, %269 : vector<4x96xf32>
    %271 = vector.broadcast %0 : vector<1x96xf32> to vector<4x96xf32>
    %272 = arith.mulf %270, %271 : vector<4x96xf32>
    %c0_186 = arith.constant 0 : index
    %c26_187 = arith.constant 26 : index
    %273 = vector.load %arg15[%c0_186, %c26_187] : memref<4x148xf32, #tpu.memory_space<vmem>>, vector<4x96xf32>
    tpu.vector_store %arg15[%c0_186, %c26_187], %272 {strides = array<i32>} : memref<4x148xf32, #tpu.memory_space<vmem>>, vector<4x96xf32>,
    %c0_188 = arith.constant 0 : index
    %c13_189 = arith.constant 13 : index
    %274 = vector.load %arg15[%c0_188, %c13_189] : memref<4x148xf32, #tpu.memory_space<vmem>>, vector<4x96xf32>
    %c0_190 = arith.constant 0 : index
    %c0_191 = arith.constant 0 : index
    %275 = vector.load %arg13[%c0_190, %c0_191] : memref<144x96xf32, #tpu.memory_space<vmem>>, vector<4x96xf32>
    tpu.vector_store %arg13[%c0_190, %c0_191], %274 {strides = array<i32>} : memref<144x96xf32, #tpu.memory_space<vmem>>, vector<4x96xf32>,
    %c0_192 = arith.constant 0 : index
    %c14_193 = arith.constant 14 : index
    %276 = vector.load %arg15[%c0_192, %c14_193] : memref<4x148xf32, #tpu.memory_space<vmem>>, vector<4x96xf32>
    %c4_194 = arith.constant 4 : index
    %c0_195 = arith.constant 0 : index
    %277 = vector.load %arg13[%c4_194, %c0_195] : memref<144x96xf32, #tpu.memory_space<vmem>>, vector<4x96xf32>
    tpu.vector_store %arg13[%c4_194, %c0_195], %276 {strides = array<i32>} : memref<144x96xf32, #tpu.memory_space<vmem>>, vector<4x96xf32>,
    %c0_196 = arith.constant 0 : index
    %c15_197 = arith.constant 15 : index
    %278 = vector.load %arg15[%c0_196, %c15_197] : memref<4x148xf32, #tpu.memory_space<vmem>>, vector<4x96xf32>
    %c8_198 = arith.constant 8 : index
    %c0_199 = arith.constant 0 : index
    %279 = vector.load %arg13[%c8_198, %c0_199] : memref<144x96xf32, #tpu.memory_space<vmem>>, vector<4x96xf32>
    tpu.vector_store %arg13[%c8_198, %c0_199], %278 {strides = array<i32>} : memref<144x96xf32, #tpu.memory_space<vmem>>, vector<4x96xf32>,
    %c0_200 = arith.constant 0 : index
    %c25_201 = arith.constant 25 : index
    %280 = vector.load %arg15[%c0_200, %c25_201] : memref<4x148xf32, #tpu.memory_space<vmem>>, vector<4x96xf32>
    %c12_202 = arith.constant 12 : index
    %c0_203 = arith.constant 0 : index
    %281 = vector.load %arg13[%c12_202, %c0_203] : memref<144x96xf32, #tpu.memory_space<vmem>>, vector<4x96xf32>
    tpu.vector_store %arg13[%c12_202, %c0_203], %280 {strides = array<i32>} : memref<144x96xf32, #tpu.memory_space<vmem>>, vector<4x96xf32>,
    %c0_204 = arith.constant 0 : index
    %c26_205 = arith.constant 26 : index
    %282 = vector.load %arg15[%c0_204, %c26_205] : memref<4x148xf32, #tpu.memory_space<vmem>>, vector<4x96xf32>
    %c16_206 = arith.constant 16 : index
    %c0_207 = arith.constant 0 : index
    %283 = vector.load %arg13[%c16_206, %c0_207] : memref<144x96xf32, #tpu.memory_space<vmem>>, vector<4x96xf32>
    tpu.vector_store %arg13[%c16_206, %c0_207], %282 {strides = array<i32>} : memref<144x96xf32, #tpu.memory_space<vmem>>, vector<4x96xf32>,
    %c0_208 = arith.constant 0 : index
    %c27_209 = arith.constant 27 : index
    %284 = vector.load %arg15[%c0_208, %c27_209] : memref<4x148xf32, #tpu.memory_space<vmem>>, vector<4x96xf32>
    %c20_210 = arith.constant 20 : index
    %c0_211 = arith.constant 0 : index
    %285 = vector.load %arg13[%c20_210, %c0_211] : memref<144x96xf32, #tpu.memory_space<vmem>>, vector<4x96xf32>
    tpu.vector_store %arg13[%c20_210, %c0_211], %284 {strides = array<i32>} : memref<144x96xf32, #tpu.memory_space<vmem>>, vector<4x96xf32>,
    %c0_212 = arith.constant 0 : index
    %c37_213 = arith.constant 37 : index
    %286 = vector.load %arg15[%c0_212, %c37_213] : memref<4x148xf32, #tpu.memory_space<vmem>>, vector<4x96xf32>
    %c24_214 = arith.constant 24 : index
    %c0_215 = arith.constant 0 : index
    %287 = vector.load %arg13[%c24_214, %c0_215] : memref<144x96xf32, #tpu.memory_space<vmem>>, vector<4x96xf32>
    tpu.vector_store %arg13[%c24_214, %c0_215], %286 {strides = array<i32>} : memref<144x96xf32, #tpu.memory_space<vmem>>, vector<4x96xf32>,
    %c0_216 = arith.constant 0 : index
    %c38_217 = arith.constant 38 : index
    %288 = vector.load %arg15[%c0_216, %c38_217] : memref<4x148xf32, #tpu.memory_space<vmem>>, vector<4x96xf32>
    %c28_218 = arith.constant 28 : index
    %c0_219 = arith.constant 0 : index
    %289 = vector.load %arg13[%c28_218, %c0_219] : memref<144x96xf32, #tpu.memory_space<vmem>>, vector<4x96xf32>
    tpu.vector_store %arg13[%c28_218, %c0_219], %288 {strides = array<i32>} : memref<144x96xf32, #tpu.memory_space<vmem>>, vector<4x96xf32>,
    %c0_220 = arith.constant 0 : index
    %c39_221 = arith.constant 39 : index
    %290 = vector.load %arg15[%c0_220, %c39_221] : memref<4x148xf32, #tpu.memory_space<vmem>>, vector<4x96xf32>
    %c32_222 = arith.constant 32 : index
    %c0_223 = arith.constant 0 : index
    %291 = vector.load %arg13[%c32_222, %c0_223] : memref<144x96xf32, #tpu.memory_space<vmem>>, vector<4x96xf32>
    tpu.vector_store %arg13[%c32_222, %c0_223], %290 {strides = array<i32>} : memref<144x96xf32, #tpu.memory_space<vmem>>, vector<4x96xf32>,
    %c0_224 = arith.constant 0 : index
    %c0_225 = arith.constant 0 : index
    %292 = vector.load %arg6[%c0_224, %c0_225] : memref<8x36xbf16, #tpu.memory_space<vmem>>, vector<8x36xbf16>
    %c0_226 = arith.constant 0 : index
    %c0_227 = arith.constant 0 : index
    %293 = vector.load %arg13[%c0_226, %c0_227] : memref<144x96xf32, #tpu.memory_space<vmem>>, vector<36x96xf32>
    %294 = arith.truncf %293 : vector<36x96xf32> to vector<36x96xbf16>
    %cst_228 = arith.constant dense<0.000000e+00> : vector<8x96xf32>
    %295 = tpu.matmul %292, %294, %cst_228 {dimension_numbers = #tpu.dot_dimension_numbers<[1], [0], [0], [1], [0, 0, 1, 1], [], []>} : vector<8x36xbf16>, vector<36x96xbf16>, vector<8x96xf32> -> vector<8x96xf32>
    %c0_229 = arith.constant 0 : index
    %c0_230 = arith.constant 0 : index
    %296 = vector.load %arg7[%c0_229, %c0_230] : memref<8x1xf32, #tpu.memory_space<vmem>>, vector<8x1xf32>
    %297 = vector.broadcast %296 : vector<8x1xf32> to vector<8x96xf32>
    %298 = arith.addf %295, %297 : vector<8x96xf32>
    %299 = tpu.concatenate %241, %270, %298 in 0 : vector<4x96xf32>, vector<4x96xf32>, vector<8x96xf32> -> vector<16x96xf32>
    %300 = arith.addf %299, %242 : vector<16x96xf32>
    %301 = arith.subf %232, %233 : vector<16x96xf32>
    %302 = arith.addf %301, %300 : vector<16x96xf32>
    %c0_231 = arith.constant 0 : index
    %c0_232 = arith.constant 0 : index
    %c0_233 = arith.constant 0 : index
    %303 = vector.load %arg11[%c0_231, %c0_232, %c0_233] : memref<2x16x96xf32, #tpu.memory_space<vmem>>, vector<1x16x96xf32>
    %304 = vector.shape_cast %303 : vector<1x16x96xf32> to vector<16x96xf32>
    %305 = vector.shape_cast %302 : vector<16x96xf32> to vector<1x16x96xf32>
    tpu.vector_store %arg11[%c0_231, %c0_232, %c0_233], %305 {strides = array<i32>} : memref<2x16x96xf32, #tpu.memory_space<vmem>>, vector<1x16x96xf32>,
    %c1_234 = arith.constant 1 : index
    %c0_235 = arith.constant 0 : index
    %c0_236 = arith.constant 0 : index
    %306 = vector.load %arg1[%c1_234, %c0_235, %c0_236] : memref<2x16x96xf32, #tpu.memory_space<vmem>>, vector<1x16x96xf32>
    %307 = vector.shape_cast %306 : vector<1x16x96xf32> to vector<16x96xf32>
    %c0_237 = arith.constant 0 : index
    %c26_238 = arith.constant 26 : index
    %308 = vector.load %arg12[%c0_237, %c26_238] : memref<16x148xf32, #tpu.memory_space<vmem>>, vector<16x96xf32>
    tpu.vector_store %arg12[%c0_237, %c26_238], %307 {strides = array<i32>} : memref<16x148xf32, #tpu.memory_space<vmem>>, vector<16x96xf32>,
    %c0_239 = arith.constant 0 : index
    %c0_240 = arith.constant 0 : index
    %309 = vector.load %arg12[%c0_239, %c0_240] : memref<16x148xf32, #tpu.memory_space<vmem>>, vector<16x96xf32>
    %c0_241 = arith.constant 0 : index
    %c0_242 = arith.constant 0 : index
    %310 = vector.load %arg8[%c0_241, %c0_242] : memref<25x148xf32, #tpu.memory_space<vmem>>, vector<1x96xf32>
    %311 = vector.broadcast %310 : vector<1x96xf32> to vector<16x96xf32>
    %312 = arith.addf %309, %311 : vector<16x96xf32>
    %c0_243 = arith.constant 0 : index
    %c0_244 = arith.constant 0 : index
    %313 = vector.load %arg9[%c0_243, %c0_244] : memref<25x148xf32, #tpu.memory_space<vmem>>, vector<1x96xf32>
    %314 = vector.broadcast %313 : vector<1x96xf32> to vector<16x96xf32>
    %315 = arith.addf %309, %314 : vector<16x96xf32>
    %c0_245 = arith.constant 0 : index
    %c1_246 = arith.constant 1 : index
    %316 = vector.load %arg12[%c0_245, %c1_246] : memref<16x148xf32, #tpu.memory_space<vmem>>, vector<16x96xf32>
    %c1_247 = arith.constant 1 : index
    %c1_248 = arith.constant 1 : index
    %317 = vector.load %arg8[%c1_247, %c1_248] : memref<25x148xf32, #tpu.memory_space<vmem>>, vector<1x96xf32>
    %318 = vector.broadcast %317 : vector<1x96xf32> to vector<16x96xf32>
    %319 = arith.addf %316, %318 : vector<16x96xf32>
    %c1_249 = arith.constant 1 : index
    %c1_250 = arith.constant 1 : index
    %320 = vector.load %arg9[%c1_249, %c1_250] : memref<25x148xf32, #tpu.memory_space<vmem>>, vector<1x96xf32>
    %321 = vector.broadcast %320 : vector<1x96xf32> to vector<16x96xf32>
    %322 = arith.addf %316, %321 : vector<16x96xf32>
    %323 = arith.maximumf %312, %319 : vector<16x96xf32>
    %324 = arith.minimumf %315, %322 : vector<16x96xf32>
    %c0_251 = arith.constant 0 : index
    %c2_252 = arith.constant 2 : index
    %325 = vector.load %arg12[%c0_251, %c2_252] : memref<16x148xf32, #tpu.memory_space<vmem>>, vector<16x96xf32>
    %c2_253 = arith.constant 2 : index
    %c2_254 = arith.constant 2 : index
    %326 = vector.load %arg8[%c2_253, %c2_254] : memref<25x148xf32, #tpu.memory_space<vmem>>, vector<1x96xf32>
    %327 = vector.broadcast %326 : vector<1x96xf32> to vector<16x96xf32>
    %328 = arith.addf %325, %327 : vector<16x96xf32>
    %c2_255 = arith.constant 2 : index
    %c2_256 = arith.constant 2 : index
    %329 = vector.load %arg9[%c2_255, %c2_256] : memref<25x148xf32, #tpu.memory_space<vmem>>, vector<1x96xf32>
    %330 = vector.broadcast %329 : vector<1x96xf32> to vector<16x96xf32>
    %331 = arith.addf %325, %330 : vector<16x96xf32>
    %332 = arith.maximumf %323, %328 : vector<16x96xf32>
    %333 = arith.minimumf %324, %331 : vector<16x96xf32>
    %c0_257 = arith.constant 0 : index
    %c3_258 = arith.constant 3 : index
    %334 = vector.load %arg12[%c0_257, %c3_258] : memref<16x148xf32, #tpu.memory_space<vmem>>, vector<16x96xf32>
    %c3_259 = arith.constant 3 : index
    %c3_260 = arith.constant 3 : index
    %335 = vector.load %arg8[%c3_259, %c3_260] : memref<25x148xf32, #tpu.memory_space<vmem>>, vector<1x96xf32>
    %336 = vector.broadcast %335 : vector<1x96xf32> to vector<16x96xf32>
    %337 = arith.addf %334, %336 : vector<16x96xf32>
    %c3_261 = arith.constant 3 : index
    %c3_262 = arith.constant 3 : index
    %338 = vector.load %arg9[%c3_261, %c3_262] : memref<25x148xf32, #tpu.memory_space<vmem>>, vector<1x96xf32>
    %339 = vector.broadcast %338 : vector<1x96xf32> to vector<16x96xf32>
    %340 = arith.addf %334, %339 : vector<16x96xf32>
    %341 = arith.maximumf %332, %337 : vector<16x96xf32>
    %342 = arith.minimumf %333, %340 : vector<16x96xf32>
    %c0_263 = arith.constant 0 : index
    %c4_264 = arith.constant 4 : index
    %343 = vector.load %arg12[%c0_263, %c4_264] : memref<16x148xf32, #tpu.memory_space<vmem>>, vector<16x96xf32>
    %c4_265 = arith.constant 4 : index
    %c4_266 = arith.constant 4 : index
    %344 = vector.load %arg8[%c4_265, %c4_266] : memref<25x148xf32, #tpu.memory_space<vmem>>, vector<1x96xf32>
    %345 = vector.broadcast %344 : vector<1x96xf32> to vector<16x96xf32>
    %346 = arith.addf %343, %345 : vector<16x96xf32>
    %c4_267 = arith.constant 4 : index
    %c4_268 = arith.constant 4 : index
    %347 = vector.load %arg9[%c4_267, %c4_268] : memref<25x148xf32, #tpu.memory_space<vmem>>, vector<1x96xf32>
    %348 = vector.broadcast %347 : vector<1x96xf32> to vector<16x96xf32>
    %349 = arith.addf %343, %348 : vector<16x96xf32>
    %350 = arith.maximumf %341, %346 : vector<16x96xf32>
    %351 = arith.minimumf %342, %349 : vector<16x96xf32>
    %c0_269 = arith.constant 0 : index
    %c12_270 = arith.constant 12 : index
    %352 = vector.load %arg12[%c0_269, %c12_270] : memref<16x148xf32, #tpu.memory_space<vmem>>, vector<16x96xf32>
    %c5_271 = arith.constant 5 : index
    %c12_272 = arith.constant 12 : index
    %353 = vector.load %arg8[%c5_271, %c12_272] : memref<25x148xf32, #tpu.memory_space<vmem>>, vector<1x96xf32>
    %354 = vector.broadcast %353 : vector<1x96xf32> to vector<16x96xf32>
    %355 = arith.addf %352, %354 : vector<16x96xf32>
    %c5_273 = arith.constant 5 : index
    %c12_274 = arith.constant 12 : index
    %356 = vector.load %arg9[%c5_273, %c12_274] : memref<25x148xf32, #tpu.memory_space<vmem>>, vector<1x96xf32>
    %357 = vector.broadcast %356 : vector<1x96xf32> to vector<16x96xf32>
    %358 = arith.addf %352, %357 : vector<16x96xf32>
    %359 = arith.maximumf %350, %355 : vector<16x96xf32>
    %360 = arith.minimumf %351, %358 : vector<16x96xf32>
    %c0_275 = arith.constant 0 : index
    %c13_276 = arith.constant 13 : index
    %361 = vector.load %arg12[%c0_275, %c13_276] : memref<16x148xf32, #tpu.memory_space<vmem>>, vector<16x96xf32>
    %c6_277 = arith.constant 6 : index
    %c13_278 = arith.constant 13 : index
    %362 = vector.load %arg8[%c6_277, %c13_278] : memref<25x148xf32, #tpu.memory_space<vmem>>, vector<1x96xf32>
    %363 = vector.broadcast %362 : vector<1x96xf32> to vector<16x96xf32>
    %364 = arith.addf %361, %363 : vector<16x96xf32>
    %c6_279 = arith.constant 6 : index
    %c13_280 = arith.constant 13 : index
    %365 = vector.load %arg9[%c6_279, %c13_280] : memref<25x148xf32, #tpu.memory_space<vmem>>, vector<1x96xf32>
    %366 = vector.broadcast %365 : vector<1x96xf32> to vector<16x96xf32>
    %367 = arith.addf %361, %366 : vector<16x96xf32>
    %368 = arith.maximumf %359, %364 : vector<16x96xf32>
    %369 = arith.minimumf %360, %367 : vector<16x96xf32>
    %c0_281 = arith.constant 0 : index
    %c0_282 = arith.constant 0 : index
    %370 = vector.load %arg13[%c0_281, %c0_282] : memref<144x96xf32, #tpu.memory_space<vmem>>, vector<16x96xf32>
    tpu.vector_store %arg13[%c0_281, %c0_282], %361 {strides = array<i32>} : memref<144x96xf32, #tpu.memory_space<vmem>>, vector<16x96xf32>,
    %c0_283 = arith.constant 0 : index
    %c14_284 = arith.constant 14 : index
    %371 = vector.load %arg12[%c0_283, %c14_284] : memref<16x148xf32, #tpu.memory_space<vmem>>, vector<16x96xf32>
    %c7_285 = arith.constant 7 : index
    %c14_286 = arith.constant 14 : index
    %372 = vector.load %arg8[%c7_285, %c14_286] : memref<25x148xf32, #tpu.memory_space<vmem>>, vector<1x96xf32>
    %373 = vector.broadcast %372 : vector<1x96xf32> to vector<16x96xf32>
    %374 = arith.addf %371, %373 : vector<16x96xf32>
    %c7_287 = arith.constant 7 : index
    %c14_288 = arith.constant 14 : index
    %375 = vector.load %arg9[%c7_287, %c14_288] : memref<25x148xf32, #tpu.memory_space<vmem>>, vector<1x96xf32>
    %376 = vector.broadcast %375 : vector<1x96xf32> to vector<16x96xf32>
    %377 = arith.addf %371, %376 : vector<16x96xf32>
    %378 = arith.maximumf %368, %374 : vector<16x96xf32>
    %379 = arith.minimumf %369, %377 : vector<16x96xf32>
    %c16_289 = arith.constant 16 : index
    %c0_290 = arith.constant 0 : index
    %380 = vector.load %arg13[%c16_289, %c0_290] : memref<144x96xf32, #tpu.memory_space<vmem>>, vector<16x96xf32>
    tpu.vector_store %arg13[%c16_289, %c0_290], %371 {strides = array<i32>} : memref<144x96xf32, #tpu.memory_space<vmem>>, vector<16x96xf32>,
    %c0_291 = arith.constant 0 : index
    %c15_292 = arith.constant 15 : index
    %381 = vector.load %arg12[%c0_291, %c15_292] : memref<16x148xf32, #tpu.memory_space<vmem>>, vector<16x96xf32>
    %c8_293 = arith.constant 8 : index
    %c15_294 = arith.constant 15 : index
    %382 = vector.load %arg8[%c8_293, %c15_294] : memref<25x148xf32, #tpu.memory_space<vmem>>, vector<1x96xf32>
    %383 = vector.broadcast %382 : vector<1x96xf32> to vector<16x96xf32>
    %384 = arith.addf %381, %383 : vector<16x96xf32>
    %c8_295 = arith.constant 8 : index
    %c15_296 = arith.constant 15 : index
    %385 = vector.load %arg9[%c8_295, %c15_296] : memref<25x148xf32, #tpu.memory_space<vmem>>, vector<1x96xf32>
    %386 = vector.broadcast %385 : vector<1x96xf32> to vector<16x96xf32>
    %387 = arith.addf %381, %386 : vector<16x96xf32>
    %388 = arith.maximumf %378, %384 : vector<16x96xf32>
    %389 = arith.minimumf %379, %387 : vector<16x96xf32>
    %c32_297 = arith.constant 32 : index
    %c0_298 = arith.constant 0 : index
    %390 = vector.load %arg13[%c32_297, %c0_298] : memref<144x96xf32, #tpu.memory_space<vmem>>, vector<16x96xf32>
    tpu.vector_store %arg13[%c32_297, %c0_298], %381 {strides = array<i32>} : memref<144x96xf32, #tpu.memory_space<vmem>>, vector<16x96xf32>,
    %c0_299 = arith.constant 0 : index
    %c16_300 = arith.constant 16 : index
    %391 = vector.load %arg12[%c0_299, %c16_300] : memref<16x148xf32, #tpu.memory_space<vmem>>, vector<16x96xf32>
    %c9_301 = arith.constant 9 : index
    %c16_302 = arith.constant 16 : index
    %392 = vector.load %arg8[%c9_301, %c16_302] : memref<25x148xf32, #tpu.memory_space<vmem>>, vector<1x96xf32>
    %393 = vector.broadcast %392 : vector<1x96xf32> to vector<16x96xf32>
    %394 = arith.addf %391, %393 : vector<16x96xf32>
    %c9_303 = arith.constant 9 : index
    %c16_304 = arith.constant 16 : index
    %395 = vector.load %arg9[%c9_303, %c16_304] : memref<25x148xf32, #tpu.memory_space<vmem>>, vector<1x96xf32>
    %396 = vector.broadcast %395 : vector<1x96xf32> to vector<16x96xf32>
    %397 = arith.addf %391, %396 : vector<16x96xf32>
    %398 = arith.maximumf %388, %394 : vector<16x96xf32>
    %399 = arith.minimumf %389, %397 : vector<16x96xf32>
    %c0_305 = arith.constant 0 : index
    %c24_306 = arith.constant 24 : index
    %400 = vector.load %arg12[%c0_305, %c24_306] : memref<16x148xf32, #tpu.memory_space<vmem>>, vector<16x96xf32>
    %c10_307 = arith.constant 10 : index
    %c24_308 = arith.constant 24 : index
    %401 = vector.load %arg8[%c10_307, %c24_308] : memref<25x148xf32, #tpu.memory_space<vmem>>, vector<1x96xf32>
    %402 = vector.broadcast %401 : vector<1x96xf32> to vector<16x96xf32>
    %403 = arith.addf %400, %402 : vector<16x96xf32>
    %c10_309 = arith.constant 10 : index
    %c24_310 = arith.constant 24 : index
    %404 = vector.load %arg9[%c10_309, %c24_310] : memref<25x148xf32, #tpu.memory_space<vmem>>, vector<1x96xf32>
    %405 = vector.broadcast %404 : vector<1x96xf32> to vector<16x96xf32>
    %406 = arith.addf %400, %405 : vector<16x96xf32>
    %407 = arith.maximumf %398, %403 : vector<16x96xf32>
    %408 = arith.minimumf %399, %406 : vector<16x96xf32>
    %c0_311 = arith.constant 0 : index
    %c25_312 = arith.constant 25 : index
    %409 = vector.load %arg12[%c0_311, %c25_312] : memref<16x148xf32, #tpu.memory_space<vmem>>, vector<16x96xf32>
    %c11_313 = arith.constant 11 : index
    %c25_314 = arith.constant 25 : index
    %410 = vector.load %arg8[%c11_313, %c25_314] : memref<25x148xf32, #tpu.memory_space<vmem>>, vector<1x96xf32>
    %411 = vector.broadcast %410 : vector<1x96xf32> to vector<16x96xf32>
    %412 = arith.addf %409, %411 : vector<16x96xf32>
    %c11_315 = arith.constant 11 : index
    %c25_316 = arith.constant 25 : index
    %413 = vector.load %arg9[%c11_315, %c25_316] : memref<25x148xf32, #tpu.memory_space<vmem>>, vector<1x96xf32>
    %414 = vector.broadcast %413 : vector<1x96xf32> to vector<16x96xf32>
    %415 = arith.addf %409, %414 : vector<16x96xf32>
    %416 = arith.maximumf %407, %412 : vector<16x96xf32>
    %417 = arith.minimumf %408, %415 : vector<16x96xf32>
    %c48_317 = arith.constant 48 : index
    %c0_318 = arith.constant 0 : index
    %418 = vector.load %arg13[%c48_317, %c0_318] : memref<144x96xf32, #tpu.memory_space<vmem>>, vector<16x96xf32>
    tpu.vector_store %arg13[%c48_317, %c0_318], %409 {strides = array<i32>} : memref<144x96xf32, #tpu.memory_space<vmem>>, vector<16x96xf32>,
    %c0_319 = arith.constant 0 : index
    %c26_320 = arith.constant 26 : index
    %419 = vector.load %arg12[%c0_319, %c26_320] : memref<16x148xf32, #tpu.memory_space<vmem>>, vector<16x96xf32>
    %c64_321 = arith.constant 64 : index
    %c0_322 = arith.constant 0 : index
    %420 = vector.load %arg13[%c64_321, %c0_322] : memref<144x96xf32, #tpu.memory_space<vmem>>, vector<16x96xf32>
    tpu.vector_store %arg13[%c64_321, %c0_322], %419 {strides = array<i32>} : memref<144x96xf32, #tpu.memory_space<vmem>>, vector<16x96xf32>,
    %c0_323 = arith.constant 0 : index
    %c27_324 = arith.constant 27 : index
    %421 = vector.load %arg12[%c0_323, %c27_324] : memref<16x148xf32, #tpu.memory_space<vmem>>, vector<16x96xf32>
    %c13_325 = arith.constant 13 : index
    %c27_326 = arith.constant 27 : index
    %422 = vector.load %arg8[%c13_325, %c27_326] : memref<25x148xf32, #tpu.memory_space<vmem>>, vector<1x96xf32>
    %423 = vector.broadcast %422 : vector<1x96xf32> to vector<16x96xf32>
    %424 = arith.addf %421, %423 : vector<16x96xf32>
    %c13_327 = arith.constant 13 : index
    %c27_328 = arith.constant 27 : index
    %425 = vector.load %arg9[%c13_327, %c27_328] : memref<25x148xf32, #tpu.memory_space<vmem>>, vector<1x96xf32>
    %426 = vector.broadcast %425 : vector<1x96xf32> to vector<16x96xf32>
    %427 = arith.addf %421, %426 : vector<16x96xf32>
    %428 = arith.maximumf %416, %424 : vector<16x96xf32>
    %429 = arith.minimumf %417, %427 : vector<16x96xf32>
    %c80_329 = arith.constant 80 : index
    %c0_330 = arith.constant 0 : index
    %430 = vector.load %arg13[%c80_329, %c0_330] : memref<144x96xf32, #tpu.memory_space<vmem>>, vector<16x96xf32>
    tpu.vector_store %arg13[%c80_329, %c0_330], %421 {strides = array<i32>} : memref<144x96xf32, #tpu.memory_space<vmem>>, vector<16x96xf32>,
    %c0_331 = arith.constant 0 : index
    %c28_332 = arith.constant 28 : index
    %431 = vector.load %arg12[%c0_331, %c28_332] : memref<16x148xf32, #tpu.memory_space<vmem>>, vector<16x96xf32>
    %c14_333 = arith.constant 14 : index
    %c28_334 = arith.constant 28 : index
    %432 = vector.load %arg8[%c14_333, %c28_334] : memref<25x148xf32, #tpu.memory_space<vmem>>, vector<1x96xf32>
    %433 = vector.broadcast %432 : vector<1x96xf32> to vector<16x96xf32>
    %434 = arith.addf %431, %433 : vector<16x96xf32>
    %c14_335 = arith.constant 14 : index
    %c28_336 = arith.constant 28 : index
    %435 = vector.load %arg9[%c14_335, %c28_336] : memref<25x148xf32, #tpu.memory_space<vmem>>, vector<1x96xf32>
    %436 = vector.broadcast %435 : vector<1x96xf32> to vector<16x96xf32>
    %437 = arith.addf %431, %436 : vector<16x96xf32>
    %438 = arith.maximumf %428, %434 : vector<16x96xf32>
    %439 = arith.minimumf %429, %437 : vector<16x96xf32>
    %c0_337 = arith.constant 0 : index
    %c36_338 = arith.constant 36 : index
    %440 = vector.load %arg12[%c0_337, %c36_338] : memref<16x148xf32, #tpu.memory_space<vmem>>, vector<16x96xf32>
    %c15_339 = arith.constant 15 : index
    %c36_340 = arith.constant 36 : index
    %441 = vector.load %arg8[%c15_339, %c36_340] : memref<25x148xf32, #tpu.memory_space<vmem>>, vector<1x96xf32>
    %442 = vector.broadcast %441 : vector<1x96xf32> to vector<16x96xf32>
    %443 = arith.addf %440, %442 : vector<16x96xf32>
    %c15_341 = arith.constant 15 : index
    %c36_342 = arith.constant 36 : index
    %444 = vector.load %arg9[%c15_341, %c36_342] : memref<25x148xf32, #tpu.memory_space<vmem>>, vector<1x96xf32>
    %445 = vector.broadcast %444 : vector<1x96xf32> to vector<16x96xf32>
    %446 = arith.addf %440, %445 : vector<16x96xf32>
    %447 = arith.maximumf %438, %443 : vector<16x96xf32>
    %448 = arith.minimumf %439, %446 : vector<16x96xf32>
    %c0_343 = arith.constant 0 : index
    %c37_344 = arith.constant 37 : index
    %449 = vector.load %arg12[%c0_343, %c37_344] : memref<16x148xf32, #tpu.memory_space<vmem>>, vector<16x96xf32>
    %c16_345 = arith.constant 16 : index
    %c37_346 = arith.constant 37 : index
    %450 = vector.load %arg8[%c16_345, %c37_346] : memref<25x148xf32, #tpu.memory_space<vmem>>, vector<1x96xf32>
    %451 = vector.broadcast %450 : vector<1x96xf32> to vector<16x96xf32>
    %452 = arith.addf %449, %451 : vector<16x96xf32>
    %c16_347 = arith.constant 16 : index
    %c37_348 = arith.constant 37 : index
    %453 = vector.load %arg9[%c16_347, %c37_348] : memref<25x148xf32, #tpu.memory_space<vmem>>, vector<1x96xf32>
    %454 = vector.broadcast %453 : vector<1x96xf32> to vector<16x96xf32>
    %455 = arith.addf %449, %454 : vector<16x96xf32>
    %456 = arith.maximumf %447, %452 : vector<16x96xf32>
    %457 = arith.minimumf %448, %455 : vector<16x96xf32>
    %c96_349 = arith.constant 96 : index
    %c0_350 = arith.constant 0 : index
    %458 = vector.load %arg13[%c96_349, %c0_350] : memref<144x96xf32, #tpu.memory_space<vmem>>, vector<16x96xf32>
    tpu.vector_store %arg13[%c96_349, %c0_350], %449 {strides = array<i32>} : memref<144x96xf32, #tpu.memory_space<vmem>>, vector<16x96xf32>,
    %c0_351 = arith.constant 0 : index
    %c38_352 = arith.constant 38 : index
    %459 = vector.load %arg12[%c0_351, %c38_352] : memref<16x148xf32, #tpu.memory_space<vmem>>, vector<16x96xf32>
    %c17_353 = arith.constant 17 : index
    %c38_354 = arith.constant 38 : index
    %460 = vector.load %arg8[%c17_353, %c38_354] : memref<25x148xf32, #tpu.memory_space<vmem>>, vector<1x96xf32>
    %461 = vector.broadcast %460 : vector<1x96xf32> to vector<16x96xf32>
    %462 = arith.addf %459, %461 : vector<16x96xf32>
    %c17_355 = arith.constant 17 : index
    %c38_356 = arith.constant 38 : index
    %463 = vector.load %arg9[%c17_355, %c38_356] : memref<25x148xf32, #tpu.memory_space<vmem>>, vector<1x96xf32>
    %464 = vector.broadcast %463 : vector<1x96xf32> to vector<16x96xf32>
    %465 = arith.addf %459, %464 : vector<16x96xf32>
    %466 = arith.maximumf %456, %462 : vector<16x96xf32>
    %467 = arith.minimumf %457, %465 : vector<16x96xf32>
    %c112_357 = arith.constant 112 : index
    %c0_358 = arith.constant 0 : index
    %468 = vector.load %arg13[%c112_357, %c0_358] : memref<144x96xf32, #tpu.memory_space<vmem>>, vector<16x96xf32>
    tpu.vector_store %arg13[%c112_357, %c0_358], %459 {strides = array<i32>} : memref<144x96xf32, #tpu.memory_space<vmem>>, vector<16x96xf32>,
    %c0_359 = arith.constant 0 : index
    %c39_360 = arith.constant 39 : index
    %469 = vector.load %arg12[%c0_359, %c39_360] : memref<16x148xf32, #tpu.memory_space<vmem>>, vector<16x96xf32>
    %c18_361 = arith.constant 18 : index
    %c39_362 = arith.constant 39 : index
    %470 = vector.load %arg8[%c18_361, %c39_362] : memref<25x148xf32, #tpu.memory_space<vmem>>, vector<1x96xf32>
    %471 = vector.broadcast %470 : vector<1x96xf32> to vector<16x96xf32>
    %472 = arith.addf %469, %471 : vector<16x96xf32>
    %c18_363 = arith.constant 18 : index
    %c39_364 = arith.constant 39 : index
    %473 = vector.load %arg9[%c18_363, %c39_364] : memref<25x148xf32, #tpu.memory_space<vmem>>, vector<1x96xf32>
    %474 = vector.broadcast %473 : vector<1x96xf32> to vector<16x96xf32>
    %475 = arith.addf %469, %474 : vector<16x96xf32>
    %476 = arith.maximumf %466, %472 : vector<16x96xf32>
    %477 = arith.minimumf %467, %475 : vector<16x96xf32>
    %c128_365 = arith.constant 128 : index
    %c0_366 = arith.constant 0 : index
    %478 = vector.load %arg13[%c128_365, %c0_366] : memref<144x96xf32, #tpu.memory_space<vmem>>, vector<16x96xf32>
    tpu.vector_store %arg13[%c128_365, %c0_366], %469 {strides = array<i32>} : memref<144x96xf32, #tpu.memory_space<vmem>>, vector<16x96xf32>,
    %c0_367 = arith.constant 0 : index
    %c40_368 = arith.constant 40 : index
    %479 = vector.load %arg12[%c0_367, %c40_368] : memref<16x148xf32, #tpu.memory_space<vmem>>, vector<16x96xf32>
    %c19_369 = arith.constant 19 : index
    %c40_370 = arith.constant 40 : index
    %480 = vector.load %arg8[%c19_369, %c40_370] : memref<25x148xf32, #tpu.memory_space<vmem>>, vector<1x96xf32>
    %481 = vector.broadcast %480 : vector<1x96xf32> to vector<16x96xf32>
    %482 = arith.addf %479, %481 : vector<16x96xf32>
    %c19_371 = arith.constant 19 : index
    %c40_372 = arith.constant 40 : index
    %483 = vector.load %arg9[%c19_371, %c40_372] : memref<25x148xf32, #tpu.memory_space<vmem>>, vector<1x96xf32>
    %484 = vector.broadcast %483 : vector<1x96xf32> to vector<16x96xf32>
    %485 = arith.addf %479, %484 : vector<16x96xf32>
    %486 = arith.maximumf %476, %482 : vector<16x96xf32>
    %487 = arith.minimumf %477, %485 : vector<16x96xf32>
    %c0_373 = arith.constant 0 : index
    %c48_374 = arith.constant 48 : index
    %488 = vector.load %arg12[%c0_373, %c48_374] : memref<16x148xf32, #tpu.memory_space<vmem>>, vector<16x96xf32>
    %c20_375 = arith.constant 20 : index
    %c48_376 = arith.constant 48 : index
    %489 = vector.load %arg8[%c20_375, %c48_376] : memref<25x148xf32, #tpu.memory_space<vmem>>, vector<1x96xf32>
    %490 = vector.broadcast %489 : vector<1x96xf32> to vector<16x96xf32>
    %491 = arith.addf %488, %490 : vector<16x96xf32>
    %c20_377 = arith.constant 20 : index
    %c48_378 = arith.constant 48 : index
    %492 = vector.load %arg9[%c20_377, %c48_378] : memref<25x148xf32, #tpu.memory_space<vmem>>, vector<1x96xf32>
    %493 = vector.broadcast %492 : vector<1x96xf32> to vector<16x96xf32>
    %494 = arith.addf %488, %493 : vector<16x96xf32>
    %495 = arith.maximumf %486, %491 : vector<16x96xf32>
    %496 = arith.minimumf %487, %494 : vector<16x96xf32>
    %c0_379 = arith.constant 0 : index
    %c49_380 = arith.constant 49 : index
    %497 = vector.load %arg12[%c0_379, %c49_380] : memref<16x148xf32, #tpu.memory_space<vmem>>, vector<16x96xf32>
    %c21_381 = arith.constant 21 : index
    %c49_382 = arith.constant 49 : index
    %498 = vector.load %arg8[%c21_381, %c49_382] : memref<25x148xf32, #tpu.memory_space<vmem>>, vector<1x96xf32>
    %499 = vector.broadcast %498 : vector<1x96xf32> to vector<16x96xf32>
    %500 = arith.addf %497, %499 : vector<16x96xf32>
    %c21_383 = arith.constant 21 : index
    %c49_384 = arith.constant 49 : index
    %501 = vector.load %arg9[%c21_383, %c49_384] : memref<25x148xf32, #tpu.memory_space<vmem>>, vector<1x96xf32>
    %502 = vector.broadcast %501 : vector<1x96xf32> to vector<16x96xf32>
    %503 = arith.addf %497, %502 : vector<16x96xf32>
    %504 = arith.maximumf %495, %500 : vector<16x96xf32>
    %505 = arith.minimumf %496, %503 : vector<16x96xf32>
    %c0_385 = arith.constant 0 : index
    %c50_386 = arith.constant 50 : index
    %506 = vector.load %arg12[%c0_385, %c50_386] : memref<16x148xf32, #tpu.memory_space<vmem>>, vector<16x96xf32>
    %c22_387 = arith.constant 22 : index
    %c50_388 = arith.constant 50 : index
    %507 = vector.load %arg8[%c22_387, %c50_388] : memref<25x148xf32, #tpu.memory_space<vmem>>, vector<1x96xf32>
    %508 = vector.broadcast %507 : vector<1x96xf32> to vector<16x96xf32>
    %509 = arith.addf %506, %508 : vector<16x96xf32>
    %c22_389 = arith.constant 22 : index
    %c50_390 = arith.constant 50 : index
    %510 = vector.load %arg9[%c22_389, %c50_390] : memref<25x148xf32, #tpu.memory_space<vmem>>, vector<1x96xf32>
    %511 = vector.broadcast %510 : vector<1x96xf32> to vector<16x96xf32>
    %512 = arith.addf %506, %511 : vector<16x96xf32>
    %513 = arith.maximumf %504, %509 : vector<16x96xf32>
    %514 = arith.minimumf %505, %512 : vector<16x96xf32>
    %c0_391 = arith.constant 0 : index
    %c51_392 = arith.constant 51 : index
    %515 = vector.load %arg12[%c0_391, %c51_392] : memref<16x148xf32, #tpu.memory_space<vmem>>, vector<16x96xf32>
    %c23_393 = arith.constant 23 : index
    %c51_394 = arith.constant 51 : index
    %516 = vector.load %arg8[%c23_393, %c51_394] : memref<25x148xf32, #tpu.memory_space<vmem>>, vector<1x96xf32>
    %517 = vector.broadcast %516 : vector<1x96xf32> to vector<16x96xf32>
    %518 = arith.addf %515, %517 : vector<16x96xf32>
    %c23_395 = arith.constant 23 : index
    %c51_396 = arith.constant 51 : index
    %519 = vector.load %arg9[%c23_395, %c51_396] : memref<25x148xf32, #tpu.memory_space<vmem>>, vector<1x96xf32>
    %520 = vector.broadcast %519 : vector<1x96xf32> to vector<16x96xf32>
    %521 = arith.addf %515, %520 : vector<16x96xf32>
    %522 = arith.maximumf %513, %518 : vector<16x96xf32>
    %523 = arith.minimumf %514, %521 : vector<16x96xf32>
    %c0_397 = arith.constant 0 : index
    %c52_398 = arith.constant 52 : index
    %524 = vector.load %arg12[%c0_397, %c52_398] : memref<16x148xf32, #tpu.memory_space<vmem>>, vector<16x96xf32>
    %c24_399 = arith.constant 24 : index
    %c52_400 = arith.constant 52 : index
    %525 = vector.load %arg8[%c24_399, %c52_400] : memref<25x148xf32, #tpu.memory_space<vmem>>, vector<1x96xf32>
    %526 = vector.broadcast %525 : vector<1x96xf32> to vector<16x96xf32>
    %527 = arith.addf %524, %526 : vector<16x96xf32>
    %c24_401 = arith.constant 24 : index
    %c52_402 = arith.constant 52 : index
    %528 = vector.load %arg9[%c24_401, %c52_402] : memref<25x148xf32, #tpu.memory_space<vmem>>, vector<1x96xf32>
    %529 = vector.broadcast %528 : vector<1x96xf32> to vector<16x96xf32>
    %530 = arith.addf %524, %529 : vector<16x96xf32>
    %531 = arith.maximumf %522, %527 : vector<16x96xf32>
    %532 = arith.minimumf %523, %530 : vector<16x96xf32>
    %c0_403 = arith.constant 0 : index
    %c0_404 = arith.constant 0 : index
    %533 = vector.load %arg2[%c0_403, %c0_404] : memref<20x144xbf16, #tpu.memory_space<vmem>>, vector<20x144xbf16>
    %c0_405 = arith.constant 0 : index
    %c0_406 = arith.constant 0 : index
    %534 = vector.load %arg13[%c0_405, %c0_406] : memref<144x96xf32, #tpu.memory_space<vmem>>, vector<144x96xf32>
    %535 = arith.truncf %534 : vector<144x96xf32> to vector<144x96xbf16>
    %cst_407 = arith.constant dense<0.000000e+00> : vector<20x96xf32>
    %536 = tpu.matmul %533, %535, %cst_407 {dimension_numbers = #tpu.dot_dimension_numbers<[1], [0], [0], [1], [0, 0, 1, 1], [], []>} : vector<20x144xbf16>, vector<144x96xbf16>, vector<20x96xf32> -> vector<20x96xf32>
    %c0_408 = arith.constant 0 : index
    %c0_409 = arith.constant 0 : index
    %537 = vector.load %arg3[%c0_408, %c0_409] : memref<20x1xf32, #tpu.memory_space<vmem>>, vector<20x1xf32>
    %538 = vector.broadcast %537 : vector<20x1xf32> to vector<20x96xf32>
    %539 = arith.addf %536, %538 : vector<20x96xf32>
    %540 = vector.extract_strided_slice %539 {offsets = [0, 0], sizes = [4, 96], strides = [1, 1]} : vector<20x96xf32> to vector<4x96xf32>
    %541 = vector.extract_strided_slice %539 {offsets = [4, 0], sizes = [16, 96], strides = [1, 1]} : vector<20x96xf32> to vector<16x96xf32>
    %542 = vector.broadcast %0 : vector<1x96xf32> to vector<4x96xf32>
    %543 = arith.mulf %540, %542 : vector<4x96xf32>
    %c0_410 = arith.constant 0 : index
    %c26_411 = arith.constant 26 : index
    %544 = vector.load %arg14[%c0_410, %c26_411] : memref<4x148xf32, #tpu.memory_space<vmem>>, vector<4x96xf32>
    tpu.vector_store %arg14[%c0_410, %c26_411], %543 {strides = array<i32>} : memref<4x148xf32, #tpu.memory_space<vmem>>, vector<4x96xf32>,
    %c0_412 = arith.constant 0 : index
    %c13_413 = arith.constant 13 : index
    %545 = vector.load %arg14[%c0_412, %c13_413] : memref<4x148xf32, #tpu.memory_space<vmem>>, vector<4x96xf32>
    %c0_414 = arith.constant 0 : index
    %c0_415 = arith.constant 0 : index
    %546 = vector.load %arg13[%c0_414, %c0_415] : memref<144x96xf32, #tpu.memory_space<vmem>>, vector<4x96xf32>
    tpu.vector_store %arg13[%c0_414, %c0_415], %545 {strides = array<i32>} : memref<144x96xf32, #tpu.memory_space<vmem>>, vector<4x96xf32>,
    %c0_416 = arith.constant 0 : index
    %c14_417 = arith.constant 14 : index
    %547 = vector.load %arg14[%c0_416, %c14_417] : memref<4x148xf32, #tpu.memory_space<vmem>>, vector<4x96xf32>
    %c4_418 = arith.constant 4 : index
    %c0_419 = arith.constant 0 : index
    %548 = vector.load %arg13[%c4_418, %c0_419] : memref<144x96xf32, #tpu.memory_space<vmem>>, vector<4x96xf32>
    tpu.vector_store %arg13[%c4_418, %c0_419], %547 {strides = array<i32>} : memref<144x96xf32, #tpu.memory_space<vmem>>, vector<4x96xf32>,
    %c0_420 = arith.constant 0 : index
    %c15_421 = arith.constant 15 : index
    %549 = vector.load %arg14[%c0_420, %c15_421] : memref<4x148xf32, #tpu.memory_space<vmem>>, vector<4x96xf32>
    %c8_422 = arith.constant 8 : index
    %c0_423 = arith.constant 0 : index
    %550 = vector.load %arg13[%c8_422, %c0_423] : memref<144x96xf32, #tpu.memory_space<vmem>>, vector<4x96xf32>
    tpu.vector_store %arg13[%c8_422, %c0_423], %549 {strides = array<i32>} : memref<144x96xf32, #tpu.memory_space<vmem>>, vector<4x96xf32>,
    %c0_424 = arith.constant 0 : index
    %c25_425 = arith.constant 25 : index
    %551 = vector.load %arg14[%c0_424, %c25_425] : memref<4x148xf32, #tpu.memory_space<vmem>>, vector<4x96xf32>
    %c12_426 = arith.constant 12 : index
    %c0_427 = arith.constant 0 : index
    %552 = vector.load %arg13[%c12_426, %c0_427] : memref<144x96xf32, #tpu.memory_space<vmem>>, vector<4x96xf32>
    tpu.vector_store %arg13[%c12_426, %c0_427], %551 {strides = array<i32>} : memref<144x96xf32, #tpu.memory_space<vmem>>, vector<4x96xf32>,
    %c0_428 = arith.constant 0 : index
    %c26_429 = arith.constant 26 : index
    %553 = vector.load %arg14[%c0_428, %c26_429] : memref<4x148xf32, #tpu.memory_space<vmem>>, vector<4x96xf32>
    %c16_430 = arith.constant 16 : index
    %c0_431 = arith.constant 0 : index
    %554 = vector.load %arg13[%c16_430, %c0_431] : memref<144x96xf32, #tpu.memory_space<vmem>>, vector<4x96xf32>
    tpu.vector_store %arg13[%c16_430, %c0_431], %553 {strides = array<i32>} : memref<144x96xf32, #tpu.memory_space<vmem>>, vector<4x96xf32>,
    %c0_432 = arith.constant 0 : index
    %c27_433 = arith.constant 27 : index
    %555 = vector.load %arg14[%c0_432, %c27_433] : memref<4x148xf32, #tpu.memory_space<vmem>>, vector<4x96xf32>
    %c20_434 = arith.constant 20 : index
    %c0_435 = arith.constant 0 : index
    %556 = vector.load %arg13[%c20_434, %c0_435] : memref<144x96xf32, #tpu.memory_space<vmem>>, vector<4x96xf32>
    tpu.vector_store %arg13[%c20_434, %c0_435], %555 {strides = array<i32>} : memref<144x96xf32, #tpu.memory_space<vmem>>, vector<4x96xf32>,
    %c0_436 = arith.constant 0 : index
    %c37_437 = arith.constant 37 : index
    %557 = vector.load %arg14[%c0_436, %c37_437] : memref<4x148xf32, #tpu.memory_space<vmem>>, vector<4x96xf32>
    %c24_438 = arith.constant 24 : index
    %c0_439 = arith.constant 0 : index
    %558 = vector.load %arg13[%c24_438, %c0_439] : memref<144x96xf32, #tpu.memory_space<vmem>>, vector<4x96xf32>
    tpu.vector_store %arg13[%c24_438, %c0_439], %557 {strides = array<i32>} : memref<144x96xf32, #tpu.memory_space<vmem>>, vector<4x96xf32>,
    %c0_440 = arith.constant 0 : index
    %c38_441 = arith.constant 38 : index
    %559 = vector.load %arg14[%c0_440, %c38_441] : memref<4x148xf32, #tpu.memory_space<vmem>>, vector<4x96xf32>
    %c28_442 = arith.constant 28 : index
    %c0_443 = arith.constant 0 : index
    %560 = vector.load %arg13[%c28_442, %c0_443] : memref<144x96xf32, #tpu.memory_space<vmem>>, vector<4x96xf32>
    tpu.vector_store %arg13[%c28_442, %c0_443], %559 {strides = array<i32>} : memref<144x96xf32, #tpu.memory_space<vmem>>, vector<4x96xf32>,
    %c0_444 = arith.constant 0 : index
    %c39_445 = arith.constant 39 : index
    %561 = vector.load %arg14[%c0_444, %c39_445] : memref<4x148xf32, #tpu.memory_space<vmem>>, vector<4x96xf32>
    %c32_446 = arith.constant 32 : index
    %c0_447 = arith.constant 0 : index
    %562 = vector.load %arg13[%c32_446, %c0_447] : memref<144x96xf32, #tpu.memory_space<vmem>>, vector<4x96xf32>
    tpu.vector_store %arg13[%c32_446, %c0_447], %561 {strides = array<i32>} : memref<144x96xf32, #tpu.memory_space<vmem>>, vector<4x96xf32>,
    %c0_448 = arith.constant 0 : index
    %c0_449 = arith.constant 0 : index
    %563 = vector.load %arg4[%c0_448, %c0_449] : memref<4x36xbf16, #tpu.memory_space<vmem>>, vector<4x36xbf16>
    %c0_450 = arith.constant 0 : index
    %c0_451 = arith.constant 0 : index
    %564 = vector.load %arg13[%c0_450, %c0_451] : memref<144x96xf32, #tpu.memory_space<vmem>>, vector<36x96xf32>
    %565 = arith.truncf %564 : vector<36x96xf32> to vector<36x96xbf16>
    %cst_452 = arith.constant dense<0.000000e+00> : vector<4x96xf32>
    %566 = tpu.matmul %563, %565, %cst_452 {dimension_numbers = #tpu.dot_dimension_numbers<[1], [0], [0], [1], [0, 0, 1, 1], [], []>} : vector<4x36xbf16>, vector<36x96xbf16>, vector<4x96xf32> -> vector<4x96xf32>
    %c0_453 = arith.constant 0 : index
    %c0_454 = arith.constant 0 : index
    %567 = vector.load %arg5[%c0_453, %c0_454] : memref<4x1xf32, #tpu.memory_space<vmem>>, vector<4x1xf32>
    %568 = vector.broadcast %567 : vector<4x1xf32> to vector<4x96xf32>
    %569 = arith.addf %566, %568 : vector<4x96xf32>
    %570 = vector.broadcast %0 : vector<1x96xf32> to vector<4x96xf32>
    %571 = arith.mulf %569, %570 : vector<4x96xf32>
    %c0_455 = arith.constant 0 : index
    %c26_456 = arith.constant 26 : index
    %572 = vector.load %arg15[%c0_455, %c26_456] : memref<4x148xf32, #tpu.memory_space<vmem>>, vector<4x96xf32>
    tpu.vector_store %arg15[%c0_455, %c26_456], %571 {strides = array<i32>} : memref<4x148xf32, #tpu.memory_space<vmem>>, vector<4x96xf32>,
    %c0_457 = arith.constant 0 : index
    %c13_458 = arith.constant 13 : index
    %573 = vector.load %arg15[%c0_457, %c13_458] : memref<4x148xf32, #tpu.memory_space<vmem>>, vector<4x96xf32>
    %c0_459 = arith.constant 0 : index
    %c0_460 = arith.constant 0 : index
    %574 = vector.load %arg13[%c0_459, %c0_460] : memref<144x96xf32, #tpu.memory_space<vmem>>, vector<4x96xf32>
    tpu.vector_store %arg13[%c0_459, %c0_460], %573 {strides = array<i32>} : memref<144x96xf32, #tpu.memory_space<vmem>>, vector<4x96xf32>,
    %c0_461 = arith.constant 0 : index
    %c14_462 = arith.constant 14 : index
    %575 = vector.load %arg15[%c0_461, %c14_462] : memref<4x148xf32, #tpu.memory_space<vmem>>, vector<4x96xf32>
    %c4_463 = arith.constant 4 : index
    %c0_464 = arith.constant 0 : index
    %576 = vector.load %arg13[%c4_463, %c0_464] : memref<144x96xf32, #tpu.memory_space<vmem>>, vector<4x96xf32>
    tpu.vector_store %arg13[%c4_463, %c0_464], %575 {strides = array<i32>} : memref<144x96xf32, #tpu.memory_space<vmem>>, vector<4x96xf32>,
    %c0_465 = arith.constant 0 : index
    %c15_466 = arith.constant 15 : index
    %577 = vector.load %arg15[%c0_465, %c15_466] : memref<4x148xf32, #tpu.memory_space<vmem>>, vector<4x96xf32>
    %c8_467 = arith.constant 8 : index
    %c0_468 = arith.constant 0 : index
    %578 = vector.load %arg13[%c8_467, %c0_468] : memref<144x96xf32, #tpu.memory_space<vmem>>, vector<4x96xf32>
    tpu.vector_store %arg13[%c8_467, %c0_468], %577 {strides = array<i32>} : memref<144x96xf32, #tpu.memory_space<vmem>>, vector<4x96xf32>,
    %c0_469 = arith.constant 0 : index
    %c25_470 = arith.constant 25 : index
    %579 = vector.load %arg15[%c0_469, %c25_470] : memref<4x148xf32, #tpu.memory_space<vmem>>, vector<4x96xf32>
    %c12_471 = arith.constant 12 : index
    %c0_472 = arith.constant 0 : index
    %580 = vector.load %arg13[%c12_471, %c0_472] : memref<144x96xf32, #tpu.memory_space<vmem>>, vector<4x96xf32>
    tpu.vector_store %arg13[%c12_471, %c0_472], %579 {strides = array<i32>} : memref<144x96xf32, #tpu.memory_space<vmem>>, vector<4x96xf32>,
    %c0_473 = arith.constant 0 : index
    %c26_474 = arith.constant 26 : index
    %581 = vector.load %arg15[%c0_473, %c26_474] : memref<4x148xf32, #tpu.memory_space<vmem>>, vector<4x96xf32>
    %c16_475 = arith.constant 16 : index
    %c0_476 = arith.constant 0 : index
    %582 = vector.load %arg13[%c16_475, %c0_476] : memref<144x96xf32, #tpu.memory_space<vmem>>, vector<4x96xf32>
    tpu.vector_store %arg13[%c16_475, %c0_476], %581 {strides = array<i32>} : memref<144x96xf32, #tpu.memory_space<vmem>>, vector<4x96xf32>,
    %c0_477 = arith.constant 0 : index
    %c27_478 = arith.constant 27 : index
    %583 = vector.load %arg15[%c0_477, %c27_478] : memref<4x148xf32, #tpu.memory_space<vmem>>, vector<4x96xf32>
    %c20_479 = arith.constant 20 : index
    %c0_480 = arith.constant 0 : index
    %584 = vector.load %arg13[%c20_479, %c0_480] : memref<144x96xf32, #tpu.memory_space<vmem>>, vector<4x96xf32>
    tpu.vector_store %arg13[%c20_479, %c0_480], %583 {strides = array<i32>} : memref<144x96xf32, #tpu.memory_space<vmem>>, vector<4x96xf32>,
    %c0_481 = arith.constant 0 : index
    %c37_482 = arith.constant 37 : index
    %585 = vector.load %arg15[%c0_481, %c37_482] : memref<4x148xf32, #tpu.memory_space<vmem>>, vector<4x96xf32>
    %c24_483 = arith.constant 24 : index
    %c0_484 = arith.constant 0 : index
    %586 = vector.load %arg13[%c24_483, %c0_484] : memref<144x96xf32, #tpu.memory_space<vmem>>, vector<4x96xf32>
    tpu.vector_store %arg13[%c24_483, %c0_484], %585 {strides = array<i32>} : memref<144x96xf32, #tpu.memory_space<vmem>>, vector<4x96xf32>,
    %c0_485 = arith.constant 0 : index
    %c38_486 = arith.constant 38 : index
    %587 = vector.load %arg15[%c0_485, %c38_486] : memref<4x148xf32, #tpu.memory_space<vmem>>, vector<4x96xf32>
    %c28_487 = arith.constant 28 : index
    %c0_488 = arith.constant 0 : index
    %588 = vector.load %arg13[%c28_487, %c0_488] : memref<144x96xf32, #tpu.memory_space<vmem>>, vector<4x96xf32>
    tpu.vector_store %arg13[%c28_487, %c0_488], %587 {strides = array<i32>} : memref<144x96xf32, #tpu.memory_space<vmem>>, vector<4x96xf32>,
    %c0_489 = arith.constant 0 : index
    %c39_490 = arith.constant 39 : index
    %589 = vector.load %arg15[%c0_489, %c39_490] : memref<4x148xf32, #tpu.memory_space<vmem>>, vector<4x96xf32>
    %c32_491 = arith.constant 32 : index
    %c0_492 = arith.constant 0 : index
    %590 = vector.load %arg13[%c32_491, %c0_492] : memref<144x96xf32, #tpu.memory_space<vmem>>, vector<4x96xf32>
    tpu.vector_store %arg13[%c32_491, %c0_492], %589 {strides = array<i32>} : memref<144x96xf32, #tpu.memory_space<vmem>>, vector<4x96xf32>,
    %c0_493 = arith.constant 0 : index
    %c0_494 = arith.constant 0 : index
    %591 = vector.load %arg6[%c0_493, %c0_494] : memref<8x36xbf16, #tpu.memory_space<vmem>>, vector<8x36xbf16>
    %c0_495 = arith.constant 0 : index
    %c0_496 = arith.constant 0 : index
    %592 = vector.load %arg13[%c0_495, %c0_496] : memref<144x96xf32, #tpu.memory_space<vmem>>, vector<36x96xf32>
    %593 = arith.truncf %592 : vector<36x96xf32> to vector<36x96xbf16>
    %cst_497 = arith.constant dense<0.000000e+00> : vector<8x96xf32>
    %594 = tpu.matmul %591, %593, %cst_497 {dimension_numbers = #tpu.dot_dimension_numbers<[1], [0], [0], [1], [0, 0, 1, 1], [], []>} : vector<8x36xbf16>, vector<36x96xbf16>, vector<8x96xf32> -> vector<8x96xf32>
    %c0_498 = arith.constant 0 : index
    %c0_499 = arith.constant 0 : index
    %595 = vector.load %arg7[%c0_498, %c0_499] : memref<8x1xf32, #tpu.memory_space<vmem>>, vector<8x1xf32>
    %596 = vector.broadcast %595 : vector<8x1xf32> to vector<8x96xf32>
    %597 = arith.addf %594, %596 : vector<8x96xf32>
    %598 = tpu.concatenate %540, %569, %597 in 0 : vector<4x96xf32>, vector<4x96xf32>, vector<8x96xf32> -> vector<16x96xf32>
    %599 = arith.addf %598, %541 : vector<16x96xf32>
    %600 = arith.subf %531, %532 : vector<16x96xf32>
    %601 = arith.addf %600, %599 : vector<16x96xf32>
    %c1_500 = arith.constant 1 : index
    %c0_501 = arith.constant 0 : index
    %c0_502 = arith.constant 0 : index
    %602 = vector.load %arg11[%c1_500, %c0_501, %c0_502] : memref<2x16x96xf32, #tpu.memory_space<vmem>>, vector<1x16x96xf32>
    %603 = vector.shape_cast %602 : vector<1x16x96xf32> to vector<16x96xf32>
    %604 = vector.shape_cast %601 : vector<16x96xf32> to vector<1x16x96xf32>
    tpu.vector_store %arg11[%c1_500, %c0_501, %c0_502], %604 {strides = array<i32>} : memref<2x16x96xf32, #tpu.memory_space<vmem>>, vector<1x16x96xf32>,
    return
  }
  func.func @transform_0(%arg0: i32) -> (i32, i32, i32) {
    %c0_i32 = arith.constant 0 : i32
    %c0_i32_0 = arith.constant 0 : i32
    %c0_i32_1 = arith.constant 0 : i32
    return %arg0, %c0_i32, %c0_i32_0 : i32, i32, i32
  }
  func.func @transform_1(%arg0: i32) -> (i32, i32) {
    %c0_i32 = arith.constant 0 : i32
    %c0_i32_0 = arith.constant 0 : i32
    %c0_i32_1 = arith.constant 0 : i32
    return %c0_i32, %c0_i32_0 : i32, i32
  }
  func.func @transform_2(%arg0: i32) -> (i32, i32) {
    %c0_i32 = arith.constant 0 : i32
    %c0_i32_0 = arith.constant 0 : i32
    %c0_i32_1 = arith.constant 0 : i32
    return %c0_i32, %c0_i32_0 : i32, i32
  }
  func.func @transform_3(%arg0: i32) -> (i32, i32) {
    %c0_i32 = arith.constant 0 : i32
    %c0_i32_0 = arith.constant 0 : i32
    %c0_i32_1 = arith.constant 0 : i32
    return %c0_i32, %c0_i32_0 : i32, i32
  }
  func.func @transform_4(%arg0: i32) -> (i32, i32) {
    %c0_i32 = arith.constant 0 : i32
    %c0_i32_0 = arith.constant 0 : i32
    %c0_i32_1 = arith.constant 0 : i32
    return %c0_i32, %c0_i32_0 : i32, i32
  }
  func.func @transform_5(%arg0: i32) -> (i32, i32) {
    %c0_i32 = arith.constant 0 : i32
    %c0_i32_0 = arith.constant 0 : i32
    %c0_i32_1 = arith.constant 0 : i32
    return %c0_i32, %c0_i32_0 : i32, i32
  }
  func.func @transform_6(%arg0: i32) -> (i32, i32) {
    %c0_i32 = arith.constant 0 : i32
    %c0_i32_0 = arith.constant 0 : i32
    %c0_i32_1 = arith.constant 0 : i32
    return %c0_i32, %c0_i32_0 : i32, i32
  }
  func.func @transform_7(%arg0: i32) -> (i32, i32) {
    %c0_i32 = arith.constant 0 : i32
    %c0_i32_0 = arith.constant 0 : i32
    %c0_i32_1 = arith.constant 0 : i32
    return %c0_i32, %c0_i32_0 : i32, i32
  }
  func.func @transform_8(%arg0: i32) -> (i32, i32) {
    %c0_i32 = arith.constant 0 : i32
    %c0_i32_0 = arith.constant 0 : i32
    %c0_i32_1 = arith.constant 0 : i32
    return %c0_i32, %c0_i32_0 : i32, i32
  }
  func.func @transform_9(%arg0: i32) -> (i32, i32) {
    %c0_i32 = arith.constant 0 : i32
    %c0_i32_0 = arith.constant 0 : i32
    %c0_i32_1 = arith.constant 0 : i32
    return %c0_i32, %c0_i32_0 : i32, i32
  }
  func.func @transform_10(%arg0: i32) -> (i32, i32, i32) {
    %c0_i32 = arith.constant 0 : i32
    %c0_i32_0 = arith.constant 0 : i32
    %c0_i32_1 = arith.constant 0 : i32
    return %arg0, %c0_i32, %c0_i32_0 : i32, i32, i32
  }
}

module attributes {stable_mosaic.version = 11 : i64} {
  func.func @_sepconv_kernel(%arg0: i32, %arg1: memref<1x16x326xf32, #tpu.memory_space<vmem>>, %arg2: memref<8x144xbf16, #tpu.memory_space<vmem>>, %arg3: memref<8x1xf32, #tpu.memory_space<vmem>>, %arg4: memref<1x8x288xf32, #tpu.memory_space<vmem>>, %arg5: memref<144x288xf32, #tpu.memory_space<vmem>>) attributes {dimension_semantics = [#tpu.dimension_semantics<parallel>], iteration_bounds = array<i64: 2>, scalar_prefetch = 0 : i64, scratch_operands = 1 : i64, tpu.core_type = #tpu.core_type<tc>, window_params = [{transform_indices = @transform_0, window_bounds = array<i64: 1, 16, 326>}, {pipeline_mode = #tpu.pipeline_mode<synchronous>, transform_indices = @transform_1, window_bounds = array<i64: 8, 144>}, {pipeline_mode = #tpu.pipeline_mode<synchronous>, transform_indices = @transform_2, window_bounds = array<i64: 8, 1>}, {transform_indices = @transform_3, window_bounds = array<i64: 1, 8, 288>}]} {
    %c0 = arith.constant 0 : index
    %c0_0 = arith.constant 0 : index
    %c0_1 = arith.constant 0 : index
    %0 = vector.load %arg1[%c0, %c0_0, %c0_1] : memref<1x16x326xf32, #tpu.memory_space<vmem>>, vector<1x16x288xf32>
    %1 = vector.shape_cast %0 : vector<1x16x288xf32> to vector<16x288xf32>
    %c0_2 = arith.constant 0 : index
    %c0_3 = arith.constant 0 : index
    %2 = vector.load %arg5[%c0_2, %c0_3] : memref<144x288xf32, #tpu.memory_space<vmem>>, vector<16x288xf32>
    tpu.vector_store %arg5[%c0_2, %c0_3], %1 {strides = array<i32>} : memref<144x288xf32, #tpu.memory_space<vmem>>, vector<16x288xf32>,
    %c0_4 = arith.constant 0 : index
    %c0_5 = arith.constant 0 : index
    %c1 = arith.constant 1 : index
    %3 = vector.load %arg1[%c0_4, %c0_5, %c1] : memref<1x16x326xf32, #tpu.memory_space<vmem>>, vector<1x16x288xf32>
    %4 = vector.shape_cast %3 : vector<1x16x288xf32> to vector<16x288xf32>
    %c16 = arith.constant 16 : index
    %c0_6 = arith.constant 0 : index
    %5 = vector.load %arg5[%c16, %c0_6] : memref<144x288xf32, #tpu.memory_space<vmem>>, vector<16x288xf32>
    tpu.vector_store %arg5[%c16, %c0_6], %4 {strides = array<i32>} : memref<144x288xf32, #tpu.memory_space<vmem>>, vector<16x288xf32>,
    %c0_7 = arith.constant 0 : index
    %c0_8 = arith.constant 0 : index
    %c2 = arith.constant 2 : index
    %6 = vector.load %arg1[%c0_7, %c0_8, %c2] : memref<1x16x326xf32, #tpu.memory_space<vmem>>, vector<1x16x288xf32>
    %7 = vector.shape_cast %6 : vector<1x16x288xf32> to vector<16x288xf32>
    %c32 = arith.constant 32 : index
    %c0_9 = arith.constant 0 : index
    %8 = vector.load %arg5[%c32, %c0_9] : memref<144x288xf32, #tpu.memory_space<vmem>>, vector<16x288xf32>
    tpu.vector_store %arg5[%c32, %c0_9], %7 {strides = array<i32>} : memref<144x288xf32, #tpu.memory_space<vmem>>, vector<16x288xf32>,
    %c0_10 = arith.constant 0 : index
    %c0_11 = arith.constant 0 : index
    %c18 = arith.constant 18 : index
    %9 = vector.load %arg1[%c0_10, %c0_11, %c18] : memref<1x16x326xf32, #tpu.memory_space<vmem>>, vector<1x16x288xf32>
    %10 = vector.shape_cast %9 : vector<1x16x288xf32> to vector<16x288xf32>
    %c48 = arith.constant 48 : index
    %c0_12 = arith.constant 0 : index
    %11 = vector.load %arg5[%c48, %c0_12] : memref<144x288xf32, #tpu.memory_space<vmem>>, vector<16x288xf32>
    tpu.vector_store %arg5[%c48, %c0_12], %10 {strides = array<i32>} : memref<144x288xf32, #tpu.memory_space<vmem>>, vector<16x288xf32>,
    %c0_13 = arith.constant 0 : index
    %c0_14 = arith.constant 0 : index
    %c19 = arith.constant 19 : index
    %12 = vector.load %arg1[%c0_13, %c0_14, %c19] : memref<1x16x326xf32, #tpu.memory_space<vmem>>, vector<1x16x288xf32>
    %13 = vector.shape_cast %12 : vector<1x16x288xf32> to vector<16x288xf32>
    %c64 = arith.constant 64 : index
    %c0_15 = arith.constant 0 : index
    %14 = vector.load %arg5[%c64, %c0_15] : memref<144x288xf32, #tpu.memory_space<vmem>>, vector<16x288xf32>
    tpu.vector_store %arg5[%c64, %c0_15], %13 {strides = array<i32>} : memref<144x288xf32, #tpu.memory_space<vmem>>, vector<16x288xf32>,
    %c0_16 = arith.constant 0 : index
    %c0_17 = arith.constant 0 : index
    %c20 = arith.constant 20 : index
    %15 = vector.load %arg1[%c0_16, %c0_17, %c20] : memref<1x16x326xf32, #tpu.memory_space<vmem>>, vector<1x16x288xf32>
    %16 = vector.shape_cast %15 : vector<1x16x288xf32> to vector<16x288xf32>
    %c80 = arith.constant 80 : index
    %c0_18 = arith.constant 0 : index
    %17 = vector.load %arg5[%c80, %c0_18] : memref<144x288xf32, #tpu.memory_space<vmem>>, vector<16x288xf32>
    tpu.vector_store %arg5[%c80, %c0_18], %16 {strides = array<i32>} : memref<144x288xf32, #tpu.memory_space<vmem>>, vector<16x288xf32>,
    %c0_19 = arith.constant 0 : index
    %c0_20 = arith.constant 0 : index
    %c36 = arith.constant 36 : index
    %18 = vector.load %arg1[%c0_19, %c0_20, %c36] : memref<1x16x326xf32, #tpu.memory_space<vmem>>, vector<1x16x288xf32>
    %19 = vector.shape_cast %18 : vector<1x16x288xf32> to vector<16x288xf32>
    %c96 = arith.constant 96 : index
    %c0_21 = arith.constant 0 : index
    %20 = vector.load %arg5[%c96, %c0_21] : memref<144x288xf32, #tpu.memory_space<vmem>>, vector<16x288xf32>
    tpu.vector_store %arg5[%c96, %c0_21], %19 {strides = array<i32>} : memref<144x288xf32, #tpu.memory_space<vmem>>, vector<16x288xf32>,
    %c0_22 = arith.constant 0 : index
    %c0_23 = arith.constant 0 : index
    %c37 = arith.constant 37 : index
    %21 = vector.load %arg1[%c0_22, %c0_23, %c37] : memref<1x16x326xf32, #tpu.memory_space<vmem>>, vector<1x16x288xf32>
    %22 = vector.shape_cast %21 : vector<1x16x288xf32> to vector<16x288xf32>
    %c112 = arith.constant 112 : index
    %c0_24 = arith.constant 0 : index
    %23 = vector.load %arg5[%c112, %c0_24] : memref<144x288xf32, #tpu.memory_space<vmem>>, vector<16x288xf32>
    tpu.vector_store %arg5[%c112, %c0_24], %22 {strides = array<i32>} : memref<144x288xf32, #tpu.memory_space<vmem>>, vector<16x288xf32>,
    %c0_25 = arith.constant 0 : index
    %c0_26 = arith.constant 0 : index
    %c38 = arith.constant 38 : index
    %24 = vector.load %arg1[%c0_25, %c0_26, %c38] : memref<1x16x326xf32, #tpu.memory_space<vmem>>, vector<1x16x288xf32>
    %25 = vector.shape_cast %24 : vector<1x16x288xf32> to vector<16x288xf32>
    %c128 = arith.constant 128 : index
    %c0_27 = arith.constant 0 : index
    %26 = vector.load %arg5[%c128, %c0_27] : memref<144x288xf32, #tpu.memory_space<vmem>>, vector<16x288xf32>
    tpu.vector_store %arg5[%c128, %c0_27], %25 {strides = array<i32>} : memref<144x288xf32, #tpu.memory_space<vmem>>, vector<16x288xf32>,
    %c0_28 = arith.constant 0 : index
    %c0_29 = arith.constant 0 : index
    %27 = vector.load %arg2[%c0_28, %c0_29] : memref<8x144xbf16, #tpu.memory_space<vmem>>, vector<8x144xbf16>
    %c0_30 = arith.constant 0 : index
    %c0_31 = arith.constant 0 : index
    %28 = vector.load %arg5[%c0_30, %c0_31] : memref<144x288xf32, #tpu.memory_space<vmem>>, vector<144x288xf32>
    %29 = arith.truncf %28 : vector<144x288xf32> to vector<144x288xbf16>
    %cst = arith.constant dense<0.000000e+00> : vector<8x288xf32>
    %30 = tpu.matmul %27, %29, %cst {dimension_numbers = #tpu.dot_dimension_numbers<[1], [0], [0], [1], [0, 0, 1, 1], [], []>} : vector<8x144xbf16>, vector<144x288xbf16>, vector<8x288xf32> -> vector<8x288xf32>
    %c0_32 = arith.constant 0 : index
    %c0_33 = arith.constant 0 : index
    %31 = vector.load %arg3[%c0_32, %c0_33] : memref<8x1xf32, #tpu.memory_space<vmem>>, vector<8x1xf32>
    %32 = vector.broadcast %31 : vector<8x1xf32> to vector<8x288xf32>
    %33 = arith.addf %30, %32 : vector<8x288xf32>
    %c0_34 = arith.constant 0 : index
    %c0_35 = arith.constant 0 : index
    %c0_36 = arith.constant 0 : index
    %34 = vector.load %arg4[%c0_34, %c0_35, %c0_36] : memref<1x8x288xf32, #tpu.memory_space<vmem>>, vector<1x8x288xf32>
    %35 = vector.shape_cast %34 : vector<1x8x288xf32> to vector<8x288xf32>
    %36 = vector.shape_cast %33 : vector<8x288xf32> to vector<1x8x288xf32>
    tpu.vector_store %arg4[%c0_34, %c0_35, %c0_36], %36 {strides = array<i32>} : memref<1x8x288xf32, #tpu.memory_space<vmem>>, vector<1x8x288xf32>,
    return
  }
  func.func @transform_0(%arg0: i32) -> (i32, i32, i32) {
    %c0_i32 = arith.constant 0 : i32
    %c0_i32_0 = arith.constant 0 : i32
    %c0_i32_1 = arith.constant 0 : i32
    return %arg0, %c0_i32, %c0_i32_0 : i32, i32, i32
  }
  func.func @transform_1(%arg0: i32) -> (i32, i32) {
    %c0_i32 = arith.constant 0 : i32
    %c0_i32_0 = arith.constant 0 : i32
    %c0_i32_1 = arith.constant 0 : i32
    return %c0_i32, %c0_i32_0 : i32, i32
  }
  func.func @transform_2(%arg0: i32) -> (i32, i32) {
    %c0_i32 = arith.constant 0 : i32
    %c0_i32_0 = arith.constant 0 : i32
    %c0_i32_1 = arith.constant 0 : i32
    return %c0_i32, %c0_i32_0 : i32, i32
  }
  func.func @transform_3(%arg0: i32) -> (i32, i32, i32) {
    %c0_i32 = arith.constant 0 : i32
    %c0_i32_0 = arith.constant 0 : i32
    %c0_i32_1 = arith.constant 0 : i32
    return %arg0, %c0_i32, %c0_i32_0 : i32, i32, i32
  }
}

</mosaic_0001>

<llo_original>
// kernel: sub.15
$region0: #{sub.15}
  %s0 = inlined_call_operand.vmem [shape: f32[5,5], index: 0, kind: input, shape index: {}]
  %s1 = inlined_call_operand.vmem [shape: f32[25], index: 1, kind: output, shape index: {}]
  $region1: #{sub.15} parent=0
    #allocation0 [shape = 'u8[4096]{0}', space=vmem, size = 0x1000, scoped, tag = 'scoped mem for output reshape']
    %v2 = vld [vmem:[%s0] sm:$0x1]
    %vm3 = vcmask 39936
    %4 = vst.msk [vmem:[#allocation0] sm:$0x1] %vm3, %v2
    %s5 = scalar_lea.vmem %s0, 4
    %v6 = vld [vmem:[%s5] sm:$0x1]
    %7 = vrot.lane.b32.xlu0 %v6, 20
    %v8 = vpop.permute.xlu0 %7
    %vm9 = vcmask 203936
    %10 = vst.msk [vmem:[#allocation0] sm:$0x1] %vm9, %v8
    %s11 = scalar_lea.vmem %s0, 3
    %v12 = vld [vmem:[%s11] sm:$0x1]
    %13 = vrot.lane.b32.xlu0 %v12, 15
    %v14 = vpop.permute.xlu0 %13
    %vm15 = vcmask 162936
    %16 = vst.msk [vmem:[#allocation0] sm:$0x1] %vm15, %v14
    %s17 = scalar_lea.vmem %s0, 2
    %v18 = vld [vmem:[%s17] sm:$0x1]
    %19 = vrot.lane.b32.xlu0 %v18, 10
    %v20 = vpop.permute.xlu0 %19
    %vm21 = vcmask 121936
    %22 = vst.msk [vmem:[#allocation0] sm:$0x1] %vm21, %v20
    %s23 = scalar_lea.vmem %s0, 1
    %v24 = vld [vmem:[%s23] sm:$0x1]
    %25 = vrot.lane.b32.xlu0 %v24, 5
    %v26 = vpop.permute.xlu0 %25
    %vm27 = vcmask 80936
    %28 = vst.msk [vmem:[#allocation0] sm:$0x1] %vm27, %v26
    %s30 = ssub.s32 2, 1
    %v31 = vld [vmem:[#allocation0] sm:%s30]
    %s33 = ssub.s32 2, 1
    %34 = vst [vmem:[%s1] sm:%s33] %v31

// kernel: mpmrm_forward.3
$region0: #{mpmrm_forward.3}
  #allocation0 [shape = 'u32[]', space=smem, size = 0x4, offset = 0x4, fixed_abs, tag = 'smem constant byte address 0x4 - core index']
  #allocation1 [shape = 'u32[72,128]{1,0:T(1,128)}', space=vmem, size = 0x9000, scoped, tag = 'internal scratch']
  #allocation2 [shape = 'f32[36,96]{1,0:T(8,128)}', space=vmem, size = 0x5000, scoped, tag = 'scratch operand']
  #allocation3 [shape = 'f32[4,148]{1,0:T(4,128)}', space=vmem, size = 0x1000, scoped, tag = 'scratch operand']
  #allocation4 [shape = 'f32[4,148]{1,0:T(4,128)}', space=vmem, size = 0x1000, scoped, tag = 'scratch operand']
  %s0 = inlined_call_operand.vmem [shape: f32[8,4,148], index: 0, kind: input, shape index: {}]
  %s1 = inlined_call_operand.vmem [shape: bf16[20,36], index: 1, kind: input, shape index: {}]
  %s2 = inlined_call_operand.vmem [shape: f32[20,1], index: 2, kind: input, shape index: {}]
  %s3 = inlined_call_operand.vmem [shape: bf16[4,36], index: 3, kind: input, shape index: {}]
  %s4 = inlined_call_operand.vmem [shape: f32[4,1], index: 4, kind: input, shape index: {}]
  %s5 = inlined_call_operand.vmem [shape: bf16[8,36], index: 5, kind: input, shape index: {}]
  %s6 = inlined_call_operand.vmem [shape: f32[8,1], index: 6, kind: input, shape index: {}]
  %s7 = inlined_call_operand.vmem [shape: f32[1,96], index: 7, kind: input, shape index: {}]
  %s8 = inlined_call_operand.vmem [shape: f32[8,16,96], index: 8, kind: output, shape index: {}]
  %s9 = sld [smem:[#allocation0]]
  $region65: #{mpmrm_forward.3} parent=0
    _
  %s11 = ssub.s32 1, %s9
  %s12 = scalar_select 0, %s11, %s9
  loop: start=0, step=1, limit=6
  $region2: #{mpmrm_forward.3} parent=0 // loop_pre_header
    _
  $region3: #{mpmrm_forward.3} parent=0 // loop_header
    %s14 = sphi 0, %s18
    %p15 = scmp.ge.s32.totalorder %s14, 6
    %s24 = sphi 0, %s26
    %s27 = sphi 0, %s24
    %s28 = sphi 0, %s27
    %s44 = sphi 0, %s28
    %s48 = sphi 0, %s48
    %s50 = sphi 0, %s48
    %s51 = sphi 0, %s50
    %s65 = sphi 0, %s51
    %s69 = sphi 0, %s69
    %s71 = sphi 0, %s69
    %s72 = sphi 0, %s71
    %s86 = sphi 0, %s72
    %s90 = sphi 0, %s90
    %s92 = sphi 0, %s90
    %s93 = sphi 0, %s92
    %s107 = sphi 0, %s93
    %s111 = sphi 0, %s111
    %s113 = sphi 0, %s111
    %s114 = sphi 0, %s113
    %s128 = sphi 0, %s114
    %s132 = sphi 0, %s132
    %s134 = sphi 0, %s132
    %s135 = sphi 0, %s134
    %s149 = sphi 0, %s135
    %s153 = sphi 0, %s153
    %s155 = sphi 0, %s153
    %s156 = sphi 0, %s155
    %s170 = sphi 0, %s156
    %s174 = sphi 0, %s174
    %s176 = sphi 0, %s174
    %s177 = sphi 0, %s176
    %s191 = sphi 0, %s177
    %s197 = sphi 0, %s199
    %s200 = sphi 0, %s197
    %s201 = sphi 0, %s200
    %s217 = sphi 0, %s201
  $region4: #{mpmrm_forward.3} parent=0 // loop_header_branch
    %17 = sbr.rel (%p15) target = $region8
  $region5: #{mpmrm_forward.3} parent=0 // loop_body
    %s19 = ssub.s32 %s14, 1
    %s20 = ssub.s32 %s14, 2
    %s21 = sadd.s32 %s14, 1
    %s22 = ssub.s32 %s14, %s21
    %p23 = scmp.eq.s32.totalorder %s22, 0
    %s25 = sadd.s32 %s24, 1
    %s26 = scalar_select %p23, %s24, %s25
    %p29 = pneg %p23
    %p30 = scmp.eq.s32.totalorder %s14, 3
    %p31 = por %p29, %p30
    %p32 = scmp.ne.s32.totalorder %s24, %s27
    %p33 = scmp.eq.s32.totalorder %s14, 0
    %p34 = por %p32, %p33
    %p35 = scmp.ne.s32.totalorder %s24, %s27
    %p36 = scmp.eq.s32.totalorder %s19, 3
    %p37 = por %p35, %p36
    %p38 = scmp.ne.s32.totalorder %s27, %s28
    %p39 = scmp.eq.s32.totalorder %s19, 0
    %p40 = por %p38, %p39
    %p41 = scmp.ne.s32.totalorder %s27, %s28
    %p42 = scmp.eq.s32.totalorder %s20, 3
    %p43 = por %p41, %p42
    %p45 = scmp.ne.s32.totalorder %s28, %s44
    %p46 = scmp.eq.s32.totalorder %s20, 0
    %p47 = por %p45, %p46
    %s49 = sadd.s32 %s48, 1
    %p52 = scmp.eq.s32.totalorder %s14, 3
    %p53 = scmp.ne.s32.totalorder %s48, %s50
    %p54 = scmp.eq.s32.totalorder %s14, 0
    %p55 = por %p53, %p54
    %p56 = scmp.ne.s32.totalorder %s48, %s50
    %p57 = scmp.eq.s32.totalorder %s19, 3
    %p58 = por %p56, %p57
    %p59 = scmp.ne.s32.totalorder %s50, %s51
    %p60 = scmp.eq.s32.totalorder %s19, 0
    %p61 = por %p59, %p60
    %p62 = scmp.ne.s32.totalorder %s50, %s51
    %p63 = scmp.eq.s32.totalorder %s20, 3
    %p64 = por %p62, %p63
    %p66 = scmp.ne.s32.totalorder %s51, %s65
    %p67 = scmp.eq.s32.totalorder %s20, 0
    %p68 = por %p66, %p67
    %s70 = sadd.s32 %s69, 1
    %p73 = scmp.eq.s32.totalorder %s14, 3
    %p74 = scmp.ne.s32.totalorder %s69, %s71
    %p75 = scmp.eq.s32.totalorder %s14, 0
    %p76 = por %p74, %p75
    %p77 = scmp.ne.s32.totalorder %s69, %s71
    %p78 = scmp.eq.s32.totalorder %s19, 3
    %p79 = por %p77, %p78
    %p80 = scmp.ne.s32.totalorder %s71, %s72
    %p81 = scmp.eq.s32.totalorder %s19, 0
    %p82 = por %p80, %p81
    %p83 = scmp.ne.s32.totalorder %s71, %s72
    %p84 = scmp.eq.s32.totalorder %s20, 3
    %p85 = por %p83, %p84
    %p87 = scmp.ne.s32.totalorder %s72, %s86
    %p88 = scmp.eq.s32.totalorder %s20, 0
    %p89 = por %p87, %p88
    %s91 = sadd.s32 %s90, 1
    %p94 = scmp.eq.s32.totalorder %s14, 3
    %p95 = scmp.ne.s32.totalorder %s90, %s92
    %p96 = scmp.eq.s32.totalorder %s14, 0
    %p97 = por %p95, %p96
    %p98 = scmp.ne.s32.totalorder %s90, %s92
    %p99 = scmp.eq.s32.totalorder %s19, 3
    %p100 = por %p98, %p99
    %p101 = scmp.ne.s32.totalorder %s92, %s93
    %p102 = scmp.eq.s32.totalorder %s19, 0
    %p103 = por %p101, %p102
    %p104 = scmp.ne.s32.totalorder %s92, %s93
    %p105 = scmp.eq.s32.totalorder %s20, 3
    %p106 = por %p104, %p105
    %p108 = scmp.ne.s32.totalorder %s93, %s107
    %p109 = scmp.eq.s32.totalorder %s20, 0
    %p110 = por %p108, %p109
    %s112 = sadd.s32 %s111, 1
    %p115 = scmp.eq.s32.totalorder %s14, 3
    %p116 = scmp.ne.s32.totalorder %s111, %s113
    %p117 = scmp.eq.s32.totalorder %s14, 0
    %p118 = por %p116, %p117
    %p119 = scmp.ne.s32.totalorder %s111, %s113
    %p120 = scmp.eq.s32.totalorder %s19, 3
    %p121 = por %p119, %p120
    %p122 = scmp.ne.s32.totalorder %s113, %s114
    %p123 = scmp.eq.s32.totalorder %s19, 0
    %p124 = por %p122, %p123
    %p125 = scmp.ne.s32.totalorder %s113, %s114
    %p126 = scmp.eq.s32.totalorder %s20, 3
    %p127 = por %p125, %p126
    %p129 = scmp.ne.s32.totalorder %s114, %s128
    %p130 = scmp.eq.s32.totalorder %s20, 0
    %p131 = por %p129, %p130
    %s133 = sadd.s32 %s132, 1
    %p136 = scmp.eq.s32.totalorder %s14, 3
    %p137 = scmp.ne.s32.totalorder %s132, %s134
    %p138 = scmp.eq.s32.totalorder %s14, 0
    %p139 = por %p137, %p138
    %p140 = scmp.ne.s32.totalorder %s132, %s134
    %p141 = scmp.eq.s32.totalorder %s19, 3
    %p142 = por %p140, %p141
    %p143 = scmp.ne.s32.totalorder %s134, %s135
    %p144 = scmp.eq.s32.totalorder %s19, 0
    %p145 = por %p143, %p144
    %p146 = scmp.ne.s32.totalorder %s134, %s135
    %p147 = scmp.eq.s32.totalorder %s20, 3
    %p148 = por %p146, %p147
    %p150 = scmp.ne.s32.totalorder %s135, %s149
    %p151 = scmp.eq.s32.totalorder %s20, 0
    %p152 = por %p150, %p151
    %s154 = sadd.s32 %s153, 1
    %p157 = scmp.eq.s32.totalorder %s14, 3
    %p158 = scmp.ne.s32.totalorder %s153, %s155
    %p159 = scmp.eq.s32.totalorder %s14, 0
    %p160 = por %p158, %p159
    %p161 = scmp.ne.s32.totalorder %s153, %s155
    %p162 = scmp.eq.s32.totalorder %s19, 3
    %p163 = por %p161, %p162
    %p164 = scmp.ne.s32.totalorder %s155, %s156
    %p165 = scmp.eq.s32.totalorder %s19, 0
    %p166 = por %p164, %p165
    %p167 = scmp.ne.s32.totalorder %s155, %s156
    %p168 = scmp.eq.s32.totalorder %s20, 3
    %p169 = por %p167, %p168
    %p171 = scmp.ne.s32.totalorder %s156, %s170
    %p172 = scmp.eq.s32.totalorder %s20, 0
    %p173 = por %p171, %p172
    %s175 = sadd.s32 %s174, 1
    %p178 = scmp.eq.s32.totalorder %s14, 3
    %p179 = scmp.ne.s32.totalorder %s174, %s176
    %p180 = scmp.eq.s32.totalorder %s14, 0
    %p181 = por %p179, %p180
    %p182 = scmp.ne.s32.totalorder %s174, %s176
    %p183 = scmp.eq.s32.totalorder %s19, 3
    %p184 = por %p182, %p183
    %p185 = scmp.ne.s32.totalorder %s176, %s177
    %p186 = scmp.eq.s32.totalorder %s19, 0
    %p187 = por %p185, %p186
    %p188 = scmp.ne.s32.totalorder %s176, %s177
    %p189 = scmp.eq.s32.totalorder %s20, 3
    %p190 = por %p188, %p189
    %p192 = scmp.ne.s32.totalorder %s177, %s191
    %p193 = scmp.eq.s32.totalorder %s20, 0
    %p194 = por %p192, %p193
    %s195 = ssub.s32 %s14, %s21
    %p196 = scmp.eq.s32.totalorder %s195, 0
    %s198 = sadd.s32 %s197, 1
    %s199 = scalar_select %p196, %s197, %s198
    %p202 = pneg %p196
    %p203 = scmp.eq.s32.totalorder %s14, 3
    %p204 = por %p202, %p203
    %p205 = scmp.ne.s32.totalorder %s197, %s200
    %p206 = scmp.eq.s32.totalorder %s14, 0
    %p207 = por %p205, %p206
    %p208 = scmp.ne.s32.totalorder %s197, %s200
    %p209 = scmp.eq.s32.totalorder %s19, 3
    %p210 = por %p208, %p209
    %p211 = scmp.ne.s32.totalorder %s200, %s201
    %p212 = scmp.eq.s32.totalorder %s19, 0
    %p213 = por %p211, %p212
    %p214 = scmp.ne.s32.totalorder %s200, %s201
    %p215 = scmp.eq.s32.totalorder %s20, 3
    %p216 = por %p214, %p215
    %p218 = scmp.ne.s32.totalorder %s201, %s217
    %p219 = scmp.eq.s32.totalorder %s20, 0
    %p220 = por %p218, %p219
    %p221 = scmp.le.s32.totalorder 1, %s14
    %p222 = scmp.lt.s32.totalorder %s14, 5
    %p223 = pnand %p221, %p222
    %p224 = pneg %p223
    // Predicated region
    $region9: #{mpmrm_forward.3} parent=5 // pred_check
      _
    $region10: #{mpmrm_forward.3} parent=5 // pred_check_branch
      %226 = sbr.rel (%p223) target = $region12
    $region11: #{mpmrm_forward.3} parent=5 // pred_region
      %s227 = ssub.s32 %s14, 1
      // Predicated region
      $region13: #{mpmrm_forward.3} parent=11 // pred_check
        %p228 = pneg %p61
      $region14: #{mpmrm_forward.3} parent=11 // pred_check_branch
        %230 = sbr.rel (%p228) target = $region16
      $region15: #{mpmrm_forward.3} parent=11 // pred_region
        _
      $region16: #{mpmrm_forward.3} parent=11 // pred_fallthru
        _
      // Predicated region
      $region17: #{mpmrm_forward.3} parent=11 // pred_check
        %p231 = pneg %p82
      $region18: #{mpmrm_forward.3} parent=11 // pred_check_branch
        %233 = sbr.rel (%p231) target = $region20
      $region19: #{mpmrm_forward.3} parent=11 // pred_region
        _
      $region20: #{mpmrm_forward.3} parent=11 // pred_fallthru
        _
      // Predicated region
      $region21: #{mpmrm_forward.3} parent=11 // pred_check
        %p234 = pneg %p103
      $region22: #{mpmrm_forward.3} parent=11 // pred_check_branch
        %236 = sbr.rel (%p234) target = $region24
      $region23: #{mpmrm_forward.3} parent=11 // pred_region
        _
      $region24: #{mpmrm_forward.3} parent=11 // pred_fallthru
        _
      // Predicated region
      $region25: #{mpmrm_forward.3} parent=11 // pred_check
        %p237 = pneg %p124
      $region26: #{mpmrm_forward.3} parent=11 // pred_check_branch
        %239 = sbr.rel (%p237) target = $region28
      $region27: #{mpmrm_forward.3} parent=11 // pred_region
        _
      $region28: #{mpmrm_forward.3} parent=11 // pred_fallthru
        _
      // Predicated region
      $region29: #{mpmrm_forward.3} parent=11 // pred_check
        %p240 = pneg %p145
      $region30: #{mpmrm_forward.3} parent=11 // pred_check_branch
        %242 = sbr.rel (%p240) target = $region32
      $region31: #{mpmrm_forward.3} parent=11 // pred_region
        _
      $region32: #{mpmrm_forward.3} parent=11 // pred_fallthru
        _
      // Predicated region
      $region33: #{mpmrm_forward.3} parent=11 // pred_check
        %p243 = pneg %p166
      $region34: #{mpmrm_forward.3} parent=11 // pred_check_branch
        %245 = sbr.rel (%p243) target = $region36
      $region35: #{mpmrm_forward.3} parent=11 // pred_region
        _
      $region36: #{mpmrm_forward.3} parent=11 // pred_fallthru
        _
      // Predicated region
      $region37: #{mpmrm_forward.3} parent=11 // pred_check
        %p246 = pneg %p187
      $region38: #{mpmrm_forward.3} parent=11 // pred_check_branch
        %248 = sbr.rel (%p246) target = $region40
      $region39: #{mpmrm_forward.3} parent=11 // pred_region
        _
      $region40: #{mpmrm_forward.3} parent=11 // pred_fallthru
        _
    $region12: #{mpmrm_forward.3} parent=5 // pred_fallthru
      _
    %p249 = scmp.lt.s32.totalorder %s14, 4
    // Predicated region
    $region41: #{mpmrm_forward.3} parent=5 // pred_check
      %p250 = pneg %p249
    $region42: #{mpmrm_forward.3} parent=5 // pred_check_branch
      %252 = sbr.rel (%p250) target = $region44
    $region43: #{mpmrm_forward.3} parent=5 // pred_region
      // Predicated region
      $region45: #{mpmrm_forward.3} parent=43 // pred_check
        %p253 = pneg %p34
      $region46: #{mpmrm_forward.3} parent=43 // pred_check_branch
        %255 = sbr.rel (%p253) target = $region48
      $region47: #{mpmrm_forward.3} parent=43 // pred_region
        %s256 = smul.u32 2, %s14
        %p257 = scmp.lt.s32.totalorder %s256, 7
        %s258 = scalar_select %p257, %s256, 7
        %s259 = smul.addr %s258, 2
        %s260 = smul.addr %s259, 4
        %s261 = scalar_lea.vmem %s0, %s260
        %s262 = smul.u32 2, %s14
      $region48: #{mpmrm_forward.3} parent=43 // pred_fallthru
        _
    $region44: #{mpmrm_forward.3} parent=5 // pred_fallthru
      _
    %p263 = scmp.le.s32.totalorder 1, %s14
    %p264 = scmp.lt.s32.totalorder %s14, 5
    %p265 = pnand %p263, %p264
    %p266 = pneg %p265
    // Predicated region
    $region49: #{mpmrm_forward.3} parent=5 // pred_check
      _
    $region50: #{mpmrm_forward.3} parent=5 // pred_check_branch
      %268 = sbr.rel (%p265) target = $region52
    $region51: #{mpmrm_forward.3} parent=5 // pred_region
      %s269 = ssub.s32 %s14, 1
      %s270 = smul.u32 2, %s19
      %p271 = scmp.lt.s32.totalorder %s270, 7
      %s272 = scalar_select %p271, %s270, 7
      %s273 = smul.addr %s272, 2
      %s274 = smul.addr %s273, 4
      %s275 = scalar_lea.vmem %s0, %s274
      %p276 = pneg %p40
      %p277 = pneg %p37
      %p278 = pneg %p61
      %p279 = pneg %p58
      %p280 = pneg %p82
      %p281 = pneg %p79
      %p282 = pneg %p103
      %p283 = pneg %p100
      %p284 = pneg %p124
      %p285 = pneg %p121
      %p286 = pneg %p145
      %p287 = pneg %p142
      %p288 = pneg %p166
      %p289 = pneg %p163
      %p290 = pneg %p187
      %p291 = pneg %p184
      %p292 = pneg %p213
      %p293 = pneg %p210
      %s294 = smul.u32 2, %s19
      %p295 = scmp.lt.s32.totalorder %s294, 7
      %s296 = scalar_select %p295, %s294, 7
      %s297 = smul.addr %s296, 2
      %s298 = smul.addr %s297, 8
      %s299 = scalar_lea.vmem %s8, %s298
      %s300 = smul.u32 2, %s19
      %p301 = scmp.lt.s32.totalorder %s300, 7
      %s302 = scalar_select %p301, %s300, 7
      %s303 = smul.addr %s302, 2
      %s304 = smul.addr %s303, 4
      %s305 = scalar_lea.vmem %s0, %s304
      %s306 = smul.u32 2, %s19
      %s307 = smul.u32 2, %s19
      %p308 = scmp.lt.s32.totalorder %s307, 7
      %s309 = scalar_select %p308, %s307, 7
      %s310 = smul.addr %s309, 2
      %s311 = smul.addr %s310, 8
      %s312 = scalar_lea.vmem %s8, %s311
      %s313 = smul.u32 2, %s19
      %v315 = vld [vmem:[%s7] sm:$0x1]
      %vm316 = vcmask 1043456
      %vm317 = vcmask 162820
      %vm318 = vmor %vm317, %vm316
      %319 = vst.msk [vmem:[#allocation3] sm:$0xff] %vm318, 0.0
      %320 = vst.msk [vmem:[#allocation4] sm:$0xff] %vm318, 0.0
      %v321 = vld [vmem:[%s305] sm:$0xf]
      %323 = vst [vmem:[#allocation1] ss:$2 sm:$0xff] %v321
      %v324 = vld.sshfl [vmem:[#allocation1] sm:$0xff pattern:$0x75316420]
      %325 = vrot.lane.b32.xlu0 %v324, 115
      %v326 = vpop.permute.xlu0 %325
      %vm328 = vcmask 781312
      %329 = vst.msk [vmem:[#allocation2] sm:$0xf] %vm328, %v326
      %v330 = vld [vmem:[%s305] sm:$0xf]
      %332 = vst [vmem:[#allocation1] ss:$2 sm:$0xff] %v330
      %v333 = vld.sshfl [vmem:[#allocation1] sm:$0xff pattern:$0x75316420]
      %334 = vrot.lane.b32.xlu0 %v333, 114
      %v335 = vpop.permute.xlu0 %334
      %337 = vst.msk [vmem:[#allocation2 + $0x4] sm:$0xf] %vm328, %v335
      %v338 = vld [vmem:[%s305] sm:$0xf]
      %340 = vst [vmem:[#allocation1] ss:$2 sm:$0xff] %v338
      %v341 = vld.sshfl [vmem:[#allocation1] sm:$0xff pattern:$0x75316420]
      %342 = vrot.lane.b32.xlu0 %v341, 113
      %v343 = vpop.permute.xlu0 %342
      %345 = vst.msk [vmem:[#allocation2 + $0x8] sm:$0xf] %vm328, %v343
      %v346 = vld [vmem:[%s305] sm:$0xf]
      %348 = vst [vmem:[#allocation1] ss:$2 sm:$0xff] %v346
      %v349 = vld.sshfl [vmem:[#allocation1] sm:$0xff pattern:$0x75316420]
      %350 = vrot.lane.b32.xlu0 %v349, 103
      %v351 = vpop.permute.xlu0 %350
      %353 = vst.msk [vmem:[#allocation2 + $0xc] sm:$0xf] %vm328, %v351
      %v354 = vld [vmem:[%s305] sm:$0xf]
      %356 = vst [vmem:[#allocation1] ss:$2 sm:$0xff] %v354
      %v357 = vld.sshfl [vmem:[#allocation1] sm:$0xff pattern:$0x75316420]
      %358 = vrot.lane.b32.xlu0 %v357, 102
      %v359 = vpop.permute.xlu0 %358
      %361 = vst.msk [vmem:[#allocation2 + $0x10] sm:$0xf] %vm328, %v359
      %v362 = vld [vmem:[%s305] sm:$0xf]
      %364 = vst [vmem:[#allocation1] ss:$2 sm:$0xff] %v362
      %v365 = vld.sshfl [vmem:[#allocation1] sm:$0xff pattern:$0x75316420]
      %366 = vrot.lane.b32.xlu0 %v365, 101
      %v367 = vpop.permute.xlu0 %366
      %369 = vst.msk [vmem:[#allocation2 + $0x14] sm:$0xf] %vm328, %v367
      %v370 = vld [vmem:[%s305] sm:$0xff]
      %372 = vst [vmem:[#allocation1] ss:$2 sm:$0xff] %v370
      %v373 = vld.sshfl [vmem:[#allocation1] sm:$0xff pattern:$0x75316420]
      %v374 = vld.sshfl [vmem:[#allocation1 + $0x8] sm:$0xff pattern:$0x75316420]
      %375 = vrot.lane.b32.xlu0 %v373, 91
      %v376 = vpop.permute.xlu0 %375
      %377 = vrot.lane.b32.xlu0 %v374, 91
      %v378 = vpop.permute.xlu0 %377
      %vm379 = vcmask 744448
      %v380 = vsel %vm379, %v376, %v378
      %382 = vst.msk [vmem:[#allocation2 + $0x18] sm:$0xf] %vm328, %v380
      %v383 = vld [vmem:[%s305] sm:$0xff]
      %385 = vst [vmem:[#allocation1] ss:$2 sm:$0xff] %v383
      %v386 = vld.sshfl [vmem:[#allocation1] sm:$0xff pattern:$0x75316420]
      %v387 = vld.sshfl [vmem:[#allocation1 + $0x8] sm:$0xff pattern:$0x75316420]
      %388 = vrot.lane.b32.xlu0 %v386, 90
      %v389 = vpop.permute.xlu0 %388
      %390 = vrot.lane.b32.xlu0 %v387, 90
      %v391 = vpop.permute.xlu0 %390
      %vm392 = vcmask 736256
      %v393 = vsel %vm392, %v389, %v391
      %395 = vst.msk [vmem:[#allocation2 + $0x1c] sm:$0xf] %vm328, %v393
      %v396 = vld [vmem:[%s305] sm:$0xff]
      %398 = vst [vmem:[#allocation1] ss:$2 sm:$0xff] %v396
      %v399 = vld.sshfl [vmem:[#allocation1] sm:$0xff pattern:$0x75316420]
      %v400 = vld.sshfl [vmem:[#allocation1 + $0x8] sm:$0xff pattern:$0x75316420]
      %401 = vrot.lane.b32.xlu0 %v399, 89
      %v402 = vpop.permute.xlu0 %401
      %403 = vrot.lane.b32.xlu0 %v400, 89
      %v404 = vpop.permute.xlu0 %403
      %vm405 = vcmask 728064
      %v406 = vsel %vm405, %v402, %v404
      %408 = vst.msk [vmem:[#allocation2 + $0x20] sm:$0xf] %vm328, %v406
      %v409 = vld [vmem:[%s1] sm:$0xf]
      %v410 = vld [vmem:[%s1 + $0x4] sm:$0xf]
      %v411 = vld [vmem:[%s1 + $0x8] sm:$0x3]
      %v412 = vld [vmem:[#allocation2] sm:$0xff]
      %v413 = vld [vmem:[#allocation2 + $0x8] sm:$0xff]
      %v414 = vld [vmem:[#allocation2 + $0x10] sm:$0xff]
      %v415 = vld [vmem:[#allocation2 + $0x18] sm:$0xff]
      %v416 = vld [vmem:[#allocation2 + $0x20] sm:$0xf]
      %v417 = vpack.c.bf16 %v413, %v412
      %v418 = vpack.c.bf16 %v415, %v414
      %v419 = vpack.c.bf16 %v416, %v416
      %v420 = vld [vmem:[%s2] sm:$0xff]
      %v421 = vld [vmem:[%s2 + $0x8] sm:$0xff]
      %v422 = vld [vmem:[%s2 + $0x10] sm:$0xf]
      %424 = vset.pattern.permute.xlu0 0
      %425 = vperm.xlu0 %424, %v420
      %v426 = vpop.permute.xlu0 %425
      %429 = vset.pattern.permute.xlu0 0
      %430 = vperm.xlu0 %429, %v421
      %v431 = vpop.permute.xlu0 %430
      %434 = vset.pattern.permute.xlu0 0
      %435 = vperm.xlu0 %434, %v422
      %v436 = vpop.permute.xlu0 %435
      %v441 = vunpack.c.l.b16 %v409
      %v442 = vunpack.c.l.b16 %v410
      %v443 = vunpack.c.l.b16 %v411
      %v444 = vpack.c.b16 %v442, %v441
      %v445 = vpack.c.b16 %v443, %v443
      %vm446 = vcmask 293888
      %v448 = vsel %vm446, %v444, 0
      %v451 = vsel %vm446, %v445, 0
      %vm453 = vcmask 1041408
      %v455 = vsel %vm453, %v419, 0
      %457 = vmatpush.bf16.msra.mxu0 0
      %458 = vmatpush.bf16.msra.mxu0 0
      %459 = vmatpush.bf16.msra.mxu0 0
      %460 = vmatpush.bf16.msra.mxu0 0
      %461 = vmatpush.bf16.msra.mxu0 0
      %462 = vmatpush.bf16.msra.mxu0 %v455
      %463 = vmatpush.bf16.msra.mxu0 %v418
      %464 = vmatpush.bf16.msra.mxu0 %v417
      %465 = vmatmul.bf16.gmra.mxu0 %v448
      %v466 = vpop.f32.mrf.mxu0
      %v467 = vadd.f32 %v426, %v466
      %v468 = vpop.f32.mrf.mxu0
      %v469 = vadd.f32 %v431, %v468
      %470 = vmatmul.bf16.gmra.mxu0 %v451
      %v471 = vpop.f32.mrf.mxu0
      %v472 = vadd.f32 %v436, %v471
      %v473 = vpop.f32.mrf.mxu0
      %474 = vdwg.mxu0
      %v476 = vperm.slane %v315, 0
      %v478 = vmul.f32 %v467, %v476
      %480 = vrot.lane.b32.xlu0 %v478, 26
      %v481 = vpop.permute.xlu0 %480
      %vm483 = vcmask 994512
      %484 = vst.msk [vmem:[#allocation3] sm:$0xf] %vm483, %v481
      %v485 = vld [vmem:[#allocation3] sm:$0xf]
      %487 = vst [vmem:[#allocation1] ss:$2 sm:$0xff] %v485
      %v488 = vld.sshfl [vmem:[#allocation1] sm:$0xff pattern:$0x75316420]
      %489 = vrot.lane.b32.xlu0 %v488, 115
      %v490 = vpop.permute.xlu0 %489
      %492 = vst.msk [vmem:[#allocation2] sm:$0xf] %vm328, %v490
      %v493 = vld [vmem:[#allocation3] sm:$0xf]
      %495 = vst [vmem:[#allocation1] ss:$2 sm:$0xff] %v493
      %v496 = vld.sshfl [vmem:[#allocation1] sm:$0xff pattern:$0x75316420]
      %497 = vrot.lane.b32.xlu0 %v496, 114
      %v498 = vpop.permute.xlu0 %497
      %500 = vst.msk [vmem:[#allocation2 + $0x4] sm:$0xf] %vm328, %v498
      %v501 = vld [vmem:[#allocation3] sm:$0xf]
      %503 = vst [vmem:[#allocation1] ss:$2 sm:$0xff] %v501
      %v504 = vld.sshfl [vmem:[#allocation1] sm:$0xff pattern:$0x75316420]
      %505 = vrot.lane.b32.xlu0 %v504, 113
      %v506 = vpop.permute.xlu0 %505
      %508 = vst.msk [vmem:[#allocation2 + $0x8] sm:$0xf] %vm328, %v506
      %v509 = vld [vmem:[#allocation3] sm:$0xf]
      %511 = vst [vmem:[#allocation1] ss:$2 sm:$0xff] %v509
      %v512 = vld.sshfl [vmem:[#allocation1] sm:$0xff pattern:$0x75316420]
      %513 = vrot.lane.b32.xlu0 %v512, 103
      %v514 = vpop.permute.xlu0 %513
      %516 = vst.msk [vmem:[#allocation2 + $0xc] sm:$0xf] %vm328, %v514
      %v517 = vld [vmem:[#allocation3] sm:$0xf]
      %519 = vst [vmem:[#allocation1] ss:$2 sm:$0xff] %v517
      %v520 = vld.sshfl [vmem:[#allocation1] sm:$0xff pattern:$0x75316420]
      %521 = vrot.lane.b32.xlu0 %v520, 102
      %v522 = vpop.permute.xlu0 %521
      %524 = vst.msk [vmem:[#allocation2 + $0x10] sm:$0xf] %vm328, %v522
      %v525 = vld [vmem:[#allocation3] sm:$0xf]
      %527 = vst [vmem:[#allocation1] ss:$2 sm:$0xff] %v525
      %v528 = vld.sshfl [vmem:[#allocation1] sm:$0xff pattern:$0x75316420]
      %529 = vrot.lane.b32.xlu0 %v528, 101
      %v530 = vpop.permute.xlu0 %529
      %532 = vst.msk [vmem:[#allocation2 + $0x14] sm:$0xf] %vm328, %v530
      %v533 = vld [vmem:[#allocation3] sm:$0xff]
      %535 = vst [vmem:[#allocation1] ss:$2 sm:$0xff] %v533
      %v536 = vld.sshfl [vmem:[#allocation1] sm:$0xff pattern:$0x75316420]
      %v537 = vld.sshfl [vmem:[#allocation1 + $0x8] sm:$0xff pattern:$0x75316420]
      %538 = vrot.lane.b32.xlu0 %v536, 91
      %v539 = vpop.permute.xlu0 %538
      %540 = vrot.lane.b32.xlu0 %v537, 91
      %v541 = vpop.permute.xlu0 %540
      %v542 = vsel %vm379, %v539, %v541
      %544 = vst.msk [vmem:[#allocation2 + $0x18] sm:$0xf] %vm328, %v542
      %v545 = vld [vmem:[#allocation3] sm:$0xff]
      %547 = vst [vmem:[#allocation1] ss:$2 sm:$0xff] %v545
      %v548 = vld.sshfl [vmem:[#allocation1] sm:$0xff pattern:$0x75316420]
      %v549 = vld.sshfl [vmem:[#allocation1 + $0x8] sm:$0xff pattern:$0x75316420]
      %550 = vrot.lane.b32.xlu0 %v548, 90
      %v551 = vpop.permute.xlu0 %550
      %552 = vrot.lane.b32.xlu0 %v549, 90
      %v553 = vpop.permute.xlu0 %552
      %v554 = vsel %vm392, %v551, %v553
      %556 = vst.msk [vmem:[#allocation2 + $0x1c] sm:$0xf] %vm328, %v554
      %v557 = vld [vmem:[#allocation3] sm:$0xff]
      %559 = vst [vmem:[#allocation1] ss:$2 sm:$0xff] %v557
      %v560 = vld.sshfl [vmem:[#allocation1] sm:$0xff pattern:$0x75316420]
      %v561 = vld.sshfl [vmem:[#allocation1 + $0x8] sm:$0xff pattern:$0x75316420]
      %562 = vrot.lane.b32.xlu0 %v560, 89
      %v563 = vpop.permute.xlu0 %562
      %564 = vrot.lane.b32.xlu0 %v561, 89
      %v565 = vpop.permute.xlu0 %564
      %v566 = vsel %vm405, %v563, %v565
      %568 = vst.msk [vmem:[#allocation2 + $0x20] sm:$0xf] %vm328, %v566
      %v569 = vld [vmem:[%s3] sm:$0x3]
      %v570 = vld [vmem:[#allocation2] sm:$0xff]
      %v571 = vld [vmem:[#allocation2 + $0x8] sm:$0xff]
      %v572 = vld [vmem:[#allocation2 + $0x10] sm:$0xff]
      %v573 = vld [vmem:[#allocation2 + $0x18] sm:$0xff]
      %v574 = vld [vmem:[#allocation2 + $0x20] sm:$0xf]
      %v575 = vpack.c.bf16 %v571, %v570
      %v576 = vpack.c.bf16 %v573, %v572
      %v577 = vpack.c.bf16 %v574, %v574
      %v578 = vld [vmem:[%s4] sm:$0xf]
      %580 = vset.pattern.permute.xlu0 0
      %581 = vperm.xlu0 %580, %v578
      %v582 = vpop.permute.xlu0 %581
      %v585 = vsel %vm446, %v569, 0
      %v588 = vsel %vm453, %v577, 0
      %590 = vmatpush.bf16.msra.mxu0 0
      %591 = vmatpush.bf16.msra.mxu0 0
      %592 = vmatpush.bf16.msra.mxu0 0
      %593 = vmatpush.bf16.msra.mxu0 0
      %594 = vmatpush.bf16.msra.mxu0 0
      %595 = vmatpush.bf16.msra.mxu0 %v588
      %596 = vmatpush.bf16.msra.mxu0 %v576
      %597 = vmatpush.bf16.msra.mxu0 %v575
      %598 = vmatmul.bf16.gmra.mxu0 %v585
      %v599 = vpop.f32.mrf.mxu0
      %v600 = vadd.f32 %v582, %v599
      %v601 = vpop.f32.mrf.mxu0
      %602 = vdwg.mxu0
      %v603 = vmul.f32 %v600, %v476
      %605 = vrot.lane.b32.xlu0 %v603, 26
      %v606 = vpop.permute.xlu0 %605
      %608 = vst.msk [vmem:[#allocation4] sm:$0xf] %vm483, %v606
      %v609 = vld [vmem:[#allocation4] sm:$0xf]
      %611 = vst [vmem:[#allocation1] ss:$2 sm:$0xff] %v609
      %v612 = vld.sshfl [vmem:[#allocation1] sm:$0xff pattern:$0x75316420]
      %613 = vrot.lane.b32.xlu0 %v612, 115
      %v614 = vpop.permute.xlu0 %613
      %616 = vst.msk [vmem:[#allocation2] sm:$0xf] %vm328, %v614
      %v617 = vld [vmem:[#allocation4] sm:$0xf]
      %619 = vst [vmem:[#allocation1] ss:$2 sm:$0xff] %v617
      %v620 = vld.sshfl [vmem:[#allocation1] sm:$0xff pattern:$0x75316420]
      %621 = vrot.lane.b32.xlu0 %v620, 114
      %v622 = vpop.permute.xlu0 %621
      %624 = vst.msk [vmem:[#allocation2 + $0x4] sm:$0xf] %vm328, %v622
      %v625 = vld [vmem:[#allocation4] sm:$0xf]
      %627 = vst [vmem:[#allocation1] ss:$2 sm:$0xff] %v625
      %v628 = vld.sshfl [vmem:[#allocation1] sm:$0xff pattern:$0x75316420]
      %629 = vrot.lane.b32.xlu0 %v628, 113
      %v630 = vpop.permute.xlu0 %629
      %632 = vst.msk [vmem:[#allocation2 + $0x8] sm:$0xf] %vm328, %v630
      %v633 = vld [vmem:[#allocation4] sm:$0xf]
      %635 = vst [vmem:[#allocation1] ss:$2 sm:$0xff] %v633
      %v636 = vld.sshfl [vmem:[#allocation1] sm:$0xff pattern:$0x75316420]
      %637 = vrot.lane.b32.xlu0 %v636, 103
      %v638 = vpop.permute.xlu0 %637
      %640 = vst.msk [vmem:[#allocation2 + $0xc] sm:$0xf] %vm328, %v638
      %v641 = vld [vmem:[#allocation4] sm:$0xf]
      %643 = vst [vmem:[#allocation1] ss:$2 sm:$0xff] %v641
      %v644 = vld.sshfl [vmem:[#allocation1] sm:$0xff pattern:$0x75316420]
      %645 = vrot.lane.b32.xlu0 %v644, 102
      %v646 = vpop.permute.xlu0 %645
      %648 = vst.msk [vmem:[#allocation2 + $0x10] sm:$0xf] %vm328, %v646
      %v649 = vld [vmem:[#allocation4] sm:$0xf]
      %651 = vst [vmem:[#allocation1] ss:$2 sm:$0xff] %v649
      %v652 = vld.sshfl [vmem:[#allocation1] sm:$0xff pattern:$0x75316420]
      %653 = vrot.lane.b32.xlu0 %v652, 101
      %v654 = vpop.permute.xlu0 %653
      %656 = vst.msk [vmem:[#allocation2 + $0x14] sm:$0xf] %vm328, %v654
      %v657 = vld [vmem:[#allocation4] sm:$0xff]
      %659 = vst [vmem:[#allocation1] ss:$2 sm:$0xff] %v657
      %v660 = vld.sshfl [vmem:[#allocation1] sm:$0xff pattern:$0x75316420]
      %v661 = vld.sshfl [vmem:[#allocation1 + $0x8] sm:$0xff pattern:$0x75316420]
      %662 = vrot.lane.b32.xlu0 %v660, 91
      %v663 = vpop.permute.xlu0 %662
      %664 = vrot.lane.b32.xlu0 %v661, 91
      %v665 = vpop.permute.xlu0 %664
      %v666 = vsel %vm379, %v663, %v665
      %668 = vst.msk [vmem:[#allocation2 + $0x18] sm:$0xf] %vm328, %v666
      %v669 = vld [vmem:[#allocation4] sm:$0xff]
      %671 = vst [vmem:[#allocation1] ss:$2 sm:$0xff] %v669
      %v672 = vld.sshfl [vmem:[#allocation1] sm:$0xff pattern:$0x75316420]
      %v673 = vld.sshfl [vmem:[#allocation1 + $0x8] sm:$0xff pattern:$0x75316420]
      %674 = vrot.lane.b32.xlu0 %v672, 90
      %v675 = vpop.permute.xlu0 %674
      %676 = vrot.lane.b32.xlu0 %v673, 90
      %v677 = vpop.permute.xlu0 %676
      %v678 = vsel %vm392, %v675, %v677
      %680 = vst.msk [vmem:[#allocation2 + $0x1c] sm:$0xf] %vm328, %v678
      %v681 = vld [vmem:[#allocation4] sm:$0xff]
      %683 = vst [vmem:[#allocation1] ss:$2 sm:$0xff] %v681
      %v684 = vld.sshfl [vmem:[#allocation1] sm:$0xff pattern:$0x75316420]
      %v685 = vld.sshfl [vmem:[#allocation1 + $0x8] sm:$0xff pattern:$0x75316420]
      %686 = vrot.lane.b32.xlu0 %v684, 89
      %v687 = vpop.permute.xlu0 %686
      %688 = vrot.lane.b32.xlu0 %v685, 89
      %v689 = vpop.permute.xlu0 %688
      %v690 = vsel %vm405, %v687, %v689
      %692 = vst.msk [vmem:[#allocation2 + $0x20] sm:$0xf] %vm328, %v690
      %v693 = vld [vmem:[%s5] sm:$0xf]
      %v694 = vld [vmem:[#allocation2] sm:$0xff]
      %v695 = vld [vmem:[#allocation2 + $0x8] sm:$0xff]
      %v696 = vld [vmem:[#allocation2 + $0x10] sm:$0xff]
      %v697 = vld [vmem:[#allocation2 + $0x18] sm:$0xff]
      %v698 = vld [vmem:[#allocation2 + $0x20] sm:$0xf]
      %v699 = vpack.c.bf16 %v695, %v694
      %v700 = vpack.c.bf16 %v697, %v696
      %v701 = vpack.c.bf16 %v698, %v698
      %v702 = vld [vmem:[%s6] sm:$0xff]
      %704 = vset.pattern.permute.xlu0 0
      %705 = vperm.xlu0 %704, %v702
      %v706 = vpop.permute.xlu0 %705
      %v709 = vsel %vm446, %v693, 0
      %v712 = vsel %vm453, %v701, 0
      %714 = vmatpush.bf16.msra.mxu0 0
      %715 = vmatpush.bf16.msra.mxu0 0
      %716 = vmatpush.bf16.msra.mxu0 0
      %717 = vmatpush.bf16.msra.mxu0 0
      %718 = vmatpush.bf16.msra.mxu0 0
      %719 = vmatpush.bf16.msra.mxu0 %v712
      %720 = vmatpush.bf16.msra.mxu0 %v700
      %721 = vmatpush.bf16.msra.mxu0 %v699
      %722 = vmatmul.bf16.gmra.mxu0 %v709
      %v723 = vpop.f32.mrf.mxu0
      %v724 = vadd.f32 %v706, %v723
      %v725 = vpop.f32.mrf.mxu0
      %726 = vdwg.mxu0
      %v728 = vrot.slane %v600, 4
      %v730 = vsel %vm316, %v467, %v728
      %v734 = vrot.slane %v467, 4
      %v735 = vrot.slane %v469, 4
      %v736 = vsel %vm316, %v734, %v735
      %v737 = vrot.slane %v472, 4
      %v738 = vsel %vm316, %v735, %v737
      %v741 = vadd.f32 %v730, %v736
      %v742 = vadd.f32 %v724, %v738
      %v743 = vmul.f32 %v741, %v476
      %v744 = vmul.f32 %v742, %v476
      %vm745 = vcmask 785408
      %746 = vst.msk [vmem:[%s312] sm:$0xff] %vm745, %v743
      %747 = vst.msk [vmem:[%s312 + $0x8] sm:$0xff] %vm745, %v744
      %s748 = scalar_lea.vmem %s305, 8
      %v749 = vld [vmem:[%s748] sm:$0xf]
      %751 = vst [vmem:[#allocation1] ss:$2 sm:$0xff] %v749
      %v752 = vld.sshfl [vmem:[#allocation1] sm:$0xff pattern:$0x75316420]
      %753 = vrot.lane.b32.xlu0 %v752, 115
      %v754 = vpop.permute.xlu0 %753
      %756 = vst.msk [vmem:[#allocation2] sm:$0xf] %vm328, %v754
      %v757 = vld [vmem:[%s748] sm:$0xf]
      %759 = vst [vmem:[#allocation1] ss:$2 sm:$0xff] %v757
      %v760 = vld.sshfl [vmem:[#allocation1] sm:$0xff pattern:$0x75316420]
      %761 = vrot.lane.b32.xlu0 %v760, 114
      %v762 = vpop.permute.xlu0 %761
      %764 = vst.msk [vmem:[#allocation2 + $0x4] sm:$0xf] %vm328, %v762
      %v765 = vld [vmem:[%s748] sm:$0xf]
      %767 = vst [vmem:[#allocation1] ss:$2 sm:$0xff] %v765
      %v768 = vld.sshfl [vmem:[#allocation1] sm:$0xff pattern:$0x75316420]
      %769 = vrot.lane.b32.xlu0 %v768, 113
      %v770 = vpop.permute.xlu0 %769
      %772 = vst.msk [vmem:[#allocation2 + $0x8] sm:$0xf] %vm328, %v770
      %v773 = vld [vmem:[%s748] sm:$0xf]
      %775 = vst [vmem:[#allocation1] ss:$2 sm:$0xff] %v773
      %v776 = vld.sshfl [vmem:[#allocation1] sm:$0xff pattern:$0x75316420]
      %777 = vrot.lane.b32.xlu0 %v776, 103
      %v778 = vpop.permute.xlu0 %777
      %780 = vst.msk [vmem:[#allocation2 + $0xc] sm:$0xf] %vm328, %v778
      %v781 = vld [vmem:[%s748] sm:$0xf]
      %783 = vst [vmem:[#allocation1] ss:$2 sm:$0xff] %v781
      %v784 = vld.sshfl [vmem:[#allocation1] sm:$0xff pattern:$0x75316420]
      %785 = vrot.lane.b32.xlu0 %v784, 102
      %v786 = vpop.permute.xlu0 %785
      %788 = vst.msk [vmem:[#allocation2 + $0x10] sm:$0xf] %vm328, %v786
      %v789 = vld [vmem:[%s748] sm:$0xf]
      %791 = vst [vmem:[#allocation1] ss:$2 sm:$0xff] %v789
      %v792 = vld.sshfl [vmem:[#allocation1] sm:$0xff pattern:$0x75316420]
      %793 = vrot.lane.b32.xlu0 %v792, 101
      %v794 = vpop.permute.xlu0 %793
      %796 = vst.msk [vmem:[#allocation2 + $0x14] sm:$0xf] %vm328, %v794
      %v797 = vld [vmem:[%s748] sm:$0xff]
      %799 = vst [vmem:[#allocation1] ss:$2 sm:$0xff] %v797
      %v800 = vld.sshfl [vmem:[#allocation1] sm:$0xff pattern:$0x75316420]
      %v801 = vld.sshfl [vmem:[#allocation1 + $0x8] sm:$0xff pattern:$0x75316420]
      %802 = vrot.lane.b32.xlu0 %v800, 91
      %v803 = vpop.permute.xlu0 %802
      %804 = vrot.lane.b32.xlu0 %v801, 91
      %v805 = vpop.permute.xlu0 %804
      %v806 = vsel %vm379, %v803, %v805
      %808 = vst.msk [vmem:[#allocation2 + $0x18] sm:$0xf] %vm328, %v806
      %v809 = vld [vmem:[%s748] sm:$0xff]
      %811 = vst [vmem:[#allocation1] ss:$2 sm:$0xff] %v809
      %v812 = vld.sshfl [vmem:[#allocation1] sm:$0xff pattern:$0x75316420]
      %v813 = vld.sshfl [vmem:[#allocation1 + $0x8] sm:$0xff pattern:$0x75316420]
      %814 = vrot.lane.b32.xlu0 %v812, 90
      %v815 = vpop.permute.xlu0 %814
      %816 = vrot.lane.b32.xlu0 %v813, 90
      %v817 = vpop.permute.xlu0 %816
      %v818 = vsel %vm392, %v815, %v817
      %820 = vst.msk [vmem:[#allocation2 + $0x1c] sm:$0xf] %vm328, %v818
      %v821 = vld [vmem:[%s748] sm:$0xff]
      %823 = vst [vmem:[#allocation1] ss:$2 sm:$0xff] %v821
      %v824 = vld.sshfl [vmem:[#allocation1] sm:$0xff pattern:$0x75316420]
      %v825 = vld.sshfl [vmem:[#allocation1 + $0x8] sm:$0xff pattern:$0x75316420]
      %826 = vrot.lane.b32.xlu0 %v824, 89
      %v827 = vpop.permute.xlu0 %826
      %828 = vrot.lane.b32.xlu0 %v825, 89
      %v829 = vpop.permute.xlu0 %828
      %v830 = vsel %vm405, %v827, %v829
      %832 = vst.msk [vmem:[#allocation2 + $0x20] sm:$0xf] %vm328, %v830
      %v833 = vld [vmem:[%s1] sm:$0xf]
      %v834 = vld [vmem:[%s1 + $0x4] sm:$0xf]
      %v835 = vld [vmem:[%s1 + $0x8] sm:$0x3]
      %v836 = vld [vmem:[#allocation2] sm:$0xff]
      %v837 = vld [vmem:[#allocation2 + $0x8] sm:$0xff]
      %v838 = vld [vmem:[#allocation2 + $0x10] sm:$0xff]
      %v839 = vld [vmem:[#allocation2 + $0x18] sm:$0xff]
      %v840 = vld [vmem:[#allocation2 + $0x20] sm:$0xf]
      %v841 = vpack.c.bf16 %v837, %v836
      %v842 = vpack.c.bf16 %v839, %v838
      %v843 = vpack.c.bf16 %v840, %v840
      %v844 = vld [vmem:[%s2] sm:$0xff]
      %v845 = vld [vmem:[%s2 + $0x8] sm:$0xff]
      %v846 = vld [vmem:[%s2 + $0x10] sm:$0xf]
      %848 = vset.pattern.permute.xlu0 0
      %849 = vperm.xlu0 %848, %v844
      %v850 = vpop.permute.xlu0 %849
      %853 = vset.pattern.permute.xlu0 0
      %854 = vperm.xlu0 %853, %v845
      %v855 = vpop.permute.xlu0 %854
      %858 = vset.pattern.permute.xlu0 0
      %859 = vperm.xlu0 %858, %v846
      %v860 = vpop.permute.xlu0 %859
      %v865 = vunpack.c.l.b16 %v833
      %v866 = vunpack.c.l.b16 %v834
      %v867 = vunpack.c.l.b16 %v835
      %v868 = vpack.c.b16 %v866, %v865
      %v869 = vpack.c.b16 %v867, %v867
      %v871 = vsel %vm446, %v868, 0
      %v874 = vsel %vm446, %v869, 0
      %v877 = vsel %vm453, %v843, 0
      %879 = vmatpush.bf16.msra.mxu0 0
      %880 = vmatpush.bf16.msra.mxu0 0
      %881 = vmatpush.bf16.msra.mxu0 0
      %882 = vmatpush.bf16.msra.mxu0 0
      %883 = vmatpush.bf16.msra.mxu0 0
      %884 = vmatpush.bf16.msra.mxu0 %v877
      %885 = vmatpush.bf16.msra.mxu0 %v842
      %886 = vmatpush.bf16.msra.mxu0 %v841
      %887 = vmatmul.bf16.gmra.mxu0 %v871
      %v888 = vpop.f32.mrf.mxu0
      %v889 = vadd.f32 %v850, %v888
      %v890 = vpop.f32.mrf.mxu0
      %v891 = vadd.f32 %v855, %v890
      %892 = vmatmul.bf16.gmra.mxu0 %v874
      %v893 = vpop.f32.mrf.mxu0
      %v894 = vadd.f32 %v860, %v893
      %v895 = vpop.f32.mrf.mxu0
      %896 = vdwg.mxu0
      %v897 = vmul.f32 %v889, %v476
      %899 = vrot.lane.b32.xlu0 %v897, 26
      %v900 = vpop.permute.xlu0 %899
      %902 = vst.msk [vmem:[#allocation3] sm:$0xf] %vm483, %v900
      %v903 = vld [vmem:[#allocation3] sm:$0xf]
      %905 = vst [vmem:[#allocation1] ss:$2 sm:$0xff] %v903
      %v906 = vld.sshfl [vmem:[#allocation1] sm:$0xff pattern:$0x75316420]
      %907 = vrot.lane.b32.xlu0 %v906, 115
      %v908 = vpop.permute.xlu0 %907
      %910 = vst.msk [vmem:[#allocation2] sm:$0xf] %vm328, %v908
      %v911 = vld [vmem:[#allocation3] sm:$0xf]
      %913 = vst [vmem:[#allocation1] ss:$2 sm:$0xff] %v911
      %v914 = vld.sshfl [vmem:[#allocation1] sm:$0xff pattern:$0x75316420]
      %915 = vrot.lane.b32.xlu0 %v914, 114
      %v916 = vpop.permute.xlu0 %915
      %918 = vst.msk [vmem:[#allocation2 + $0x4] sm:$0xf] %vm328, %v916
      %v919 = vld [vmem:[#allocation3] sm:$0xf]
      %921 = vst [vmem:[#allocation1] ss:$2 sm:$0xff] %v919
      %v922 = vld.sshfl [vmem:[#allocation1] sm:$0xff pattern:$0x75316420]
      %923 = vrot.lane.b32.xlu0 %v922, 113
      %v924 = vpop.permute.xlu0 %923
      %926 = vst.msk [vmem:[#allocation2 + $0x8] sm:$0xf] %vm328, %v924
      %v927 = vld [vmem:[#allocation3] sm:$0xf]
      %929 = vst [vmem:[#allocation1] ss:$2 sm:$0xff] %v927
      %v930 = vld.sshfl [vmem:[#allocation1] sm:$0xff pattern:$0x75316420]
      %931 = vrot.lane.b32.xlu0 %v930, 103
      %v932 = vpop.permute.xlu0 %931
      %934 = vst.msk [vmem:[#allocation2 + $0xc] sm:$0xf] %vm328, %v932
      %v935 = vld [vmem:[#allocation3] sm:$0xf]
      %937 = vst [vmem:[#allocation1] ss:$2 sm:$0xff] %v935
      %v938 = vld.sshfl [vmem:[#allocation1] sm:$0xff pattern:$0x75316420]
      %939 = vrot.lane.b32.xlu0 %v938, 102
      %v940 = vpop.permute.xlu0 %939
      %942 = vst.msk [vmem:[#allocation2 + $0x10] sm:$0xf] %vm328, %v940
      %v943 = vld [vmem:[#allocation3] sm:$0xf]
      %945 = vst [vmem:[#allocation1] ss:$2 sm:$0xff] %v943
      %v946 = vld.sshfl [vmem:[#allocation1] sm:$0xff pattern:$0x75316420]
      %947 = vrot.lane.b32.xlu0 %v946, 101
      %v948 = vpop.permute.xlu0 %947
      %950 = vst.msk [vmem:[#allocation2 + $0x14] sm:$0xf] %vm328, %v948
      %v951 = vld [vmem:[#allocation3] sm:$0xff]
      %953 = vst [vmem:[#allocation1] ss:$2 sm:$0xff] %v951
      %v954 = vld.sshfl [vmem:[#allocation1] sm:$0xff pattern:$0x75316420]
      %v955 = vld.sshfl [vmem:[#allocation1 + $0x8] sm:$0xff pattern:$0x75316420]
      %956 = vrot.lane.b32.xlu0 %v954, 91
      %v957 = vpop.permute.xlu0 %956
      %958 = vrot.lane.b32.xlu0 %v955, 91
      %v959 = vpop.permute.xlu0 %958
      %v960 = vsel %vm379, %v957, %v959
      %962 = vst.msk [vmem:[#allocation2 + $0x18] sm:$0xf] %vm328, %v960
      %v963 = vld [vmem:[#allocation3] sm:$0xff]
      %965 = vst [vmem:[#allocation1] ss:$2 sm:$0xff] %v963
      %v966 = vld.sshfl [vmem:[#allocation1] sm:$0xff pattern:$0x75316420]
      %v967 = vld.sshfl [vmem:[#allocation1 + $0x8] sm:$0xff pattern:$0x75316420]
      %968 = vrot.lane.b32.xlu0 %v966, 90
      %v969 = vpop.permute.xlu0 %968
      %970 = vrot.lane.b32.xlu0 %v967, 90
      %v971 = vpop.permute.xlu0 %970
      %v972 = vsel %vm392, %v969, %v971
      %974 = vst.msk [vmem:[#allocation2 + $0x1c] sm:$0xf] %vm328, %v972
      %v975 = vld [vmem:[#allocation3] sm:$0xff]
      %977 = vst [vmem:[#allocation1] ss:$2 sm:$0xff] %v975
      %v978 = vld.sshfl [vmem:[#allocation1] sm:$0xff pattern:$0x75316420]
      %v979 = vld.sshfl [vmem:[#allocation1 + $0x8] sm:$0xff pattern:$0x75316420]
      %980 = vrot.lane.b32.xlu0 %v978, 89
      %v981 = vpop.permute.xlu0 %980
      %982 = vrot.lane.b32.xlu0 %v979, 89
      %v983 = vpop.permute.xlu0 %982
      %v984 = vsel %vm405, %v981, %v983
      %986 = vst.msk [vmem:[#allocation2 + $0x20] sm:$0xf] %vm328, %v984
      %v987 = vld [vmem:[%s3] sm:$0x3]
      %v988 = vld [vmem:[#allocation2] sm:$0xff]
      %v989 = vld [vmem:[#allocation2 + $0x8] sm:$0xff]
      %v990 = vld [vmem:[#allocation2 + $0x10] sm:$0xff]
      %v991 = vld [vmem:[#allocation2 + $0x18] sm:$0xff]
      %v992 = vld [vmem:[#allocation2 + $0x20] sm:$0xf]
      %v993 = vpack.c.bf16 %v989, %v988
      %v994 = vpack.c.bf16 %v991, %v990
      %v995 = vpack.c.bf16 %v992, %v992
      %v996 = vld [vmem:[%s4] sm:$0xf]
      %998 = vset.pattern.permute.xlu0 0
      %999 = vperm.xlu0 %998, %v996
      %v1000 = vpop.permute.xlu0 %999
      %v1003 = vsel %vm446, %v987, 0
      %v1006 = vsel %vm453, %v995, 0
      %1008 = vmatpush.bf16.msra.mxu0 0
      %1009 = vmatpush.bf16.msra.mxu0 0
      %1010 = vmatpush.bf16.msra.mxu0 0
      %1011 = vmatpush.bf16.msra.mxu0 0
      %1012 = vmatpush.bf16.msra.mxu0 0
      %1013 = vmatpush.bf16.msra.mxu0 %v1006
      %1014 = vmatpush.bf16.msra.mxu0 %v994
      %1015 = vmatpush.bf16.msra.mxu0 %v993
      %1016 = vmatmul.bf16.gmra.mxu0 %v1003
      %v1017 = vpop.f32.mrf.mxu0
      %v1018 = vadd.f32 %v1000, %v1017
      %v1019 = vpop.f32.mrf.mxu0
      %1020 = vdwg.mxu0
      %v1021 = vmul.f32 %v1018, %v476
      %1023 = vrot.lane.b32.xlu0 %v1021, 26
      %v1024 = vpop.permute.xlu0 %1023
      %1026 = vst.msk [vmem:[#allocation4] sm:$0xf] %vm483, %v1024
      %v1027 = vld [vmem:[#allocation4] sm:$0xf]
      %1029 = vst [vmem:[#allocation1] ss:$2 sm:$0xff] %v1027
      %v1030 = vld.sshfl [vmem:[#allocation1] sm:$0xff pattern:$0x75316420]
      %1031 = vrot.lane.b32.xlu0 %v1030, 115
      %v1032 = vpop.permute.xlu0 %1031
      %1034 = vst.msk [vmem:[#allocation2] sm:$0xf] %vm328, %v1032
      %v1035 = vld [vmem:[#allocation4] sm:$0xf]
      %1037 = vst [vmem:[#allocation1] ss:$2 sm:$0xff] %v1035
      %v1038 = vld.sshfl [vmem:[#allocation1] sm:$0xff pattern:$0x75316420]
      %1039 = vrot.lane.b32.xlu0 %v1038, 114
      %v1040 = vpop.permute.xlu0 %1039
      %1042 = vst.msk [vmem:[#allocation2 + $0x4] sm:$0xf] %vm328, %v1040
      %v1043 = vld [vmem:[#allocation4] sm:$0xf]
      %1045 = vst [vmem:[#allocation1] ss:$2 sm:$0xff] %v1043
      %v1046 = vld.sshfl [vmem:[#allocation1] sm:$0xff pattern:$0x75316420]
      %1047 = vrot.lane.b32.xlu0 %v1046, 113
      %v1048 = vpop.permute.xlu0 %1047
      %1050 = vst.msk [vmem:[#allocation2 + $0x8] sm:$0xf] %vm328, %v1048
      %v1051 = vld [vmem:[#allocation4] sm:$0xf]
      %1053 = vst [vmem:[#allocation1] ss:$2 sm:$0xff] %v1051
      %v1054 = vld.sshfl [vmem:[#allocation1] sm:$0xff pattern:$0x75316420]
      %1055 = vrot.lane.b32.xlu0 %v1054, 103
      %v1056 = vpop.permute.xlu0 %1055
      %1058 = vst.msk [vmem:[#allocation2 + $0xc] sm:$0xf] %vm328, %v1056
      %v1059 = vld [vmem:[#allocation4] sm:$0xf]
      %1061 = vst [vmem:[#allocation1] ss:$2 sm:$0xff] %v1059
      %v1062 = vld.sshfl [vmem:[#allocation1] sm:$0xff pattern:$0x75316420]
      %1063 = vrot.lane.b32.xlu0 %v1062, 102
      %v1064 = vpop.permute.xlu0 %1063
      %1066 = vst.msk [vmem:[#allocation2 + $0x10] sm:$0xf] %vm328, %v1064
      %v1067 = vld [vmem:[#allocation4] sm:$0xf]
      %1069 = vst [vmem:[#allocation1] ss:$2 sm:$0xff] %v1067
      %v1070 = vld.sshfl [vmem:[#allocation1] sm:$0xff pattern:$0x75316420]
      %1071 = vrot.lane.b32.xlu0 %v1070, 101
      %v1072 = vpop.permute.xlu0 %1071
      %1074 = vst.msk [vmem:[#allocation2 + $0x14] sm:$0xf] %vm328, %v1072
      %v1075 = vld [vmem:[#allocation4] sm:$0xff]
      %1077 = vst [vmem:[#allocation1] ss:$2 sm:$0xff] %v1075
      %v1078 = vld.sshfl [vmem:[#allocation1] sm:$0xff pattern:$0x75316420]
      %v1079 = vld.sshfl [vmem:[#allocation1 + $0x8] sm:$0xff pattern:$0x75316420]
      %1080 = vrot.lane.b32.xlu0 %v1078, 91
      %v1081 = vpop.permute.xlu0 %1080
      %1082 = vrot.lane.b32.xlu0 %v1079, 91
      %v1083 = vpop.permute.xlu0 %1082
      %v1084 = vsel %vm379, %v1081, %v1083
      %1086 = vst.msk [vmem:[#allocation2 + $0x18] sm:$0xf] %vm328, %v1084
      %v1087 = vld [vmem:[#allocation4] sm:$0xff]
      %1089 = vst [vmem:[#allocation1] ss:$2 sm:$0xff] %v1087
      %v1090 = vld.sshfl [vmem:[#allocation1] sm:$0xff pattern:$0x75316420]
      %v1091 = vld.sshfl [vmem:[#allocation1 + $0x8] sm:$0xff pattern:$0x75316420]
      %1092 = vrot.lane.b32.xlu0 %v1090, 90
      %v1093 = vpop.permute.xlu0 %1092
      %1094 = vrot.lane.b32.xlu0 %v1091, 90
      %v1095 = vpop.permute.xlu0 %1094
      %v1096 = vsel %vm392, %v1093, %v1095
      %1098 = vst.msk [vmem:[#allocation2 + $0x1c] sm:$0xf] %vm328, %v1096
      %v1099 = vld [vmem:[#allocation4] sm:$0xff]
      %1101 = vst [vmem:[#allocation1] ss:$2 sm:$0xff] %v1099
      %v1102 = vld.sshfl [vmem:[#allocation1] sm:$0xff pattern:$0x75316420]
      %v1103 = vld.sshfl [vmem:[#allocation1 + $0x8] sm:$0xff pattern:$0x75316420]
      %1104 = vrot.lane.b32.xlu0 %v1102, 89
      %v1105 = vpop.permute.xlu0 %1104
      %1106 = vrot.lane.b32.xlu0 %v1103, 89
      %v1107 = vpop.permute.xlu0 %1106
      %v1108 = vsel %vm405, %v1105, %v1107
      %1110 = vst.msk [vmem:[#allocation2 + $0x20] sm:$0xf] %vm328, %v1108
      %v1111 = vld [vmem:[%s5] sm:$0xf]
      %v1112 = vld [vmem:[#allocation2] sm:$0xff]
      %v1113 = vld [vmem:[#allocation2 + $0x8] sm:$0xff]
      %v1114 = vld [vmem:[#allocation2 + $0x10] sm:$0xff]
      %v1115 = vld [vmem:[#allocation2 + $0x18] sm:$0xff]
      %v1116 = vld [vmem:[#allocation2 + $0x20] sm:$0xf]
      %v1117 = vpack.c.bf16 %v1113, %v1112
      %v1118 = vpack.c.bf16 %v1115, %v1114
      %v1119 = vpack.c.bf16 %v1116, %v1116
      %v1120 = vld [vmem:[%s6] sm:$0xff]
      %1122 = vset.pattern.permute.xlu0 0
      %1123 = vperm.xlu0 %1122, %v1120
      %v1124 = vpop.permute.xlu0 %1123
      %v1127 = vsel %vm446, %v1111, 0
      %v1130 = vsel %vm453, %v1119, 0
      %1132 = vmatpush.bf16.msra.mxu0 0
      %1133 = vmatpush.bf16.msra.mxu0 0
      %1134 = vmatpush.bf16.msra.mxu0 0
      %1135 = vmatpush.bf16.msra.mxu0 0
      %1136 = vmatpush.bf16.msra.mxu0 0
      %1137 = vmatpush.bf16.msra.mxu0 %v1130
      %1138 = vmatpush.bf16.msra.mxu0 %v1118
      %1139 = vmatpush.bf16.msra.mxu0 %v1117
      %1140 = vmatmul.bf16.gmra.mxu0 %v1127
      %v1141 = vpop.f32.mrf.mxu0
      %v1142 = vadd.f32 %v1124, %v1141
      %v1143 = vpop.f32.mrf.mxu0
      %1144 = vdwg.mxu0
      %v1146 = vrot.slane %v1018, 4
      %v1148 = vsel %vm316, %v889, %v1146
      %v1152 = vrot.slane %v889, 4
      %v1153 = vrot.slane %v891, 4
      %v1154 = vsel %vm316, %v1152, %v1153
      %v1155 = vrot.slane %v894, 4
      %v1156 = vsel %vm316, %v1153, %v1155
      %v1159 = vadd.f32 %v1148, %v1154
      %v1160 = vadd.f32 %v1142, %v1156
      %v1161 = vmul.f32 %v1159, %v476
      %v1162 = vmul.f32 %v1160, %v476
      %s1163 = scalar_lea.vmem %s312, 16
      %1164 = vst.msk [vmem:[%s1163] sm:$0xff] %vm745, %v1161
      %1165 = vst.msk [vmem:[%s1163 + $0x8] sm:$0xff] %vm745, %v1162
      %s1166 = smul.u32 2, %s19
      %p1167 = scmp.lt.s32.totalorder %s1166, 7
      %s1168 = scalar_select %p1167, %s1166, 7
      %s1169 = smul.addr %s1168, 2
      %s1170 = smul.addr %s1169, 8
      %s1171 = scalar_lea.vmem %s8, %s1170
      // Predicated region
      $region53: #{mpmrm_forward.3} parent=51 // pred_check
        %p1172 = pneg %p210
      $region54: #{mpmrm_forward.3} parent=51 // pred_check_branch
        %1174 = sbr.rel (%p1172) target = $region56
      $region55: #{mpmrm_forward.3} parent=51 // pred_region
        %s1175 = smul.u32 2, %s19
      $region56: #{mpmrm_forward.3} parent=51 // pred_fallthru
        _
    $region52: #{mpmrm_forward.3} parent=5 // pred_fallthru
      _
    %p1176 = scmp.le.s32.totalorder 2, %s14
    // Predicated region
    $region57: #{mpmrm_forward.3} parent=5 // pred_check
      %p1177 = pneg %p1176
    $region58: #{mpmrm_forward.3} parent=5 // pred_check_branch
      %1179 = sbr.rel (%p1177) target = $region60
    $region59: #{mpmrm_forward.3} parent=5 // pred_region
      %s1180 = ssub.s32 %s14, 2
      // Predicated region
      $region61: #{mpmrm_forward.3} parent=59 // pred_check
        %p1181 = pneg %p216
      $region62: #{mpmrm_forward.3} parent=59 // pred_check_branch
        %1183 = sbr.rel (%p1181) target = $region64
      $region63: #{mpmrm_forward.3} parent=59 // pred_region
        %s1184 = smul.u32 2, %s20
        %p1185 = scmp.lt.s32.totalorder %s1184, 7
        %s1186 = scalar_select %p1185, %s1184, 7
        %s1187 = smul.addr %s1186, 2
        %s1188 = smul.addr %s1187, 8
        %s1189 = scalar_lea.vmem %s8, %s1188
      $region64: #{mpmrm_forward.3} parent=59 // pred_fallthru
        _
    $region60: #{mpmrm_forward.3} parent=5 // pred_fallthru
      _
  $region6: #{mpmrm_forward.3} parent=0 // loop_footer
    %s18 = sadd.s32 1, %s14
  $region7: #{mpmrm_forward.3} parent=0 // loop_footer_branch
    %13 = sbr.rel target = $region3
  $region8: #{mpmrm_forward.3} parent=0 // loop_exit
    _

// kernel: mpmrm_forward.5
$region0: #{mpmrm_forward.5}
  #allocation0 [shape = 'u32[]', space=smem, size = 0x4, offset = 0x4, fixed_abs, tag = 'smem constant byte address 0x4 - core index']
  #allocation1 [shape = 'u32[72,128]{1,0:T(1,128)}', space=vmem, size = 0x9000, scoped, tag = 'internal scratch']
  #allocation2 [shape = 'f32[144,288]{1,0:T(8,128)}', space=vmem, size = 0x36000, scoped, tag = 'scratch operand']
  %s0 = inlined_call_operand.vmem [shape: f32[2,16,326], index: 0, kind: input, shape index: {}]
  %s1 = inlined_call_operand.vmem [shape: bf16[8,144], index: 1, kind: input, shape index: {}]
  %s2 = inlined_call_operand.vmem [shape: f32[8,1], index: 2, kind: input, shape index: {}]
  %s3 = inlined_call_operand.vmem [shape: f32[2,8,288], index: 3, kind: output, shape index: {}]
  %s4 = sld [smem:[#allocation0]]
  $region45: #{mpmrm_forward.5} parent=0
    _
  %s6 = ssub.s32 1, %s4
  %s7 = scalar_select 0, %s6, %s4
  loop: start=0, step=1, limit=4
  $region2: #{mpmrm_forward.5} parent=0 // loop_pre_header
    _
  $region3: #{mpmrm_forward.5} parent=0 // loop_header
    %s9 = sphi 0, %s13
    %p10 = scmp.ge.s32.totalorder %s9, 4
    %s19 = sphi 0, %s21
    %s22 = sphi 0, %s19
    %s23 = sphi 0, %s22
    %s39 = sphi 0, %s23
    %s43 = sphi 0, %s43
    %s45 = sphi 0, %s43
    %s46 = sphi 0, %s45
    %s60 = sphi 0, %s46
    %s64 = sphi 0, %s64
    %s66 = sphi 0, %s64
    %s67 = sphi 0, %s66
    %s81 = sphi 0, %s67
    %s87 = sphi 0, %s89
    %s90 = sphi 0, %s87
    %s91 = sphi 0, %s90
    %s107 = sphi 0, %s91
  $region4: #{mpmrm_forward.5} parent=0 // loop_header_branch
    %12 = sbr.rel (%p10) target = $region8
  $region5: #{mpmrm_forward.5} parent=0 // loop_body
    %s14 = ssub.s32 %s9, 1
    %s15 = ssub.s32 %s9, 2
    %s16 = sadd.s32 %s9, 1
    %s17 = ssub.s32 %s9, %s16
    %p18 = scmp.eq.s32.totalorder %s17, 0
    %s20 = sadd.s32 %s19, 1
    %s21 = scalar_select %p18, %s19, %s20
    %p24 = pneg %p18
    %p25 = scmp.eq.s32.totalorder %s9, 1
    %p26 = por %p24, %p25
    %p27 = scmp.ne.s32.totalorder %s19, %s22
    %p28 = scmp.eq.s32.totalorder %s9, 0
    %p29 = por %p27, %p28
    %p30 = scmp.ne.s32.totalorder %s19, %s22
    %p31 = scmp.eq.s32.totalorder %s14, 1
    %p32 = por %p30, %p31
    %p33 = scmp.ne.s32.totalorder %s22, %s23
    %p34 = scmp.eq.s32.totalorder %s14, 0
    %p35 = por %p33, %p34
    %p36 = scmp.ne.s32.totalorder %s22, %s23
    %p37 = scmp.eq.s32.totalorder %s15, 1
    %p38 = por %p36, %p37
    %p40 = scmp.ne.s32.totalorder %s23, %s39
    %p41 = scmp.eq.s32.totalorder %s15, 0
    %p42 = por %p40, %p41
    %s44 = sadd.s32 %s43, 1
    %p47 = scmp.eq.s32.totalorder %s9, 1
    %p48 = scmp.ne.s32.totalorder %s43, %s45
    %p49 = scmp.eq.s32.totalorder %s9, 0
    %p50 = por %p48, %p49
    %p51 = scmp.ne.s32.totalorder %s43, %s45
    %p52 = scmp.eq.s32.totalorder %s14, 1
    %p53 = por %p51, %p52
    %p54 = scmp.ne.s32.totalorder %s45, %s46
    %p55 = scmp.eq.s32.totalorder %s14, 0
    %p56 = por %p54, %p55
    %p57 = scmp.ne.s32.totalorder %s45, %s46
    %p58 = scmp.eq.s32.totalorder %s15, 1
    %p59 = por %p57, %p58
    %p61 = scmp.ne.s32.totalorder %s46, %s60
    %p62 = scmp.eq.s32.totalorder %s15, 0
    %p63 = por %p61, %p62
    %s65 = sadd.s32 %s64, 1
    %p68 = scmp.eq.s32.totalorder %s9, 1
    %p69 = scmp.ne.s32.totalorder %s64, %s66
    %p70 = scmp.eq.s32.totalorder %s9, 0
    %p71 = por %p69, %p70
    %p72 = scmp.ne.s32.totalorder %s64, %s66
    %p73 = scmp.eq.s32.totalorder %s14, 1
    %p74 = por %p72, %p73
    %p75 = scmp.ne.s32.totalorder %s66, %s67
    %p76 = scmp.eq.s32.totalorder %s14, 0
    %p77 = por %p75, %p76
    %p78 = scmp.ne.s32.totalorder %s66, %s67
    %p79 = scmp.eq.s32.totalorder %s15, 1
    %p80 = por %p78, %p79
    %p82 = scmp.ne.s32.totalorder %s67, %s81
    %p83 = scmp.eq.s32.totalorder %s15, 0
    %p84 = por %p82, %p83
    %s85 = ssub.s32 %s9, %s16
    %p86 = scmp.eq.s32.totalorder %s85, 0
    %s88 = sadd.s32 %s87, 1
    %s89 = scalar_select %p86, %s87, %s88
    %p92 = pneg %p86
    %p93 = scmp.eq.s32.totalorder %s9, 1
    %p94 = por %p92, %p93
    %p95 = scmp.ne.s32.totalorder %s87, %s90
    %p96 = scmp.eq.s32.totalorder %s9, 0
    %p97 = por %p95, %p96
    %p98 = scmp.ne.s32.totalorder %s87, %s90
    %p99 = scmp.eq.s32.totalorder %s14, 1
    %p100 = por %p98, %p99
    %p101 = scmp.ne.s32.totalorder %s90, %s91
    %p102 = scmp.eq.s32.totalorder %s14, 0
    %p103 = por %p101, %p102
    %p104 = scmp.ne.s32.totalorder %s90, %s91
    %p105 = scmp.eq.s32.totalorder %s15, 1
    %p106 = por %p104, %p105
    %p108 = scmp.ne.s32.totalorder %s91, %s107
    %p109 = scmp.eq.s32.totalorder %s15, 0
    %p110 = por %p108, %p109
    %p111 = scmp.le.s32.totalorder 1, %s9
    %p112 = scmp.lt.s32.totalorder %s9, 3
    %p113 = pnand %p111, %p112
    %p114 = pneg %p113
    // Predicated region
    $region9: #{mpmrm_forward.5} parent=5 // pred_check
      _
    $region10: #{mpmrm_forward.5} parent=5 // pred_check_branch
      %116 = sbr.rel (%p113) target = $region12
    $region11: #{mpmrm_forward.5} parent=5 // pred_region
      %s117 = ssub.s32 %s9, 1
      // Predicated region
      $region13: #{mpmrm_forward.5} parent=11 // pred_check
        %p118 = pneg %p56
      $region14: #{mpmrm_forward.5} parent=11 // pred_check_branch
        %120 = sbr.rel (%p118) target = $region16
      $region15: #{mpmrm_forward.5} parent=11 // pred_region
        _
      $region16: #{mpmrm_forward.5} parent=11 // pred_fallthru
        _
      // Predicated region
      $region17: #{mpmrm_forward.5} parent=11 // pred_check
        %p121 = pneg %p77
      $region18: #{mpmrm_forward.5} parent=11 // pred_check_branch
        %123 = sbr.rel (%p121) target = $region20
      $region19: #{mpmrm_forward.5} parent=11 // pred_region
        _
      $region20: #{mpmrm_forward.5} parent=11 // pred_fallthru
        _
    $region12: #{mpmrm_forward.5} parent=5 // pred_fallthru
      _
    %p124 = scmp.lt.s32.totalorder %s9, 2
    // Predicated region
    $region21: #{mpmrm_forward.5} parent=5 // pred_check
      %p125 = pneg %p124
    $region22: #{mpmrm_forward.5} parent=5 // pred_check_branch
      %127 = sbr.rel (%p125) target = $region24
    $region23: #{mpmrm_forward.5} parent=5 // pred_region
      // Predicated region
      $region25: #{mpmrm_forward.5} parent=23 // pred_check
        %p128 = pneg %p29
      $region26: #{mpmrm_forward.5} parent=23 // pred_check_branch
        %130 = sbr.rel (%p128) target = $region28
      $region27: #{mpmrm_forward.5} parent=23 // pred_region
        %p131 = scmp.lt.s32.totalorder %s9, 1
        %s132 = scalar_select %p131, %s9, 1
        %s133 = smul.addr %s132, 6
        %s134 = smul.addr %s133, 8
        %s135 = scalar_lea.vmem %s0, %s134
      $region28: #{mpmrm_forward.5} parent=23 // pred_fallthru
        _
    $region24: #{mpmrm_forward.5} parent=5 // pred_fallthru
      _
    %p136 = scmp.le.s32.totalorder 1, %s9
    %p137 = scmp.lt.s32.totalorder %s9, 3
    %p138 = pnand %p136, %p137
    %p139 = pneg %p138
    // Predicated region
    $region29: #{mpmrm_forward.5} parent=5 // pred_check
      _
    $region30: #{mpmrm_forward.5} parent=5 // pred_check_branch
      %141 = sbr.rel (%p138) target = $region32
    $region31: #{mpmrm_forward.5} parent=5 // pred_region
      %s142 = ssub.s32 %s9, 1
      %p143 = scmp.lt.s32.totalorder %s14, 1
      %s144 = scalar_select %p143, %s14, 1
      %s145 = smul.addr %s144, 6
      %s146 = smul.addr %s145, 8
      %s147 = scalar_lea.vmem %s0, %s146
      %p148 = pneg %p35
      %p149 = pneg %p32
      %p150 = pneg %p56
      %p151 = pneg %p53
      %p152 = pneg %p77
      %p153 = pneg %p74
      %p154 = pneg %p103
      %p155 = pneg %p100
      %p156 = scmp.lt.s32.totalorder %s14, 1
      %s157 = scalar_select %p156, %s14, 1
      %s158 = smul.addr %s157, 3
      %s159 = smul.addr %s158, 8
      %s160 = scalar_lea.vmem %s3, %s159
      %p161 = scmp.lt.s32.totalorder %s14, 1
      %s162 = scalar_select %p161, %s14, 1
      %s163 = smul.addr %s162, 6
      %s164 = smul.addr %s163, 8
      %s165 = scalar_lea.vmem %s0, %s164
      %p166 = scmp.lt.s32.totalorder %s14, 1
      %s167 = scalar_select %p166, %s14, 1
      %s168 = smul.addr %s167, 3
      %s169 = smul.addr %s168, 8
      %s170 = scalar_lea.vmem %s3, %s169
      %v172 = vld [vmem:[%s165] sm:$0xff]
      %v173 = vld [vmem:[%s165 + $0x8] sm:$0xff]
      %v174 = vld [vmem:[%s165 + $0x10] sm:$0xff]
      %v175 = vld [vmem:[%s165 + $0x18] sm:$0xff]
      %v176 = vld [vmem:[%s165 + $0x20] sm:$0xff]
      %v177 = vld [vmem:[%s165 + $0x28] sm:$0xff]
      %178 = vst [vmem:[#allocation2] sm:$0xff] %v172
      %179 = vst [vmem:[#allocation2 + $0x8] sm:$0xff] %v173
      %vm180 = vcmask 261120
      %181 = vst.msk [vmem:[#allocation2 + $0x10] sm:$0xff] %vm180, %v174
      %182 = vst [vmem:[#allocation2 + $0x18] sm:$0xff] %v175
      %183 = vst [vmem:[#allocation2 + $0x20] sm:$0xff] %v176
      %184 = vst.msk [vmem:[#allocation2 + $0x28] sm:$0xff] %vm180, %v177
      %v185 = vld [vmem:[%s165] sm:$0xff]
      %v186 = vld [vmem:[%s165 + $0x8] sm:$0xff]
      %v187 = vld [vmem:[%s165 + $0x10] sm:$0xff]
      %v188 = vld [vmem:[%s165 + $0x18] sm:$0xff]
      %v189 = vld [vmem:[%s165 + $0x20] sm:$0xff]
      %v190 = vld [vmem:[%s165 + $0x28] sm:$0xff]
      %197 = vrot.lane.b32.xlu0 %v185, 127
      %v198 = vpop.permute.xlu0 %197
      %199 = vrot.lane.b32.xlu0 %v186, 127
      %v200 = vpop.permute.xlu0 %199
      %201 = vrot.lane.b32.xlu0 %v187, 127
      %v202 = vpop.permute.xlu0 %201
      %203 = vrot.lane.b32.xlu0 %v188, 127
      %v204 = vpop.permute.xlu0 %203
      %205 = vrot.lane.b32.xlu0 %v189, 127
      %v206 = vpop.permute.xlu0 %205
      %207 = vrot.lane.b32.xlu0 %v190, 127
      %v208 = vpop.permute.xlu0 %207
      %vm209 = vcmask 1039360
      %v210 = vsel %vm209, %v198, %v200
      %v211 = vsel %vm209, %v200, %v202
      %v212 = vsel %vm209, %v204, %v206
      %v213 = vsel %vm209, %v206, %v208
      %220 = vst [vmem:[#allocation2 + $0x30] sm:$0xff] %v210
      %221 = vst [vmem:[#allocation2 + $0x38] sm:$0xff] %v211
      %222 = vst.msk [vmem:[#allocation2 + $0x40] sm:$0xff] %vm180, %v202
      %223 = vst [vmem:[#allocation2 + $0x48] sm:$0xff] %v212
      %224 = vst [vmem:[#allocation2 + $0x50] sm:$0xff] %v213
      %225 = vst.msk [vmem:[#allocation2 + $0x58] sm:$0xff] %vm180, %v208
      %v226 = vld [vmem:[%s165] sm:$0xff]
      %v227 = vld [vmem:[%s165 + $0x8] sm:$0xff]
      %v228 = vld [vmem:[%s165 + $0x10] sm:$0xff]
      %v229 = vld [vmem:[%s165 + $0x18] sm:$0xff]
      %v230 = vld [vmem:[%s165 + $0x20] sm:$0xff]
      %v231 = vld [vmem:[%s165 + $0x28] sm:$0xff]
      %238 = vrot.lane.b32.xlu0 %v226, 126
      %v239 = vpop.permute.xlu0 %238
      %240 = vrot.lane.b32.xlu0 %v227, 126
      %v241 = vpop.permute.xlu0 %240
      %242 = vrot.lane.b32.xlu0 %v228, 126
      %v243 = vpop.permute.xlu0 %242
      %244 = vrot.lane.b32.xlu0 %v229, 126
      %v245 = vpop.permute.xlu0 %244
      %246 = vrot.lane.b32.xlu0 %v230, 126
      %v247 = vpop.permute.xlu0 %246
      %248 = vrot.lane.b32.xlu0 %v231, 126
      %v249 = vpop.permute.xlu0 %248
      %vm250 = vcmask 1031168
      %v251 = vsel %vm250, %v239, %v241
      %v252 = vsel %vm250, %v241, %v243
      %v253 = vsel %vm250, %v245, %v247
      %v254 = vsel %vm250, %v247, %v249
      %261 = vst [vmem:[#allocation2 + $0x60] sm:$0xff] %v251
      %262 = vst [vmem:[#allocation2 + $0x68] sm:$0xff] %v252
      %263 = vst.msk [vmem:[#allocation2 + $0x70] sm:$0xff] %vm180, %v243
      %264 = vst [vmem:[#allocation2 + $0x78] sm:$0xff] %v253
      %265 = vst [vmem:[#allocation2 + $0x80] sm:$0xff] %v254
      %266 = vst.msk [vmem:[#allocation2 + $0x88] sm:$0xff] %vm180, %v249
      %v267 = vld [vmem:[%s165] sm:$0xff]
      %v268 = vld [vmem:[%s165 + $0x8] sm:$0xff]
      %v269 = vld [vmem:[%s165 + $0x10] sm:$0xff]
      %v270 = vld [vmem:[%s165 + $0x18] sm:$0xff]
      %v271 = vld [vmem:[%s165 + $0x20] sm:$0xff]
      %v272 = vld [vmem:[%s165 + $0x28] sm:$0xff]
      %279 = vrot.lane.b32.xlu0 %v267, 110
      %v280 = vpop.permute.xlu0 %279
      %281 = vrot.lane.b32.xlu0 %v268, 110
      %v282 = vpop.permute.xlu0 %281
      %283 = vrot.lane.b32.xlu0 %v269, 110
      %v284 = vpop.permute.xlu0 %283
      %285 = vrot.lane.b32.xlu0 %v270, 110
      %v286 = vpop.permute.xlu0 %285
      %287 = vrot.lane.b32.xlu0 %v271, 110
      %v288 = vpop.permute.xlu0 %287
      %289 = vrot.lane.b32.xlu0 %v272, 110
      %v290 = vpop.permute.xlu0 %289
      %vm291 = vcmask 900096
      %v292 = vsel %vm291, %v280, %v282
      %v293 = vsel %vm291, %v282, %v284
      %v294 = vsel %vm291, %v286, %v288
      %v295 = vsel %vm291, %v288, %v290
      %302 = vst [vmem:[#allocation2 + $0x90] sm:$0xff] %v292
      %303 = vst [vmem:[#allocation2 + $0x98] sm:$0xff] %v293
      %304 = vst.msk [vmem:[#allocation2 + $0xa0] sm:$0xff] %vm180, %v284
      %305 = vst [vmem:[#allocation2 + $0xa8] sm:$0xff] %v294
      %306 = vst [vmem:[#allocation2 + $0xb0] sm:$0xff] %v295
      %307 = vst.msk [vmem:[#allocation2 + $0xb8] sm:$0xff] %vm180, %v290
      %v308 = vld [vmem:[%s165] sm:$0xff]
      %v309 = vld [vmem:[%s165 + $0x8] sm:$0xff]
      %v310 = vld [vmem:[%s165 + $0x10] sm:$0xff]
      %v311 = vld [vmem:[%s165 + $0x18] sm:$0xff]
      %v312 = vld [vmem:[%s165 + $0x20] sm:$0xff]
      %v313 = vld [vmem:[%s165 + $0x28] sm:$0xff]
      %320 = vrot.lane.b32.xlu0 %v308, 109
      %v321 = vpop.permute.xlu0 %320
      %322 = vrot.lane.b32.xlu0 %v309, 109
      %v323 = vpop.permute.xlu0 %322
      %324 = vrot.lane.b32.xlu0 %v310, 109
      %v325 = vpop.permute.xlu0 %324
      %326 = vrot.lane.b32.xlu0 %v311, 109
      %v327 = vpop.permute.xlu0 %326
      %328 = vrot.lane.b32.xlu0 %v312, 109
      %v329 = vpop.permute.xlu0 %328
      %330 = vrot.lane.b32.xlu0 %v313, 109
      %v331 = vpop.permute.xlu0 %330
      %vm332 = vcmask 891904
      %v333 = vsel %vm332, %v321, %v323
      %v334 = vsel %vm332, %v323, %v325
      %v335 = vsel %vm332, %v327, %v329
      %v336 = vsel %vm332, %v329, %v331
      %343 = vst [vmem:[#allocation2 + $0xc0] sm:$0xff] %v333
      %344 = vst [vmem:[#allocation2 + $0xc8] sm:$0xff] %v334
      %345 = vst.msk [vmem:[#allocation2 + $0xd0] sm:$0xff] %vm180, %v325
      %346 = vst [vmem:[#allocation2 + $0xd8] sm:$0xff] %v335
      %347 = vst [vmem:[#allocation2 + $0xe0] sm:$0xff] %v336
      %348 = vst.msk [vmem:[#allocation2 + $0xe8] sm:$0xff] %vm180, %v331
      %v349 = vld [vmem:[%s165] sm:$0xff]
      %v350 = vld [vmem:[%s165 + $0x8] sm:$0xff]
      %v351 = vld [vmem:[%s165 + $0x10] sm:$0xff]
      %v352 = vld [vmem:[%s165 + $0x18] sm:$0xff]
      %v353 = vld [vmem:[%s165 + $0x20] sm:$0xff]
      %v354 = vld [vmem:[%s165 + $0x28] sm:$0xff]
      %361 = vrot.lane.b32.xlu0 %v349, 108
      %v362 = vpop.permute.xlu0 %361
      %363 = vrot.lane.b32.xlu0 %v350, 108
      %v364 = vpop.permute.xlu0 %363
      %365 = vrot.lane.b32.xlu0 %v351, 108
      %v366 = vpop.permute.xlu0 %365
      %367 = vrot.lane.b32.xlu0 %v352, 108
      %v368 = vpop.permute.xlu0 %367
      %369 = vrot.lane.b32.xlu0 %v353, 108
      %v370 = vpop.permute.xlu0 %369
      %371 = vrot.lane.b32.xlu0 %v354, 108
      %v372 = vpop.permute.xlu0 %371
      %vm373 = vcmask 883712
      %v374 = vsel %vm373, %v362, %v364
      %v375 = vsel %vm373, %v364, %v366
      %v376 = vsel %vm373, %v368, %v370
      %v377 = vsel %vm373, %v370, %v372
      %384 = vst [vmem:[#allocation2 + $0xf0] sm:$0xff] %v374
      %385 = vst [vmem:[#allocation2 + $0xf8] sm:$0xff] %v375
      %386 = vst.msk [vmem:[#allocation2 + $0x100] sm:$0xff] %vm180, %v366
      %387 = vst [vmem:[#allocation2 + $0x108] sm:$0xff] %v376
      %388 = vst [vmem:[#allocation2 + $0x110] sm:$0xff] %v377
      %389 = vst.msk [vmem:[#allocation2 + $0x118] sm:$0xff] %vm180, %v372
      %v390 = vld [vmem:[%s165] sm:$0xff]
      %v391 = vld [vmem:[%s165 + $0x8] sm:$0xff]
      %v392 = vld [vmem:[%s165 + $0x10] sm:$0xff]
      %v393 = vld [vmem:[%s165 + $0x18] sm:$0xff]
      %v394 = vld [vmem:[%s165 + $0x20] sm:$0xff]
      %v395 = vld [vmem:[%s165 + $0x28] sm:$0xff]
      %402 = vrot.lane.b32.xlu0 %v390, 92
      %v403 = vpop.permute.xlu0 %402
      %404 = vrot.lane.b32.xlu0 %v391, 92
      %v405 = vpop.permute.xlu0 %404
      %406 = vrot.lane.b32.xlu0 %v392, 92
      %v407 = vpop.permute.xlu0 %406
      %408 = vrot.lane.b32.xlu0 %v393, 92
      %v409 = vpop.permute.xlu0 %408
      %410 = vrot.lane.b32.xlu0 %v394, 92
      %v411 = vpop.permute.xlu0 %410
      %412 = vrot.lane.b32.xlu0 %v395, 92
      %v413 = vpop.permute.xlu0 %412
      %vm414 = vcmask 752640
      %v415 = vsel %vm414, %v403, %v405
      %v416 = vsel %vm414, %v405, %v407
      %v417 = vsel %vm414, %v409, %v411
      %v418 = vsel %vm414, %v411, %v413
      %425 = vst [vmem:[#allocation2 + $0x120] sm:$0xff] %v415
      %426 = vst [vmem:[#allocation2 + $0x128] sm:$0xff] %v416
      %427 = vst.msk [vmem:[#allocation2 + $0x130] sm:$0xff] %vm180, %v407
      %428 = vst [vmem:[#allocation2 + $0x138] sm:$0xff] %v417
      %429 = vst [vmem:[#allocation2 + $0x140] sm:$0xff] %v418
      %430 = vst.msk [vmem:[#allocation2 + $0x148] sm:$0xff] %vm180, %v413
      %v431 = vld [vmem:[%s165] sm:$0xff]
      %v432 = vld [vmem:[%s165 + $0x8] sm:$0xff]
      %v433 = vld [vmem:[%s165 + $0x10] sm:$0xff]
      %v434 = vld [vmem:[%s165 + $0x18] sm:$0xff]
      %v435 = vld [vmem:[%s165 + $0x20] sm:$0xff]
      %v436 = vld [vmem:[%s165 + $0x28] sm:$0xff]
      %443 = vrot.lane.b32.xlu0 %v431, 91
      %v444 = vpop.permute.xlu0 %443
      %445 = vrot.lane.b32.xlu0 %v432, 91
      %v446 = vpop.permute.xlu0 %445
      %447 = vrot.lane.b32.xlu0 %v433, 91
      %v448 = vpop.permute.xlu0 %447
      %449 = vrot.lane.b32.xlu0 %v434, 91
      %v450 = vpop.permute.xlu0 %449
      %451 = vrot.lane.b32.xlu0 %v435, 91
      %v452 = vpop.permute.xlu0 %451
      %453 = vrot.lane.b32.xlu0 %v436, 91
      %v454 = vpop.permute.xlu0 %453
      %vm455 = vcmask 744448
      %v456 = vsel %vm455, %v444, %v446
      %v457 = vsel %vm455, %v446, %v448
      %v458 = vsel %vm455, %v450, %v452
      %v459 = vsel %vm455, %v452, %v454
      %466 = vst [vmem:[#allocation2 + $0x150] sm:$0xff] %v456
      %467 = vst [vmem:[#allocation2 + $0x158] sm:$0xff] %v457
      %468 = vst.msk [vmem:[#allocation2 + $0x160] sm:$0xff] %vm180, %v448
      %469 = vst [vmem:[#allocation2 + $0x168] sm:$0xff] %v458
      %470 = vst [vmem:[#allocation2 + $0x170] sm:$0xff] %v459
      %471 = vst.msk [vmem:[#allocation2 + $0x178] sm:$0xff] %vm180, %v454
      %v472 = vld [vmem:[%s165] sm:$0xff]
      %v473 = vld [vmem:[%s165 + $0x8] sm:$0xff]
      %v474 = vld [vmem:[%s165 + $0x10] sm:$0xff]
      %v475 = vld [vmem:[%s165 + $0x18] sm:$0xff]
      %v476 = vld [vmem:[%s165 + $0x20] sm:$0xff]
      %v477 = vld [vmem:[%s165 + $0x28] sm:$0xff]
      %484 = vrot.lane.b32.xlu0 %v472, 90
      %v485 = vpop.permute.xlu0 %484
      %486 = vrot.lane.b32.xlu0 %v473, 90
      %v487 = vpop.permute.xlu0 %486
      %488 = vrot.lane.b32.xlu0 %v474, 90
      %v489 = vpop.permute.xlu0 %488
      %490 = vrot.lane.b32.xlu0 %v475, 90
      %v491 = vpop.permute.xlu0 %490
      %492 = vrot.lane.b32.xlu0 %v476, 90
      %v493 = vpop.permute.xlu0 %492
      %494 = vrot.lane.b32.xlu0 %v477, 90
      %v495 = vpop.permute.xlu0 %494
      %vm496 = vcmask 736256
      %v497 = vsel %vm496, %v485, %v487
      %v498 = vsel %vm496, %v487, %v489
      %v499 = vsel %vm496, %v491, %v493
      %v500 = vsel %vm496, %v493, %v495
      %507 = vst [vmem:[#allocation2 + $0x180] sm:$0xff] %v497
      %508 = vst [vmem:[#allocation2 + $0x188] sm:$0xff] %v498
      %509 = vst.msk [vmem:[#allocation2 + $0x190] sm:$0xff] %vm180, %v489
      %510 = vst [vmem:[#allocation2 + $0x198] sm:$0xff] %v499
      %511 = vst [vmem:[#allocation2 + $0x1a0] sm:$0xff] %v500
      %512 = vst.msk [vmem:[#allocation2 + $0x1a8] sm:$0xff] %vm180, %v495
      %v513 = vld [vmem:[%s1] sm:$0xff]
      %v514 = vld [vmem:[#allocation2] sm:$0xff]
      %v515 = vld [vmem:[#allocation2 + $0x8] sm:$0xff]
      %v516 = vld [vmem:[#allocation2 + $0x10] sm:$0xff]
      %v517 = vld [vmem:[#allocation2 + $0x18] sm:$0xff]
      %v518 = vld [vmem:[#allocation2 + $0x20] sm:$0xff]
      %v519 = vld [vmem:[#allocation2 + $0x28] sm:$0xff]
      %v520 = vld [vmem:[#allocation2 + $0x30] sm:$0xff]
      %v521 = vld [vmem:[#allocation2 + $0x38] sm:$0xff]
      %v522 = vld [vmem:[#allocation2 + $0x40] sm:$0xff]
      %v523 = vld [vmem:[#allocation2 + $0x48] sm:$0xff]
      %v524 = vld [vmem:[#allocation2 + $0x50] sm:$0xff]
      %v525 = vld [vmem:[#allocation2 + $0x58] sm:$0xff]
      %v526 = vld [vmem:[#allocation2 + $0x60] sm:$0xff]
      %v527 = vld [vmem:[#allocation2 + $0x68] sm:$0xff]
      %v528 = vld [vmem:[#allocation2 + $0x70] sm:$0xff]
      %v529 = vld [vmem:[#allocation2 + $0x78] sm:$0xff]
      %v530 = vld [vmem:[#allocation2 + $0x80] sm:$0xff]
      %v531 = vld [vmem:[#allocation2 + $0x88] sm:$0xff]
      %v532 = vld [vmem:[#allocation2 + $0x90] sm:$0xff]
      %v533 = vld [vmem:[#allocation2 + $0x98] sm:$0xff]
      %v534 = vld [vmem:[#allocation2 + $0xa0] sm:$0xff]
      %v535 = vld [vmem:[#allocation2 + $0xa8] sm:$0xff]
      %v536 = vld [vmem:[#allocation2 + $0xb0] sm:$0xff]
      %v537 = vld [vmem:[#allocation2 + $0xb8] sm:$0xff]
      %v538 = vld [vmem:[#allocation2 + $0xc0] sm:$0xff]
      %v539 = vld [vmem:[#allocation2 + $0xc8] sm:$0xff]
      %v540 = vld [vmem:[#allocation2 + $0xd0] sm:$0xff]
      %v541 = vld [vmem:[#allocation2 + $0xd8] sm:$0xff]
      %v542 = vld [vmem:[#allocation2 + $0xe0] sm:$0xff]
      %v543 = vld [vmem:[#allocation2 + $0xe8] sm:$0xff]
      %v544 = vld [vmem:[#allocation2 + $0xf0] sm:$0xff]
      %v545 = vld [vmem:[#allocation2 + $0xf8] sm:$0xff]
      %v546 = vld [vmem:[#allocation2 + $0x100] sm:$0xff]
      %v547 = vld [vmem:[#allocation2 + $0x108] sm:$0xff]
      %v548 = vld [vmem:[#allocation2 + $0x110] sm:$0xff]
      %v549 = vld [vmem:[#allocation2 + $0x118] sm:$0xff]
      %v550 = vld [vmem:[#allocation2 + $0x120] sm:$0xff]
      %v551 = vld [vmem:[#allocation2 + $0x128] sm:$0xff]
      %v552 = vld [vmem:[#allocation2 + $0x130] sm:$0xff]
      %v553 = vld [vmem:[#allocation2 + $0x138] sm:$0xff]
      %v554 = vld [vmem:[#allocation2 + $0x140] sm:$0xff]
      %v555 = vld [vmem:[#allocation2 + $0x148] sm:$0xff]
      %v556 = vld [vmem:[#allocation2 + $0x150] sm:$0xff]
      %v557 = vld [vmem:[#allocation2 + $0x158] sm:$0xff]
      %v558 = vld [vmem:[#allocation2 + $0x160] sm:$0xff]
      %v559 = vld [vmem:[#allocation2 + $0x168] sm:$0xff]
      %v560 = vld [vmem:[#allocation2 + $0x170] sm:$0xff]
      %v561 = vld [vmem:[#allocation2 + $0x178] sm:$0xff]
      %v562 = vld [vmem:[#allocation2 + $0x180] sm:$0xff]
      %v563 = vld [vmem:[#allocation2 + $0x188] sm:$0xff]
      %v564 = vld [vmem:[#allocation2 + $0x190] sm:$0xff]
      %v565 = vld [vmem:[#allocation2 + $0x198] sm:$0xff]
      %v566 = vld [vmem:[#allocation2 + $0x1a0] sm:$0xff]
      %v567 = vld [vmem:[#allocation2 + $0x1a8] sm:$0xff]
      %v568 = vpack.c.bf16 %v517, %v514
      %v569 = vpack.c.bf16 %v518, %v515
      %v570 = vpack.c.bf16 %v519, %v516
      %v571 = vpack.c.bf16 %v523, %v520
      %v572 = vpack.c.bf16 %v524, %v521
      %v573 = vpack.c.bf16 %v525, %v522
      %v574 = vpack.c.bf16 %v529, %v526
      %v575 = vpack.c.bf16 %v530, %v527
      %v576 = vpack.c.bf16 %v531, %v528
      %v577 = vpack.c.bf16 %v535, %v532
      %v578 = vpack.c.bf16 %v536, %v533
      %v579 = vpack.c.bf16 %v537, %v534
      %v580 = vpack.c.bf16 %v541, %v538
      %v581 = vpack.c.bf16 %v542, %v539
      %v582 = vpack.c.bf16 %v543, %v540
      %v583 = vpack.c.bf16 %v547, %v544
      %v584 = vpack.c.bf16 %v548, %v545
      %v585 = vpack.c.bf16 %v549, %v546
      %v586 = vpack.c.bf16 %v553, %v550
      %v587 = vpack.c.bf16 %v554, %v551
      %v588 = vpack.c.bf16 %v555, %v552
      %v589 = vpack.c.bf16 %v559, %v556
      %v590 = vpack.c.bf16 %v560, %v557
      %v591 = vpack.c.bf16 %v561, %v558
      %v592 = vpack.c.bf16 %v565, %v562
      %v593 = vpack.c.bf16 %v566, %v563
      %v594 = vpack.c.bf16 %v567, %v564
      %v595 = vld [vmem:[%s2] sm:$0xff]
      %597 = vset.pattern.permute.xlu0 0
      %598 = vperm.xlu0 %597, %v595
      %v599 = vpop.permute.xlu0 %598
      %v602 = vunpack.c.l.b16 %v513
      %v603 = vunpack.c.h.b16 %v513
      %v604 = vpack.c.b16 %v602, %v602
      %v605 = vpack.c.b16 %v603, %v603
      %vm607 = vcmask 130048
      %v609 = vsel %vm607, %v605, 0
      %611 = vmatpush.bf16.msra.mxu0 %v589
      %612 = vmatpush.bf16.msra.mxu0 %v586
      %613 = vmatpush.bf16.msra.mxu0 %v583
      %614 = vmatpush.bf16.msra.mxu0 %v580
      %615 = vmatpush.bf16.msra.mxu0 %v577
      %616 = vmatpush.bf16.msra.mxu0 %v574
      %617 = vmatpush.bf16.msra.mxu0 %v571
      %618 = vmatpush.bf16.msra.mxu0 %v568
      %619 = vmatmul.bf16.gmra.mxu0 %v604
      %v620 = vpop.f32.mrf.mxu0
      %v621 = vadd.f32 %v599, %v620
      %v622 = vpop.f32.mrf.mxu0
      %623 = vdwg.mxu0
      %624 = vmatpush.bf16.msra.mxu0 0
      %625 = vmatpush.bf16.msra.mxu0 0
      %626 = vmatpush.bf16.msra.mxu0 0
      %627 = vmatpush.bf16.msra.mxu0 0
      %628 = vmatpush.bf16.msra.mxu0 0
      %629 = vmatpush.bf16.msra.mxu0 0
      %630 = vmatpush.bf16.msra.mxu0 0
      %631 = vmatpush.bf16.msra.mxu0 %v592
      %632 = vmatmul.bf16.gmra.mxu0 %v609
      %v633 = vpop.f32.mrf.mxu0
      %v634 = vadd.f32 %v621, %v633
      %v635 = vpop.f32.mrf.mxu0
      %636 = vdwg.mxu0
      %637 = vmatpush.bf16.msra.mxu0 %v590
      %638 = vmatpush.bf16.msra.mxu0 %v587
      %639 = vmatpush.bf16.msra.mxu0 %v584
      %640 = vmatpush.bf16.msra.mxu0 %v581
      %641 = vmatpush.bf16.msra.mxu0 %v578
      %642 = vmatpush.bf16.msra.mxu0 %v575
      %643 = vmatpush.bf16.msra.mxu0 %v572
      %644 = vmatpush.bf16.msra.mxu0 %v569
      %645 = vmatmul.bf16.gmra.mxu0 %v604
      %v646 = vpop.f32.mrf.mxu0
      %v647 = vadd.f32 %v599, %v646
      %v648 = vpop.f32.mrf.mxu0
      %649 = vdwg.mxu0
      %650 = vmatpush.bf16.msra.mxu0 0
      %651 = vmatpush.bf16.msra.mxu0 0
      %652 = vmatpush.bf16.msra.mxu0 0
      %653 = vmatpush.bf16.msra.mxu0 0
      %654 = vmatpush.bf16.msra.mxu0 0
      %655 = vmatpush.bf16.msra.mxu0 0
      %656 = vmatpush.bf16.msra.mxu0 0
      %657 = vmatpush.bf16.msra.mxu0 %v593
      %658 = vmatmul.bf16.gmra.mxu0 %v609
      %v659 = vpop.f32.mrf.mxu0
      %v660 = vadd.f32 %v647, %v659
      %v661 = vpop.f32.mrf.mxu0
      %662 = vdwg.mxu0
      %663 = vmatpush.bf16.msra.mxu0 %v591
      %664 = vmatpush.bf16.msra.mxu0 %v588
      %665 = vmatpush.bf16.msra.mxu0 %v585
      %666 = vmatpush.bf16.msra.mxu0 %v582
      %667 = vmatpush.bf16.msra.mxu0 %v579
      %668 = vmatpush.bf16.msra.mxu0 %v576
      %669 = vmatpush.bf16.msra.mxu0 %v573
      %670 = vmatpush.bf16.msra.mxu0 %v570
      %671 = vmatmul.bf16.gmra.mxu0 %v604
      %v672 = vpop.f32.mrf.mxu0
      %v673 = vadd.f32 %v599, %v672
      %v674 = vpop.f32.mrf.mxu0
      %675 = vdwg.mxu0
      %676 = vmatpush.bf16.msra.mxu0 0
      %677 = vmatpush.bf16.msra.mxu0 0
      %678 = vmatpush.bf16.msra.mxu0 0
      %679 = vmatpush.bf16.msra.mxu0 0
      %680 = vmatpush.bf16.msra.mxu0 0
      %681 = vmatpush.bf16.msra.mxu0 0
      %682 = vmatpush.bf16.msra.mxu0 0
      %683 = vmatpush.bf16.msra.mxu0 %v594
      %684 = vmatmul.bf16.gmra.mxu0 %v609
      %v685 = vpop.f32.mrf.mxu0
      %v686 = vadd.f32 %v673, %v685
      %v687 = vpop.f32.mrf.mxu0
      %688 = vdwg.mxu0
      %689 = vst [vmem:[%s170] sm:$0xff] %v634
      %690 = vst [vmem:[%s170 + $0x8] sm:$0xff] %v660
      %691 = vst.msk [vmem:[%s170 + $0x10] sm:$0xff] %vm180, %v686
      %p692 = scmp.lt.s32.totalorder %s14, 1
      %s693 = scalar_select %p692, %s14, 1
      %s694 = smul.addr %s693, 3
      %s695 = smul.addr %s694, 8
      %s696 = scalar_lea.vmem %s3, %s695
      // Predicated region
      $region33: #{mpmrm_forward.5} parent=31 // pred_check
        %p697 = pneg %p100
      $region34: #{mpmrm_forward.5} parent=31 // pred_check_branch
        %699 = sbr.rel (%p697) target = $region36
      $region35: #{mpmrm_forward.5} parent=31 // pred_region
        _
      $region36: #{mpmrm_forward.5} parent=31 // pred_fallthru
        _
    $region32: #{mpmrm_forward.5} parent=5 // pred_fallthru
      _
    %p700 = scmp.le.s32.totalorder 2, %s9
    // Predicated region
    $region37: #{mpmrm_forward.5} parent=5 // pred_check
      %p701 = pneg %p700
    $region38: #{mpmrm_forward.5} parent=5 // pred_check_branch
      %703 = sbr.rel (%p701) target = $region40
    $region39: #{mpmrm_forward.5} parent=5 // pred_region
      %s704 = ssub.s32 %s9, 2
      // Predicated region
      $region41: #{mpmrm_forward.5} parent=39 // pred_check
        %p705 = pneg %p106
      $region42: #{mpmrm_forward.5} parent=39 // pred_check_branch
        %707 = sbr.rel (%p705) target = $region44
      $region43: #{mpmrm_forward.5} parent=39 // pred_region
        %p708 = scmp.lt.s32.totalorder %s15, 1
        %s709 = scalar_select %p708, %s15, 1
        %s710 = smul.addr %s709, 3
        %s711 = smul.addr %s710, 8
        %s712 = scalar_lea.vmem %s3, %s711
      $region44: #{mpmrm_forward.5} parent=39 // pred_fallthru
        _
    $region40: #{mpmrm_forward.5} parent=5 // pred_fallthru
      _
  $region6: #{mpmrm_forward.5} parent=0 // loop_footer
    %s13 = sadd.s32 1, %s9
  $region7: #{mpmrm_forward.5} parent=0 // loop_footer_branch
    %8 = sbr.rel target = $region3
  $region8: #{mpmrm_forward.5} parent=0 // loop_exit
    _

// kernel: mpmrm_forward.4
$region0: #{mpmrm_forward.4}
  #allocation0 [shape = 'u32[]', space=smem, size = 0x4, offset = 0x4, fixed_abs, tag = 'smem constant byte address 0x4 - core index']
  #allocation1 [shape = 'u32[72,128]{1,0:T(1,128)}', space=vmem, size = 0x9000, scoped, tag = 'internal scratch']
  #allocation2 [shape = 'f32[16,148]{1,0:T(8,128)}', space=vmem, size = 0x4000, scoped, tag = 'scratch operand']
  #allocation3 [shape = 'f32[144,96]{1,0:T(8,128)}', space=vmem, size = 0x12000, scoped, tag = 'scratch operand']
  #allocation4 [shape = 'f32[4,148]{1,0:T(4,128)}', space=vmem, size = 0x1000, scoped, tag = 'scratch operand']
  #allocation5 [shape = 'f32[4,148]{1,0:T(4,128)}', space=vmem, size = 0x1000, scoped, tag = 'scratch operand']
  %s0 = inlined_call_operand.vmem [shape: f32[8,16,96], index: 0, kind: input, shape index: {}]
  %s1 = inlined_call_operand.vmem [shape: bf16[20,144], index: 1, kind: input, shape index: {}]
  %s2 = inlined_call_operand.vmem [shape: f32[20,1], index: 2, kind: input, shape index: {}]
  %s3 = inlined_call_operand.vmem [shape: bf16[4,36], index: 3, kind: input, shape index: {}]
  %s4 = inlined_call_operand.vmem [shape: f32[4,1], index: 4, kind: input, shape index: {}]
  %s5 = inlined_call_operand.vmem [shape: bf16[8,36], index: 5, kind: input, shape index: {}]
  %s6 = inlined_call_operand.vmem [shape: f32[8,1], index: 6, kind: input, shape index: {}]
  %s7 = inlined_call_operand.vmem [shape: f32[25,148], index: 7, kind: input, shape index: {}]
  %s8 = inlined_call_operand.vmem [shape: f32[25,148], index: 8, kind: input, shape index: {}]
  %s9 = inlined_call_operand.vmem [shape: f32[1,96], index: 9, kind: input, shape index: {}]
  %s10 = inlined_call_operand.vmem [shape: f32[8,16,96], index: 10, kind: output, shape index: {}]
  %s11 = sld [smem:[#allocation0]]
  $region73: #{mpmrm_forward.4} parent=0
    _
  %s13 = ssub.s32 1, %s11
  %s14 = scalar_select 0, %s13, %s11
  loop: start=0, step=1, limit=6
  $region2: #{mpmrm_forward.4} parent=0 // loop_pre_header
    _
  $region3: #{mpmrm_forward.4} parent=0 // loop_header
    %s16 = sphi 0, %s20
    %p17 = scmp.ge.s32.totalorder %s16, 6
    %s26 = sphi 0, %s28
    %s29 = sphi 0, %s26
    %s30 = sphi 0, %s29
    %s46 = sphi 0, %s30
    %s50 = sphi 0, %s50
    %s52 = sphi 0, %s50
    %s53 = sphi 0, %s52
    %s67 = sphi 0, %s53
    %s71 = sphi 0, %s71
    %s73 = sphi 0, %s71
    %s74 = sphi 0, %s73
    %s88 = sphi 0, %s74
    %s92 = sphi 0, %s92
    %s94 = sphi 0, %s92
    %s95 = sphi 0, %s94
    %s109 = sphi 0, %s95
    %s113 = sphi 0, %s113
    %s115 = sphi 0, %s113
    %s116 = sphi 0, %s115
    %s130 = sphi 0, %s116
    %s134 = sphi 0, %s134
    %s136 = sphi 0, %s134
    %s137 = sphi 0, %s136
    %s151 = sphi 0, %s137
    %s155 = sphi 0, %s155
    %s157 = sphi 0, %s155
    %s158 = sphi 0, %s157
    %s172 = sphi 0, %s158
    %s176 = sphi 0, %s176
    %s178 = sphi 0, %s176
    %s179 = sphi 0, %s178
    %s193 = sphi 0, %s179
    %s197 = sphi 0, %s197
    %s199 = sphi 0, %s197
    %s200 = sphi 0, %s199
    %s214 = sphi 0, %s200
    %s218 = sphi 0, %s218
    %s220 = sphi 0, %s218
    %s221 = sphi 0, %s220
    %s235 = sphi 0, %s221
    %s241 = sphi 0, %s243
    %s244 = sphi 0, %s241
    %s245 = sphi 0, %s244
    %s261 = sphi 0, %s245
  $region4: #{mpmrm_forward.4} parent=0 // loop_header_branch
    %19 = sbr.rel (%p17) target = $region8
  $region5: #{mpmrm_forward.4} parent=0 // loop_body
    %s21 = ssub.s32 %s16, 1
    %s22 = ssub.s32 %s16, 2
    %s23 = sadd.s32 %s16, 1
    %s24 = ssub.s32 %s16, %s23
    %p25 = scmp.eq.s32.totalorder %s24, 0
    %s27 = sadd.s32 %s26, 1
    %s28 = scalar_select %p25, %s26, %s27
    %p31 = pneg %p25
    %p32 = scmp.eq.s32.totalorder %s16, 3
    %p33 = por %p31, %p32
    %p34 = scmp.ne.s32.totalorder %s26, %s29
    %p35 = scmp.eq.s32.totalorder %s16, 0
    %p36 = por %p34, %p35
    %p37 = scmp.ne.s32.totalorder %s26, %s29
    %p38 = scmp.eq.s32.totalorder %s21, 3
    %p39 = por %p37, %p38
    %p40 = scmp.ne.s32.totalorder %s29, %s30
    %p41 = scmp.eq.s32.totalorder %s21, 0
    %p42 = por %p40, %p41
    %p43 = scmp.ne.s32.totalorder %s29, %s30
    %p44 = scmp.eq.s32.totalorder %s22, 3
    %p45 = por %p43, %p44
    %p47 = scmp.ne.s32.totalorder %s30, %s46
    %p48 = scmp.eq.s32.totalorder %s22, 0
    %p49 = por %p47, %p48
    %s51 = sadd.s32 %s50, 1
    %p54 = scmp.eq.s32.totalorder %s16, 3
    %p55 = scmp.ne.s32.totalorder %s50, %s52
    %p56 = scmp.eq.s32.totalorder %s16, 0
    %p57 = por %p55, %p56
    %p58 = scmp.ne.s32.totalorder %s50, %s52
    %p59 = scmp.eq.s32.totalorder %s21, 3
    %p60 = por %p58, %p59
    %p61 = scmp.ne.s32.totalorder %s52, %s53
    %p62 = scmp.eq.s32.totalorder %s21, 0
    %p63 = por %p61, %p62
    %p64 = scmp.ne.s32.totalorder %s52, %s53
    %p65 = scmp.eq.s32.totalorder %s22, 3
    %p66 = por %p64, %p65
    %p68 = scmp.ne.s32.totalorder %s53, %s67
    %p69 = scmp.eq.s32.totalorder %s22, 0
    %p70 = por %p68, %p69
    %s72 = sadd.s32 %s71, 1
    %p75 = scmp.eq.s32.totalorder %s16, 3
    %p76 = scmp.ne.s32.totalorder %s71, %s73
    %p77 = scmp.eq.s32.totalorder %s16, 0
    %p78 = por %p76, %p77
    %p79 = scmp.ne.s32.totalorder %s71, %s73
    %p80 = scmp.eq.s32.totalorder %s21, 3
    %p81 = por %p79, %p80
    %p82 = scmp.ne.s32.totalorder %s73, %s74
    %p83 = scmp.eq.s32.totalorder %s21, 0
    %p84 = por %p82, %p83
    %p85 = scmp.ne.s32.totalorder %s73, %s74
    %p86 = scmp.eq.s32.totalorder %s22, 3
    %p87 = por %p85, %p86
    %p89 = scmp.ne.s32.totalorder %s74, %s88
    %p90 = scmp.eq.s32.totalorder %s22, 0
    %p91 = por %p89, %p90
    %s93 = sadd.s32 %s92, 1
    %p96 = scmp.eq.s32.totalorder %s16, 3
    %p97 = scmp.ne.s32.totalorder %s92, %s94
    %p98 = scmp.eq.s32.totalorder %s16, 0
    %p99 = por %p97, %p98
    %p100 = scmp.ne.s32.totalorder %s92, %s94
    %p101 = scmp.eq.s32.totalorder %s21, 3
    %p102 = por %p100, %p101
    %p103 = scmp.ne.s32.totalorder %s94, %s95
    %p104 = scmp.eq.s32.totalorder %s21, 0
    %p105 = por %p103, %p104
    %p106 = scmp.ne.s32.totalorder %s94, %s95
    %p107 = scmp.eq.s32.totalorder %s22, 3
    %p108 = por %p106, %p107
    %p110 = scmp.ne.s32.totalorder %s95, %s109
    %p111 = scmp.eq.s32.totalorder %s22, 0
    %p112 = por %p110, %p111
    %s114 = sadd.s32 %s113, 1
    %p117 = scmp.eq.s32.totalorder %s16, 3
    %p118 = scmp.ne.s32.totalorder %s113, %s115
    %p119 = scmp.eq.s32.totalorder %s16, 0
    %p120 = por %p118, %p119
    %p121 = scmp.ne.s32.totalorder %s113, %s115
    %p122 = scmp.eq.s32.totalorder %s21, 3
    %p123 = por %p121, %p122
    %p124 = scmp.ne.s32.totalorder %s115, %s116
    %p125 = scmp.eq.s32.totalorder %s21, 0
    %p126 = por %p124, %p125
    %p127 = scmp.ne.s32.totalorder %s115, %s116
    %p128 = scmp.eq.s32.totalorder %s22, 3
    %p129 = por %p127, %p128
    %p131 = scmp.ne.s32.totalorder %s116, %s130
    %p132 = scmp.eq.s32.totalorder %s22, 0
    %p133 = por %p131, %p132
    %s135 = sadd.s32 %s134, 1
    %p138 = scmp.eq.s32.totalorder %s16, 3
    %p139 = scmp.ne.s32.totalorder %s134, %s136
    %p140 = scmp.eq.s32.totalorder %s16, 0
    %p141 = por %p139, %p140
    %p142 = scmp.ne.s32.totalorder %s134, %s136
    %p143 = scmp.eq.s32.totalorder %s21, 3
    %p144 = por %p142, %p143
    %p145 = scmp.ne.s32.totalorder %s136, %s137
    %p146 = scmp.eq.s32.totalorder %s21, 0
    %p147 = por %p145, %p146
    %p148 = scmp.ne.s32.totalorder %s136, %s137
    %p149 = scmp.eq.s32.totalorder %s22, 3
    %p150 = por %p148, %p149
    %p152 = scmp.ne.s32.totalorder %s137, %s151
    %p153 = scmp.eq.s32.totalorder %s22, 0
    %p154 = por %p152, %p153
    %s156 = sadd.s32 %s155, 1
    %p159 = scmp.eq.s32.totalorder %s16, 3
    %p160 = scmp.ne.s32.totalorder %s155, %s157
    %p161 = scmp.eq.s32.totalorder %s16, 0
    %p162 = por %p160, %p161
    %p163 = scmp.ne.s32.totalorder %s155, %s157
    %p164 = scmp.eq.s32.totalorder %s21, 3
    %p165 = por %p163, %p164
    %p166 = scmp.ne.s32.totalorder %s157, %s158
    %p167 = scmp.eq.s32.totalorder %s21, 0
    %p168 = por %p166, %p167
    %p169 = scmp.ne.s32.totalorder %s157, %s158
    %p170 = scmp.eq.s32.totalorder %s22, 3
    %p171 = por %p169, %p170
    %p173 = scmp.ne.s32.totalorder %s158, %s172
    %p174 = scmp.eq.s32.totalorder %s22, 0
    %p175 = por %p173, %p174
    %s177 = sadd.s32 %s176, 1
    %p180 = scmp.eq.s32.totalorder %s16, 3
    %p181 = scmp.ne.s32.totalorder %s176, %s178
    %p182 = scmp.eq.s32.totalorder %s16, 0
    %p183 = por %p181, %p182
    %p184 = scmp.ne.s32.totalorder %s176, %s178
    %p185 = scmp.eq.s32.totalorder %s21, 3
    %p186 = por %p184, %p185
    %p187 = scmp.ne.s32.totalorder %s178, %s179
    %p188 = scmp.eq.s32.totalorder %s21, 0
    %p189 = por %p187, %p188
    %p190 = scmp.ne.s32.totalorder %s178, %s179
    %p191 = scmp.eq.s32.totalorder %s22, 3
    %p192 = por %p190, %p191
    %p194 = scmp.ne.s32.totalorder %s179, %s193
    %p195 = scmp.eq.s32.totalorder %s22, 0
    %p196 = por %p194, %p195
    %s198 = sadd.s32 %s197, 1
    %p201 = scmp.eq.s32.totalorder %s16, 3
    %p202 = scmp.ne.s32.totalorder %s197, %s199
    %p203 = scmp.eq.s32.totalorder %s16, 0
    %p204 = por %p202, %p203
    %p205 = scmp.ne.s32.totalorder %s197, %s199
    %p206 = scmp.eq.s32.totalorder %s21, 3
    %p207 = por %p205, %p206
    %p208 = scmp.ne.s32.totalorder %s199, %s200
    %p209 = scmp.eq.s32.totalorder %s21, 0
    %p210 = por %p208, %p209
    %p211 = scmp.ne.s32.totalorder %s199, %s200
    %p212 = scmp.eq.s32.totalorder %s22, 3
    %p213 = por %p211, %p212
    %p215 = scmp.ne.s32.totalorder %s200, %s214
    %p216 = scmp.eq.s32.totalorder %s22, 0
    %p217 = por %p215, %p216
    %s219 = sadd.s32 %s218, 1
    %p222 = scmp.eq.s32.totalorder %s16, 3
    %p223 = scmp.ne.s32.totalorder %s218, %s220
    %p224 = scmp.eq.s32.totalorder %s16, 0
    %p225 = por %p223, %p224
    %p226 = scmp.ne.s32.totalorder %s218, %s220
    %p227 = scmp.eq.s32.totalorder %s21, 3
    %p228 = por %p226, %p227
    %p229 = scmp.ne.s32.totalorder %s220, %s221
    %p230 = scmp.eq.s32.totalorder %s21, 0
    %p231 = por %p229, %p230
    %p232 = scmp.ne.s32.totalorder %s220, %s221
    %p233 = scmp.eq.s32.totalorder %s22, 3
    %p234 = por %p232, %p233
    %p236 = scmp.ne.s32.totalorder %s221, %s235
    %p237 = scmp.eq.s32.totalorder %s22, 0
    %p238 = por %p236, %p237
    %s239 = ssub.s32 %s16, %s23
    %p240 = scmp.eq.s32.totalorder %s239, 0
    %s242 = sadd.s32 %s241, 1
    %s243 = scalar_select %p240, %s241, %s242
    %p246 = pneg %p240
    %p247 = scmp.eq.s32.totalorder %s16, 3
    %p248 = por %p246, %p247
    %p249 = scmp.ne.s32.totalorder %s241, %s244
    %p250 = scmp.eq.s32.totalorder %s16, 0
    %p251 = por %p249, %p250
    %p252 = scmp.ne.s32.totalorder %s241, %s244
    %p253 = scmp.eq.s32.totalorder %s21, 3
    %p254 = por %p252, %p253
    %p255 = scmp.ne.s32.totalorder %s244, %s245
    %p256 = scmp.eq.s32.totalorder %s21, 0
    %p257 = por %p255, %p256
    %p258 = scmp.ne.s32.totalorder %s244, %s245
    %p259 = scmp.eq.s32.totalorder %s22, 3
    %p260 = por %p258, %p259
    %p262 = scmp.ne.s32.totalorder %s245, %s261
    %p263 = scmp.eq.s32.totalorder %s22, 0
    %p264 = por %p262, %p263
    %p265 = scmp.le.s32.totalorder 1, %s16
    %p266 = scmp.lt.s32.totalorder %s16, 5
    %p267 = pnand %p265, %p266
    %p268 = pneg %p267
    // Predicated region
    $region9: #{mpmrm_forward.4} parent=5 // pred_check
      _
    $region10: #{mpmrm_forward.4} parent=5 // pred_check_branch
      %270 = sbr.rel (%p267) target = $region12
    $region11: #{mpmrm_forward.4} parent=5 // pred_region
      %s271 = ssub.s32 %s16, 1
      // Predicated region
      $region13: #{mpmrm_forward.4} parent=11 // pred_check
        %p272 = pneg %p63
      $region14: #{mpmrm_forward.4} parent=11 // pred_check_branch
        %274 = sbr.rel (%p272) target = $region16
      $region15: #{mpmrm_forward.4} parent=11 // pred_region
        _
      $region16: #{mpmrm_forward.4} parent=11 // pred_fallthru
        _
      // Predicated region
      $region17: #{mpmrm_forward.4} parent=11 // pred_check
        %p275 = pneg %p84
      $region18: #{mpmrm_forward.4} parent=11 // pred_check_branch
        %277 = sbr.rel (%p275) target = $region20
      $region19: #{mpmrm_forward.4} parent=11 // pred_region
        _
      $region20: #{mpmrm_forward.4} parent=11 // pred_fallthru
        _
      // Predicated region
      $region21: #{mpmrm_forward.4} parent=11 // pred_check
        %p278 = pneg %p105
      $region22: #{mpmrm_forward.4} parent=11 // pred_check_branch
        %280 = sbr.rel (%p278) target = $region24
      $region23: #{mpmrm_forward.4} parent=11 // pred_region
        _
      $region24: #{mpmrm_forward.4} parent=11 // pred_fallthru
        _
      // Predicated region
      $region25: #{mpmrm_forward.4} parent=11 // pred_check
        %p281 = pneg %p126
      $region26: #{mpmrm_forward.4} parent=11 // pred_check_branch
        %283 = sbr.rel (%p281) target = $region28
      $region27: #{mpmrm_forward.4} parent=11 // pred_region
        _
      $region28: #{mpmrm_forward.4} parent=11 // pred_fallthru
        _
      // Predicated region
      $region29: #{mpmrm_forward.4} parent=11 // pred_check
        %p284 = pneg %p147
      $region30: #{mpmrm_forward.4} parent=11 // pred_check_branch
        %286 = sbr.rel (%p284) target = $region32
      $region31: #{mpmrm_forward.4} parent=11 // pred_region
        _
      $region32: #{mpmrm_forward.4} parent=11 // pred_fallthru
        _
      // Predicated region
      $region33: #{mpmrm_forward.4} parent=11 // pred_check
        %p287 = pneg %p168
      $region34: #{mpmrm_forward.4} parent=11 // pred_check_branch
        %289 = sbr.rel (%p287) target = $region36
      $region35: #{mpmrm_forward.4} parent=11 // pred_region
        _
      $region36: #{mpmrm_forward.4} parent=11 // pred_fallthru
        _
      // Predicated region
      $region37: #{mpmrm_forward.4} parent=11 // pred_check
        %p290 = pneg %p189
      $region38: #{mpmrm_forward.4} parent=11 // pred_check_branch
        %292 = sbr.rel (%p290) target = $region40
      $region39: #{mpmrm_forward.4} parent=11 // pred_region
        _
      $region40: #{mpmrm_forward.4} parent=11 // pred_fallthru
        _
      // Predicated region
      $region41: #{mpmrm_forward.4} parent=11 // pred_check
        %p293 = pneg %p210
      $region42: #{mpmrm_forward.4} parent=11 // pred_check_branch
        %295 = sbr.rel (%p293) target = $region44
      $region43: #{mpmrm_forward.4} parent=11 // pred_region
        _
      $region44: #{mpmrm_forward.4} parent=11 // pred_fallthru
        _
      // Predicated region
      $region45: #{mpmrm_forward.4} parent=11 // pred_check
        %p296 = pneg %p231
      $region46: #{mpmrm_forward.4} parent=11 // pred_check_branch
        %298 = sbr.rel (%p296) target = $region48
      $region47: #{mpmrm_forward.4} parent=11 // pred_region
        _
      $region48: #{mpmrm_forward.4} parent=11 // pred_fallthru
        _
    $region12: #{mpmrm_forward.4} parent=5 // pred_fallthru
      _
    %p299 = scmp.lt.s32.totalorder %s16, 4
    // Predicated region
    $region49: #{mpmrm_forward.4} parent=5 // pred_check
      %p300 = pneg %p299
    $region50: #{mpmrm_forward.4} parent=5 // pred_check_branch
      %302 = sbr.rel (%p300) target = $region52
    $region51: #{mpmrm_forward.4} parent=5 // pred_region
      // Predicated region
      $region53: #{mpmrm_forward.4} parent=51 // pred_check
        %p303 = pneg %p36
      $region54: #{mpmrm_forward.4} parent=51 // pred_check_branch
        %305 = sbr.rel (%p303) target = $region56
      $region55: #{mpmrm_forward.4} parent=51 // pred_region
        %s306 = smul.u32 2, %s16
        %p307 = scmp.lt.s32.totalorder %s306, 7
        %s308 = scalar_select %p307, %s306, 7
        %s309 = smul.addr %s308, 2
        %s310 = smul.addr %s309, 8
        %s311 = scalar_lea.vmem %s0, %s310
        %s312 = smul.u32 2, %s16
      $region56: #{mpmrm_forward.4} parent=51 // pred_fallthru
        _
    $region52: #{mpmrm_forward.4} parent=5 // pred_fallthru
      _
    %p313 = scmp.le.s32.totalorder 1, %s16
    %p314 = scmp.lt.s32.totalorder %s16, 5
    %p315 = pnand %p313, %p314
    %p316 = pneg %p315
    // Predicated region
    $region57: #{mpmrm_forward.4} parent=5 // pred_check
      _
    $region58: #{mpmrm_forward.4} parent=5 // pred_check_branch
      %318 = sbr.rel (%p315) target = $region60
    $region59: #{mpmrm_forward.4} parent=5 // pred_region
      %s319 = ssub.s32 %s16, 1
      %s320 = smul.u32 2, %s21
      %p321 = scmp.lt.s32.totalorder %s320, 7
      %s322 = scalar_select %p321, %s320, 7
      %s323 = smul.addr %s322, 2
      %s324 = smul.addr %s323, 8
      %s325 = scalar_lea.vmem %s0, %s324
      %p326 = pneg %p42
      %p327 = pneg %p39
      %p328 = pneg %p63
      %p329 = pneg %p60
      %p330 = pneg %p84
      %p331 = pneg %p81
      %p332 = pneg %p105
      %p333 = pneg %p102
      %p334 = pneg %p126
      %p335 = pneg %p123
      %p336 = pneg %p147
      %p337 = pneg %p144
      %p338 = pneg %p168
      %p339 = pneg %p165
      %p340 = pneg %p189
      %p341 = pneg %p186
      %p342 = pneg %p210
      %p343 = pneg %p207
      %p344 = pneg %p231
      %p345 = pneg %p228
      %p346 = pneg %p257
      %p347 = pneg %p254
      %s348 = smul.u32 2, %s21
      %p349 = scmp.lt.s32.totalorder %s348, 7
      %s350 = scalar_select %p349, %s348, 7
      %s351 = smul.addr %s350, 2
      %s352 = smul.addr %s351, 8
      %s353 = scalar_lea.vmem %s10, %s352
      %s354 = smul.u32 2, %s21
      %p355 = scmp.lt.s32.totalorder %s354, 7
      %s356 = scalar_select %p355, %s354, 7
      %s357 = smul.addr %s356, 2
      %s358 = smul.addr %s357, 8
      %s359 = scalar_lea.vmem %s0, %s358
      %s360 = smul.u32 2, %s21
      %s361 = smul.u32 2, %s21
      %p362 = scmp.lt.s32.totalorder %s361, 7
      %s363 = scalar_select %p362, %s361, 7
      %s364 = smul.addr %s363, 2
      %s365 = smul.addr %s364, 8
      %s366 = scalar_lea.vmem %s10, %s365
      %s367 = smul.u32 2, %s21
      %v369 = vld [vmem:[%s9] sm:$0x1]
      %370 = vst [vmem:[#allocation2] sm:$0xff] 0.0
      %vm371 = vcmask 162816
      %372 = vst.msk [vmem:[#allocation2 + $0x8] sm:$0xff] %vm371, 0.0
      %373 = vst [vmem:[#allocation2 + $0x10] sm:$0xff] 0.0
      %374 = vst.msk [vmem:[#allocation2 + $0x18] sm:$0xff] %vm371, 0.0
      %vm375 = vcmask 1043456
      %vm376 = vcmask 162820
      %vm377 = vmor %vm376, %vm375
      %378 = vst.msk [vmem:[#allocation4] sm:$0xff] %vm377, 0.0
      %379 = vst.msk [vmem:[#allocation5] sm:$0xff] %vm377, 0.0
      %v380 = vld [vmem:[%s359] sm:$0xff]
      %v381 = vld [vmem:[%s359 + $0x8] sm:$0xff]
      %384 = vrot.lane.b32.xlu0 %v380, 26
      %v385 = vpop.permute.xlu0 %384
      %386 = vrot.lane.b32.xlu0 %v381, 26
      %v387 = vpop.permute.xlu0 %386
      %vm390 = vcmask 998608
      %391 = vst.msk [vmem:[#allocation2] sm:$0xff] %vm390, %v385
      %392 = vst.msk [vmem:[#allocation2 + $0x10] sm:$0xff] %vm390, %v387
      %v393 = vld [vmem:[#allocation2] sm:$0xff]
      %v394 = vld [vmem:[#allocation2 + $0x10] sm:$0xff]
      %v395 = vld [vmem:[%s7] ss:$0 sm:$0xff]
      %v396 = vadd.f32 %v393, %v395
      %v397 = vadd.f32 %v394, %v395
      %v398 = vld [vmem:[%s8] ss:$0 sm:$0xff]
      %v399 = vadd.f32 %v393, %v398
      %v400 = vadd.f32 %v394, %v398
      %v401 = vld [vmem:[%s7 + $0x1] ss:$0 sm:$0xff]
      %v402 = vadd.f32 %v393, %v401
      %v403 = vadd.f32 %v394, %v401
      %v404 = vld [vmem:[%s8 + $0x1] ss:$0 sm:$0xff]
      %v405 = vadd.f32 %v393, %v404
      %v406 = vadd.f32 %v394, %v404
      %409 = vrot.lane.b32.xlu0 %v402, 127
      %v410 = vpop.permute.xlu0 %409
      %411 = vrot.lane.b32.xlu0 %v403, 127
      %v412 = vpop.permute.xlu0 %411
      %v415 = vmax.f32 %v396, %v410
      %v416 = vmax.f32 %v397, %v412
      %419 = vrot.lane.b32.xlu0 %v405, 127
      %v420 = vpop.permute.xlu0 %419
      %421 = vrot.lane.b32.xlu0 %v406, 127
      %v422 = vpop.permute.xlu0 %421
      %v425 = vmin.f32 %v399, %v420
      %v426 = vmin.f32 %v400, %v422
      %v427 = vld [vmem:[%s7 + $0x2] ss:$0 sm:$0xff]
      %v428 = vadd.f32 %v393, %v427
      %v429 = vadd.f32 %v394, %v427
      %v430 = vld [vmem:[%s8 + $0x2] ss:$0 sm:$0xff]
      %v431 = vadd.f32 %v393, %v430
      %v432 = vadd.f32 %v394, %v430
      %435 = vrot.lane.b32.xlu0 %v428, 126
      %v436 = vpop.permute.xlu0 %435
      %437 = vrot.lane.b32.xlu0 %v429, 126
      %v438 = vpop.permute.xlu0 %437
      %v441 = vmax.f32 %v415, %v436
      %v442 = vmax.f32 %v416, %v438
      %445 = vrot.lane.b32.xlu0 %v431, 126
      %v446 = vpop.permute.xlu0 %445
      %447 = vrot.lane.b32.xlu0 %v432, 126
      %v448 = vpop.permute.xlu0 %447
      %v451 = vmin.f32 %v425, %v446
      %v452 = vmin.f32 %v426, %v448
      %v453 = vld [vmem:[%s7 + $0x3] ss:$0 sm:$0xff]
      %v454 = vadd.f32 %v393, %v453
      %v455 = vadd.f32 %v394, %v453
      %v456 = vld [vmem:[%s8 + $0x3] ss:$0 sm:$0xff]
      %v457 = vadd.f32 %v393, %v456
      %v458 = vadd.f32 %v394, %v456
      %461 = vrot.lane.b32.xlu0 %v454, 125
      %v462 = vpop.permute.xlu0 %461
      %463 = vrot.lane.b32.xlu0 %v455, 125
      %v464 = vpop.permute.xlu0 %463
      %v467 = vmax.f32 %v441, %v462
      %v468 = vmax.f32 %v442, %v464
      %471 = vrot.lane.b32.xlu0 %v457, 125
      %v472 = vpop.permute.xlu0 %471
      %473 = vrot.lane.b32.xlu0 %v458, 125
      %v474 = vpop.permute.xlu0 %473
      %v477 = vmin.f32 %v451, %v472
      %v478 = vmin.f32 %v452, %v474
      %v479 = vld [vmem:[%s7 + $0x4] ss:$0 sm:$0xff]
      %v480 = vadd.f32 %v393, %v479
      %v481 = vadd.f32 %v394, %v479
      %v482 = vld [vmem:[%s8 + $0x4] ss:$0 sm:$0xff]
      %v483 = vadd.f32 %v393, %v482
      %v484 = vadd.f32 %v394, %v482
      %487 = vrot.lane.b32.xlu0 %v480, 124
      %v488 = vpop.permute.xlu0 %487
      %489 = vrot.lane.b32.xlu0 %v481, 124
      %v490 = vpop.permute.xlu0 %489
      %v493 = vmax.f32 %v467, %v488
      %v494 = vmax.f32 %v468, %v490
      %497 = vrot.lane.b32.xlu0 %v483, 124
      %v498 = vpop.permute.xlu0 %497
      %499 = vrot.lane.b32.xlu0 %v484, 124
      %v500 = vpop.permute.xlu0 %499
      %v503 = vmin.f32 %v477, %v498
      %v504 = vmin.f32 %v478, %v500
      %v505 = vld [vmem:[%s7 + $0x5] ss:$0 sm:$0xff]
      %v506 = vadd.f32 %v393, %v505
      %v507 = vadd.f32 %v394, %v505
      %v508 = vld [vmem:[%s8 + $0x5] ss:$0 sm:$0xff]
      %v509 = vadd.f32 %v393, %v508
      %v510 = vadd.f32 %v394, %v508
      %513 = vrot.lane.b32.xlu0 %v506, 116
      %v514 = vpop.permute.xlu0 %513
      %515 = vrot.lane.b32.xlu0 %v507, 116
      %v516 = vpop.permute.xlu0 %515
      %v519 = vmax.f32 %v493, %v514
      %v520 = vmax.f32 %v494, %v516
      %523 = vrot.lane.b32.xlu0 %v509, 116
      %v524 = vpop.permute.xlu0 %523
      %525 = vrot.lane.b32.xlu0 %v510, 116
      %v526 = vpop.permute.xlu0 %525
      %v529 = vmin.f32 %v503, %v524
      %v530 = vmin.f32 %v504, %v526
      %v531 = vld [vmem:[%s7 + $0x6] ss:$0 sm:$0xff]
      %v532 = vadd.f32 %v393, %v531
      %v533 = vadd.f32 %v394, %v531
      %v534 = vld [vmem:[%s8 + $0x6] ss:$0 sm:$0xff]
      %v535 = vadd.f32 %v393, %v534
      %v536 = vadd.f32 %v394, %v534
      %539 = vrot.lane.b32.xlu0 %v532, 115
      %v540 = vpop.permute.xlu0 %539
      %541 = vrot.lane.b32.xlu0 %v533, 115
      %v542 = vpop.permute.xlu0 %541
      %v545 = vmax.f32 %v519, %v540
      %v546 = vmax.f32 %v520, %v542
      %549 = vrot.lane.b32.xlu0 %v535, 115
      %v550 = vpop.permute.xlu0 %549
      %551 = vrot.lane.b32.xlu0 %v536, 115
      %v552 = vpop.permute.xlu0 %551
      %v555 = vmin.f32 %v529, %v550
      %v556 = vmin.f32 %v530, %v552
      %559 = vrot.lane.b32.xlu0 %v393, 115
      %v560 = vpop.permute.xlu0 %559
      %561 = vrot.lane.b32.xlu0 %v394, 115
      %v562 = vpop.permute.xlu0 %561
      %vm565 = vcmask 785408
      %566 = vst.msk [vmem:[#allocation3] sm:$0xff] %vm565, %v560
      %567 = vst.msk [vmem:[#allocation3 + $0x8] sm:$0xff] %vm565, %v562
      %v568 = vld [vmem:[#allocation2] sm:$0xff]
      %v569 = vld [vmem:[#allocation2 + $0x10] sm:$0xff]
      %v570 = vld [vmem:[%s7 + $0x7] ss:$0 sm:$0xff]
      %v571 = vadd.f32 %v568, %v570
      %v572 = vadd.f32 %v569, %v570
      %v573 = vld [vmem:[%s8 + $0x7] ss:$0 sm:$0xff]
      %v574 = vadd.f32 %v568, %v573
      %v575 = vadd.f32 %v569, %v573
      %578 = vrot.lane.b32.xlu0 %v571, 114
      %v579 = vpop.permute.xlu0 %578
      %580 = vrot.lane.b32.xlu0 %v572, 114
      %v581 = vpop.permute.xlu0 %580
      %v584 = vmax.f32 %v545, %v579
      %v585 = vmax.f32 %v546, %v581
      %588 = vrot.lane.b32.xlu0 %v574, 114
      %v589 = vpop.permute.xlu0 %588
      %590 = vrot.lane.b32.xlu0 %v575, 114
      %v591 = vpop.permute.xlu0 %590
      %v594 = vmin.f32 %v555, %v589
      %v595 = vmin.f32 %v556, %v591
      %598 = vrot.lane.b32.xlu0 %v568, 114
      %v599 = vpop.permute.xlu0 %598
      %600 = vrot.lane.b32.xlu0 %v569, 114
      %v601 = vpop.permute.xlu0 %600
      %604 = vst.msk [vmem:[#allocation3 + $0x10] sm:$0xff] %vm565, %v599
      %605 = vst.msk [vmem:[#allocation3 + $0x18] sm:$0xff] %vm565, %v601
      %v606 = vld [vmem:[#allocation2] sm:$0xff]
      %v607 = vld [vmem:[#allocation2 + $0x10] sm:$0xff]
      %v608 = vld [vmem:[%s7 + $0x10] ss:$0 sm:$0xff]
      %v609 = vadd.f32 %v606, %v608
      %v610 = vadd.f32 %v607, %v608
      %v611 = vld [vmem:[%s8 + $0x10] ss:$0 sm:$0xff]
      %v612 = vadd.f32 %v606, %v611
      %v613 = vadd.f32 %v607, %v611
      %616 = vrot.lane.b32.xlu0 %v609, 113
      %v617 = vpop.permute.xlu0 %616
      %618 = vrot.lane.b32.xlu0 %v610, 113
      %v619 = vpop.permute.xlu0 %618
      %v622 = vmax.f32 %v584, %v617
      %v623 = vmax.f32 %v585, %v619
      %626 = vrot.lane.b32.xlu0 %v612, 113
      %v627 = vpop.permute.xlu0 %626
      %628 = vrot.lane.b32.xlu0 %v613, 113
      %v629 = vpop.permute.xlu0 %628
      %v632 = vmin.f32 %v594, %v627
      %v633 = vmin.f32 %v595, %v629
      %636 = vrot.lane.b32.xlu0 %v606, 113
      %v637 = vpop.permute.xlu0 %636
      %638 = vrot.lane.b32.xlu0 %v607, 113
      %v639 = vpop.permute.xlu0 %638
      %642 = vst.msk [vmem:[#allocation3 + $0x20] sm:$0xff] %vm565, %v637
      %643 = vst.msk [vmem:[#allocation3 + $0x28] sm:$0xff] %vm565, %v639
      %v644 = vld [vmem:[#allocation2] sm:$0xff]
      %v645 = vld [vmem:[#allocation2 + $0x10] sm:$0xff]
      %v646 = vld [vmem:[%s7 + $0x11] ss:$0 sm:$0xff]
      %v647 = vadd.f32 %v644, %v646
      %v648 = vadd.f32 %v645, %v646
      %v649 = vld [vmem:[%s8 + $0x11] ss:$0 sm:$0xff]
      %v650 = vadd.f32 %v644, %v649
      %v651 = vadd.f32 %v645, %v649
      %654 = vrot.lane.b32.xlu0 %v647, 112
      %v655 = vpop.permute.xlu0 %654
      %656 = vrot.lane.b32.xlu0 %v648, 112
      %v657 = vpop.permute.xlu0 %656
      %v660 = vmax.f32 %v622, %v655
      %v661 = vmax.f32 %v623, %v657
      %664 = vrot.lane.b32.xlu0 %v650, 112
      %v665 = vpop.permute.xlu0 %664
      %666 = vrot.lane.b32.xlu0 %v651, 112
      %v667 = vpop.permute.xlu0 %666
      %v670 = vmin.f32 %v632, %v665
      %v671 = vmin.f32 %v633, %v667
      %v672 = vld [vmem:[%s7 + $0x12] ss:$0 sm:$0xff]
      %v673 = vadd.f32 %v644, %v672
      %v674 = vadd.f32 %v645, %v672
      %v675 = vld [vmem:[%s8 + $0x12] ss:$0 sm:$0xff]
      %v676 = vadd.f32 %v644, %v675
      %v677 = vadd.f32 %v645, %v675
      %680 = vrot.lane.b32.xlu0 %v673, 104
      %v681 = vpop.permute.xlu0 %680
      %682 = vrot.lane.b32.xlu0 %v674, 104
      %v683 = vpop.permute.xlu0 %682
      %v686 = vmax.f32 %v660, %v681
      %v687 = vmax.f32 %v661, %v683
      %690 = vrot.lane.b32.xlu0 %v676, 104
      %v691 = vpop.permute.xlu0 %690
      %692 = vrot.lane.b32.xlu0 %v677, 104
      %v693 = vpop.permute.xlu0 %692
      %v696 = vmin.f32 %v670, %v691
      %v697 = vmin.f32 %v671, %v693
      %v698 = vld [vmem:[%s7 + $0x13] ss:$0 sm:$0xff]
      %v699 = vadd.f32 %v644, %v698
      %v700 = vadd.f32 %v645, %v698
      %v701 = vld [vmem:[%s8 + $0x13] ss:$0 sm:$0xff]
      %v702 = vadd.f32 %v644, %v701
      %v703 = vadd.f32 %v645, %v701
      %706 = vrot.lane.b32.xlu0 %v699, 103
      %v707 = vpop.permute.xlu0 %706
      %708 = vrot.lane.b32.xlu0 %v700, 103
      %v709 = vpop.permute.xlu0 %708
      %v712 = vmax.f32 %v686, %v707
      %v713 = vmax.f32 %v687, %v709
      %716 = vrot.lane.b32.xlu0 %v702, 103
      %v717 = vpop.permute.xlu0 %716
      %718 = vrot.lane.b32.xlu0 %v703, 103
      %v719 = vpop.permute.xlu0 %718
      %v722 = vmin.f32 %v696, %v717
      %v723 = vmin.f32 %v697, %v719
      %726 = vrot.lane.b32.xlu0 %v644, 103
      %v727 = vpop.permute.xlu0 %726
      %728 = vrot.lane.b32.xlu0 %v645, 103
      %v729 = vpop.permute.xlu0 %728
      %732 = vst.msk [vmem:[#allocation3 + $0x30] sm:$0xff] %vm565, %v727
      %733 = vst.msk [vmem:[#allocation3 + $0x38] sm:$0xff] %vm565, %v729
      %v734 = vld [vmem:[#allocation2] sm:$0xff]
      %v735 = vld [vmem:[#allocation2 + $0x10] sm:$0xff]
      %738 = vrot.lane.b32.xlu0 %v734, 102
      %v739 = vpop.permute.xlu0 %738
      %740 = vrot.lane.b32.xlu0 %v735, 102
      %v741 = vpop.permute.xlu0 %740
      %744 = vst.msk [vmem:[#allocation3 + $0x40] sm:$0xff] %vm565, %v739
      %745 = vst.msk [vmem:[#allocation3 + $0x48] sm:$0xff] %vm565, %v741
      %v746 = vld [vmem:[#allocation2] sm:$0xff]
      %v747 = vld [vmem:[#allocation2 + $0x10] sm:$0xff]
      %v748 = vld [vmem:[%s7 + $0x15] ss:$0 sm:$0xff]
      %v749 = vadd.f32 %v746, %v748
      %v750 = vadd.f32 %v747, %v748
      %v751 = vld [vmem:[%s8 + $0x15] ss:$0 sm:$0xff]
      %v752 = vadd.f32 %v746, %v751
      %v753 = vadd.f32 %v747, %v751
      %756 = vrot.lane.b32.xlu0 %v749, 101
      %v757 = vpop.permute.xlu0 %756
      %758 = vrot.lane.b32.xlu0 %v750, 101
      %v759 = vpop.permute.xlu0 %758
      %v762 = vmax.f32 %v712, %v757
      %v763 = vmax.f32 %v713, %v759
      %766 = vrot.lane.b32.xlu0 %v752, 101
      %v767 = vpop.permute.xlu0 %766
      %768 = vrot.lane.b32.xlu0 %v753, 101
      %v769 = vpop.permute.xlu0 %768
      %v772 = vmin.f32 %v722, %v767
      %v773 = vmin.f32 %v723, %v769
      %776 = vrot.lane.b32.xlu0 %v746, 101
      %v777 = vpop.permute.xlu0 %776
      %778 = vrot.lane.b32.xlu0 %v747, 101
      %v779 = vpop.permute.xlu0 %778
      %782 = vst.msk [vmem:[#allocation3 + $0x50] sm:$0xff] %vm565, %v777
      %783 = vst.msk [vmem:[#allocation3 + $0x58] sm:$0xff] %vm565, %v779
      %v784 = vld [vmem:[#allocation2] sm:$0xff]
      %v785 = vld [vmem:[#allocation2 + $0x10] sm:$0xff]
      %v786 = vld [vmem:[%s7 + $0x16] ss:$0 sm:$0xff]
      %v787 = vadd.f32 %v784, %v786
      %v788 = vadd.f32 %v785, %v786
      %v789 = vld [vmem:[%s8 + $0x16] ss:$0 sm:$0xff]
      %v790 = vadd.f32 %v784, %v789
      %v791 = vadd.f32 %v785, %v789
      %794 = vrot.lane.b32.xlu0 %v787, 100
      %v795 = vpop.permute.xlu0 %794
      %796 = vrot.lane.b32.xlu0 %v788, 100
      %v797 = vpop.permute.xlu0 %796
      %v800 = vmax.f32 %v762, %v795
      %v801 = vmax.f32 %v763, %v797
      %804 = vrot.lane.b32.xlu0 %v790, 100
      %v805 = vpop.permute.xlu0 %804
      %806 = vrot.lane.b32.xlu0 %v791, 100
      %v807 = vpop.permute.xlu0 %806
      %v810 = vmin.f32 %v772, %v805
      %v811 = vmin.f32 %v773, %v807
      %v812 = vld [vmem:[#allocation2 + $0x8] sm:$0xff]
      %v813 = vld [vmem:[#allocation2 + $0x18] sm:$0xff]
      %v814 = vld [vmem:[%s7 + $0x17] ss:$0 sm:$0xff]
      %v815 = vld [vmem:[%s7 + $0x1f] ss:$0 sm:$0xff]
      %v816 = vadd.f32 %v784, %v814
      %v817 = vadd.f32 %v812, %v815
      %v818 = vadd.f32 %v785, %v814
      %v819 = vadd.f32 %v813, %v815
      %v820 = vld [vmem:[%s8 + $0x17] ss:$0 sm:$0xff]
      %v821 = vld [vmem:[%s8 + $0x1f] ss:$0 sm:$0xff]
      %v822 = vadd.f32 %v784, %v820
      %v823 = vadd.f32 %v812, %v821
      %v824 = vadd.f32 %v785, %v820
      %v825 = vadd.f32 %v813, %v821
      %830 = vrot.lane.b32.xlu0 %v816, 92
      %v831 = vpop.permute.xlu0 %830
      %832 = vrot.lane.b32.xlu0 %v817, 92
      %v833 = vpop.permute.xlu0 %832
      %834 = vrot.lane.b32.xlu0 %v818, 92
      %v835 = vpop.permute.xlu0 %834
      %836 = vrot.lane.b32.xlu0 %v819, 92
      %v837 = vpop.permute.xlu0 %836
      %vm838 = vcmask 752640
      %v839 = vsel %vm838, %v831, %v833
      %v840 = vsel %vm838, %v835, %v837
      %v843 = vmax.f32 %v800, %v839
      %v844 = vmax.f32 %v801, %v840
      %849 = vrot.lane.b32.xlu0 %v822, 92
      %v850 = vpop.permute.xlu0 %849
      %851 = vrot.lane.b32.xlu0 %v823, 92
      %v852 = vpop.permute.xlu0 %851
      %853 = vrot.lane.b32.xlu0 %v824, 92
      %v854 = vpop.permute.xlu0 %853
      %855 = vrot.lane.b32.xlu0 %v825, 92
      %v856 = vpop.permute.xlu0 %855
      %v857 = vsel %vm838, %v850, %v852
      %v858 = vsel %vm838, %v854, %v856
      %v861 = vmin.f32 %v810, %v857
      %v862 = vmin.f32 %v811, %v858
      %v863 = vld [vmem:[%s7 + $0x20] ss:$0 sm:$0xff]
      %v864 = vld [vmem:[%s7 + $0x28] ss:$0 sm:$0xff]
      %v865 = vadd.f32 %v784, %v863
      %v866 = vadd.f32 %v812, %v864
      %v867 = vadd.f32 %v785, %v863
      %v868 = vadd.f32 %v813, %v864
      %v869 = vld [vmem:[%s8 + $0x20] ss:$0 sm:$0xff]
      %v870 = vld [vmem:[%s8 + $0x28] ss:$0 sm:$0xff]
      %v871 = vadd.f32 %v784, %v869
      %v872 = vadd.f32 %v812, %v870
      %v873 = vadd.f32 %v785, %v869
      %v874 = vadd.f32 %v813, %v870
      %879 = vrot.lane.b32.xlu0 %v865, 91
      %v880 = vpop.permute.xlu0 %879
      %881 = vrot.lane.b32.xlu0 %v866, 91
      %v882 = vpop.permute.xlu0 %881
      %883 = vrot.lane.b32.xlu0 %v867, 91
      %v884 = vpop.permute.xlu0 %883
      %885 = vrot.lane.b32.xlu0 %v868, 91
      %v886 = vpop.permute.xlu0 %885
      %vm887 = vcmask 744448
      %v888 = vsel %vm887, %v880, %v882
      %v889 = vsel %vm887, %v884, %v886
      %v892 = vmax.f32 %v843, %v888
      %v893 = vmax.f32 %v844, %v889
      %898 = vrot.lane.b32.xlu0 %v871, 91
      %v899 = vpop.permute.xlu0 %898
      %900 = vrot.lane.b32.xlu0 %v872, 91
      %v901 = vpop.permute.xlu0 %900
      %902 = vrot.lane.b32.xlu0 %v873, 91
      %v903 = vpop.permute.xlu0 %902
      %904 = vrot.lane.b32.xlu0 %v874, 91
      %v905 = vpop.permute.xlu0 %904
      %v906 = vsel %vm887, %v899, %v901
      %v907 = vsel %vm887, %v903, %v905
      %v910 = vmin.f32 %v861, %v906
      %v911 = vmin.f32 %v862, %v907
      %916 = vrot.lane.b32.xlu0 %v784, 91
      %v917 = vpop.permute.xlu0 %916
      %918 = vrot.lane.b32.xlu0 %v812, 91
      %v919 = vpop.permute.xlu0 %918
      %920 = vrot.lane.b32.xlu0 %v785, 91
      %v921 = vpop.permute.xlu0 %920
      %922 = vrot.lane.b32.xlu0 %v813, 91
      %v923 = vpop.permute.xlu0 %922
      %v924 = vsel %vm887, %v917, %v919
      %v925 = vsel %vm887, %v921, %v923
      %928 = vst.msk [vmem:[#allocation3 + $0x60] sm:$0xff] %vm565, %v924
      %929 = vst.msk [vmem:[#allocation3 + $0x68] sm:$0xff] %vm565, %v925
      %v930 = vld [vmem:[#allocation2] sm:$0xff]
      %v931 = vld [vmem:[#allocation2 + $0x8] sm:$0xff]
      %v932 = vld [vmem:[#allocation2 + $0x10] sm:$0xff]
      %v933 = vld [vmem:[#allocation2 + $0x18] sm:$0xff]
      %v934 = vld [vmem:[%s7 + $0x21] ss:$0 sm:$0xff]
      %v935 = vld [vmem:[%s7 + $0x29] ss:$0 sm:$0xff]
      %v936 = vadd.f32 %v930, %v934
      %v937 = vadd.f32 %v931, %v935
      %v938 = vadd.f32 %v932, %v934
      %v939 = vadd.f32 %v933, %v935
      %v940 = vld [vmem:[%s8 + $0x21] ss:$0 sm:$0xff]
      %v941 = vld [vmem:[%s8 + $0x29] ss:$0 sm:$0xff]
      %v942 = vadd.f32 %v930, %v940
      %v943 = vadd.f32 %v931, %v941
      %v944 = vadd.f32 %v932, %v940
      %v945 = vadd.f32 %v933, %v941
      %950 = vrot.lane.b32.xlu0 %v936, 90
      %v951 = vpop.permute.xlu0 %950
      %952 = vrot.lane.b32.xlu0 %v937, 90
      %v953 = vpop.permute.xlu0 %952
      %954 = vrot.lane.b32.xlu0 %v938, 90
      %v955 = vpop.permute.xlu0 %954
      %956 = vrot.lane.b32.xlu0 %v939, 90
      %v957 = vpop.permute.xlu0 %956
      %vm958 = vcmask 736256
      %v959 = vsel %vm958, %v951, %v953
      %v960 = vsel %vm958, %v955, %v957
      %v963 = vmax.f32 %v892, %v959
      %v964 = vmax.f32 %v893, %v960
      %969 = vrot.lane.b32.xlu0 %v942, 90
      %v970 = vpop.permute.xlu0 %969
      %971 = vrot.lane.b32.xlu0 %v943, 90
      %v972 = vpop.permute.xlu0 %971
      %973 = vrot.lane.b32.xlu0 %v944, 90
      %v974 = vpop.permute.xlu0 %973
      %975 = vrot.lane.b32.xlu0 %v945, 90
      %v976 = vpop.permute.xlu0 %975
      %v977 = vsel %vm958, %v970, %v972
      %v978 = vsel %vm958, %v974, %v976
      %v981 = vmin.f32 %v910, %v977
      %v982 = vmin.f32 %v911, %v978
      %987 = vrot.lane.b32.xlu0 %v930, 90
      %v988 = vpop.permute.xlu0 %987
      %989 = vrot.lane.b32.xlu0 %v931, 90
      %v990 = vpop.permute.xlu0 %989
      %991 = vrot.lane.b32.xlu0 %v932, 90
      %v992 = vpop.permute.xlu0 %991
      %993 = vrot.lane.b32.xlu0 %v933, 90
      %v994 = vpop.permute.xlu0 %993
      %v995 = vsel %vm958, %v988, %v990
      %v996 = vsel %vm958, %v992, %v994
      %999 = vst.msk [vmem:[#allocation3 + $0x70] sm:$0xff] %vm565, %v995
      %1000 = vst.msk [vmem:[#allocation3 + $0x78] sm:$0xff] %vm565, %v996
      %v1001 = vld [vmem:[#allocation2] sm:$0xff]
      %v1002 = vld [vmem:[#allocation2 + $0x8] sm:$0xff]
      %v1003 = vld [vmem:[#allocation2 + $0x10] sm:$0xff]
      %v1004 = vld [vmem:[#allocation2 + $0x18] sm:$0xff]
      %v1005 = vld [vmem:[%s7 + $0x22] ss:$0 sm:$0xff]
      %v1006 = vld [vmem:[%s7 + $0x2a] ss:$0 sm:$0xff]
      %v1007 = vadd.f32 %v1001, %v1005
      %v1008 = vadd.f32 %v1002, %v1006
      %v1009 = vadd.f32 %v1003, %v1005
      %v1010 = vadd.f32 %v1004, %v1006
      %v1011 = vld [vmem:[%s8 + $0x22] ss:$0 sm:$0xff]
      %v1012 = vld [vmem:[%s8 + $0x2a] ss:$0 sm:$0xff]
      %v1013 = vadd.f32 %v1001, %v1011
      %v1014 = vadd.f32 %v1002, %v1012
      %v1015 = vadd.f32 %v1003, %v1011
      %v1016 = vadd.f32 %v1004, %v1012
      %1021 = vrot.lane.b32.xlu0 %v1007, 89
      %v1022 = vpop.permute.xlu0 %1021
      %1023 = vrot.lane.b32.xlu0 %v1008, 89
      %v1024 = vpop.permute.xlu0 %1023
      %1025 = vrot.lane.b32.xlu0 %v1009, 89
      %v1026 = vpop.permute.xlu0 %1025
      %1027 = vrot.lane.b32.xlu0 %v1010, 89
      %v1028 = vpop.permute.xlu0 %1027
      %vm1029 = vcmask 728064
      %v1030 = vsel %vm1029, %v1022, %v1024
      %v1031 = vsel %vm1029, %v1026, %v1028
      %v1034 = vmax.f32 %v963, %v1030
      %v1035 = vmax.f32 %v964, %v1031
      %1040 = vrot.lane.b32.xlu0 %v1013, 89
      %v1041 = vpop.permute.xlu0 %1040
      %1042 = vrot.lane.b32.xlu0 %v1014, 89
      %v1043 = vpop.permute.xlu0 %1042
      %1044 = vrot.lane.b32.xlu0 %v1015, 89
      %v1045 = vpop.permute.xlu0 %1044
      %1046 = vrot.lane.b32.xlu0 %v1016, 89
      %v1047 = vpop.permute.xlu0 %1046
      %v1048 = vsel %vm1029, %v1041, %v1043
      %v1049 = vsel %vm1029, %v1045, %v1047
      %v1052 = vmin.f32 %v981, %v1048
      %v1053 = vmin.f32 %v982, %v1049
      %1058 = vrot.lane.b32.xlu0 %v1001, 89
      %v1059 = vpop.permute.xlu0 %1058
      %1060 = vrot.lane.b32.xlu0 %v1002, 89
      %v1061 = vpop.permute.xlu0 %1060
      %1062 = vrot.lane.b32.xlu0 %v1003, 89
      %v1063 = vpop.permute.xlu0 %1062
      %1064 = vrot.lane.b32.xlu0 %v1004, 89
      %v1065 = vpop.permute.xlu0 %1064
      %v1066 = vsel %vm1029, %v1059, %v1061
      %v1067 = vsel %vm1029, %v1063, %v1065
      %1070 = vst.msk [vmem:[#allocation3 + $0x80] sm:$0xff] %vm565, %v1066
      %1071 = vst.msk [vmem:[#allocation3 + $0x88] sm:$0xff] %vm565, %v1067
      %v1072 = vld [vmem:[#allocation2] sm:$0xff]
      %v1073 = vld [vmem:[#allocation2 + $0x8] sm:$0xff]
      %v1074 = vld [vmem:[#allocation2 + $0x10] sm:$0xff]
      %v1075 = vld [vmem:[#allocation2 + $0x18] sm:$0xff]
      %v1076 = vld [vmem:[%s7 + $0x23] ss:$0 sm:$0xff]
      %v1077 = vld [vmem:[%s7 + $0x2b] ss:$0 sm:$0xff]
      %v1078 = vadd.f32 %v1072, %v1076
      %v1079 = vadd.f32 %v1073, %v1077
      %v1080 = vadd.f32 %v1074, %v1076
      %v1081 = vadd.f32 %v1075, %v1077
      %v1082 = vld [vmem:[%s8 + $0x23] ss:$0 sm:$0xff]
      %v1083 = vld [vmem:[%s8 + $0x2b] ss:$0 sm:$0xff]
      %v1084 = vadd.f32 %v1072, %v1082
      %v1085 = vadd.f32 %v1073, %v1083
      %v1086 = vadd.f32 %v1074, %v1082
      %v1087 = vadd.f32 %v1075, %v1083
      %1092 = vrot.lane.b32.xlu0 %v1078, 88
      %v1093 = vpop.permute.xlu0 %1092
      %1094 = vrot.lane.b32.xlu0 %v1079, 88
      %v1095 = vpop.permute.xlu0 %1094
      %1096 = vrot.lane.b32.xlu0 %v1080, 88
      %v1097 = vpop.permute.xlu0 %1096
      %1098 = vrot.lane.b32.xlu0 %v1081, 88
      %v1099 = vpop.permute.xlu0 %1098
      %vm1100 = vcmask 719872
      %v1101 = vsel %vm1100, %v1093, %v1095
      %v1102 = vsel %vm1100, %v1097, %v1099
      %v1105 = vmax.f32 %v1034, %v1101
      %v1106 = vmax.f32 %v1035, %v1102
      %1111 = vrot.lane.b32.xlu0 %v1084, 88
      %v1112 = vpop.permute.xlu0 %1111
      %1113 = vrot.lane.b32.xlu0 %v1085, 88
      %v1114 = vpop.permute.xlu0 %1113
      %1115 = vrot.lane.b32.xlu0 %v1086, 88
      %v1116 = vpop.permute.xlu0 %1115
      %1117 = vrot.lane.b32.xlu0 %v1087, 88
      %v1118 = vpop.permute.xlu0 %1117
      %v1119 = vsel %vm1100, %v1112, %v1114
      %v1120 = vsel %vm1100, %v1116, %v1118
      %v1123 = vmin.f32 %v1052, %v1119
      %v1124 = vmin.f32 %v1053, %v1120
      %v1125 = vld [vmem:[%s7 + $0x24] ss:$0 sm:$0xff]
      %v1126 = vld [vmem:[%s7 + $0x2c] ss:$0 sm:$0xff]
      %v1127 = vadd.f32 %v1072, %v1125
      %v1128 = vadd.f32 %v1073, %v1126
      %v1129 = vadd.f32 %v1074, %v1125
      %v1130 = vadd.f32 %v1075, %v1126
      %v1131 = vld [vmem:[%s8 + $0x24] ss:$0 sm:$0xff]
      %v1132 = vld [vmem:[%s8 + $0x2c] ss:$0 sm:$0xff]
      %v1133 = vadd.f32 %v1072, %v1131
      %v1134 = vadd.f32 %v1073, %v1132
      %v1135 = vadd.f32 %v1074, %v1131
      %v1136 = vadd.f32 %v1075, %v1132
      %1141 = vrot.lane.b32.xlu0 %v1127, 80
      %v1142 = vpop.permute.xlu0 %1141
      %1143 = vrot.lane.b32.xlu0 %v1128, 80
      %v1144 = vpop.permute.xlu0 %1143
      %1145 = vrot.lane.b32.xlu0 %v1129, 80
      %v1146 = vpop.permute.xlu0 %1145
      %1147 = vrot.lane.b32.xlu0 %v1130, 80
      %v1148 = vpop.permute.xlu0 %1147
      %vm1149 = vcmask 654336
      %v1150 = vsel %vm1149, %v1142, %v1144
      %v1151 = vsel %vm1149, %v1146, %v1148
      %v1154 = vmax.f32 %v1105, %v1150
      %v1155 = vmax.f32 %v1106, %v1151
      %1160 = vrot.lane.b32.xlu0 %v1133, 80
      %v1161 = vpop.permute.xlu0 %1160
      %1162 = vrot.lane.b32.xlu0 %v1134, 80
      %v1163 = vpop.permute.xlu0 %1162
      %1164 = vrot.lane.b32.xlu0 %v1135, 80
      %v1165 = vpop.permute.xlu0 %1164
      %1166 = vrot.lane.b32.xlu0 %v1136, 80
      %v1167 = vpop.permute.xlu0 %1166
      %v1168 = vsel %vm1149, %v1161, %v1163
      %v1169 = vsel %vm1149, %v1165, %v1167
      %v1172 = vmin.f32 %v1123, %v1168
      %v1173 = vmin.f32 %v1124, %v1169
      %v1174 = vld [vmem:[%s7 + $0x25] ss:$0 sm:$0xff]
      %v1175 = vld [vmem:[%s7 + $0x2d] ss:$0 sm:$0xff]
      %v1176 = vadd.f32 %v1072, %v1174
      %v1177 = vadd.f32 %v1073, %v1175
      %v1178 = vadd.f32 %v1074, %v1174
      %v1179 = vadd.f32 %v1075, %v1175
      %v1180 = vld [vmem:[%s8 + $0x25] ss:$0 sm:$0xff]
      %v1181 = vld [vmem:[%s8 + $0x2d] ss:$0 sm:$0xff]
      %v1182 = vadd.f32 %v1072, %v1180
      %v1183 = vadd.f32 %v1073, %v1181
      %v1184 = vadd.f32 %v1074, %v1180
      %v1185 = vadd.f32 %v1075, %v1181
      %1190 = vrot.lane.b32.xlu0 %v1176, 79
      %v1191 = vpop.permute.xlu0 %1190
      %1192 = vrot.lane.b32.xlu0 %v1177, 79
      %v1193 = vpop.permute.xlu0 %1192
      %1194 = vrot.lane.b32.xlu0 %v1178, 79
      %v1195 = vpop.permute.xlu0 %1194
      %1196 = vrot.lane.b32.xlu0 %v1179, 79
      %v1197 = vpop.permute.xlu0 %1196
      %vm1198 = vcmask 646144
      %v1199 = vsel %vm1198, %v1191, %v1193
      %v1200 = vsel %vm1198, %v1195, %v1197
      %v1203 = vmax.f32 %v1154, %v1199
      %v1204 = vmax.f32 %v1155, %v1200
      %1209 = vrot.lane.b32.xlu0 %v1182, 79
      %v1210 = vpop.permute.xlu0 %1209
      %1211 = vrot.lane.b32.xlu0 %v1183, 79
      %v1212 = vpop.permute.xlu0 %1211
      %1213 = vrot.lane.b32.xlu0 %v1184, 79
      %v1214 = vpop.permute.xlu0 %1213
      %1215 = vrot.lane.b32.xlu0 %v1185, 79
      %v1216 = vpop.permute.xlu0 %1215
      %v1217 = vsel %vm1198, %v1210, %v1212
      %v1218 = vsel %vm1198, %v1214, %v1216
      %v1221 = vmin.f32 %v1172, %v1217
      %v1222 = vmin.f32 %v1173, %v1218
      %v1223 = vld [vmem:[%s7 + $0x26] ss:$0 sm:$0xff]
      %v1224 = vld [vmem:[%s7 + $0x2e] ss:$0 sm:$0xff]
      %v1225 = vadd.f32 %v1072, %v1223
      %v1226 = vadd.f32 %v1073, %v1224
      %v1227 = vadd.f32 %v1074, %v1223
      %v1228 = vadd.f32 %v1075, %v1224
      %v1229 = vld [vmem:[%s8 + $0x26] ss:$0 sm:$0xff]
      %v1230 = vld [vmem:[%s8 + $0x2e] ss:$0 sm:$0xff]
      %v1231 = vadd.f32 %v1072, %v1229
      %v1232 = vadd.f32 %v1073, %v1230
      %v1233 = vadd.f32 %v1074, %v1229
      %v1234 = vadd.f32 %v1075, %v1230
      %1239 = vrot.lane.b32.xlu0 %v1225, 78
      %v1240 = vpop.permute.xlu0 %1239
      %1241 = vrot.lane.b32.xlu0 %v1226, 78
      %v1242 = vpop.permute.xlu0 %1241
      %1243 = vrot.lane.b32.xlu0 %v1227, 78
      %v1244 = vpop.permute.xlu0 %1243
      %1245 = vrot.lane.b32.xlu0 %v1228, 78
      %v1246 = vpop.permute.xlu0 %1245
      %vm1247 = vcmask 637952
      %v1248 = vsel %vm1247, %v1240, %v1242
      %v1249 = vsel %vm1247, %v1244, %v1246
      %v1252 = vmax.f32 %v1203, %v1248
      %v1253 = vmax.f32 %v1204, %v1249
      %1258 = vrot.lane.b32.xlu0 %v1231, 78
      %v1259 = vpop.permute.xlu0 %1258
      %1260 = vrot.lane.b32.xlu0 %v1232, 78
      %v1261 = vpop.permute.xlu0 %1260
      %1262 = vrot.lane.b32.xlu0 %v1233, 78
      %v1263 = vpop.permute.xlu0 %1262
      %1264 = vrot.lane.b32.xlu0 %v1234, 78
      %v1265 = vpop.permute.xlu0 %1264
      %v1266 = vsel %vm1247, %v1259, %v1261
      %v1267 = vsel %vm1247, %v1263, %v1265
      %v1270 = vmin.f32 %v1221, %v1266
      %v1271 = vmin.f32 %v1222, %v1267
      %v1272 = vld [vmem:[%s7 + $0x27] ss:$0 sm:$0xff]
      %v1273 = vld [vmem:[%s7 + $0x2f] ss:$0 sm:$0xff]
      %v1274 = vadd.f32 %v1072, %v1272
      %v1275 = vadd.f32 %v1073, %v1273
      %v1276 = vadd.f32 %v1074, %v1272
      %v1277 = vadd.f32 %v1075, %v1273
      %v1278 = vld [vmem:[%s8 + $0x27] ss:$0 sm:$0xff]
      %v1279 = vld [vmem:[%s8 + $0x2f] ss:$0 sm:$0xff]
      %v1280 = vadd.f32 %v1072, %v1278
      %v1281 = vadd.f32 %v1073, %v1279
      %v1282 = vadd.f32 %v1074, %v1278
      %v1283 = vadd.f32 %v1075, %v1279
      %1288 = vrot.lane.b32.xlu0 %v1274, 77
      %v1289 = vpop.permute.xlu0 %1288
      %1290 = vrot.lane.b32.xlu0 %v1275, 77
      %v1291 = vpop.permute.xlu0 %1290
      %1292 = vrot.lane.b32.xlu0 %v1276, 77
      %v1293 = vpop.permute.xlu0 %1292
      %1294 = vrot.lane.b32.xlu0 %v1277, 77
      %v1295 = vpop.permute.xlu0 %1294
      %vm1296 = vcmask 629760
      %v1297 = vsel %vm1296, %v1289, %v1291
      %v1298 = vsel %vm1296, %v1293, %v1295
      %v1301 = vmax.f32 %v1252, %v1297
      %v1302 = vmax.f32 %v1253, %v1298
      %1307 = vrot.lane.b32.xlu0 %v1280, 77
      %v1308 = vpop.permute.xlu0 %1307
      %1309 = vrot.lane.b32.xlu0 %v1281, 77
      %v1310 = vpop.permute.xlu0 %1309
      %1311 = vrot.lane.b32.xlu0 %v1282, 77
      %v1312 = vpop.permute.xlu0 %1311
      %1313 = vrot.lane.b32.xlu0 %v1283, 77
      %v1314 = vpop.permute.xlu0 %1313
      %v1315 = vsel %vm1296, %v1308, %v1310
      %v1316 = vsel %vm1296, %v1312, %v1314
      %v1319 = vmin.f32 %v1270, %v1315
      %v1320 = vmin.f32 %v1271, %v1316
      %v1321 = vld [vmem:[%s7 + $0x30] ss:$0 sm:$0xff]
      %v1322 = vld [vmem:[%s7 + $0x38] ss:$0 sm:$0xff]
      %v1323 = vadd.f32 %v1072, %v1321
      %v1324 = vadd.f32 %v1073, %v1322
      %v1325 = vadd.f32 %v1074, %v1321
      %v1326 = vadd.f32 %v1075, %v1322
      %v1327 = vld [vmem:[%s8 + $0x30] ss:$0 sm:$0xff]
      %v1328 = vld [vmem:[%s8 + $0x38] ss:$0 sm:$0xff]
      %v1329 = vadd.f32 %v1072, %v1327
      %v1330 = vadd.f32 %v1073, %v1328
      %v1331 = vadd.f32 %v1074, %v1327
      %v1332 = vadd.f32 %v1075, %v1328
      %1337 = vrot.lane.b32.xlu0 %v1323, 76
      %v1338 = vpop.permute.xlu0 %1337
      %1339 = vrot.lane.b32.xlu0 %v1324, 76
      %v1340 = vpop.permute.xlu0 %1339
      %1341 = vrot.lane.b32.xlu0 %v1325, 76
      %v1342 = vpop.permute.xlu0 %1341
      %1343 = vrot.lane.b32.xlu0 %v1326, 76
      %v1344 = vpop.permute.xlu0 %1343
      %vm1345 = vcmask 621568
      %v1346 = vsel %vm1345, %v1338, %v1340
      %v1347 = vsel %vm1345, %v1342, %v1344
      %v1350 = vmax.f32 %v1301, %v1346
      %v1351 = vmax.f32 %v1302, %v1347
      %1356 = vrot.lane.b32.xlu0 %v1329, 76
      %v1357 = vpop.permute.xlu0 %1356
      %1358 = vrot.lane.b32.xlu0 %v1330, 76
      %v1359 = vpop.permute.xlu0 %1358
      %1360 = vrot.lane.b32.xlu0 %v1331, 76
      %v1361 = vpop.permute.xlu0 %1360
      %1362 = vrot.lane.b32.xlu0 %v1332, 76
      %v1363 = vpop.permute.xlu0 %1362
      %v1364 = vsel %vm1345, %v1357, %v1359
      %v1365 = vsel %vm1345, %v1361, %v1363
      %v1368 = vmin.f32 %v1319, %v1364
      %v1369 = vmin.f32 %v1320, %v1365
      %v1370 = vld [vmem:[%s1] sm:$0xff]
      %v1371 = vld [vmem:[%s1 + $0x8] sm:$0xff]
      %v1372 = vld [vmem:[%s1 + $0x10] sm:$0x33]
      %v1373 = vld [vmem:[#allocation3] sm:$0xff]
      %v1374 = vld [vmem:[#allocation3 + $0x8] sm:$0xff]
      %v1375 = vld [vmem:[#allocation3 + $0x10] sm:$0xff]
      %v1376 = vld [vmem:[#allocation3 + $0x18] sm:$0xff]
      %v1377 = vld [vmem:[#allocation3 + $0x20] sm:$0xff]
      %v1378 = vld [vmem:[#allocation3 + $0x28] sm:$0xff]
      %v1379 = vld [vmem:[#allocation3 + $0x30] sm:$0xff]
      %v1380 = vld [vmem:[#allocation3 + $0x38] sm:$0xff]
      %v1381 = vld [vmem:[#allocation3 + $0x40] sm:$0xff]
      %v1382 = vld [vmem:[#allocation3 + $0x48] sm:$0xff]
      %v1383 = vld [vmem:[#allocation3 + $0x50] sm:$0xff]
      %v1384 = vld [vmem:[#allocation3 + $0x58] sm:$0xff]
      %v1385 = vld [vmem:[#allocation3 + $0x60] sm:$0xff]
      %v1386 = vld [vmem:[#allocation3 + $0x68] sm:$0xff]
      %v1387 = vld [vmem:[#allocation3 + $0x70] sm:$0xff]
      %v1388 = vld [vmem:[#allocation3 + $0x78] sm:$0xff]
      %v1389 = vld [vmem:[#allocation3 + $0x80] sm:$0xff]
      %v1390 = vld [vmem:[#allocation3 + $0x88] sm:$0xff]
      %v1391 = vpack.c.bf16 %v1374, %v1373
      %v1392 = vpack.c.bf16 %v1376, %v1375
      %v1393 = vpack.c.bf16 %v1378, %v1377
      %v1394 = vpack.c.bf16 %v1380, %v1379
      %v1395 = vpack.c.bf16 %v1382, %v1381
      %v1396 = vpack.c.bf16 %v1384, %v1383
      %v1397 = vpack.c.bf16 %v1386, %v1385
      %v1398 = vpack.c.bf16 %v1388, %v1387
      %v1399 = vpack.c.bf16 %v1390, %v1389
      %v1400 = vld [vmem:[%s2] sm:$0xff]
      %v1401 = vld [vmem:[%s2 + $0x8] sm:$0xff]
      %v1402 = vld [vmem:[%s2 + $0x10] sm:$0xf]
      %1404 = vset.pattern.permute.xlu0 0
      %1405 = vperm.xlu0 %1404, %v1400
      %v1406 = vpop.permute.xlu0 %1405
      %1409 = vset.pattern.permute.xlu0 0
      %1410 = vperm.xlu0 %1409, %v1401
      %v1411 = vpop.permute.xlu0 %1410
      %1414 = vset.pattern.permute.xlu0 0
      %1415 = vperm.xlu0 %1414, %v1402
      %v1416 = vpop.permute.xlu0 %1415
      %v1421 = vunpack.c.l.b16 %v1370
      %v1422 = vunpack.c.h.b16 %v1370
      %v1423 = vunpack.c.l.b16 %v1371
      %v1424 = vunpack.c.h.b16 %v1371
      %v1425 = vunpack.c.l.b16 %v1372
      %v1426 = vunpack.c.h.b16 %v1372
      %v1427 = vpack.c.b16 %v1423, %v1421
      %v1428 = vpack.c.b16 %v1424, %v1422
      %v1429 = vpack.c.b16 %v1425, %v1425
      %v1430 = vpack.c.b16 %v1426, %v1426
      %vm1433 = vcmask 130048
      %v1435 = vsel %vm1433, %v1428, 0
      %v1438 = vsel %vm1433, %v1430, 0
      %1440 = vmatpush.bf16.msra.mxu0 %v1398
      %1441 = vmatpush.bf16.msra.mxu0 %v1397
      %1442 = vmatpush.bf16.msra.mxu0 %v1396
      %1443 = vmatpush.bf16.msra.mxu0 %v1395
      %1444 = vmatpush.bf16.msra.mxu0 %v1394
      %1445 = vmatpush.bf16.msra.mxu0 %v1393
      %1446 = vmatpush.bf16.msra.mxu0 %v1392
      %1447 = vmatpush.bf16.msra.mxu0 %v1391
      %1448 = vmatmul.bf16.gmra.mxu0 %v1427
      %v1449 = vpop.f32.mrf.mxu0
      %v1450 = vadd.f32 %v1406, %v1449
      %v1451 = vpop.f32.mrf.mxu0
      %v1452 = vadd.f32 %v1411, %v1451
      %1453 = vmatmul.bf16.gmra.mxu0 %v1429
      %v1454 = vpop.f32.mrf.mxu0
      %v1455 = vadd.f32 %v1416, %v1454
      %v1456 = vpop.f32.mrf.mxu0
      %1457 = vdwg.mxu0
      %1458 = vmatpush.bf16.msra.mxu0 0
      %1459 = vmatpush.bf16.msra.mxu0 0
      %1460 = vmatpush.bf16.msra.mxu0 0
      %1461 = vmatpush.bf16.msra.mxu0 0
      %1462 = vmatpush.bf16.msra.mxu0 0
      %1463 = vmatpush.bf16.msra.mxu0 0
      %1464 = vmatpush.bf16.msra.mxu0 0
      %1465 = vmatpush.bf16.msra.mxu0 %v1399
      %1466 = vmatmul.bf16.gmra.mxu0 %v1435
      %v1467 = vpop.f32.mrf.mxu0
      %v1468 = vadd.f32 %v1450, %v1467
      %v1469 = vpop.f32.mrf.mxu0
      %v1470 = vadd.f32 %v1452, %v1469
      %1471 = vmatmul.bf16.gmra.mxu0 %v1438
      %v1472 = vpop.f32.mrf.mxu0
      %v1473 = vadd.f32 %v1455, %v1472
      %v1474 = vpop.f32.mrf.mxu0
      %1475 = vdwg.mxu0
      %v1477 = vperm.slane %v369, 0
      %v1479 = vmul.f32 %v1468, %v1477
      %1481 = vrot.lane.b32.xlu0 %v1479, 26
      %v1482 = vpop.permute.xlu0 %1481
      %vm1484 = vcmask 994512
      %1485 = vst.msk [vmem:[#allocation4] sm:$0xf] %vm1484, %v1482
      %v1486 = vld [vmem:[#allocation4] sm:$0xf]
      %1488 = vst [vmem:[#allocation1] ss:$2 sm:$0xff] %v1486
      %v1489 = vld.sshfl [vmem:[#allocation1] sm:$0xff pattern:$0x75316420]
      %1490 = vrot.lane.b32.xlu0 %v1489, 115
      %v1491 = vpop.permute.xlu0 %1490
      %vm1493 = vcmask 781312
      %1494 = vst.msk [vmem:[#allocation3] sm:$0xf] %vm1493, %v1491
      %v1495 = vld [vmem:[#allocation4] sm:$0xf]
      %1497 = vst [vmem:[#allocation1] ss:$2 sm:$0xff] %v1495
      %v1498 = vld.sshfl [vmem:[#allocation1] sm:$0xff pattern:$0x75316420]
      %1499 = vrot.lane.b32.xlu0 %v1498, 114
      %v1500 = vpop.permute.xlu0 %1499
      %1502 = vst.msk [vmem:[#allocation3 + $0x4] sm:$0xf] %vm1493, %v1500
      %v1503 = vld [vmem:[#allocation4] sm:$0xf]
      %1505 = vst [vmem:[#allocation1] ss:$2 sm:$0xff] %v1503
      %v1506 = vld.sshfl [vmem:[#allocation1] sm:$0xff pattern:$0x75316420]
      %1507 = vrot.lane.b32.xlu0 %v1506, 113
      %v1508 = vpop.permute.xlu0 %1507
      %1510 = vst.msk [vmem:[#allocation3 + $0x8] sm:$0xf] %vm1493, %v1508
      %v1511 = vld [vmem:[#allocation4] sm:$0xf]
      %1513 = vst [vmem:[#allocation1] ss:$2 sm:$0xff] %v1511
      %v1514 = vld.sshfl [vmem:[#allocation1] sm:$0xff pattern:$0x75316420]
      %1515 = vrot.lane.b32.xlu0 %v1514, 103
      %v1516 = vpop.permute.xlu0 %1515
      %1518 = vst.msk [vmem:[#allocation3 + $0xc] sm:$0xf] %vm1493, %v1516
      %v1519 = vld [vmem:[#allocation4] sm:$0xf]
      %1521 = vst [vmem:[#allocation1] ss:$2 sm:$0xff] %v1519
      %v1522 = vld.sshfl [vmem:[#allocation1] sm:$0xff pattern:$0x75316420]
      %1523 = vrot.lane.b32.xlu0 %v1522, 102
      %v1524 = vpop.permute.xlu0 %1523
      %1526 = vst.msk [vmem:[#allocation3 + $0x10] sm:$0xf] %vm1493, %v1524
      %v1527 = vld [vmem:[#allocation4] sm:$0xf]
      %1529 = vst [vmem:[#allocation1] ss:$2 sm:$0xff] %v1527
      %v1530 = vld.sshfl [vmem:[#allocation1] sm:$0xff pattern:$0x75316420]
      %1531 = vrot.lane.b32.xlu0 %v1530, 101
      %v1532 = vpop.permute.xlu0 %1531
      %1534 = vst.msk [vmem:[#allocation3 + $0x14] sm:$0xf] %vm1493, %v1532
      %v1535 = vld [vmem:[#allocation4] sm:$0xff]
      %1537 = vst [vmem:[#allocation1] ss:$2 sm:$0xff] %v1535
      %v1538 = vld.sshfl [vmem:[#allocation1] sm:$0xff pattern:$0x75316420]
      %v1539 = vld.sshfl [vmem:[#allocation1 + $0x8] sm:$0xff pattern:$0x75316420]
      %1540 = vrot.lane.b32.xlu0 %v1538, 91
      %v1541 = vpop.permute.xlu0 %1540
      %1542 = vrot.lane.b32.xlu0 %v1539, 91
      %v1543 = vpop.permute.xlu0 %1542
      %v1544 = vsel %vm887, %v1541, %v1543
      %1546 = vst.msk [vmem:[#allocation3 + $0x18] sm:$0xf] %vm1493, %v1544
      %v1547 = vld [vmem:[#allocation4] sm:$0xff]
      %1549 = vst [vmem:[#allocation1] ss:$2 sm:$0xff] %v1547
      %v1550 = vld.sshfl [vmem:[#allocation1] sm:$0xff pattern:$0x75316420]
      %v1551 = vld.sshfl [vmem:[#allocation1 + $0x8] sm:$0xff pattern:$0x75316420]
      %1552 = vrot.lane.b32.xlu0 %v1550, 90
      %v1553 = vpop.permute.xlu0 %1552
      %1554 = vrot.lane.b32.xlu0 %v1551, 90
      %v1555 = vpop.permute.xlu0 %1554
      %v1556 = vsel %vm958, %v1553, %v1555
      %1558 = vst.msk [vmem:[#allocation3 + $0x1c] sm:$0xf] %vm1493, %v1556
      %v1559 = vld [vmem:[#allocation4] sm:$0xff]
      %1561 = vst [vmem:[#allocation1] ss:$2 sm:$0xff] %v1559
      %v1562 = vld.sshfl [vmem:[#allocation1] sm:$0xff pattern:$0x75316420]
      %v1563 = vld.sshfl [vmem:[#allocation1 + $0x8] sm:$0xff pattern:$0x75316420]
      %1564 = vrot.lane.b32.xlu0 %v1562, 89
      %v1565 = vpop.permute.xlu0 %1564
      %1566 = vrot.lane.b32.xlu0 %v1563, 89
      %v1567 = vpop.permute.xlu0 %1566
      %v1568 = vsel %vm1029, %v1565, %v1567
      %1570 = vst.msk [vmem:[#allocation3 + $0x20] sm:$0xf] %vm1493, %v1568
      %v1571 = vld [vmem:[%s3] sm:$0x3]
      %v1572 = vld [vmem:[#allocation3] sm:$0xff]
      %v1573 = vld [vmem:[#allocation3 + $0x8] sm:$0xff]
      %v1574 = vld [vmem:[#allocation3 + $0x10] sm:$0xff]
      %v1575 = vld [vmem:[#allocation3 + $0x18] sm:$0xff]
      %v1576 = vld [vmem:[#allocation3 + $0x20] sm:$0xf]
      %v1577 = vpack.c.bf16 %v1573, %v1572
      %v1578 = vpack.c.bf16 %v1575, %v1574
      %v1579 = vpack.c.bf16 %v1576, %v1576
      %v1580 = vld [vmem:[%s4] sm:$0xf]
      %1582 = vset.pattern.permute.xlu0 0
      %1583 = vperm.xlu0 %1582, %v1580
      %v1584 = vpop.permute.xlu0 %1583
      %vm1586 = vcmask 293888
      %v1588 = vsel %vm1586, %v1571, 0
      %vm1590 = vcmask 1041408
      %v1592 = vsel %vm1590, %v1579, 0
      %1594 = vmatpush.bf16.msra.mxu0 0
      %1595 = vmatpush.bf16.msra.mxu0 0
      %1596 = vmatpush.bf16.msra.mxu0 0
      %1597 = vmatpush.bf16.msra.mxu0 0
      %1598 = vmatpush.bf16.msra.mxu0 0
      %1599 = vmatpush.bf16.msra.mxu0 %v1592
      %1600 = vmatpush.bf16.msra.mxu0 %v1578
      %1601 = vmatpush.bf16.msra.mxu0 %v1577
      %1602 = vmatmul.bf16.gmra.mxu0 %v1588
      %v1603 = vpop.f32.mrf.mxu0
      %v1604 = vadd.f32 %v1584, %v1603
      %v1605 = vpop.f32.mrf.mxu0
      %1606 = vdwg.mxu0
      %v1607 = vmul.f32 %v1604, %v1477
      %1609 = vrot.lane.b32.xlu0 %v1607, 26
      %v1610 = vpop.permute.xlu0 %1609
      %1612 = vst.msk [vmem:[#allocation5] sm:$0xf] %vm1484, %v1610
      %v1613 = vld [vmem:[#allocation5] sm:$0xf]
      %1615 = vst [vmem:[#allocation1] ss:$2 sm:$0xff] %v1613
      %v1616 = vld.sshfl [vmem:[#allocation1] sm:$0xff pattern:$0x75316420]
      %1617 = vrot.lane.b32.xlu0 %v1616, 115
      %v1618 = vpop.permute.xlu0 %1617
      %1620 = vst.msk [vmem:[#allocation3] sm:$0xf] %vm1493, %v1618
      %v1621 = vld [vmem:[#allocation5] sm:$0xf]
      %1623 = vst [vmem:[#allocation1] ss:$2 sm:$0xff] %v1621
      %v1624 = vld.sshfl [vmem:[#allocation1] sm:$0xff pattern:$0x75316420]
      %1625 = vrot.lane.b32.xlu0 %v1624, 114
      %v1626 = vpop.permute.xlu0 %1625
      %1628 = vst.msk [vmem:[#allocation3 + $0x4] sm:$0xf] %vm1493, %v1626
      %v1629 = vld [vmem:[#allocation5] sm:$0xf]
      %1631 = vst [vmem:[#allocation1] ss:$2 sm:$0xff] %v1629
      %v1632 = vld.sshfl [vmem:[#allocation1] sm:$0xff pattern:$0x75316420]
      %1633 = vrot.lane.b32.xlu0 %v1632, 113
      %v1634 = vpop.permute.xlu0 %1633
      %1636 = vst.msk [vmem:[#allocation3 + $0x8] sm:$0xf] %vm1493, %v1634
      %v1637 = vld [vmem:[#allocation5] sm:$0xf]
      %1639 = vst [vmem:[#allocation1] ss:$2 sm:$0xff] %v1637
      %v1640 = vld.sshfl [vmem:[#allocation1] sm:$0xff pattern:$0x75316420]
      %1641 = vrot.lane.b32.xlu0 %v1640, 103
      %v1642 = vpop.permute.xlu0 %1641
      %1644 = vst.msk [vmem:[#allocation3 + $0xc] sm:$0xf] %vm1493, %v1642
      %v1645 = vld [vmem:[#allocation5] sm:$0xf]
      %1647 = vst [vmem:[#allocation1] ss:$2 sm:$0xff] %v1645
      %v1648 = vld.sshfl [vmem:[#allocation1] sm:$0xff pattern:$0x75316420]
      %1649 = vrot.lane.b32.xlu0 %v1648, 102
      %v1650 = vpop.permute.xlu0 %1649
      %1652 = vst.msk [vmem:[#allocation3 + $0x10] sm:$0xf] %vm1493, %v1650
      %v1653 = vld [vmem:[#allocation5] sm:$0xf]
      %1655 = vst [vmem:[#allocation1] ss:$2 sm:$0xff] %v1653
      %v1656 = vld.sshfl [vmem:[#allocation1] sm:$0xff pattern:$0x75316420]
      %1657 = vrot.lane.b32.xlu0 %v1656, 101
      %v1658 = vpop.permute.xlu0 %1657
      %1660 = vst.msk [vmem:[#allocation3 + $0x14] sm:$0xf] %vm1493, %v1658
      %v1661 = vld [vmem:[#allocation5] sm:$0xff]
      %1663 = vst [vmem:[#allocation1] ss:$2 sm:$0xff] %v1661
      %v1664 = vld.sshfl [vmem:[#allocation1] sm:$0xff pattern:$0x75316420]
      %v1665 = vld.sshfl [vmem:[#allocation1 + $0x8] sm:$0xff pattern:$0x75316420]
      %1666 = vrot.lane.b32.xlu0 %v1664, 91
      %v1667 = vpop.permute.xlu0 %1666
      %1668 = vrot.lane.b32.xlu0 %v1665, 91
      %v1669 = vpop.permute.xlu0 %1668
      %v1670 = vsel %vm887, %v1667, %v1669
      %1672 = vst.msk [vmem:[#allocation3 + $0x18] sm:$0xf] %vm1493, %v1670
      %v1673 = vld [vmem:[#allocation5] sm:$0xff]
      %1675 = vst [vmem:[#allocation1] ss:$2 sm:$0xff] %v1673
      %v1676 = vld.sshfl [vmem:[#allocation1] sm:$0xff pattern:$0x75316420]
      %v1677 = vld.sshfl [vmem:[#allocation1 + $0x8] sm:$0xff pattern:$0x75316420]
      %1678 = vrot.lane.b32.xlu0 %v1676, 90
      %v1679 = vpop.permute.xlu0 %1678
      %1680 = vrot.lane.b32.xlu0 %v1677, 90
      %v1681 = vpop.permute.xlu0 %1680
      %v1682 = vsel %vm958, %v1679, %v1681
      %1684 = vst.msk [vmem:[#allocation3 + $0x1c] sm:$0xf] %vm1493, %v1682
      %v1685 = vld [vmem:[#allocation5] sm:$0xff]
      %1687 = vst [vmem:[#allocation1] ss:$2 sm:$0xff] %v1685
      %v1688 = vld.sshfl [vmem:[#allocation1] sm:$0xff pattern:$0x75316420]
      %v1689 = vld.sshfl [vmem:[#allocation1 + $0x8] sm:$0xff pattern:$0x75316420]
      %1690 = vrot.lane.b32.xlu0 %v1688, 89
      %v1691 = vpop.permute.xlu0 %1690
      %1692 = vrot.lane.b32.xlu0 %v1689, 89
      %v1693 = vpop.permute.xlu0 %1692
      %v1694 = vsel %vm1029, %v1691, %v1693
      %1696 = vst.msk [vmem:[#allocation3 + $0x20] sm:$0xf] %vm1493, %v1694
      %v1697 = vld [vmem:[%s5] sm:$0xf]
      %v1698 = vld [vmem:[#allocation3] sm:$0xff]
      %v1699 = vld [vmem:[#allocation3 + $0x8] sm:$0xff]
      %v1700 = vld [vmem:[#allocation3 + $0x10] sm:$0xff]
      %v1701 = vld [vmem:[#allocation3 + $0x18] sm:$0xff]
      %v1702 = vld [vmem:[#allocation3 + $0x20] sm:$0xf]
      %v1703 = vpack.c.bf16 %v1699, %v1698
      %v1704 = vpack.c.bf16 %v1701, %v1700
      %v1705 = vpack.c.bf16 %v1702, %v1702
      %v1706 = vld [vmem:[%s6] sm:$0xff]
      %1708 = vset.pattern.permute.xlu0 0
      %1709 = vperm.xlu0 %1708, %v1706
      %v1710 = vpop.permute.xlu0 %1709
      %v1713 = vsel %vm1586, %v1697, 0
      %v1716 = vsel %vm1590, %v1705, 0
      %1718 = vmatpush.bf16.msra.mxu0 0
      %1719 = vmatpush.bf16.msra.mxu0 0
      %1720 = vmatpush.bf16.msra.mxu0 0
      %1721 = vmatpush.bf16.msra.mxu0 0
      %1722 = vmatpush.bf16.msra.mxu0 0
      %1723 = vmatpush.bf16.msra.mxu0 %v1716
      %1724 = vmatpush.bf16.msra.mxu0 %v1704
      %1725 = vmatpush.bf16.msra.mxu0 %v1703
      %1726 = vmatmul.bf16.gmra.mxu0 %v1713
      %v1727 = vpop.f32.mrf.mxu0
      %v1728 = vadd.f32 %v1710, %v1727
      %v1729 = vpop.f32.mrf.mxu0
      %1730 = vdwg.mxu0
      %v1732 = vrot.slane %v1604, 4
      %v1734 = vsel %vm375, %v1468, %v1732
      %v1738 = vrot.slane %v1468, 4
      %v1739 = vrot.slane %v1470, 4
      %v1740 = vsel %vm375, %v1738, %v1739
      %v1741 = vrot.slane %v1473, 4
      %v1742 = vsel %vm375, %v1739, %v1741
      %v1745 = vadd.f32 %v1734, %v1740
      %v1746 = vadd.f32 %v1728, %v1742
      %v1747 = vsub.f32 %v1350, %v1368
      %v1748 = vsub.f32 %v1351, %v1369
      %v1749 = vadd.f32 %v1747, %v1745
      %v1750 = vadd.f32 %v1748, %v1746
      %1751 = vst.msk [vmem:[%s366] sm:$0xff] %vm565, %v1749
      %1752 = vst.msk [vmem:[%s366 + $0x8] sm:$0xff] %vm565, %v1750
      %s1753 = scalar_lea.vmem %s359, 16
      %v1754 = vld [vmem:[%s1753] sm:$0xff]
      %v1755 = vld [vmem:[%s1753 + $0x8] sm:$0xff]
      %1758 = vrot.lane.b32.xlu0 %v1754, 26
      %v1759 = vpop.permute.xlu0 %1758
      %1760 = vrot.lane.b32.xlu0 %v1755, 26
      %v1761 = vpop.permute.xlu0 %1760
      %1764 = vst.msk [vmem:[#allocation2] sm:$0xff] %vm390, %v1759
      %1765 = vst.msk [vmem:[#allocation2 + $0x10] sm:$0xff] %vm390, %v1761
      %v1766 = vld [vmem:[#allocation2] sm:$0xff]
      %v1767 = vld [vmem:[#allocation2 + $0x10] sm:$0xff]
      %v1768 = vld [vmem:[%s7] ss:$0 sm:$0xff]
      %v1769 = vadd.f32 %v1766, %v1768
      %v1770 = vadd.f32 %v1767, %v1768
      %v1771 = vld [vmem:[%s8] ss:$0 sm:$0xff]
      %v1772 = vadd.f32 %v1766, %v1771
      %v1773 = vadd.f32 %v1767, %v1771
      %v1774 = vld [vmem:[%s7 + $0x1] ss:$0 sm:$0xff]
      %v1775 = vadd.f32 %v1766, %v1774
      %v1776 = vadd.f32 %v1767, %v1774
      %v1777 = vld [vmem:[%s8 + $0x1] ss:$0 sm:$0xff]
      %v1778 = vadd.f32 %v1766, %v1777
      %v1779 = vadd.f32 %v1767, %v1777
      %1782 = vrot.lane.b32.xlu0 %v1775, 127
      %v1783 = vpop.permute.xlu0 %1782
      %1784 = vrot.lane.b32.xlu0 %v1776, 127
      %v1785 = vpop.permute.xlu0 %1784
      %v1788 = vmax.f32 %v1769, %v1783
      %v1789 = vmax.f32 %v1770, %v1785
      %1792 = vrot.lane.b32.xlu0 %v1778, 127
      %v1793 = vpop.permute.xlu0 %1792
      %1794 = vrot.lane.b32.xlu0 %v1779, 127
      %v1795 = vpop.permute.xlu0 %1794
      %v1798 = vmin.f32 %v1772, %v1793
      %v1799 = vmin.f32 %v1773, %v1795
      %v1800 = vld [vmem:[%s7 + $0x2] ss:$0 sm:$0xff]
      %v1801 = vadd.f32 %v1766, %v1800
      %v1802 = vadd.f32 %v1767, %v1800
      %v1803 = vld [vmem:[%s8 + $0x2] ss:$0 sm:$0xff]
      %v1804 = vadd.f32 %v1766, %v1803
      %v1805 = vadd.f32 %v1767, %v1803
      %1808 = vrot.lane.b32.xlu0 %v1801, 126
      %v1809 = vpop.permute.xlu0 %1808
      %1810 = vrot.lane.b32.xlu0 %v1802, 126
      %v1811 = vpop.permute.xlu0 %1810
      %v1814 = vmax.f32 %v1788, %v1809
      %v1815 = vmax.f32 %v1789, %v1811
      %1818 = vrot.lane.b32.xlu0 %v1804, 126
      %v1819 = vpop.permute.xlu0 %1818
      %1820 = vrot.lane.b32.xlu0 %v1805, 126
      %v1821 = vpop.permute.xlu0 %1820
      %v1824 = vmin.f32 %v1798, %v1819
      %v1825 = vmin.f32 %v1799, %v1821
      %v1826 = vld [vmem:[%s7 + $0x3] ss:$0 sm:$0xff]
      %v1827 = vadd.f32 %v1766, %v1826
      %v1828 = vadd.f32 %v1767, %v1826
      %v1829 = vld [vmem:[%s8 + $0x3] ss:$0 sm:$0xff]
      %v1830 = vadd.f32 %v1766, %v1829
      %v1831 = vadd.f32 %v1767, %v1829
      %1834 = vrot.lane.b32.xlu0 %v1827, 125
      %v1835 = vpop.permute.xlu0 %1834
      %1836 = vrot.lane.b32.xlu0 %v1828, 125
      %v1837 = vpop.permute.xlu0 %1836
      %v1840 = vmax.f32 %v1814, %v1835
      %v1841 = vmax.f32 %v1815, %v1837
      %1844 = vrot.lane.b32.xlu0 %v1830, 125
      %v1845 = vpop.permute.xlu0 %1844
      %1846 = vrot.lane.b32.xlu0 %v1831, 125
      %v1847 = vpop.permute.xlu0 %1846
      %v1850 = vmin.f32 %v1824, %v1845
      %v1851 = vmin.f32 %v1825, %v1847
      %v1852 = vld [vmem:[%s7 + $0x4] ss:$0 sm:$0xff]
      %v1853 = vadd.f32 %v1766, %v1852
      %v1854 = vadd.f32 %v1767, %v1852
      %v1855 = vld [vmem:[%s8 + $0x4] ss:$0 sm:$0xff]
      %v1856 = vadd.f32 %v1766, %v1855
      %v1857 = vadd.f32 %v1767, %v1855
      %1860 = vrot.lane.b32.xlu0 %v1853, 124
      %v1861 = vpop.permute.xlu0 %1860
      %1862 = vrot.lane.b32.xlu0 %v1854, 124
      %v1863 = vpop.permute.xlu0 %1862
      %v1866 = vmax.f32 %v1840, %v1861
      %v1867 = vmax.f32 %v1841, %v1863
      %1870 = vrot.lane.b32.xlu0 %v1856, 124
      %v1871 = vpop.permute.xlu0 %1870
      %1872 = vrot.lane.b32.xlu0 %v1857, 124
      %v1873 = vpop.permute.xlu0 %1872
      %v1876 = vmin.f32 %v1850, %v1871
      %v1877 = vmin.f32 %v1851, %v1873
      %v1878 = vld [vmem:[%s7 + $0x5] ss:$0 sm:$0xff]
      %v1879 = vadd.f32 %v1766, %v1878
      %v1880 = vadd.f32 %v1767, %v1878
      %v1881 = vld [vmem:[%s8 + $0x5] ss:$0 sm:$0xff]
      %v1882 = vadd.f32 %v1766, %v1881
      %v1883 = vadd.f32 %v1767, %v1881
      %1886 = vrot.lane.b32.xlu0 %v1879, 116
      %v1887 = vpop.permute.xlu0 %1886
      %1888 = vrot.lane.b32.xlu0 %v1880, 116
      %v1889 = vpop.permute.xlu0 %1888
      %v1892 = vmax.f32 %v1866, %v1887
      %v1893 = vmax.f32 %v1867, %v1889
      %1896 = vrot.lane.b32.xlu0 %v1882, 116
      %v1897 = vpop.permute.xlu0 %1896
      %1898 = vrot.lane.b32.xlu0 %v1883, 116
      %v1899 = vpop.permute.xlu0 %1898
      %v1902 = vmin.f32 %v1876, %v1897
      %v1903 = vmin.f32 %v1877, %v1899
      %v1904 = vld [vmem:[%s7 + $0x6] ss:$0 sm:$0xff]
      %v1905 = vadd.f32 %v1766, %v1904
      %v1906 = vadd.f32 %v1767, %v1904
      %v1907 = vld [vmem:[%s8 + $0x6] ss:$0 sm:$0xff]
      %v1908 = vadd.f32 %v1766, %v1907
      %v1909 = vadd.f32 %v1767, %v1907
      %1912 = vrot.lane.b32.xlu0 %v1905, 115
      %v1913 = vpop.permute.xlu0 %1912
      %1914 = vrot.lane.b32.xlu0 %v1906, 115
      %v1915 = vpop.permute.xlu0 %1914
      %v1918 = vmax.f32 %v1892, %v1913
      %v1919 = vmax.f32 %v1893, %v1915
      %1922 = vrot.lane.b32.xlu0 %v1908, 115
      %v1923 = vpop.permute.xlu0 %1922
      %1924 = vrot.lane.b32.xlu0 %v1909, 115
      %v1925 = vpop.permute.xlu0 %1924
      %v1928 = vmin.f32 %v1902, %v1923
      %v1929 = vmin.f32 %v1903, %v1925
      %1932 = vrot.lane.b32.xlu0 %v1766, 115
      %v1933 = vpop.permute.xlu0 %1932
      %1934 = vrot.lane.b32.xlu0 %v1767, 115
      %v1935 = vpop.permute.xlu0 %1934
      %1938 = vst.msk [vmem:[#allocation3] sm:$0xff] %vm565, %v1933
      %1939 = vst.msk [vmem:[#allocation3 + $0x8] sm:$0xff] %vm565, %v1935
      %v1940 = vld [vmem:[#allocation2] sm:$0xff]
      %v1941 = vld [vmem:[#allocation2 + $0x10] sm:$0xff]
      %v1942 = vld [vmem:[%s7 + $0x7] ss:$0 sm:$0xff]
      %v1943 = vadd.f32 %v1940, %v1942
      %v1944 = vadd.f32 %v1941, %v1942
      %v1945 = vld [vmem:[%s8 + $0x7] ss:$0 sm:$0xff]
      %v1946 = vadd.f32 %v1940, %v1945
      %v1947 = vadd.f32 %v1941, %v1945
      %1950 = vrot.lane.b32.xlu0 %v1943, 114
      %v1951 = vpop.permute.xlu0 %1950
      %1952 = vrot.lane.b32.xlu0 %v1944, 114
      %v1953 = vpop.permute.xlu0 %1952
      %v1956 = vmax.f32 %v1918, %v1951
      %v1957 = vmax.f32 %v1919, %v1953
      %1960 = vrot.lane.b32.xlu0 %v1946, 114
      %v1961 = vpop.permute.xlu0 %1960
      %1962 = vrot.lane.b32.xlu0 %v1947, 114
      %v1963 = vpop.permute.xlu0 %1962
      %v1966 = vmin.f32 %v1928, %v1961
      %v1967 = vmin.f32 %v1929, %v1963
      %1970 = vrot.lane.b32.xlu0 %v1940, 114
      %v1971 = vpop.permute.xlu0 %1970
      %1972 = vrot.lane.b32.xlu0 %v1941, 114
      %v1973 = vpop.permute.xlu0 %1972
      %1976 = vst.msk [vmem:[#allocation3 + $0x10] sm:$0xff] %vm565, %v1971
      %1977 = vst.msk [vmem:[#allocation3 + $0x18] sm:$0xff] %vm565, %v1973
      %v1978 = vld [vmem:[#allocation2] sm:$0xff]
      %v1979 = vld [vmem:[#allocation2 + $0x10] sm:$0xff]
      %v1980 = vld [vmem:[%s7 + $0x10] ss:$0 sm:$0xff]
      %v1981 = vadd.f32 %v1978, %v1980
      %v1982 = vadd.f32 %v1979, %v1980
      %v1983 = vld [vmem:[%s8 + $0x10] ss:$0 sm:$0xff]
      %v1984 = vadd.f32 %v1978, %v1983
      %v1985 = vadd.f32 %v1979, %v1983
      %1988 = vrot.lane.b32.xlu0 %v1981, 113
      %v1989 = vpop.permute.xlu0 %1988
      %1990 = vrot.lane.b32.xlu0 %v1982, 113
      %v1991 = vpop.permute.xlu0 %1990
      %v1994 = vmax.f32 %v1956, %v1989
      %v1995 = vmax.f32 %v1957, %v1991
      %1998 = vrot.lane.b32.xlu0 %v1984, 113
      %v1999 = vpop.permute.xlu0 %1998
      %2000 = vrot.lane.b32.xlu0 %v1985, 113
      %v2001 = vpop.permute.xlu0 %2000
      %v2004 = vmin.f32 %v1966, %v1999
      %v2005 = vmin.f32 %v1967, %v2001
      %2008 = vrot.lane.b32.xlu0 %v1978, 113
      %v2009 = vpop.permute.xlu0 %2008
      %2010 = vrot.lane.b32.xlu0 %v1979, 113
      %v2011 = vpop.permute.xlu0 %2010
      %2014 = vst.msk [vmem:[#allocation3 + $0x20] sm:$0xff] %vm565, %v2009
      %2015 = vst.msk [vmem:[#allocation3 + $0x28] sm:$0xff] %vm565, %v2011
      %v2016 = vld [vmem:[#allocation2] sm:$0xff]
      %v2017 = vld [vmem:[#allocation2 + $0x10] sm:$0xff]
      %v2018 = vld [vmem:[%s7 + $0x11] ss:$0 sm:$0xff]
      %v2019 = vadd.f32 %v2016, %v2018
      %v2020 = vadd.f32 %v2017, %v2018
      %v2021 = vld [vmem:[%s8 + $0x11] ss:$0 sm:$0xff]
      %v2022 = vadd.f32 %v2016, %v2021
      %v2023 = vadd.f32 %v2017, %v2021
      %2026 = vrot.lane.b32.xlu0 %v2019, 112
      %v2027 = vpop.permute.xlu0 %2026
      %2028 = vrot.lane.b32.xlu0 %v2020, 112
      %v2029 = vpop.permute.xlu0 %2028
      %v2032 = vmax.f32 %v1994, %v2027
      %v2033 = vmax.f32 %v1995, %v2029
      %2036 = vrot.lane.b32.xlu0 %v2022, 112
      %v2037 = vpop.permute.xlu0 %2036
      %2038 = vrot.lane.b32.xlu0 %v2023, 112
      %v2039 = vpop.permute.xlu0 %2038
      %v2042 = vmin.f32 %v2004, %v2037
      %v2043 = vmin.f32 %v2005, %v2039
      %v2044 = vld [vmem:[%s7 + $0x12] ss:$0 sm:$0xff]
      %v2045 = vadd.f32 %v2016, %v2044
      %v2046 = vadd.f32 %v2017, %v2044
      %v2047 = vld [vmem:[%s8 + $0x12] ss:$0 sm:$0xff]
      %v2048 = vadd.f32 %v2016, %v2047
      %v2049 = vadd.f32 %v2017, %v2047
      %2052 = vrot.lane.b32.xlu0 %v2045, 104
      %v2053 = vpop.permute.xlu0 %2052
      %2054 = vrot.lane.b32.xlu0 %v2046, 104
      %v2055 = vpop.permute.xlu0 %2054
      %v2058 = vmax.f32 %v2032, %v2053
      %v2059 = vmax.f32 %v2033, %v2055
      %2062 = vrot.lane.b32.xlu0 %v2048, 104
      %v2063 = vpop.permute.xlu0 %2062
      %2064 = vrot.lane.b32.xlu0 %v2049, 104
      %v2065 = vpop.permute.xlu0 %2064
      %v2068 = vmin.f32 %v2042, %v2063
      %v2069 = vmin.f32 %v2043, %v2065
      %v2070 = vld [vmem:[%s7 + $0x13] ss:$0 sm:$0xff]
      %v2071 = vadd.f32 %v2016, %v2070
      %v2072 = vadd.f32 %v2017, %v2070
      %v2073 = vld [vmem:[%s8 + $0x13] ss:$0 sm:$0xff]
      %v2074 = vadd.f32 %v2016, %v2073
      %v2075 = vadd.f32 %v2017, %v2073
      %2078 = vrot.lane.b32.xlu0 %v2071, 103
      %v2079 = vpop.permute.xlu0 %2078
      %2080 = vrot.lane.b32.xlu0 %v2072, 103
      %v2081 = vpop.permute.xlu0 %2080
      %v2084 = vmax.f32 %v2058, %v2079
      %v2085 = vmax.f32 %v2059, %v2081
      %2088 = vrot.lane.b32.xlu0 %v2074, 103
      %v2089 = vpop.permute.xlu0 %2088
      %2090 = vrot.lane.b32.xlu0 %v2075, 103
      %v2091 = vpop.permute.xlu0 %2090
      %v2094 = vmin.f32 %v2068, %v2089
      %v2095 = vmin.f32 %v2069, %v2091
      %2098 = vrot.lane.b32.xlu0 %v2016, 103
      %v2099 = vpop.permute.xlu0 %2098
      %2100 = vrot.lane.b32.xlu0 %v2017, 103
      %v2101 = vpop.permute.xlu0 %2100
      %2104 = vst.msk [vmem:[#allocation3 + $0x30] sm:$0xff] %vm565, %v2099
      %2105 = vst.msk [vmem:[#allocation3 + $0x38] sm:$0xff] %vm565, %v2101
      %v2106 = vld [vmem:[#allocation2] sm:$0xff]
      %v2107 = vld [vmem:[#allocation2 + $0x10] sm:$0xff]
      %2110 = vrot.lane.b32.xlu0 %v2106, 102
      %v2111 = vpop.permute.xlu0 %2110
      %2112 = vrot.lane.b32.xlu0 %v2107, 102
      %v2113 = vpop.permute.xlu0 %2112
      %2116 = vst.msk [vmem:[#allocation3 + $0x40] sm:$0xff] %vm565, %v2111
      %2117 = vst.msk [vmem:[#allocation3 + $0x48] sm:$0xff] %vm565, %v2113
      %v2118 = vld [vmem:[#allocation2] sm:$0xff]
      %v2119 = vld [vmem:[#allocation2 + $0x10] sm:$0xff]
      %v2120 = vld [vmem:[%s7 + $0x15] ss:$0 sm:$0xff]
      %v2121 = vadd.f32 %v2118, %v2120
      %v2122 = vadd.f32 %v2119, %v2120
      %v2123 = vld [vmem:[%s8 + $0x15] ss:$0 sm:$0xff]
      %v2124 = vadd.f32 %v2118, %v2123
      %v2125 = vadd.f32 %v2119, %v2123
      %2128 = vrot.lane.b32.xlu0 %v2121, 101
      %v2129 = vpop.permute.xlu0 %2128
      %2130 = vrot.lane.b32.xlu0 %v2122, 101
      %v2131 = vpop.permute.xlu0 %2130
      %v2134 = vmax.f32 %v2084, %v2129
      %v2135 = vmax.f32 %v2085, %v2131
      %2138 = vrot.lane.b32.xlu0 %v2124, 101
      %v2139 = vpop.permute.xlu0 %2138
      %2140 = vrot.lane.b32.xlu0 %v2125, 101
      %v2141 = vpop.permute.xlu0 %2140
      %v2144 = vmin.f32 %v2094, %v2139
      %v2145 = vmin.f32 %v2095, %v2141
      %2148 = vrot.lane.b32.xlu0 %v2118, 101
      %v2149 = vpop.permute.xlu0 %2148
      %2150 = vrot.lane.b32.xlu0 %v2119, 101
      %v2151 = vpop.permute.xlu0 %2150
      %2154 = vst.msk [vmem:[#allocation3 + $0x50] sm:$0xff] %vm565, %v2149
      %2155 = vst.msk [vmem:[#allocation3 + $0x58] sm:$0xff] %vm565, %v2151
      %v2156 = vld [vmem:[#allocation2] sm:$0xff]
      %v2157 = vld [vmem:[#allocation2 + $0x10] sm:$0xff]
      %v2158 = vld [vmem:[%s7 + $0x16] ss:$0 sm:$0xff]
      %v2159 = vadd.f32 %v2156, %v2158
      %v2160 = vadd.f32 %v2157, %v2158
      %v2161 = vld [vmem:[%s8 + $0x16] ss:$0 sm:$0xff]
      %v2162 = vadd.f32 %v2156, %v2161
      %v2163 = vadd.f32 %v2157, %v2161
      %2166 = vrot.lane.b32.xlu0 %v2159, 100
      %v2167 = vpop.permute.xlu0 %2166
      %2168 = vrot.lane.b32.xlu0 %v2160, 100
      %v2169 = vpop.permute.xlu0 %2168
      %v2172 = vmax.f32 %v2134, %v2167
      %v2173 = vmax.f32 %v2135, %v2169
      %2176 = vrot.lane.b32.xlu0 %v2162, 100
      %v2177 = vpop.permute.xlu0 %2176
      %2178 = vrot.lane.b32.xlu0 %v2163, 100
      %v2179 = vpop.permute.xlu0 %2178
      %v2182 = vmin.f32 %v2144, %v2177
      %v2183 = vmin.f32 %v2145, %v2179
      %v2184 = vld [vmem:[#allocation2 + $0x8] sm:$0xff]
      %v2185 = vld [vmem:[#allocation2 + $0x18] sm:$0xff]
      %v2186 = vld [vmem:[%s7 + $0x17] ss:$0 sm:$0xff]
      %v2187 = vld [vmem:[%s7 + $0x1f] ss:$0 sm:$0xff]
      %v2188 = vadd.f32 %v2156, %v2186
      %v2189 = vadd.f32 %v2184, %v2187
      %v2190 = vadd.f32 %v2157, %v2186
      %v2191 = vadd.f32 %v2185, %v2187
      %v2192 = vld [vmem:[%s8 + $0x17] ss:$0 sm:$0xff]
      %v2193 = vld [vmem:[%s8 + $0x1f] ss:$0 sm:$0xff]
      %v2194 = vadd.f32 %v2156, %v2192
      %v2195 = vadd.f32 %v2184, %v2193
      %v2196 = vadd.f32 %v2157, %v2192
      %v2197 = vadd.f32 %v2185, %v2193
      %2202 = vrot.lane.b32.xlu0 %v2188, 92
      %v2203 = vpop.permute.xlu0 %2202
      %2204 = vrot.lane.b32.xlu0 %v2189, 92
      %v2205 = vpop.permute.xlu0 %2204
      %2206 = vrot.lane.b32.xlu0 %v2190, 92
      %v2207 = vpop.permute.xlu0 %2206
      %2208 = vrot.lane.b32.xlu0 %v2191, 92
      %v2209 = vpop.permute.xlu0 %2208
      %v2210 = vsel %vm838, %v2203, %v2205
      %v2211 = vsel %vm838, %v2207, %v2209
      %v2214 = vmax.f32 %v2172, %v2210
      %v2215 = vmax.f32 %v2173, %v2211
      %2220 = vrot.lane.b32.xlu0 %v2194, 92
      %v2221 = vpop.permute.xlu0 %2220
      %2222 = vrot.lane.b32.xlu0 %v2195, 92
      %v2223 = vpop.permute.xlu0 %2222
      %2224 = vrot.lane.b32.xlu0 %v2196, 92
      %v2225 = vpop.permute.xlu0 %2224
      %2226 = vrot.lane.b32.xlu0 %v2197, 92
      %v2227 = vpop.permute.xlu0 %2226
      %v2228 = vsel %vm838, %v2221, %v2223
      %v2229 = vsel %vm838, %v2225, %v2227
      %v2232 = vmin.f32 %v2182, %v2228
      %v2233 = vmin.f32 %v2183, %v2229
      %v2234 = vld [vmem:[%s7 + $0x20] ss:$0 sm:$0xff]
      %v2235 = vld [vmem:[%s7 + $0x28] ss:$0 sm:$0xff]
      %v2236 = vadd.f32 %v2156, %v2234
      %v2237 = vadd.f32 %v2184, %v2235
      %v2238 = vadd.f32 %v2157, %v2234
      %v2239 = vadd.f32 %v2185, %v2235
      %v2240 = vld [vmem:[%s8 + $0x20] ss:$0 sm:$0xff]
      %v2241 = vld [vmem:[%s8 + $0x28] ss:$0 sm:$0xff]
      %v2242 = vadd.f32 %v2156, %v2240
      %v2243 = vadd.f32 %v2184, %v2241
      %v2244 = vadd.f32 %v2157, %v2240
      %v2245 = vadd.f32 %v2185, %v2241
      %2250 = vrot.lane.b32.xlu0 %v2236, 91
      %v2251 = vpop.permute.xlu0 %2250
      %2252 = vrot.lane.b32.xlu0 %v2237, 91
      %v2253 = vpop.permute.xlu0 %2252
      %2254 = vrot.lane.b32.xlu0 %v2238, 91
      %v2255 = vpop.permute.xlu0 %2254
      %2256 = vrot.lane.b32.xlu0 %v2239, 91
      %v2257 = vpop.permute.xlu0 %2256
      %v2258 = vsel %vm887, %v2251, %v2253
      %v2259 = vsel %vm887, %v2255, %v2257
      %v2262 = vmax.f32 %v2214, %v2258
      %v2263 = vmax.f32 %v2215, %v2259
      %2268 = vrot.lane.b32.xlu0 %v2242, 91
      %v2269 = vpop.permute.xlu0 %2268
      %2270 = vrot.lane.b32.xlu0 %v2243, 91
      %v2271 = vpop.permute.xlu0 %2270
      %2272 = vrot.lane.b32.xlu0 %v2244, 91
      %v2273 = vpop.permute.xlu0 %2272
      %2274 = vrot.lane.b32.xlu0 %v2245, 91
      %v2275 = vpop.permute.xlu0 %2274
      %v2276 = vsel %vm887, %v2269, %v2271
      %v2277 = vsel %vm887, %v2273, %v2275
      %v2280 = vmin.f32 %v2232, %v2276
      %v2281 = vmin.f32 %v2233, %v2277
      %2286 = vrot.lane.b32.xlu0 %v2156, 91
      %v2287 = vpop.permute.xlu0 %2286
      %2288 = vrot.lane.b32.xlu0 %v2184, 91
      %v2289 = vpop.permute.xlu0 %2288
      %2290 = vrot.lane.b32.xlu0 %v2157, 91
      %v2291 = vpop.permute.xlu0 %2290
      %2292 = vrot.lane.b32.xlu0 %v2185, 91
      %v2293 = vpop.permute.xlu0 %2292
      %v2294 = vsel %vm887, %v2287, %v2289
      %v2295 = vsel %vm887, %v2291, %v2293
      %2298 = vst.msk [vmem:[#allocation3 + $0x60] sm:$0xff] %vm565, %v2294
      %2299 = vst.msk [vmem:[#allocation3 + $0x68] sm:$0xff] %vm565, %v2295
      %v2300 = vld [vmem:[#allocation2] sm:$0xff]
      %v2301 = vld [vmem:[#allocation2 + $0x8] sm:$0xff]
      %v2302 = vld [vmem:[#allocation2 + $0x10] sm:$0xff]
      %v2303 = vld [vmem:[#allocation2 + $0x18] sm:$0xff]
      %v2304 = vld [vmem:[%s7 + $0x21] ss:$0 sm:$0xff]
      %v2305 = vld [vmem:[%s7 + $0x29] ss:$0 sm:$0xff]
      %v2306 = vadd.f32 %v2300, %v2304
      %v2307 = vadd.f32 %v2301, %v2305
      %v2308 = vadd.f32 %v2302, %v2304
      %v2309 = vadd.f32 %v2303, %v2305
      %v2310 = vld [vmem:[%s8 + $0x21] ss:$0 sm:$0xff]
      %v2311 = vld [vmem:[%s8 + $0x29] ss:$0 sm:$0xff]
      %v2312 = vadd.f32 %v2300, %v2310
      %v2313 = vadd.f32 %v2301, %v2311
      %v2314 = vadd.f32 %v2302, %v2310
      %v2315 = vadd.f32 %v2303, %v2311
      %2320 = vrot.lane.b32.xlu0 %v2306, 90
      %v2321 = vpop.permute.xlu0 %2320
      %2322 = vrot.lane.b32.xlu0 %v2307, 90
      %v2323 = vpop.permute.xlu0 %2322
      %2324 = vrot.lane.b32.xlu0 %v2308, 90
      %v2325 = vpop.permute.xlu0 %2324
      %2326 = vrot.lane.b32.xlu0 %v2309, 90
      %v2327 = vpop.permute.xlu0 %2326
      %v2328 = vsel %vm958, %v2321, %v2323
      %v2329 = vsel %vm958, %v2325, %v2327
      %v2332 = vmax.f32 %v2262, %v2328
      %v2333 = vmax.f32 %v2263, %v2329
      %2338 = vrot.lane.b32.xlu0 %v2312, 90
      %v2339 = vpop.permute.xlu0 %2338
      %2340 = vrot.lane.b32.xlu0 %v2313, 90
      %v2341 = vpop.permute.xlu0 %2340
      %2342 = vrot.lane.b32.xlu0 %v2314, 90
      %v2343 = vpop.permute.xlu0 %2342
      %2344 = vrot.lane.b32.xlu0 %v2315, 90
      %v2345 = vpop.permute.xlu0 %2344
      %v2346 = vsel %vm958, %v2339, %v2341
      %v2347 = vsel %vm958, %v2343, %v2345
      %v2350 = vmin.f32 %v2280, %v2346
      %v2351 = vmin.f32 %v2281, %v2347
      %2356 = vrot.lane.b32.xlu0 %v2300, 90
      %v2357 = vpop.permute.xlu0 %2356
      %2358 = vrot.lane.b32.xlu0 %v2301, 90
      %v2359 = vpop.permute.xlu0 %2358
      %2360 = vrot.lane.b32.xlu0 %v2302, 90
      %v2361 = vpop.permute.xlu0 %2360
      %2362 = vrot.lane.b32.xlu0 %v2303, 90
      %v2363 = vpop.permute.xlu0 %2362
      %v2364 = vsel %vm958, %v2357, %v2359
      %v2365 = vsel %vm958, %v2361, %v2363
      %2368 = vst.msk [vmem:[#allocation3 + $0x70] sm:$0xff] %vm565, %v2364
      %2369 = vst.msk [vmem:[#allocation3 + $0x78] sm:$0xff] %vm565, %v2365
      %v2370 = vld [vmem:[#allocation2] sm:$0xff]
      %v2371 = vld [vmem:[#allocation2 + $0x8] sm:$0xff]
      %v2372 = vld [vmem:[#allocation2 + $0x10] sm:$0xff]
      %v2373 = vld [vmem:[#allocation2 + $0x18] sm:$0xff]
      %v2374 = vld [vmem:[%s7 + $0x22] ss:$0 sm:$0xff]
      %v2375 = vld [vmem:[%s7 + $0x2a] ss:$0 sm:$0xff]
      %v2376 = vadd.f32 %v2370, %v2374
      %v2377 = vadd.f32 %v2371, %v2375
      %v2378 = vadd.f32 %v2372, %v2374
      %v2379 = vadd.f32 %v2373, %v2375
      %v2380 = vld [vmem:[%s8 + $0x22] ss:$0 sm:$0xff]
      %v2381 = vld [vmem:[%s8 + $0x2a] ss:$0 sm:$0xff]
      %v2382 = vadd.f32 %v2370, %v2380
      %v2383 = vadd.f32 %v2371, %v2381
      %v2384 = vadd.f32 %v2372, %v2380
      %v2385 = vadd.f32 %v2373, %v2381
      %2390 = vrot.lane.b32.xlu0 %v2376, 89
      %v2391 = vpop.permute.xlu0 %2390
      %2392 = vrot.lane.b32.xlu0 %v2377, 89
      %v2393 = vpop.permute.xlu0 %2392
      %2394 = vrot.lane.b32.xlu0 %v2378, 89
      %v2395 = vpop.permute.xlu0 %2394
      %2396 = vrot.lane.b32.xlu0 %v2379, 89
      %v2397 = vpop.permute.xlu0 %2396
      %v2398 = vsel %vm1029, %v2391, %v2393
      %v2399 = vsel %vm1029, %v2395, %v2397
      %v2402 = vmax.f32 %v2332, %v2398
      %v2403 = vmax.f32 %v2333, %v2399
      %2408 = vrot.lane.b32.xlu0 %v2382, 89
      %v2409 = vpop.permute.xlu0 %2408
      %2410 = vrot.lane.b32.xlu0 %v2383, 89
      %v2411 = vpop.permute.xlu0 %2410
      %2412 = vrot.lane.b32.xlu0 %v2384, 89
      %v2413 = vpop.permute.xlu0 %2412
      %2414 = vrot.lane.b32.xlu0 %v2385, 89
      %v2415 = vpop.permute.xlu0 %2414
      %v2416 = vsel %vm1029, %v2409, %v2411
      %v2417 = vsel %vm1029, %v2413, %v2415
      %v2420 = vmin.f32 %v2350, %v2416
      %v2421 = vmin.f32 %v2351, %v2417
      %2426 = vrot.lane.b32.xlu0 %v2370, 89
      %v2427 = vpop.permute.xlu0 %2426
      %2428 = vrot.lane.b32.xlu0 %v2371, 89
      %v2429 = vpop.permute.xlu0 %2428
      %2430 = vrot.lane.b32.xlu0 %v2372, 89
      %v2431 = vpop.permute.xlu0 %2430
      %2432 = vrot.lane.b32.xlu0 %v2373, 89
      %v2433 = vpop.permute.xlu0 %2432
      %v2434 = vsel %vm1029, %v2427, %v2429
      %v2435 = vsel %vm1029, %v2431, %v2433
      %2438 = vst.msk [vmem:[#allocation3 + $0x80] sm:$0xff] %vm565, %v2434
      %2439 = vst.msk [vmem:[#allocation3 + $0x88] sm:$0xff] %vm565, %v2435
      %v2440 = vld [vmem:[#allocation2] sm:$0xff]
      %v2441 = vld [vmem:[#allocation2 + $0x8] sm:$0xff]
      %v2442 = vld [vmem:[#allocation2 + $0x10] sm:$0xff]
      %v2443 = vld [vmem:[#allocation2 + $0x18] sm:$0xff]
      %v2444 = vld [vmem:[%s7 + $0x23] ss:$0 sm:$0xff]
      %v2445 = vld [vmem:[%s7 + $0x2b] ss:$0 sm:$0xff]
      %v2446 = vadd.f32 %v2440, %v2444
      %v2447 = vadd.f32 %v2441, %v2445
      %v2448 = vadd.f32 %v2442, %v2444
      %v2449 = vadd.f32 %v2443, %v2445
      %v2450 = vld [vmem:[%s8 + $0x23] ss:$0 sm:$0xff]
      %v2451 = vld [vmem:[%s8 + $0x2b] ss:$0 sm:$0xff]
      %v2452 = vadd.f32 %v2440, %v2450
      %v2453 = vadd.f32 %v2441, %v2451
      %v2454 = vadd.f32 %v2442, %v2450
      %v2455 = vadd.f32 %v2443, %v2451
      %2460 = vrot.lane.b32.xlu0 %v2446, 88
      %v2461 = vpop.permute.xlu0 %2460
      %2462 = vrot.lane.b32.xlu0 %v2447, 88
      %v2463 = vpop.permute.xlu0 %2462
      %2464 = vrot.lane.b32.xlu0 %v2448, 88
      %v2465 = vpop.permute.xlu0 %2464
      %2466 = vrot.lane.b32.xlu0 %v2449, 88
      %v2467 = vpop.permute.xlu0 %2466
      %v2468 = vsel %vm1100, %v2461, %v2463
      %v2469 = vsel %vm1100, %v2465, %v2467
      %v2472 = vmax.f32 %v2402, %v2468
      %v2473 = vmax.f32 %v2403, %v2469
      %2478 = vrot.lane.b32.xlu0 %v2452, 88
      %v2479 = vpop.permute.xlu0 %2478
      %2480 = vrot.lane.b32.xlu0 %v2453, 88
      %v2481 = vpop.permute.xlu0 %2480
      %2482 = vrot.lane.b32.xlu0 %v2454, 88
      %v2483 = vpop.permute.xlu0 %2482
      %2484 = vrot.lane.b32.xlu0 %v2455, 88
      %v2485 = vpop.permute.xlu0 %2484
      %v2486 = vsel %vm1100, %v2479, %v2481
      %v2487 = vsel %vm1100, %v2483, %v2485
      %v2490 = vmin.f32 %v2420, %v2486
      %v2491 = vmin.f32 %v2421, %v2487
      %v2492 = vld [vmem:[%s7 + $0x24] ss:$0 sm:$0xff]
      %v2493 = vld [vmem:[%s7 + $0x2c] ss:$0 sm:$0xff]
      %v2494 = vadd.f32 %v2440, %v2492
      %v2495 = vadd.f32 %v2441, %v2493
      %v2496 = vadd.f32 %v2442, %v2492
      %v2497 = vadd.f32 %v2443, %v2493
      %v2498 = vld [vmem:[%s8 + $0x24] ss:$0 sm:$0xff]
      %v2499 = vld [vmem:[%s8 + $0x2c] ss:$0 sm:$0xff]
      %v2500 = vadd.f32 %v2440, %v2498
      %v2501 = vadd.f32 %v2441, %v2499
      %v2502 = vadd.f32 %v2442, %v2498
      %v2503 = vadd.f32 %v2443, %v2499
      %2508 = vrot.lane.b32.xlu0 %v2494, 80
      %v2509 = vpop.permute.xlu0 %2508
      %2510 = vrot.lane.b32.xlu0 %v2495, 80
      %v2511 = vpop.permute.xlu0 %2510
      %2512 = vrot.lane.b32.xlu0 %v2496, 80
      %v2513 = vpop.permute.xlu0 %2512
      %2514 = vrot.lane.b32.xlu0 %v2497, 80
      %v2515 = vpop.permute.xlu0 %2514
      %v2516 = vsel %vm1149, %v2509, %v2511
      %v2517 = vsel %vm1149, %v2513, %v2515
      %v2520 = vmax.f32 %v2472, %v2516
      %v2521 = vmax.f32 %v2473, %v2517
      %2526 = vrot.lane.b32.xlu0 %v2500, 80
      %v2527 = vpop.permute.xlu0 %2526
      %2528 = vrot.lane.b32.xlu0 %v2501, 80
      %v2529 = vpop.permute.xlu0 %2528
      %2530 = vrot.lane.b32.xlu0 %v2502, 80
      %v2531 = vpop.permute.xlu0 %2530
      %2532 = vrot.lane.b32.xlu0 %v2503, 80
      %v2533 = vpop.permute.xlu0 %2532
      %v2534 = vsel %vm1149, %v2527, %v2529
      %v2535 = vsel %vm1149, %v2531, %v2533
      %v2538 = vmin.f32 %v2490, %v2534
      %v2539 = vmin.f32 %v2491, %v2535
      %v2540 = vld [vmem:[%s7 + $0x25] ss:$0 sm:$0xff]
      %v2541 = vld [vmem:[%s7 + $0x2d] ss:$0 sm:$0xff]
      %v2542 = vadd.f32 %v2440, %v2540
      %v2543 = vadd.f32 %v2441, %v2541
      %v2544 = vadd.f32 %v2442, %v2540
      %v2545 = vadd.f32 %v2443, %v2541
      %v2546 = vld [vmem:[%s8 + $0x25] ss:$0 sm:$0xff]
      %v2547 = vld [vmem:[%s8 + $0x2d] ss:$0 sm:$0xff]
      %v2548 = vadd.f32 %v2440, %v2546
      %v2549 = vadd.f32 %v2441, %v2547
      %v2550 = vadd.f32 %v2442, %v2546
      %v2551 = vadd.f32 %v2443, %v2547
      %2556 = vrot.lane.b32.xlu0 %v2542, 79
      %v2557 = vpop.permute.xlu0 %2556
      %2558 = vrot.lane.b32.xlu0 %v2543, 79
      %v2559 = vpop.permute.xlu0 %2558
      %2560 = vrot.lane.b32.xlu0 %v2544, 79
      %v2561 = vpop.permute.xlu0 %2560
      %2562 = vrot.lane.b32.xlu0 %v2545, 79
      %v2563 = vpop.permute.xlu0 %2562
      %v2564 = vsel %vm1198, %v2557, %v2559
      %v2565 = vsel %vm1198, %v2561, %v2563
      %v2568 = vmax.f32 %v2520, %v2564
      %v2569 = vmax.f32 %v2521, %v2565
      %2574 = vrot.lane.b32.xlu0 %v2548, 79
      %v2575 = vpop.permute.xlu0 %2574
      %2576 = vrot.lane.b32.xlu0 %v2549, 79
      %v2577 = vpop.permute.xlu0 %2576
      %2578 = vrot.lane.b32.xlu0 %v2550, 79
      %v2579 = vpop.permute.xlu0 %2578
      %2580 = vrot.lane.b32.xlu0 %v2551, 79
      %v2581 = vpop.permute.xlu0 %2580
      %v2582 = vsel %vm1198, %v2575, %v2577
      %v2583 = vsel %vm1198, %v2579, %v2581
      %v2586 = vmin.f32 %v2538, %v2582
      %v2587 = vmin.f32 %v2539, %v2583
      %v2588 = vld [vmem:[%s7 + $0x26] ss:$0 sm:$0xff]
      %v2589 = vld [vmem:[%s7 + $0x2e] ss:$0 sm:$0xff]
      %v2590 = vadd.f32 %v2440, %v2588
      %v2591 = vadd.f32 %v2441, %v2589
      %v2592 = vadd.f32 %v2442, %v2588
      %v2593 = vadd.f32 %v2443, %v2589
      %v2594 = vld [vmem:[%s8 + $0x26] ss:$0 sm:$0xff]
      %v2595 = vld [vmem:[%s8 + $0x2e] ss:$0 sm:$0xff]
      %v2596 = vadd.f32 %v2440, %v2594
      %v2597 = vadd.f32 %v2441, %v2595
      %v2598 = vadd.f32 %v2442, %v2594
      %v2599 = vadd.f32 %v2443, %v2595
      %2604 = vrot.lane.b32.xlu0 %v2590, 78
      %v2605 = vpop.permute.xlu0 %2604
      %2606 = vrot.lane.b32.xlu0 %v2591, 78
      %v2607 = vpop.permute.xlu0 %2606
      %2608 = vrot.lane.b32.xlu0 %v2592, 78
      %v2609 = vpop.permute.xlu0 %2608
      %2610 = vrot.lane.b32.xlu0 %v2593, 78
      %v2611 = vpop.permute.xlu0 %2610
      %v2612 = vsel %vm1247, %v2605, %v2607
      %v2613 = vsel %vm1247, %v2609, %v2611
      %v2616 = vmax.f32 %v2568, %v2612
      %v2617 = vmax.f32 %v2569, %v2613
      %2622 = vrot.lane.b32.xlu0 %v2596, 78
      %v2623 = vpop.permute.xlu0 %2622
      %2624 = vrot.lane.b32.xlu0 %v2597, 78
      %v2625 = vpop.permute.xlu0 %2624
      %2626 = vrot.lane.b32.xlu0 %v2598, 78
      %v2627 = vpop.permute.xlu0 %2626
      %2628 = vrot.lane.b32.xlu0 %v2599, 78
      %v2629 = vpop.permute.xlu0 %2628
      %v2630 = vsel %vm1247, %v2623, %v2625
      %v2631 = vsel %vm1247, %v2627, %v2629
      %v2634 = vmin.f32 %v2586, %v2630
      %v2635 = vmin.f32 %v2587, %v2631
      %v2636 = vld [vmem:[%s7 + $0x27] ss:$0 sm:$0xff]
      %v2637 = vld [vmem:[%s7 + $0x2f] ss:$0 sm:$0xff]
      %v2638 = vadd.f32 %v2440, %v2636
      %v2639 = vadd.f32 %v2441, %v2637
      %v2640 = vadd.f32 %v2442, %v2636
      %v2641 = vadd.f32 %v2443, %v2637
      %v2642 = vld [vmem:[%s8 + $0x27] ss:$0 sm:$0xff]
      %v2643 = vld [vmem:[%s8 + $0x2f] ss:$0 sm:$0xff]
      %v2644 = vadd.f32 %v2440, %v2642
      %v2645 = vadd.f32 %v2441, %v2643
      %v2646 = vadd.f32 %v2442, %v2642
      %v2647 = vadd.f32 %v2443, %v2643
      %2652 = vrot.lane.b32.xlu0 %v2638, 77
      %v2653 = vpop.permute.xlu0 %2652
      %2654 = vrot.lane.b32.xlu0 %v2639, 77
      %v2655 = vpop.permute.xlu0 %2654
      %2656 = vrot.lane.b32.xlu0 %v2640, 77
      %v2657 = vpop.permute.xlu0 %2656
      %2658 = vrot.lane.b32.xlu0 %v2641, 77
      %v2659 = vpop.permute.xlu0 %2658
      %v2660 = vsel %vm1296, %v2653, %v2655
      %v2661 = vsel %vm1296, %v2657, %v2659
      %v2664 = vmax.f32 %v2616, %v2660
      %v2665 = vmax.f32 %v2617, %v2661
      %2670 = vrot.lane.b32.xlu0 %v2644, 77
      %v2671 = vpop.permute.xlu0 %2670
      %2672 = vrot.lane.b32.xlu0 %v2645, 77
      %v2673 = vpop.permute.xlu0 %2672
      %2674 = vrot.lane.b32.xlu0 %v2646, 77
      %v2675 = vpop.permute.xlu0 %2674
      %2676 = vrot.lane.b32.xlu0 %v2647, 77
      %v2677 = vpop.permute.xlu0 %2676
      %v2678 = vsel %vm1296, %v2671, %v2673
      %v2679 = vsel %vm1296, %v2675, %v2677
      %v2682 = vmin.f32 %v2634, %v2678
      %v2683 = vmin.f32 %v2635, %v2679
      %v2684 = vld [vmem:[%s7 + $0x30] ss:$0 sm:$0xff]
      %v2685 = vld [vmem:[%s7 + $0x38] ss:$0 sm:$0xff]
      %v2686 = vadd.f32 %v2440, %v2684
      %v2687 = vadd.f32 %v2441, %v2685
      %v2688 = vadd.f32 %v2442, %v2684
      %v2689 = vadd.f32 %v2443, %v2685
      %v2690 = vld [vmem:[%s8 + $0x30] ss:$0 sm:$0xff]
      %v2691 = vld [vmem:[%s8 + $0x38] ss:$0 sm:$0xff]
      %v2692 = vadd.f32 %v2440, %v2690
      %v2693 = vadd.f32 %v2441, %v2691
      %v2694 = vadd.f32 %v2442, %v2690
      %v2695 = vadd.f32 %v2443, %v2691
      %2700 = vrot.lane.b32.xlu0 %v2686, 76
      %v2701 = vpop.permute.xlu0 %2700
      %2702 = vrot.lane.b32.xlu0 %v2687, 76
      %v2703 = vpop.permute.xlu0 %2702
      %2704 = vrot.lane.b32.xlu0 %v2688, 76
      %v2705 = vpop.permute.xlu0 %2704
      %2706 = vrot.lane.b32.xlu0 %v2689, 76
      %v2707 = vpop.permute.xlu0 %2706
      %v2708 = vsel %vm1345, %v2701, %v2703
      %v2709 = vsel %vm1345, %v2705, %v2707
      %v2712 = vmax.f32 %v2664, %v2708
      %v2713 = vmax.f32 %v2665, %v2709
      %2718 = vrot.lane.b32.xlu0 %v2692, 76
      %v2719 = vpop.permute.xlu0 %2718
      %2720 = vrot.lane.b32.xlu0 %v2693, 76
      %v2721 = vpop.permute.xlu0 %2720
      %2722 = vrot.lane.b32.xlu0 %v2694, 76
      %v2723 = vpop.permute.xlu0 %2722
      %2724 = vrot.lane.b32.xlu0 %v2695, 76
      %v2725 = vpop.permute.xlu0 %2724
      %v2726 = vsel %vm1345, %v2719, %v2721
      %v2727 = vsel %vm1345, %v2723, %v2725
      %v2730 = vmin.f32 %v2682, %v2726
      %v2731 = vmin.f32 %v2683, %v2727
      %v2732 = vld [vmem:[%s1] sm:$0xff]
      %v2733 = vld [vmem:[%s1 + $0x8] sm:$0xff]
      %v2734 = vld [vmem:[%s1 + $0x10] sm:$0x33]
      %v2735 = vld [vmem:[#allocation3] sm:$0xff]
      %v2736 = vld [vmem:[#allocation3 + $0x8] sm:$0xff]
      %v2737 = vld [vmem:[#allocation3 + $0x10] sm:$0xff]
      %v2738 = vld [vmem:[#allocation3 + $0x18] sm:$0xff]
      %v2739 = vld [vmem:[#allocation3 + $0x20] sm:$0xff]
      %v2740 = vld [vmem:[#allocation3 + $0x28] sm:$0xff]
      %v2741 = vld [vmem:[#allocation3 + $0x30] sm:$0xff]
      %v2742 = vld [vmem:[#allocation3 + $0x38] sm:$0xff]
      %v2743 = vld [vmem:[#allocation3 + $0x40] sm:$0xff]
      %v2744 = vld [vmem:[#allocation3 + $0x48] sm:$0xff]
      %v2745 = vld [vmem:[#allocation3 + $0x50] sm:$0xff]
      %v2746 = vld [vmem:[#allocation3 + $0x58] sm:$0xff]
      %v2747 = vld [vmem:[#allocation3 + $0x60] sm:$0xff]
      %v2748 = vld [vmem:[#allocation3 + $0x68] sm:$0xff]
      %v2749 = vld [vmem:[#allocation3 + $0x70] sm:$0xff]
      %v2750 = vld [vmem:[#allocation3 + $0x78] sm:$0xff]
      %v2751 = vld [vmem:[#allocation3 + $0x80] sm:$0xff]
      %v2752 = vld [vmem:[#allocation3 + $0x88] sm:$0xff]
      %v2753 = vpack.c.bf16 %v2736, %v2735
      %v2754 = vpack.c.bf16 %v2738, %v2737
      %v2755 = vpack.c.bf16 %v2740, %v2739
      %v2756 = vpack.c.bf16 %v2742, %v2741
      %v2757 = vpack.c.bf16 %v2744, %v2743
      %v2758 = vpack.c.bf16 %v2746, %v2745
      %v2759 = vpack.c.bf16 %v2748, %v2747
      %v2760 = vpack.c.bf16 %v2750, %v2749
      %v2761 = vpack.c.bf16 %v2752, %v2751
      %v2762 = vld [vmem:[%s2] sm:$0xff]
      %v2763 = vld [vmem:[%s2 + $0x8] sm:$0xff]
      %v2764 = vld [vmem:[%s2 + $0x10] sm:$0xf]
      %2766 = vset.pattern.permute.xlu0 0
      %2767 = vperm.xlu0 %2766, %v2762
      %v2768 = vpop.permute.xlu0 %2767
      %2771 = vset.pattern.permute.xlu0 0
      %2772 = vperm.xlu0 %2771, %v2763
      %v2773 = vpop.permute.xlu0 %2772
      %2776 = vset.pattern.permute.xlu0 0
      %2777 = vperm.xlu0 %2776, %v2764
      %v2778 = vpop.permute.xlu0 %2777
      %v2783 = vunpack.c.l.b16 %v2732
      %v2784 = vunpack.c.h.b16 %v2732
      %v2785 = vunpack.c.l.b16 %v2733
      %v2786 = vunpack.c.h.b16 %v2733
      %v2787 = vunpack.c.l.b16 %v2734
      %v2788 = vunpack.c.h.b16 %v2734
      %v2789 = vpack.c.b16 %v2785, %v2783
      %v2790 = vpack.c.b16 %v2786, %v2784
      %v2791 = vpack.c.b16 %v2787, %v2787
      %v2792 = vpack.c.b16 %v2788, %v2788
      %v2796 = vsel %vm1433, %v2790, 0
      %v2799 = vsel %vm1433, %v2792, 0
      %2801 = vmatpush.bf16.msra.mxu0 %v2760
      %2802 = vmatpush.bf16.msra.mxu0 %v2759
      %2803 = vmatpush.bf16.msra.mxu0 %v2758
      %2804 = vmatpush.bf16.msra.mxu0 %v2757
      %2805 = vmatpush.bf16.msra.mxu0 %v2756
      %2806 = vmatpush.bf16.msra.mxu0 %v2755
      %2807 = vmatpush.bf16.msra.mxu0 %v2754
      %2808 = vmatpush.bf16.msra.mxu0 %v2753
      %2809 = vmatmul.bf16.gmra.mxu0 %v2789
      %v2810 = vpop.f32.mrf.mxu0
      %v2811 = vadd.f32 %v2768, %v2810
      %v2812 = vpop.f32.mrf.mxu0
      %v2813 = vadd.f32 %v2773, %v2812
      %2814 = vmatmul.bf16.gmra.mxu0 %v2791
      %v2815 = vpop.f32.mrf.mxu0
      %v2816 = vadd.f32 %v2778, %v2815
      %v2817 = vpop.f32.mrf.mxu0
      %2818 = vdwg.mxu0
      %2819 = vmatpush.bf16.msra.mxu0 0
      %2820 = vmatpush.bf16.msra.mxu0 0
      %2821 = vmatpush.bf16.msra.mxu0 0
      %2822 = vmatpush.bf16.msra.mxu0 0
      %2823 = vmatpush.bf16.msra.mxu0 0
      %2824 = vmatpush.bf16.msra.mxu0 0
      %2825 = vmatpush.bf16.msra.mxu0 0
      %2826 = vmatpush.bf16.msra.mxu0 %v2761
      %2827 = vmatmul.bf16.gmra.mxu0 %v2796
      %v2828 = vpop.f32.mrf.mxu0
      %v2829 = vadd.f32 %v2811, %v2828
      %v2830 = vpop.f32.mrf.mxu0
      %v2831 = vadd.f32 %v2813, %v2830
      %2832 = vmatmul.bf16.gmra.mxu0 %v2799
      %v2833 = vpop.f32.mrf.mxu0
      %v2834 = vadd.f32 %v2816, %v2833
      %v2835 = vpop.f32.mrf.mxu0
      %2836 = vdwg.mxu0
      %v2837 = vmul.f32 %v2829, %v1477
      %2839 = vrot.lane.b32.xlu0 %v2837, 26
      %v2840 = vpop.permute.xlu0 %2839
      %2842 = vst.msk [vmem:[#allocation4] sm:$0xf] %vm1484, %v2840
      %v2843 = vld [vmem:[#allocation4] sm:$0xf]
      %2845 = vst [vmem:[#allocation1] ss:$2 sm:$0xff] %v2843
      %v2846 = vld.sshfl [vmem:[#allocation1] sm:$0xff pattern:$0x75316420]
      %2847 = vrot.lane.b32.xlu0 %v2846, 115
      %v2848 = vpop.permute.xlu0 %2847
      %2850 = vst.msk [vmem:[#allocation3] sm:$0xf] %vm1493, %v2848
      %v2851 = vld [vmem:[#allocation4] sm:$0xf]
      %2853 = vst [vmem:[#allocation1] ss:$2 sm:$0xff] %v2851
      %v2854 = vld.sshfl [vmem:[#allocation1] sm:$0xff pattern:$0x75316420]
      %2855 = vrot.lane.b32.xlu0 %v2854, 114
      %v2856 = vpop.permute.xlu0 %2855
      %2858 = vst.msk [vmem:[#allocation3 + $0x4] sm:$0xf] %vm1493, %v2856
      %v2859 = vld [vmem:[#allocation4] sm:$0xf]
      %2861 = vst [vmem:[#allocation1] ss:$2 sm:$0xff] %v2859
      %v2862 = vld.sshfl [vmem:[#allocation1] sm:$0xff pattern:$0x75316420]
      %2863 = vrot.lane.b32.xlu0 %v2862, 113
      %v2864 = vpop.permute.xlu0 %2863
      %2866 = vst.msk [vmem:[#allocation3 + $0x8] sm:$0xf] %vm1493, %v2864
      %v2867 = vld [vmem:[#allocation4] sm:$0xf]
      %2869 = vst [vmem:[#allocation1] ss:$2 sm:$0xff] %v2867
      %v2870 = vld.sshfl [vmem:[#allocation1] sm:$0xff pattern:$0x75316420]
      %2871 = vrot.lane.b32.xlu0 %v2870, 103
      %v2872 = vpop.permute.xlu0 %2871
      %2874 = vst.msk [vmem:[#allocation3 + $0xc] sm:$0xf] %vm1493, %v2872
      %v2875 = vld [vmem:[#allocation4] sm:$0xf]
      %2877 = vst [vmem:[#allocation1] ss:$2 sm:$0xff] %v2875
      %v2878 = vld.sshfl [vmem:[#allocation1] sm:$0xff pattern:$0x75316420]
      %2879 = vrot.lane.b32.xlu0 %v2878, 102
      %v2880 = vpop.permute.xlu0 %2879
      %2882 = vst.msk [vmem:[#allocation3 + $0x10] sm:$0xf] %vm1493, %v2880
      %v2883 = vld [vmem:[#allocation4] sm:$0xf]
      %2885 = vst [vmem:[#allocation1] ss:$2 sm:$0xff] %v2883
      %v2886 = vld.sshfl [vmem:[#allocation1] sm:$0xff pattern:$0x75316420]
      %2887 = vrot.lane.b32.xlu0 %v2886, 101
      %v2888 = vpop.permute.xlu0 %2887
      %2890 = vst.msk [vmem:[#allocation3 + $0x14] sm:$0xf] %vm1493, %v2888
      %v2891 = vld [vmem:[#allocation4] sm:$0xff]
      %2893 = vst [vmem:[#allocation1] ss:$2 sm:$0xff] %v2891
      %v2894 = vld.sshfl [vmem:[#allocation1] sm:$0xff pattern:$0x75316420]
      %v2895 = vld.sshfl [vmem:[#allocation1 + $0x8] sm:$0xff pattern:$0x75316420]
      %2896 = vrot.lane.b32.xlu0 %v2894, 91
      %v2897 = vpop.permute.xlu0 %2896
      %2898 = vrot.lane.b32.xlu0 %v2895, 91
      %v2899 = vpop.permute.xlu0 %2898
      %v2900 = vsel %vm887, %v2897, %v2899
      %2902 = vst.msk [vmem:[#allocation3 + $0x18] sm:$0xf] %vm1493, %v2900
      %v2903 = vld [vmem:[#allocation4] sm:$0xff]
      %2905 = vst [vmem:[#allocation1] ss:$2 sm:$0xff] %v2903
      %v2906 = vld.sshfl [vmem:[#allocation1] sm:$0xff pattern:$0x75316420]
      %v2907 = vld.sshfl [vmem:[#allocation1 + $0x8] sm:$0xff pattern:$0x75316420]
      %2908 = vrot.lane.b32.xlu0 %v2906, 90
      %v2909 = vpop.permute.xlu0 %2908
      %2910 = vrot.lane.b32.xlu0 %v2907, 90
      %v2911 = vpop.permute.xlu0 %2910
      %v2912 = vsel %vm958, %v2909, %v2911
      %2914 = vst.msk [vmem:[#allocation3 + $0x1c] sm:$0xf] %vm1493, %v2912
      %v2915 = vld [vmem:[#allocation4] sm:$0xff]
      %2917 = vst [vmem:[#allocation1] ss:$2 sm:$0xff] %v2915
      %v2918 = vld.sshfl [vmem:[#allocation1] sm:$0xff pattern:$0x75316420]
      %v2919 = vld.sshfl [vmem:[#allocation1 + $0x8] sm:$0xff pattern:$0x75316420]
      %2920 = vrot.lane.b32.xlu0 %v2918, 89
      %v2921 = vpop.permute.xlu0 %2920
      %2922 = vrot.lane.b32.xlu0 %v2919, 89
      %v2923 = vpop.permute.xlu0 %2922
      %v2924 = vsel %vm1029, %v2921, %v2923
      %2926 = vst.msk [vmem:[#allocation3 + $0x20] sm:$0xf] %vm1493, %v2924
      %v2927 = vld [vmem:[%s3] sm:$0x3]
      %v2928 = vld [vmem:[#allocation3] sm:$0xff]
      %v2929 = vld [vmem:[#allocation3 + $0x8] sm:$0xff]
      %v2930 = vld [vmem:[#allocation3 + $0x10] sm:$0xff]
      %v2931 = vld [vmem:[#allocation3 + $0x18] sm:$0xff]
      %v2932 = vld [vmem:[#allocation3 + $0x20] sm:$0xf]
      %v2933 = vpack.c.bf16 %v2929, %v2928
      %v2934 = vpack.c.bf16 %v2931, %v2930
      %v2935 = vpack.c.bf16 %v2932, %v2932
      %v2936 = vld [vmem:[%s4] sm:$0xf]
      %2938 = vset.pattern.permute.xlu0 0
      %2939 = vperm.xlu0 %2938, %v2936
      %v2940 = vpop.permute.xlu0 %2939
      %v2943 = vsel %vm1586, %v2927, 0
      %v2946 = vsel %vm1590, %v2935, 0
      %2948 = vmatpush.bf16.msra.mxu0 0
      %2949 = vmatpush.bf16.msra.mxu0 0
      %2950 = vmatpush.bf16.msra.mxu0 0
      %2951 = vmatpush.bf16.msra.mxu0 0
      %2952 = vmatpush.bf16.msra.mxu0 0
      %2953 = vmatpush.bf16.msra.mxu0 %v2946
      %2954 = vmatpush.bf16.msra.mxu0 %v2934
      %2955 = vmatpush.bf16.msra.mxu0 %v2933
      %2956 = vmatmul.bf16.gmra.mxu0 %v2943
      %v2957 = vpop.f32.mrf.mxu0
      %v2958 = vadd.f32 %v2940, %v2957
      %v2959 = vpop.f32.mrf.mxu0
      %2960 = vdwg.mxu0
      %v2961 = vmul.f32 %v2958, %v1477
      %2963 = vrot.lane.b32.xlu0 %v2961, 26
      %v2964 = vpop.permute.xlu0 %2963
      %2966 = vst.msk [vmem:[#allocation5] sm:$0xf] %vm1484, %v2964
      %v2967 = vld [vmem:[#allocation5] sm:$0xf]
      %2969 = vst [vmem:[#allocation1] ss:$2 sm:$0xff] %v2967
      %v2970 = vld.sshfl [vmem:[#allocation1] sm:$0xff pattern:$0x75316420]
      %2971 = vrot.lane.b32.xlu0 %v2970, 115
      %v2972 = vpop.permute.xlu0 %2971
      %2974 = vst.msk [vmem:[#allocation3] sm:$0xf] %vm1493, %v2972
      %v2975 = vld [vmem:[#allocation5] sm:$0xf]
      %2977 = vst [vmem:[#allocation1] ss:$2 sm:$0xff] %v2975
      %v2978 = vld.sshfl [vmem:[#allocation1] sm:$0xff pattern:$0x75316420]
      %2979 = vrot.lane.b32.xlu0 %v2978, 114
      %v2980 = vpop.permute.xlu0 %2979
      %2982 = vst.msk [vmem:[#allocation3 + $0x4] sm:$0xf] %vm1493, %v2980
      %v2983 = vld [vmem:[#allocation5] sm:$0xf]
      %2985 = vst [vmem:[#allocation1] ss:$2 sm:$0xff] %v2983
      %v2986 = vld.sshfl [vmem:[#allocation1] sm:$0xff pattern:$0x75316420]
      %2987 = vrot.lane.b32.xlu0 %v2986, 113
      %v2988 = vpop.permute.xlu0 %2987
      %2990 = vst.msk [vmem:[#allocation3 + $0x8] sm:$0xf] %vm1493, %v2988
      %v2991 = vld [vmem:[#allocation5] sm:$0xf]
      %2993 = vst [vmem:[#allocation1] ss:$2 sm:$0xff] %v2991
      %v2994 = vld.sshfl [vmem:[#allocation1] sm:$0xff pattern:$0x75316420]
      %2995 = vrot.lane.b32.xlu0 %v2994, 103
      %v2996 = vpop.permute.xlu0 %2995
      %2998 = vst.msk [vmem:[#allocation3 + $0xc] sm:$0xf] %vm1493, %v2996
      %v2999 = vld [vmem:[#allocation5] sm:$0xf]
      %3001 = vst [vmem:[#allocation1] ss:$2 sm:$0xff] %v2999
      %v3002 = vld.sshfl [vmem:[#allocation1] sm:$0xff pattern:$0x75316420]
      %3003 = vrot.lane.b32.xlu0 %v3002, 102
      %v3004 = vpop.permute.xlu0 %3003
      %3006 = vst.msk [vmem:[#allocation3 + $0x10] sm:$0xf] %vm1493, %v3004
      %v3007 = vld [vmem:[#allocation5] sm:$0xf]
      %3009 = vst [vmem:[#allocation1] ss:$2 sm:$0xff] %v3007
      %v3010 = vld.sshfl [vmem:[#allocation1] sm:$0xff pattern:$0x75316420]
      %3011 = vrot.lane.b32.xlu0 %v3010, 101
      %v3012 = vpop.permute.xlu0 %3011
      %3014 = vst.msk [vmem:[#allocation3 + $0x14] sm:$0xf] %vm1493, %v3012
      %v3015 = vld [vmem:[#allocation5] sm:$0xff]
      %3017 = vst [vmem:[#allocation1] ss:$2 sm:$0xff] %v3015
      %v3018 = vld.sshfl [vmem:[#allocation1] sm:$0xff pattern:$0x75316420]
      %v3019 = vld.sshfl [vmem:[#allocation1 + $0x8] sm:$0xff pattern:$0x75316420]
      %3020 = vrot.lane.b32.xlu0 %v3018, 91
      %v3021 = vpop.permute.xlu0 %3020
      %3022 = vrot.lane.b32.xlu0 %v3019, 91
      %v3023 = vpop.permute.xlu0 %3022
      %v3024 = vsel %vm887, %v3021, %v3023
      %3026 = vst.msk [vmem:[#allocation3 + $0x18] sm:$0xf] %vm1493, %v3024
      %v3027 = vld [vmem:[#allocation5] sm:$0xff]
      %3029 = vst [vmem:[#allocation1] ss:$2 sm:$0xff] %v3027
      %v3030 = vld.sshfl [vmem:[#allocation1] sm:$0xff pattern:$0x75316420]
      %v3031 = vld.sshfl [vmem:[#allocation1 + $0x8] sm:$0xff pattern:$0x75316420]
      %3032 = vrot.lane.b32.xlu0 %v3030, 90
      %v3033 = vpop.permute.xlu0 %3032
      %3034 = vrot.lane.b32.xlu0 %v3031, 90
      %v3035 = vpop.permute.xlu0 %3034
      %v3036 = vsel %vm958, %v3033, %v3035
      %3038 = vst.msk [vmem:[#allocation3 + $0x1c] sm:$0xf] %vm1493, %v3036
      %v3039 = vld [vmem:[#allocation5] sm:$0xff]
      %3041 = vst [vmem:[#allocation1] ss:$2 sm:$0xff] %v3039
      %v3042 = vld.sshfl [vmem:[#allocation1] sm:$0xff pattern:$0x75316420]
      %v3043 = vld.sshfl [vmem:[#allocation1 + $0x8] sm:$0xff pattern:$0x75316420]
      %3044 = vrot.lane.b32.xlu0 %v3042, 89
      %v3045 = vpop.permute.xlu0 %3044
      %3046 = vrot.lane.b32.xlu0 %v3043, 89
      %v3047 = vpop.permute.xlu0 %3046
      %v3048 = vsel %vm1029, %v3045, %v3047
      %3050 = vst.msk [vmem:[#allocation3 + $0x20] sm:$0xf] %vm1493, %v3048
      %v3051 = vld [vmem:[%s5] sm:$0xf]
      %v3052 = vld [vmem:[#allocation3] sm:$0xff]
      %v3053 = vld [vmem:[#allocation3 + $0x8] sm:$0xff]
      %v3054 = vld [vmem:[#allocation3 + $0x10] sm:$0xff]
      %v3055 = vld [vmem:[#allocation3 + $0x18] sm:$0xff]
      %v3056 = vld [vmem:[#allocation3 + $0x20] sm:$0xf]
      %v3057 = vpack.c.bf16 %v3053, %v3052
      %v3058 = vpack.c.bf16 %v3055, %v3054
      %v3059 = vpack.c.bf16 %v3056, %v3056
      %v3060 = vld [vmem:[%s6] sm:$0xff]
      %3062 = vset.pattern.permute.xlu0 0
      %3063 = vperm.xlu0 %3062, %v3060
      %v3064 = vpop.permute.xlu0 %3063
      %v3067 = vsel %vm1586, %v3051, 0
      %v3070 = vsel %vm1590, %v3059, 0
      %3072 = vmatpush.bf16.msra.mxu0 0
      %3073 = vmatpush.bf16.msra.mxu0 0
      %3074 = vmatpush.bf16.msra.mxu0 0
      %3075 = vmatpush.bf16.msra.mxu0 0
      %3076 = vmatpush.bf16.msra.mxu0 0
      %3077 = vmatpush.bf16.msra.mxu0 %v3070
      %3078 = vmatpush.bf16.msra.mxu0 %v3058
      %3079 = vmatpush.bf16.msra.mxu0 %v3057
      %3080 = vmatmul.bf16.gmra.mxu0 %v3067
      %v3081 = vpop.f32.mrf.mxu0
      %v3082 = vadd.f32 %v3064, %v3081
      %v3083 = vpop.f32.mrf.mxu0
      %3084 = vdwg.mxu0
      %v3086 = vrot.slane %v2958, 4
      %v3088 = vsel %vm375, %v2829, %v3086
      %v3092 = vrot.slane %v2829, 4
      %v3093 = vrot.slane %v2831, 4
      %v3094 = vsel %vm375, %v3092, %v3093
      %v3095 = vrot.slane %v2834, 4
      %v3096 = vsel %vm375, %v3093, %v3095
      %v3099 = vadd.f32 %v3088, %v3094
      %v3100 = vadd.f32 %v3082, %v3096
      %v3101 = vsub.f32 %v2712, %v2730
      %v3102 = vsub.f32 %v2713, %v2731
      %v3103 = vadd.f32 %v3101, %v3099
      %v3104 = vadd.f32 %v3102, %v3100
      %s3105 = scalar_lea.vmem %s366, 16
      %3106 = vst.msk [vmem:[%s3105] sm:$0xff] %vm565, %v3103
      %3107 = vst.msk [vmem:[%s3105 + $0x8] sm:$0xff] %vm565, %v3104
      %s3108 = smul.u32 2, %s21
      %p3109 = scmp.lt.s32.totalorder %s3108, 7
      %s3110 = scalar_select %p3109, %s3108, 7
      %s3111 = smul.addr %s3110, 2
      %s3112 = smul.addr %s3111, 8
      %s3113 = scalar_lea.vmem %s10, %s3112
      // Predicated region
      $region61: #{mpmrm_forward.4} parent=59 // pred_check
        %p3114 = pneg %p254
      $region62: #{mpmrm_forward.4} parent=59 // pred_check_branch
        %3116 = sbr.rel (%p3114) target = $region64
      $region63: #{mpmrm_forward.4} parent=59 // pred_region
        %s3117 = smul.u32 2, %s21
      $region64: #{mpmrm_forward.4} parent=59 // pred_fallthru
        _
    $region60: #{mpmrm_forward.4} parent=5 // pred_fallthru
      _
    %p3118 = scmp.le.s32.totalorder 2, %s16
    // Predicated region
    $region65: #{mpmrm_forward.4} parent=5 // pred_check
      %p3119 = pneg %p3118
    $region66: #{mpmrm_forward.4} parent=5 // pred_check_branch
      %3121 = sbr.rel (%p3119) target = $region68
    $region67: #{mpmrm_forward.4} parent=5 // pred_region
      %s3122 = ssub.s32 %s16, 2
      // Predicated region
      $region69: #{mpmrm_forward.4} parent=67 // pred_check
        %p3123 = pneg %p260
      $region70: #{mpmrm_forward.4} parent=67 // pred_check_branch
        %3125 = sbr.rel (%p3123) target = $region72
      $region71: #{mpmrm_forward.4} parent=67 // pred_region
        %s3126 = smul.u32 2, %s22
        %p3127 = scmp.lt.s32.totalorder %s3126, 7
        %s3128 = scalar_select %p3127, %s3126, 7
        %s3129 = smul.addr %s3128, 2
        %s3130 = smul.addr %s3129, 8
        %s3131 = scalar_lea.vmem %s10, %s3130
      $region72: #{mpmrm_forward.4} parent=67 // pred_fallthru
        _
    $region68: #{mpmrm_forward.4} parent=5 // pred_fallthru
      _
  $region6: #{mpmrm_forward.4} parent=0 // loop_footer
    %s20 = sadd.s32 1, %s16
  $region7: #{mpmrm_forward.4} parent=0 // loop_footer_branch
    %15 = sbr.rel target = $region3
  $region8: #{mpmrm_forward.4} parent=0 // loop_exit
    _

</llo_original>
